<compile_context>
chip_gen: v7x
topology: tpu7x:2x2x1
jax: 0.10.0
libtpu: 0.0.40
codegen_flags: <defaults>
</compile_context>

<pallas_src>
import math
import functools

import jax
import jax.numpy as jnp
from jax.experimental import pallas as pl
from jax.experimental.pallas import tpu as pltpu


# ----------------------------------------------------------------------------
# Model configuration (small shapes consistent with the module)
# ----------------------------------------------------------------------------
CFG = dict(
    img_size=16,
    patch_size=4,        # -> num_patches = 16
    en_emb_dim=32,
    de_emb_dim=32,
    out_dim=48,          # patch_size**2 * 3
    de_num_layers=2,
    de_num_heads=4,
    qkv_bias=True,
    mlp_ratio=4.0,
    mask_ratio=0.75,     # -> len_keep = 4, masked = 12
)


# ----------------------------------------------------------------------------
# Fused Pallas kernel: full decoder forward (incl. gathers) in one call
# ----------------------------------------------------------------------------
def _mae_decoder_kernel(
    x_enc_ref, ids_shuffle_ref, ids_restore_ref, pos_ref, mtok_ref,
    emb_w_ref, emb_b_ref,
    ln1_g_ref, ln1_b_ref, wq_ref, bq_ref, wkv_ref, bkv_ref, wo_ref, bo_ref,
    ln2_g_ref, ln2_b_ref, fc1_w_ref, fc1_b_ref, fc2_w_ref, fc2_b_ref,
    dn_g_ref, dn_b_ref, pred_w_ref, pred_b_ref,
    out_ref,
    *, num_layers, num_heads, len_keep,
):
    f32 = jnp.float32
    B, Nk, Cen = x_enc_ref.shape
    P, C = pos_ref.shape
    Nq = P - Nk
    H = num_heads
    dh = C // H
    scale = 1.0 / math.sqrt(dh)
    Dout = pred_w_ref.shape[-1]

    def ln(x2d, g, b, eps=1e-5):
        x2d = x2d.astype(f32)
        mean = jnp.mean(x2d, axis=-1, keepdims=True)
        var = jnp.mean(jnp.square(x2d - mean), axis=-1, keepdims=True)
        return (x2d - mean) * jax.lax.rsqrt(var + eps) * g + b

    def linear(x2d, w, b):
        return jnp.dot(x2d, w, preferred_element_type=f32) + b

    pos = pos_ref[...].astype(f32)                                    # (P, C)

    # ---- positional-embedding gathers, done in-kernel as one-hot matmuls ----
    ids = ids_shuffle_ref[...]                                        # (B, P) int32
    ids_keep = ids[:, :len_keep]                                      # (B, Nk)
    ids_masked = ids[:, len_keep:]                                    # (B, Nq)
    iota_q = jax.lax.broadcasted_iota(jnp.int32, (B, Nq, P), 2)
    iota_k = jax.lax.broadcasted_iota(jnp.int32, (B, Nk, P), 2)
    oh_q = jnp.where(iota_q == ids_masked[:, :, None], 1.0, 0.0).astype(f32)
    oh_k = jnp.where(iota_k == ids_keep[:, :, None], 1.0, 0.0).astype(f32)
    qpos = jnp.dot(oh_q.reshape(B * Nq, P), pos,
                   preferred_element_type=f32).reshape(B, Nq, C)      # query_pos
    mpos = jnp.dot(oh_k.reshape(B * Nk, P), pos,
                   preferred_element_type=f32).reshape(B, Nk, C)      # memory_pos

    # ---- decoder_embed ----
    x = linear(x_enc_ref[...].reshape(B * Nk, Cen), emb_w_ref[...], emb_b_ref[...])
    x = x.reshape(B, Nk, C)

    # ---- mask tokens ----
    q = jnp.broadcast_to(mtok_ref[...], (B * Nq, C)).reshape(B, Nq, C)

    for l in range(num_layers):
        # Positional adds fused into the block (the reference re-adds them every layer).
        q = q + qpos
        x = x + mpos

        # ---- cross attention (pre-norm on queries) ----
        qn = ln(q.reshape(B * Nq, C), ln1_g_ref[l], ln1_b_ref[l])
        qp = linear(qn, wq_ref[l], bq_ref[l]).reshape(B, Nq, C)
        kv = linear(x.reshape(B * Nk, C), wkv_ref[l], bkv_ref[l])      # fused K|V proj
        kp = kv[:, :C].reshape(B, Nk, C)
        vp = kv[:, C:].reshape(B, Nk, C)

        head_outs = []
        for h in range(H):  # static unrolled head loop; stays entirely in VMEM/vregs
            lo, hi = h * dh, (h + 1) * dh
            s = jnp.einsum("bqd,bkd->bqk", qp[:, :, lo:hi], kp[:, :, lo:hi],
                           preferred_element_type=f32) * scale
            s = s - jnp.max(s, axis=-1, keepdims=True)
            p = jnp.exp(s)
            p = p * pl.reciprocal(jnp.sum(p, axis=-1, keepdims=True), approx=True)
            head_outs.append(jnp.einsum("bqk,bkd->bqd", p, vp[:, :, lo:hi],
                                        preferred_element_type=f32))
        attn = jnp.concatenate(head_outs, axis=-1)                     # (B, Nq, C)

        attn = linear(attn.reshape(B * Nq, C), wo_ref[l], bo_ref[l])
        q = q + attn.reshape(B, Nq, C)        # residual (dropout: inference no-op)

        # ---- MLP ----
        qn2 = ln(q.reshape(B * Nq, C), ln2_g_ref[l], ln2_b_ref[l])
        # TODO(synk): PyTorch nn.GELU() defaults to exact erf GELU; tanh approx used here.
        h1 = jax.nn.gelu(linear(qn2, fc1_w_ref[l], fc1_b_ref[l]), approximate=True)
        h2 = linear(h1, fc2_w_ref[l], fc2_b_ref[l])
        q = q + h2.reshape(B, Nq, C)          # residual

    # ---- decoder_norm (mask tokens only) + decoder_pred (token-wise linear) ----
    qn = ln(q.reshape(B * Nq, C), dn_g_ref[...], dn_b_ref[...])
    pred_q = linear(qn, pred_w_ref[...], pred_b_ref[...]).reshape(B, Nq, Dout)
    pred_x = linear(x.reshape(B * Nk, C), pred_w_ref[...], pred_b_ref[...]).reshape(B, Nk, Dout)

    # ---- ids_restore un-shuffle, in-kernel via one-hot batched matmuls ----
    # torch order: x_all = cat([x_enc, mask_tokens], dim=1); gather(x_all, ids_restore).
    iota_r = jax.lax.broadcasted_iota(jnp.int32, (B, P, P), 2)
    oh_r = jnp.where(iota_r == ids_restore_ref[...][:, :, None], 1.0, 0.0).astype(f32)
    out = (jnp.einsum("bip,bpd->bid", oh_r[:, :, :Nk], pred_x,
                      preferred_element_type=f32)
           + jnp.einsum("bip,bpd->bid", oh_r[:, :, Nk:], pred_q,
                        preferred_element_type=f32))
    out_ref[...] = out.astype(out_ref.dtype)   # single full-array store


# ----------------------------------------------------------------------------
# Positional embedding & parameter init (matches the PyTorch module)
# ----------------------------------------------------------------------------
def get_posembed(embed_dim, grid_size, temperature=10000.0):
    scale = 2 * math.pi
    num_pos_feats = embed_dim // 2
    y_embed, x_embed = jnp.meshgrid(
        jnp.arange(grid_size, dtype=jnp.float32),
        jnp.arange(grid_size, dtype=jnp.float32),
        indexing="ij",
    )
    y_embed = y_embed / (grid_size + 1e-6) * scale
    x_embed = x_embed / (grid_size + 1e-6) * scale
    dim_t = jnp.arange(num_pos_feats, dtype=jnp.float32)
    dim_t_ = jnp.floor(dim_t / 2) / num_pos_feats
    dim_t = temperature ** (2 * dim_t_)
    pos_x = x_embed[..., None] / dim_t
    pos_y = y_embed[..., None] / dim_t
    pos_x = jnp.stack(
        (jnp.sin(pos_x[..., 0::2]), jnp.cos(pos_x[..., 1::2])), axis=-1
    ).reshape(grid_size, grid_size, -1)
    pos_y = jnp.stack(
        (jnp.sin(pos_y[..., 0::2]), jnp.cos(pos_y[..., 1::2])), axis=-1
    ).reshape(grid_size, grid_size, -1)
    pos_embed = jnp.concatenate((pos_y, pos_x), axis=-1).reshape(-1, embed_dim)
    return pos_embed[None]  # (1, num_patches, embed_dim)


def _xavier_uniform(key, fan_in, fan_out):
    limit = math.sqrt(6.0 / (fan_in + fan_out))
    return jax.random.uniform(key, (fan_in, fan_out), jnp.float32, -limit, limit)


def init_params(key, cfg):
    P = (cfg["img_size"] // cfg["patch_size"]) ** 2
    C, Cen, Cout = cfg["de_emb_dim"], cfg["en_emb_dim"], cfg["out_dim"]
    hidden = int(C * cfg["mlp_ratio"])
    keys = jax.random.split(key, 3 + cfg["de_num_layers"])
    params = {
        "decoder_embed": {"w": _xavier_uniform(keys[0], Cen, C),
                          "b": jnp.zeros((C,), jnp.float32)},
        "mask_token": jax.random.normal(keys[1], (1, 1, C), jnp.float32) * 0.02,
        "decoder_pos_embed": get_posembed(C, int(P ** 0.5)),
        "decoder_norm": {"g": jnp.ones((C,), jnp.float32),
                         "b": jnp.zeros((C,), jnp.float32)},
        "decoder_pred": {"w": _xavier_uniform(keys[2], C, Cout),
                         "b": jnp.zeros((Cout,), jnp.float32)},
        "blocks": [],
    }
    for l in range(cfg["de_num_layers"]):
        lk = jax.random.split(keys[3 + l], 6)
        params["blocks"].append({
            "ln1_g": jnp.ones((C,), jnp.float32), "ln1_b": jnp.zeros((C,), jnp.float32),
            "wq": _xavier_uniform(lk[0], C, C), "bq": jnp.zeros((C,), jnp.float32),
            "wk": _xavier_uniform(lk[1], C, C), "bk": jnp.zeros((C,), jnp.float32),
            "wv": _xavier_uniform(lk[2], C, C), "bv": jnp.zeros((C,), jnp.float32),
            "wo": _xavier_uniform(lk[3], C, C), "bo": jnp.zeros((C,), jnp.float32),
            "ln2_g": jnp.ones((C,), jnp.float32), "ln2_b": jnp.zeros((C,), jnp.float32),
            "fc1_w": _xavier_uniform(lk[4], C, hidden), "fc1_b": jnp.zeros((hidden,), jnp.float32),
            "fc2_w": _xavier_uniform(lk[5], hidden, C), "fc2_b": jnp.zeros((C,), jnp.float32),
        })
    return params


# ----------------------------------------------------------------------------
# Forward pass: exactly one fused pallas_call
# ----------------------------------------------------------------------------
def mae_decoder_forward(params, x_enc, ids_shuffle, ids_restore, cfg):
    P = (cfg["img_size"] // cfg["patch_size"]) ** 2
    C = cfg["de_emb_dim"]
    L = cfg["de_num_layers"]
    H = cfg["de_num_heads"]
    Dout = cfg["out_dim"]
    hidden = int(C * cfg["mlp_ratio"])
    B, Nk, Cen = x_enc.shape
    Nq = ids_restore.shape[1] - Nk
    len_keep = int(P * (1 - cfg["mask_ratio"]))
    dh = C // H

    blocks = params["blocks"]
    stack = lambda k: jnp.stack([blk[k] for blk in blocks])

    inputs = [
        x_enc,                                                            # (B, Nk, Cen)
        ids_shuffle.astype(jnp.int32),                                    # (B, P)
        ids_restore.astype(jnp.int32),                                    # (B, P)
        params["decoder_pos_embed"].reshape(P, C),
        params["mask_token"].reshape(1, C),
        params["decoder_embed"]["w"],
        params["decoder_embed"]["b"].reshape(1, C),
        stack("ln1_g").reshape(L, 1, C),
        stack("ln1_b").reshape(L, 1, C),
        stack("wq"),
        stack("bq").reshape(L, 1, C),
        jnp.concatenate([stack("wk"), stack("wv")], axis=-1),             # (L, C, 2C)
        jnp.concatenate([stack("bk"), stack("bv")], axis=-1).reshape(L, 1, 2 * C),
        stack("wo"),
        stack("bo").reshape(L, 1, C),
        stack("ln2_g").reshape(L, 1, C),
        stack("ln2_b").reshape(L, 1, C),
        stack("fc1_w"),
        stack("fc1_b").reshape(L, 1, hidden),
        stack("fc2_w"),
        stack("fc2_b").reshape(L, 1, C),
        params["decoder_norm"]["g"].reshape(1, C),
        params["decoder_norm"]["b"].reshape(1, C),
        params["decoder_pred"]["w"],
        params["decoder_pred"]["b"].reshape(1, Dout),
    ]

    # Advisory cost estimate so XLA schedules the tiny custom call sensibly.
    flops = 2 * B * Nk * Cen * C
    flops += 2 * B * Nq * P * C + 2 * B * Nk * P * C                      # one-hot pos gathers
    flops += L * (2 * B * Nq * C * C + 2 * B * Nk * C * (2 * C)
                  + 2 * 2 * B * H * Nq * Nk * dh
                  + 2 * B * Nq * C * C
                  + 2 * B * Nq * C * hidden + 2 * B * Nq * hidden * C)
    flops += 2 * B * P * C * Dout
    flops += 2 * B * P * P * Dout                                         # un-shuffle matmul
    transcendentals = L * (B * H * Nq * Nk + B * Nq * hidden)
    bytes_accessed = sum(int(a.size) * a.dtype.itemsize for a in inputs) + B * P * Dout * 4

    vmem_spec = pl.BlockSpec(memory_space=pltpu.MemorySpace.VMEM)
    out = pl.pallas_call(
        functools.partial(_mae_decoder_kernel, num_layers=L, num_heads=H,
                          len_keep=len_keep),
        out_shape=jax.ShapeDtypeStruct((B, P, Dout), x_enc.dtype),
        in_specs=[vmem_spec] * len(inputs),
        out_specs=vmem_spec,
        cost_estimate=pl.CostEstimate(
            flops=flops, transcendentals=transcendentals, bytes_accessed=bytes_accessed),
    )(*inputs)
    return out


# ----------------------------------------------------------------------------
# Main
# ----------------------------------------------------------------------------
if __name__ == "__main__":
    cfg = CFG
    key = jax.random.PRNGKey(0)
    k_params, k_x, k_perm = jax.random.split(key, 3)

    P = (cfg["img_size"] // cfg["patch_size"]) ** 2      # 16
    len_keep = int(P * (1 - cfg["mask_ratio"]))          # 4
    B = 2

    params = init_params(k_params, cfg)

    x_enc = jax.random.normal(k_x, (B, len_keep, cfg["en_emb_dim"]), jnp.float32)

    # per-batch random permutations -> ids_shuffle, ids_restore
    perm_keys = jax.random.split(k_perm, B)
    ids_shuffle = jnp.stack([jax.random.permutation(k, P) for k in perm_keys]).astype(jnp.int32)
    ids_restore = jnp.argsort(ids_shuffle, axis=1).astype(jnp.int32)

    fwd = jax.jit(lambda p, x, s, r: mae_decoder_forward(p, x, s, r, cfg))
    out = fwd(params, x_enc, ids_shuffle, ids_restore)
    out = jax.block_until_ready(out)

    assert out.shape == (B, P, cfg["out_dim"]), out.shape
    assert jnp.all(jnp.isfinite(out))
    print("KERNEL_OK")
</pallas_src>

<mosaic_0001>
module attributes {stable_mosaic.version = 11 : i64} {
  func.func @_mae_decoder_kernel(%arg0: memref<2x4x32xf32, #tpu.memory_space<vmem>>, %arg1: memref<2x16xi32, #tpu.memory_space<vmem>>, %arg2: memref<2x16xi32, #tpu.memory_space<vmem>>, %arg3: memref<16x32xf32, #tpu.memory_space<vmem>>, %arg4: memref<1x32xf32, #tpu.memory_space<vmem>>, %arg5: memref<32x32xf32, #tpu.memory_space<vmem>>, %arg6: memref<1x32xf32, #tpu.memory_space<vmem>>, %arg7: memref<2x1x32xf32, #tpu.memory_space<vmem>>, %arg8: memref<2x1x32xf32, #tpu.memory_space<vmem>>, %arg9: memref<2x32x32xf32, #tpu.memory_space<vmem>>, %arg10: memref<2x1x32xf32, #tpu.memory_space<vmem>>, %arg11: memref<2x32x64xf32, #tpu.memory_space<vmem>>, %arg12: memref<2x1x64xf32, #tpu.memory_space<vmem>>, %arg13: memref<2x32x32xf32, #tpu.memory_space<vmem>>, %arg14: memref<2x1x32xf32, #tpu.memory_space<vmem>>, %arg15: memref<2x1x32xf32, #tpu.memory_space<vmem>>, %arg16: memref<2x1x32xf32, #tpu.memory_space<vmem>>, %arg17: memref<2x32x128xf32, #tpu.memory_space<vmem>>, %arg18: memref<2x1x128xf32, #tpu.memory_space<vmem>>, %arg19: memref<2x128x32xf32, #tpu.memory_space<vmem>>, %arg20: memref<2x1x32xf32, #tpu.memory_space<vmem>>, %arg21: memref<1x32xf32, #tpu.memory_space<vmem>>, %arg22: memref<1x32xf32, #tpu.memory_space<vmem>>, %arg23: memref<32x48xf32, #tpu.memory_space<vmem>>, %arg24: memref<1x48xf32, #tpu.memory_space<vmem>>, %arg25: memref<2x16x48xf32, #tpu.memory_space<vmem>>) attributes {dimension_semantics = [], scalar_prefetch = 0 : i64, scratch_operands = 0 : i64, tpu.core_type = #tpu.core_type<tc>} {
    %c0 = arith.constant 0 : index
    %c0_0 = arith.constant 0 : index
    %0 = vector.load %arg3[%c0, %c0_0] : memref<16x32xf32, #tpu.memory_space<vmem>>, vector<16x32xf32>
    %c0_1 = arith.constant 0 : index
    %c0_2 = arith.constant 0 : index
    %1 = vector.load %arg1[%c0_1, %c0_2] : memref<2x16xi32, #tpu.memory_space<vmem>>, vector<2x16xi32>
    %2 = vector.extract_strided_slice %1 {offsets = [0, 0], sizes = [2, 4], strides = [1, 1]} : vector<2x16xi32> to vector<2x4xi32>
    %3 = vector.extract_strided_slice %1 {offsets = [0, 4], sizes = [2, 12], strides = [1, 1]} : vector<2x16xi32> to vector<2x12xi32>
    %4 = tpu.iota {dimensions = array<i32: 2>} : vector<2x12x16xi32>
    %5 = tpu.iota {dimensions = array<i32: 2>} : vector<2x4x16xi32>
    %6 = vector.shape_cast %3 : vector<2x12xi32> to vector<2x12x1xi32>
    %7 = vector.broadcast %6 : vector<2x12x1xi32> to vector<2x12x16xi32>
    %8 = arith.cmpi eq, %4, %7 : vector<2x12x16xi32>
    %cst = arith.constant 1.000000e+00 : f32
    %cst_3 = arith.constant 0.000000e+00 : f32
    %9 = vector.broadcast %cst : f32 to vector<2x12x16xf32>
    %10 = vector.broadcast %cst_3 : f32 to vector<2x12x16xf32>
    %11 = arith.select %8, %9, %10 : vector<2x12x16xi1>, vector<2x12x16xf32>
    %12 = vector.shape_cast %2 : vector<2x4xi32> to vector<2x4x1xi32>
    %13 = vector.broadcast %12 : vector<2x4x1xi32> to vector<2x4x16xi32>
    %14 = arith.cmpi eq, %5, %13 : vector<2x4x16xi32>
    %cst_4 = arith.constant 1.000000e+00 : f32
    %cst_5 = arith.constant 0.000000e+00 : f32
    %15 = vector.broadcast %cst_4 : f32 to vector<2x4x16xf32>
    %16 = vector.broadcast %cst_5 : f32 to vector<2x4x16xf32>
    %17 = arith.select %14, %15, %16 : vector<2x4x16xi1>, vector<2x4x16xf32>
    %18 = vector.shape_cast %11 : vector<2x12x16xf32> to vector<24x16xf32>
    %cst_6 = arith.constant dense<0.000000e+00> : vector<24x32xf32>
    %19 = tpu.matmul %18, %0, %cst_6 {dimension_numbers = #tpu.dot_dimension_numbers<[1], [0], [0], [1], [0, 0, 1, 1], [], []>} : vector<24x16xf32>, vector<16x32xf32>, vector<24x32xf32> -> vector<24x32xf32>
    %20 = vector.shape_cast %19 : vector<24x32xf32> to vector<2x12x32xf32>
    %21 = vector.shape_cast %17 : vector<2x4x16xf32> to vector<8x16xf32>
    %cst_7 = arith.constant dense<0.000000e+00> : vector<8x32xf32>
    %22 = tpu.matmul %21, %0, %cst_7 {dimension_numbers = #tpu.dot_dimension_numbers<[1], [0], [0], [1], [0, 0, 1, 1], [], []>} : vector<8x16xf32>, vector<16x32xf32>, vector<8x32xf32> -> vector<8x32xf32>
    %23 = vector.shape_cast %22 : vector<8x32xf32> to vector<2x4x32xf32>
    %c0_8 = arith.constant 0 : index
    %c0_9 = arith.constant 0 : index
    %c0_10 = arith.constant 0 : index
    %24 = vector.load %arg0[%c0_8, %c0_9, %c0_10] : memref<2x4x32xf32, #tpu.memory_space<vmem>>, vector<2x4x32xf32>
    %25 = vector.shape_cast %24 : vector<2x4x32xf32> to vector<8x32xf32>
    %c0_11 = arith.constant 0 : index
    %c0_12 = arith.constant 0 : index
    %26 = vector.load %arg5[%c0_11, %c0_12] : memref<32x32xf32, #tpu.memory_space<vmem>>, vector<32x32xf32>
    %c0_13 = arith.constant 0 : index
    %c0_14 = arith.constant 0 : index
    %27 = vector.load %arg6[%c0_13, %c0_14] : memref<1x32xf32, #tpu.memory_space<vmem>>, vector<1x32xf32>
    %cst_15 = arith.constant dense<0.000000e+00> : vector<8x32xf32>
    %28 = tpu.matmul %25, %26, %cst_15 {dimension_numbers = #tpu.dot_dimension_numbers<[1], [0], [0], [1], [0, 0, 1, 1], [], []>} : vector<8x32xf32>, vector<32x32xf32>, vector<8x32xf32> -> vector<8x32xf32>
    %29 = vector.broadcast %27 : vector<1x32xf32> to vector<8x32xf32>
    %30 = arith.addf %28, %29 : vector<8x32xf32>
    %31 = vector.shape_cast %30 : vector<8x32xf32> to vector<2x4x32xf32>
    %c0_16 = arith.constant 0 : index
    %c0_17 = arith.constant 0 : index
    %32 = vector.load %arg4[%c0_16, %c0_17] : memref<1x32xf32, #tpu.memory_space<vmem>>, vector<1x32xf32>
    %33 = vector.shape_cast %32 : vector<1x32xf32> to vector<1x32xf32>
    %34 = vector.broadcast %33 : vector<1x32xf32> to vector<24x32xf32>
    %35 = vector.shape_cast %34 : vector<24x32xf32> to vector<2x12x32xf32>
    %36 = arith.addf %35, %20 : vector<2x12x32xf32>
    %37 = arith.addf %31, %23 : vector<2x4x32xf32>
    %38 = vector.shape_cast %36 : vector<2x12x32xf32> to vector<24x32xf32>
    %c0_18 = arith.constant 0 : index
    %c0_19 = arith.constant 0 : index
    %c0_20 = arith.constant 0 : index
    %39 = vector.load %arg7[%c0_18, %c0_19, %c0_20] : memref<2x1x32xf32, #tpu.memory_space<vmem>>, vector<1x1x32xf32>
    %40 = vector.shape_cast %39 : vector<1x1x32xf32> to vector<1x32xf32>
    %c0_21 = arith.constant 0 : index
    %c0_22 = arith.constant 0 : index
    %c0_23 = arith.constant 0 : index
    %41 = vector.load %arg8[%c0_21, %c0_22, %c0_23] : memref<2x1x32xf32, #tpu.memory_space<vmem>>, vector<1x1x32xf32>
    %42 = vector.shape_cast %41 : vector<1x1x32xf32> to vector<1x32xf32>
    %cst_24 = arith.constant dense<0.000000e+00> : vector<24xf32>
    %43 = vector.multi_reduction <add>, %38, %cst_24 [1] : vector<24x32xf32> to vector<24xf32>
    %44 = vector.shape_cast %43 : vector<24xf32> to vector<24x1xf32>
    %cst_25 = arith.constant 3.200000e+01 : f32
    %45 = vector.broadcast %cst_25 : f32 to vector<24x1xf32>
    %46 = arith.divf %44, %45 : vector<24x1xf32>
    %47 = vector.broadcast %46 : vector<24x1xf32> to vector<24x32xf32>
    %48 = arith.subf %38, %47 : vector<24x32xf32>
    %49 = arith.mulf %48, %48 : vector<24x32xf32>
    %cst_26 = arith.constant dense<0.000000e+00> : vector<24xf32>
    %50 = vector.multi_reduction <add>, %49, %cst_26 [1] : vector<24x32xf32> to vector<24xf32>
    %51 = vector.shape_cast %50 : vector<24xf32> to vector<24x1xf32>
    %cst_27 = arith.constant 3.200000e+01 : f32
    %52 = vector.broadcast %cst_27 : f32 to vector<24x1xf32>
    %53 = arith.divf %51, %52 : vector<24x1xf32>
    %54 = vector.broadcast %46 : vector<24x1xf32> to vector<24x32xf32>
    %55 = arith.subf %38, %54 : vector<24x32xf32>
    %cst_28 = arith.constant 9.99999974E-6 : f32
    %56 = vector.broadcast %cst_28 : f32 to vector<24x1xf32>
    %57 = arith.addf %53, %56 : vector<24x1xf32>
    %58 = math.rsqrt %57 : vector<24x1xf32>
    %59 = vector.broadcast %58 : vector<24x1xf32> to vector<24x32xf32>
    %60 = arith.mulf %55, %59 : vector<24x32xf32>
    %61 = vector.broadcast %40 : vector<1x32xf32> to vector<24x32xf32>
    %62 = arith.mulf %60, %61 : vector<24x32xf32>
    %63 = vector.broadcast %42 : vector<1x32xf32> to vector<24x32xf32>
    %64 = arith.addf %62, %63 : vector<24x32xf32>
    %c0_29 = arith.constant 0 : index
    %c0_30 = arith.constant 0 : index
    %c0_31 = arith.constant 0 : index
    %65 = vector.load %arg9[%c0_29, %c0_30, %c0_31] : memref<2x32x32xf32, #tpu.memory_space<vmem>>, vector<1x32x32xf32>
    %66 = vector.shape_cast %65 : vector<1x32x32xf32> to vector<32x32xf32>
    %c0_32 = arith.constant 0 : index
    %c0_33 = arith.constant 0 : index
    %c0_34 = arith.constant 0 : index
    %67 = vector.load %arg10[%c0_32, %c0_33, %c0_34] : memref<2x1x32xf32, #tpu.memory_space<vmem>>, vector<1x1x32xf32>
    %68 = vector.shape_cast %67 : vector<1x1x32xf32> to vector<1x32xf32>
    %cst_35 = arith.constant dense<0.000000e+00> : vector<24x32xf32>
    %69 = tpu.matmul %64, %66, %cst_35 {dimension_numbers = #tpu.dot_dimension_numbers<[1], [0], [0], [1], [0, 0, 1, 1], [], []>} : vector<24x32xf32>, vector<32x32xf32>, vector<24x32xf32> -> vector<24x32xf32>
    %70 = vector.broadcast %68 : vector<1x32xf32> to vector<24x32xf32>
    %71 = arith.addf %69, %70 : vector<24x32xf32>
    %72 = vector.shape_cast %71 : vector<24x32xf32> to vector<2x12x32xf32>
    %73 = vector.shape_cast %37 : vector<2x4x32xf32> to vector<8x32xf32>
    %c0_36 = arith.constant 0 : index
    %c0_37 = arith.constant 0 : index
    %c0_38 = arith.constant 0 : index
    %74 = vector.load %arg11[%c0_36, %c0_37, %c0_38] : memref<2x32x64xf32, #tpu.memory_space<vmem>>, vector<1x32x64xf32>
    %75 = vector.shape_cast %74 : vector<1x32x64xf32> to vector<32x64xf32>
    %c0_39 = arith.constant 0 : index
    %c0_40 = arith.constant 0 : index
    %c0_41 = arith.constant 0 : index
    %76 = vector.load %arg12[%c0_39, %c0_40, %c0_41] : memref<2x1x64xf32, #tpu.memory_space<vmem>>, vector<1x1x64xf32>
    %77 = vector.shape_cast %76 : vector<1x1x64xf32> to vector<1x64xf32>
    %cst_42 = arith.constant dense<0.000000e+00> : vector<8x64xf32>
    %78 = tpu.matmul %73, %75, %cst_42 {dimension_numbers = #tpu.dot_dimension_numbers<[1], [0], [0], [1], [0, 0, 1, 1], [], []>} : vector<8x32xf32>, vector<32x64xf32>, vector<8x64xf32> -> vector<8x64xf32>
    %79 = vector.broadcast %77 : vector<1x64xf32> to vector<8x64xf32>
    %80 = arith.addf %78, %79 : vector<8x64xf32>
    %81 = vector.extract_strided_slice %80 {offsets = [0, 0], sizes = [8, 32], strides = [1, 1]} : vector<8x64xf32> to vector<8x32xf32>
    %82 = vector.shape_cast %81 : vector<8x32xf32> to vector<2x4x32xf32>
    %83 = vector.extract_strided_slice %80 {offsets = [0, 32], sizes = [8, 32], strides = [1, 1]} : vector<8x64xf32> to vector<8x32xf32>
    %84 = vector.shape_cast %83 : vector<8x32xf32> to vector<2x4x32xf32>
    %85 = vector.extract_strided_slice %72 {offsets = [0, 0, 0], sizes = [2, 12, 8], strides = [1, 1, 1]} : vector<2x12x32xf32> to vector<2x12x8xf32>
    %86 = vector.extract_strided_slice %82 {offsets = [0, 0, 0], sizes = [2, 4, 8], strides = [1, 1, 1]} : vector<2x4x32xf32> to vector<2x4x8xf32>
    "tpu.trace_start"() <{level = 10 : i32, message = "bqd,bkd->bqk"}> : () -> ()
    %cst_43 = arith.constant dense<0.000000e+00> : vector<2x12x4xf32>
    %87 = tpu.matmul %85, %86, %cst_43 {dimension_numbers = #tpu.dot_dimension_numbers<[2], [2], [1], [1], [0, 0, 0, 1, 1, 1], [0], [0]>} : vector<2x12x8xf32>, vector<2x4x8xf32>, vector<2x12x4xf32> -> vector<2x12x4xf32>
    "tpu.trace_stop"() : () -> ()
    %cst_44 = arith.constant 0.353553385 : f32
    %88 = vector.broadcast %cst_44 : f32 to vector<2x12x4xf32>
    %89 = arith.mulf %87, %88 : vector<2x12x4xf32>
    %cst_45 = arith.constant dense<0xFF800000> : vector<2x12xf32>
    %90 = vector.multi_reduction <maximumf>, %89, %cst_45 [2] : vector<2x12x4xf32> to vector<2x12xf32>
    %91 = vector.shape_cast %90 : vector<2x12xf32> to vector<2x12x1xf32>
    %92 = vector.broadcast %91 : vector<2x12x1xf32> to vector<2x12x4xf32>
    %93 = arith.subf %89, %92 : vector<2x12x4xf32>
    %94 = math.exp %93 : vector<2x12x4xf32>
    %cst_46 = arith.constant dense<0.000000e+00> : vector<2x12xf32>
    %95 = vector.multi_reduction <add>, %94, %cst_46 [2] : vector<2x12x4xf32> to vector<2x12xf32>
    %96 = vector.shape_cast %95 : vector<2x12xf32> to vector<2x12x1xf32>
    %97 = tpu.reciprocal %96 {approx = true} : vector<2x12x1xf32> -> vector<2x12x1xf32>
    %98 = vector.broadcast %97 : vector<2x12x1xf32> to vector<2x12x4xf32>
    %99 = arith.mulf %94, %98 : vector<2x12x4xf32>
    %100 = vector.extract_strided_slice %84 {offsets = [0, 0, 0], sizes = [2, 4, 8], strides = [1, 1, 1]} : vector<2x4x32xf32> to vector<2x4x8xf32>
    "tpu.trace_start"() <{level = 10 : i32, message = "bqk,bkd->bqd"}> : () -> ()
    %cst_47 = arith.constant dense<0.000000e+00> : vector<2x12x8xf32>
    %101 = tpu.matmul %99, %100, %cst_47 {dimension_numbers = #tpu.dot_dimension_numbers<[2], [1], [1], [2], [0, 0, 0, 1, 1, 2], [0], [0]>} : vector<2x12x4xf32>, vector<2x4x8xf32>, vector<2x12x8xf32> -> vector<2x12x8xf32>
    "tpu.trace_stop"() : () -> ()
    %102 = vector.extract_strided_slice %72 {offsets = [0, 0, 8], sizes = [2, 12, 8], strides = [1, 1, 1]} : vector<2x12x32xf32> to vector<2x12x8xf32>
    %103 = vector.extract_strided_slice %82 {offsets = [0, 0, 8], sizes = [2, 4, 8], strides = [1, 1, 1]} : vector<2x4x32xf32> to vector<2x4x8xf32>
    "tpu.trace_start"() <{level = 10 : i32, message = "bqd,bkd->bqk"}> : () -> ()
    %cst_48 = arith.constant dense<0.000000e+00> : vector<2x12x4xf32>
    %104 = tpu.matmul %102, %103, %cst_48 {dimension_numbers = #tpu.dot_dimension_numbers<[2], [2], [1], [1], [0, 0, 0, 1, 1, 1], [0], [0]>} : vector<2x12x8xf32>, vector<2x4x8xf32>, vector<2x12x4xf32> -> vector<2x12x4xf32>
    "tpu.trace_stop"() : () -> ()
    %cst_49 = arith.constant 0.353553385 : f32
    %105 = vector.broadcast %cst_49 : f32 to vector<2x12x4xf32>
    %106 = arith.mulf %104, %105 : vector<2x12x4xf32>
    %cst_50 = arith.constant dense<0xFF800000> : vector<2x12xf32>
    %107 = vector.multi_reduction <maximumf>, %106, %cst_50 [2] : vector<2x12x4xf32> to vector<2x12xf32>
    %108 = vector.shape_cast %107 : vector<2x12xf32> to vector<2x12x1xf32>
    %109 = vector.broadcast %108 : vector<2x12x1xf32> to vector<2x12x4xf32>
    %110 = arith.subf %106, %109 : vector<2x12x4xf32>
    %111 = math.exp %110 : vector<2x12x4xf32>
    %cst_51 = arith.constant dense<0.000000e+00> : vector<2x12xf32>
    %112 = vector.multi_reduction <add>, %111, %cst_51 [2] : vector<2x12x4xf32> to vector<2x12xf32>
    %113 = vector.shape_cast %112 : vector<2x12xf32> to vector<2x12x1xf32>
    %114 = tpu.reciprocal %113 {approx = true} : vector<2x12x1xf32> -> vector<2x12x1xf32>
    %115 = vector.broadcast %114 : vector<2x12x1xf32> to vector<2x12x4xf32>
    %116 = arith.mulf %111, %115 : vector<2x12x4xf32>
    %117 = vector.extract_strided_slice %84 {offsets = [0, 0, 8], sizes = [2, 4, 8], strides = [1, 1, 1]} : vector<2x4x32xf32> to vector<2x4x8xf32>
    "tpu.trace_start"() <{level = 10 : i32, message = "bqk,bkd->bqd"}> : () -> ()
    %cst_52 = arith.constant dense<0.000000e+00> : vector<2x12x8xf32>
    %118 = tpu.matmul %116, %117, %cst_52 {dimension_numbers = #tpu.dot_dimension_numbers<[2], [1], [1], [2], [0, 0, 0, 1, 1, 2], [0], [0]>} : vector<2x12x4xf32>, vector<2x4x8xf32>, vector<2x12x8xf32> -> vector<2x12x8xf32>
    "tpu.trace_stop"() : () -> ()
    %119 = vector.extract_strided_slice %72 {offsets = [0, 0, 16], sizes = [2, 12, 8], strides = [1, 1, 1]} : vector<2x12x32xf32> to vector<2x12x8xf32>
    %120 = vector.extract_strided_slice %82 {offsets = [0, 0, 16], sizes = [2, 4, 8], strides = [1, 1, 1]} : vector<2x4x32xf32> to vector<2x4x8xf32>
    "tpu.trace_start"() <{level = 10 : i32, message = "bqd,bkd->bqk"}> : () -> ()
    %cst_53 = arith.constant dense<0.000000e+00> : vector<2x12x4xf32>
    %121 = tpu.matmul %119, %120, %cst_53 {dimension_numbers = #tpu.dot_dimension_numbers<[2], [2], [1], [1], [0, 0, 0, 1, 1, 1], [0], [0]>} : vector<2x12x8xf32>, vector<2x4x8xf32>, vector<2x12x4xf32> -> vector<2x12x4xf32>
    "tpu.trace_stop"() : () -> ()
    %cst_54 = arith.constant 0.353553385 : f32
    %122 = vector.broadcast %cst_54 : f32 to vector<2x12x4xf32>
    %123 = arith.mulf %121, %122 : vector<2x12x4xf32>
    %cst_55 = arith.constant dense<0xFF800000> : vector<2x12xf32>
    %124 = vector.multi_reduction <maximumf>, %123, %cst_55 [2] : vector<2x12x4xf32> to vector<2x12xf32>
    %125 = vector.shape_cast %124 : vector<2x12xf32> to vector<2x12x1xf32>
    %126 = vector.broadcast %125 : vector<2x12x1xf32> to vector<2x12x4xf32>
    %127 = arith.subf %123, %126 : vector<2x12x4xf32>
    %128 = math.exp %127 : vector<2x12x4xf32>
    %cst_56 = arith.constant dense<0.000000e+00> : vector<2x12xf32>
    %129 = vector.multi_reduction <add>, %128, %cst_56 [2] : vector<2x12x4xf32> to vector<2x12xf32>
    %130 = vector.shape_cast %129 : vector<2x12xf32> to vector<2x12x1xf32>
    %131 = tpu.reciprocal %130 {approx = true} : vector<2x12x1xf32> -> vector<2x12x1xf32>
    %132 = vector.broadcast %131 : vector<2x12x1xf32> to vector<2x12x4xf32>
    %133 = arith.mulf %128, %132 : vector<2x12x4xf32>
    %134 = vector.extract_strided_slice %84 {offsets = [0, 0, 16], sizes = [2, 4, 8], strides = [1, 1, 1]} : vector<2x4x32xf32> to vector<2x4x8xf32>
    "tpu.trace_start"() <{level = 10 : i32, message = "bqk,bkd->bqd"}> : () -> ()
    %cst_57 = arith.constant dense<0.000000e+00> : vector<2x12x8xf32>
    %135 = tpu.matmul %133, %134, %cst_57 {dimension_numbers = #tpu.dot_dimension_numbers<[2], [1], [1], [2], [0, 0, 0, 1, 1, 2], [0], [0]>} : vector<2x12x4xf32>, vector<2x4x8xf32>, vector<2x12x8xf32> -> vector<2x12x8xf32>
    "tpu.trace_stop"() : () -> ()
    %136 = vector.extract_strided_slice %72 {offsets = [0, 0, 24], sizes = [2, 12, 8], strides = [1, 1, 1]} : vector<2x12x32xf32> to vector<2x12x8xf32>
    %137 = vector.extract_strided_slice %82 {offsets = [0, 0, 24], sizes = [2, 4, 8], strides = [1, 1, 1]} : vector<2x4x32xf32> to vector<2x4x8xf32>
    "tpu.trace_start"() <{level = 10 : i32, message = "bqd,bkd->bqk"}> : () -> ()
    %cst_58 = arith.constant dense<0.000000e+00> : vector<2x12x4xf32>
    %138 = tpu.matmul %136, %137, %cst_58 {dimension_numbers = #tpu.dot_dimension_numbers<[2], [2], [1], [1], [0, 0, 0, 1, 1, 1], [0], [0]>} : vector<2x12x8xf32>, vector<2x4x8xf32>, vector<2x12x4xf32> -> vector<2x12x4xf32>
    "tpu.trace_stop"() : () -> ()
    %cst_59 = arith.constant 0.353553385 : f32
    %139 = vector.broadcast %cst_59 : f32 to vector<2x12x4xf32>
    %140 = arith.mulf %138, %139 : vector<2x12x4xf32>
    %cst_60 = arith.constant dense<0xFF800000> : vector<2x12xf32>
    %141 = vector.multi_reduction <maximumf>, %140, %cst_60 [2] : vector<2x12x4xf32> to vector<2x12xf32>
    %142 = vector.shape_cast %141 : vector<2x12xf32> to vector<2x12x1xf32>
    %143 = vector.broadcast %142 : vector<2x12x1xf32> to vector<2x12x4xf32>
    %144 = arith.subf %140, %143 : vector<2x12x4xf32>
    %145 = math.exp %144 : vector<2x12x4xf32>
    %cst_61 = arith.constant dense<0.000000e+00> : vector<2x12xf32>
    %146 = vector.multi_reduction <add>, %145, %cst_61 [2] : vector<2x12x4xf32> to vector<2x12xf32>
    %147 = vector.shape_cast %146 : vector<2x12xf32> to vector<2x12x1xf32>
    %148 = tpu.reciprocal %147 {approx = true} : vector<2x12x1xf32> -> vector<2x12x1xf32>
    %149 = vector.broadcast %148 : vector<2x12x1xf32> to vector<2x12x4xf32>
    %150 = arith.mulf %145, %149 : vector<2x12x4xf32>
    %151 = vector.extract_strided_slice %84 {offsets = [0, 0, 24], sizes = [2, 4, 8], strides = [1, 1, 1]} : vector<2x4x32xf32> to vector<2x4x8xf32>
    "tpu.trace_start"() <{level = 10 : i32, message = "bqk,bkd->bqd"}> : () -> ()
    %cst_62 = arith.constant dense<0.000000e+00> : vector<2x12x8xf32>
    %152 = tpu.matmul %150, %151, %cst_62 {dimension_numbers = #tpu.dot_dimension_numbers<[2], [1], [1], [2], [0, 0, 0, 1, 1, 2], [0], [0]>} : vector<2x12x4xf32>, vector<2x4x8xf32>, vector<2x12x8xf32> -> vector<2x12x8xf32>
    "tpu.trace_stop"() : () -> ()
    %153 = tpu.concatenate %101, %118, %135, %152 in 2 : vector<2x12x8xf32>, vector<2x12x8xf32>, vector<2x12x8xf32>, vector<2x12x8xf32> -> vector<2x12x32xf32>
    %154 = vector.shape_cast %153 : vector<2x12x32xf32> to vector<24x32xf32>
    %c0_63 = arith.constant 0 : index
    %c0_64 = arith.constant 0 : index
    %c0_65 = arith.constant 0 : index
    %155 = vector.load %arg13[%c0_63, %c0_64, %c0_65] : memref<2x32x32xf32, #tpu.memory_space<vmem>>, vector<1x32x32xf32>
    %156 = vector.shape_cast %155 : vector<1x32x32xf32> to vector<32x32xf32>
    %c0_66 = arith.constant 0 : index
    %c0_67 = arith.constant 0 : index
    %c0_68 = arith.constant 0 : index
    %157 = vector.load %arg14[%c0_66, %c0_67, %c0_68] : memref<2x1x32xf32, #tpu.memory_space<vmem>>, vector<1x1x32xf32>
    %158 = vector.shape_cast %157 : vector<1x1x32xf32> to vector<1x32xf32>
    %cst_69 = arith.constant dense<0.000000e+00> : vector<24x32xf32>
    %159 = tpu.matmul %154, %156, %cst_69 {dimension_numbers = #tpu.dot_dimension_numbers<[1], [0], [0], [1], [0, 0, 1, 1], [], []>} : vector<24x32xf32>, vector<32x32xf32>, vector<24x32xf32> -> vector<24x32xf32>
    %160 = vector.broadcast %158 : vector<1x32xf32> to vector<24x32xf32>
    %161 = arith.addf %159, %160 : vector<24x32xf32>
    %162 = vector.shape_cast %161 : vector<24x32xf32> to vector<2x12x32xf32>
    %163 = arith.addf %36, %162 : vector<2x12x32xf32>
    %164 = vector.shape_cast %163 : vector<2x12x32xf32> to vector<24x32xf32>
    %c0_70 = arith.constant 0 : index
    %c0_71 = arith.constant 0 : index
    %c0_72 = arith.constant 0 : index
    %165 = vector.load %arg15[%c0_70, %c0_71, %c0_72] : memref<2x1x32xf32, #tpu.memory_space<vmem>>, vector<1x1x32xf32>
    %166 = vector.shape_cast %165 : vector<1x1x32xf32> to vector<1x32xf32>
    %c0_73 = arith.constant 0 : index
    %c0_74 = arith.constant 0 : index
    %c0_75 = arith.constant 0 : index
    %167 = vector.load %arg16[%c0_73, %c0_74, %c0_75] : memref<2x1x32xf32, #tpu.memory_space<vmem>>, vector<1x1x32xf32>
    %168 = vector.shape_cast %167 : vector<1x1x32xf32> to vector<1x32xf32>
    %cst_76 = arith.constant dense<0.000000e+00> : vector<24xf32>
    %169 = vector.multi_reduction <add>, %164, %cst_76 [1] : vector<24x32xf32> to vector<24xf32>
    %170 = vector.shape_cast %169 : vector<24xf32> to vector<24x1xf32>
    %cst_77 = arith.constant 3.200000e+01 : f32
    %171 = vector.broadcast %cst_77 : f32 to vector<24x1xf32>
    %172 = arith.divf %170, %171 : vector<24x1xf32>
    %173 = vector.broadcast %172 : vector<24x1xf32> to vector<24x32xf32>
    %174 = arith.subf %164, %173 : vector<24x32xf32>
    %175 = arith.mulf %174, %174 : vector<24x32xf32>
    %cst_78 = arith.constant dense<0.000000e+00> : vector<24xf32>
    %176 = vector.multi_reduction <add>, %175, %cst_78 [1] : vector<24x32xf32> to vector<24xf32>
    %177 = vector.shape_cast %176 : vector<24xf32> to vector<24x1xf32>
    %cst_79 = arith.constant 3.200000e+01 : f32
    %178 = vector.broadcast %cst_79 : f32 to vector<24x1xf32>
    %179 = arith.divf %177, %178 : vector<24x1xf32>
    %180 = vector.broadcast %172 : vector<24x1xf32> to vector<24x32xf32>
    %181 = arith.subf %164, %180 : vector<24x32xf32>
    %cst_80 = arith.constant 9.99999974E-6 : f32
    %182 = vector.broadcast %cst_80 : f32 to vector<24x1xf32>
    %183 = arith.addf %179, %182 : vector<24x1xf32>
    %184 = math.rsqrt %183 : vector<24x1xf32>
    %185 = vector.broadcast %184 : vector<24x1xf32> to vector<24x32xf32>
    %186 = arith.mulf %181, %185 : vector<24x32xf32>
    %187 = vector.broadcast %166 : vector<1x32xf32> to vector<24x32xf32>
    %188 = arith.mulf %186, %187 : vector<24x32xf32>
    %189 = vector.broadcast %168 : vector<1x32xf32> to vector<24x32xf32>
    %190 = arith.addf %188, %189 : vector<24x32xf32>
    %c0_81 = arith.constant 0 : index
    %c0_82 = arith.constant 0 : index
    %c0_83 = arith.constant 0 : index
    %191 = vector.load %arg17[%c0_81, %c0_82, %c0_83] : memref<2x32x128xf32, #tpu.memory_space<vmem>>, vector<1x32x128xf32>
    %192 = vector.shape_cast %191 : vector<1x32x128xf32> to vector<32x128xf32>
    %c0_84 = arith.constant 0 : index
    %c0_85 = arith.constant 0 : index
    %c0_86 = arith.constant 0 : index
    %193 = vector.load %arg18[%c0_84, %c0_85, %c0_86] : memref<2x1x128xf32, #tpu.memory_space<vmem>>, vector<1x1x128xf32>
    %194 = vector.shape_cast %193 : vector<1x1x128xf32> to vector<1x128xf32>
    %cst_87 = arith.constant dense<0.000000e+00> : vector<24x128xf32>
    %195 = tpu.matmul %190, %192, %cst_87 {dimension_numbers = #tpu.dot_dimension_numbers<[1], [0], [0], [1], [0, 0, 1, 1], [], []>} : vector<24x32xf32>, vector<32x128xf32>, vector<24x128xf32> -> vector<24x128xf32>
    %196 = vector.broadcast %194 : vector<1x128xf32> to vector<24x128xf32>
    %197 = arith.addf %195, %196 : vector<24x128xf32>
    %198 = arith.mulf %197, %197 : vector<24x128xf32>
    %199 = arith.mulf %197, %198 : vector<24x128xf32>
    %cst_88 = arith.constant 4.471500e-02 : f32
    %200 = vector.broadcast %cst_88 : f32 to vector<24x128xf32>
    %201 = arith.mulf %200, %199 : vector<24x128xf32>
    %202 = arith.addf %197, %201 : vector<24x128xf32>
    %cst_89 = arith.constant 0.797884583 : f32
    %203 = vector.broadcast %cst_89 : f32 to vector<24x128xf32>
    %204 = arith.mulf %203, %202 : vector<24x128xf32>
    %205 = math.tanh %204 : vector<24x128xf32>
    %cst_90 = arith.constant 1.000000e+00 : f32
    %206 = vector.broadcast %cst_90 : f32 to vector<24x128xf32>
    %207 = arith.addf %206, %205 : vector<24x128xf32>
    %cst_91 = arith.constant 5.000000e-01 : f32
    %208 = vector.broadcast %cst_91 : f32 to vector<24x128xf32>
    %209 = arith.mulf %208, %207 : vector<24x128xf32>
    %210 = arith.mulf %197, %209 : vector<24x128xf32>
    %c0_92 = arith.constant 0 : index
    %c0_93 = arith.constant 0 : index
    %c0_94 = arith.constant 0 : index
    %211 = vector.load %arg19[%c0_92, %c0_93, %c0_94] : memref<2x128x32xf32, #tpu.memory_space<vmem>>, vector<1x128x32xf32>
    %212 = vector.shape_cast %211 : vector<1x128x32xf32> to vector<128x32xf32>
    %c0_95 = arith.constant 0 : index
    %c0_96 = arith.constant 0 : index
    %c0_97 = arith.constant 0 : index
    %213 = vector.load %arg20[%c0_95, %c0_96, %c0_97] : memref<2x1x32xf32, #tpu.memory_space<vmem>>, vector<1x1x32xf32>
    %214 = vector.shape_cast %213 : vector<1x1x32xf32> to vector<1x32xf32>
    %cst_98 = arith.constant dense<0.000000e+00> : vector<24x32xf32>
    %215 = tpu.matmul %210, %212, %cst_98 {dimension_numbers = #tpu.dot_dimension_numbers<[1], [0], [0], [1], [0, 0, 1, 1], [], []>} : vector<24x128xf32>, vector<128x32xf32>, vector<24x32xf32> -> vector<24x32xf32>
    %216 = vector.broadcast %214 : vector<1x32xf32> to vector<24x32xf32>
    %217 = arith.addf %215, %216 : vector<24x32xf32>
    %218 = vector.shape_cast %217 : vector<24x32xf32> to vector<2x12x32xf32>
    %219 = arith.addf %163, %218 : vector<2x12x32xf32>
    %220 = arith.addf %219, %20 : vector<2x12x32xf32>
    %221 = arith.addf %37, %23 : vector<2x4x32xf32>
    %222 = vector.shape_cast %220 : vector<2x12x32xf32> to vector<24x32xf32>
    %c1 = arith.constant 1 : index
    %c0_99 = arith.constant 0 : index
    %c0_100 = arith.constant 0 : index
    %223 = vector.load %arg7[%c1, %c0_99, %c0_100] : memref<2x1x32xf32, #tpu.memory_space<vmem>>, vector<1x1x32xf32>
    %224 = vector.shape_cast %223 : vector<1x1x32xf32> to vector<1x32xf32>
    %c1_101 = arith.constant 1 : index
    %c0_102 = arith.constant 0 : index
    %c0_103 = arith.constant 0 : index
    %225 = vector.load %arg8[%c1_101, %c0_102, %c0_103] : memref<2x1x32xf32, #tpu.memory_space<vmem>>, vector<1x1x32xf32>
    %226 = vector.shape_cast %225 : vector<1x1x32xf32> to vector<1x32xf32>
    %cst_104 = arith.constant dense<0.000000e+00> : vector<24xf32>
    %227 = vector.multi_reduction <add>, %222, %cst_104 [1] : vector<24x32xf32> to vector<24xf32>
    %228 = vector.shape_cast %227 : vector<24xf32> to vector<24x1xf32>
    %cst_105 = arith.constant 3.200000e+01 : f32
    %229 = vector.broadcast %cst_105 : f32 to vector<24x1xf32>
    %230 = arith.divf %228, %229 : vector<24x1xf32>
    %231 = vector.broadcast %230 : vector<24x1xf32> to vector<24x32xf32>
    %232 = arith.subf %222, %231 : vector<24x32xf32>
    %233 = arith.mulf %232, %232 : vector<24x32xf32>
    %cst_106 = arith.constant dense<0.000000e+00> : vector<24xf32>
    %234 = vector.multi_reduction <add>, %233, %cst_106 [1] : vector<24x32xf32> to vector<24xf32>
    %235 = vector.shape_cast %234 : vector<24xf32> to vector<24x1xf32>
    %cst_107 = arith.constant 3.200000e+01 : f32
    %236 = vector.broadcast %cst_107 : f32 to vector<24x1xf32>
    %237 = arith.divf %235, %236 : vector<24x1xf32>
    %238 = vector.broadcast %230 : vector<24x1xf32> to vector<24x32xf32>
    %239 = arith.subf %222, %238 : vector<24x32xf32>
    %cst_108 = arith.constant 9.99999974E-6 : f32
    %240 = vector.broadcast %cst_108 : f32 to vector<24x1xf32>
    %241 = arith.addf %237, %240 : vector<24x1xf32>
    %242 = math.rsqrt %241 : vector<24x1xf32>
    %243 = vector.broadcast %242 : vector<24x1xf32> to vector<24x32xf32>
    %244 = arith.mulf %239, %243 : vector<24x32xf32>
    %245 = vector.broadcast %224 : vector<1x32xf32> to vector<24x32xf32>
    %246 = arith.mulf %244, %245 : vector<24x32xf32>
    %247 = vector.broadcast %226 : vector<1x32xf32> to vector<24x32xf32>
    %248 = arith.addf %246, %247 : vector<24x32xf32>
    %c1_109 = arith.constant 1 : index
    %c0_110 = arith.constant 0 : index
    %c0_111 = arith.constant 0 : index
    %249 = vector.load %arg9[%c1_109, %c0_110, %c0_111] : memref<2x32x32xf32, #tpu.memory_space<vmem>>, vector<1x32x32xf32>
    %250 = vector.shape_cast %249 : vector<1x32x32xf32> to vector<32x32xf32>
    %c1_112 = arith.constant 1 : index
    %c0_113 = arith.constant 0 : index
    %c0_114 = arith.constant 0 : index
    %251 = vector.load %arg10[%c1_112, %c0_113, %c0_114] : memref<2x1x32xf32, #tpu.memory_space<vmem>>, vector<1x1x32xf32>
    %252 = vector.shape_cast %251 : vector<1x1x32xf32> to vector<1x32xf32>
    %cst_115 = arith.constant dense<0.000000e+00> : vector<24x32xf32>
    %253 = tpu.matmul %248, %250, %cst_115 {dimension_numbers = #tpu.dot_dimension_numbers<[1], [0], [0], [1], [0, 0, 1, 1], [], []>} : vector<24x32xf32>, vector<32x32xf32>, vector<24x32xf32> -> vector<24x32xf32>
    %254 = vector.broadcast %252 : vector<1x32xf32> to vector<24x32xf32>
    %255 = arith.addf %253, %254 : vector<24x32xf32>
    %256 = vector.shape_cast %255 : vector<24x32xf32> to vector<2x12x32xf32>
    %257 = vector.shape_cast %221 : vector<2x4x32xf32> to vector<8x32xf32>
    %c1_116 = arith.constant 1 : index
    %c0_117 = arith.constant 0 : index
    %c0_118 = arith.constant 0 : index
    %258 = vector.load %arg11[%c1_116, %c0_117, %c0_118] : memref<2x32x64xf32, #tpu.memory_space<vmem>>, vector<1x32x64xf32>
    %259 = vector.shape_cast %258 : vector<1x32x64xf32> to vector<32x64xf32>
    %c1_119 = arith.constant 1 : index
    %c0_120 = arith.constant 0 : index
    %c0_121 = arith.constant 0 : index
    %260 = vector.load %arg12[%c1_119, %c0_120, %c0_121] : memref<2x1x64xf32, #tpu.memory_space<vmem>>, vector<1x1x64xf32>
    %261 = vector.shape_cast %260 : vector<1x1x64xf32> to vector<1x64xf32>
    %cst_122 = arith.constant dense<0.000000e+00> : vector<8x64xf32>
    %262 = tpu.matmul %257, %259, %cst_122 {dimension_numbers = #tpu.dot_dimension_numbers<[1], [0], [0], [1], [0, 0, 1, 1], [], []>} : vector<8x32xf32>, vector<32x64xf32>, vector<8x64xf32> -> vector<8x64xf32>
    %263 = vector.broadcast %261 : vector<1x64xf32> to vector<8x64xf32>
    %264 = arith.addf %262, %263 : vector<8x64xf32>
    %265 = vector.extract_strided_slice %264 {offsets = [0, 0], sizes = [8, 32], strides = [1, 1]} : vector<8x64xf32> to vector<8x32xf32>
    %266 = vector.shape_cast %265 : vector<8x32xf32> to vector<2x4x32xf32>
    %267 = vector.extract_strided_slice %264 {offsets = [0, 32], sizes = [8, 32], strides = [1, 1]} : vector<8x64xf32> to vector<8x32xf32>
    %268 = vector.shape_cast %267 : vector<8x32xf32> to vector<2x4x32xf32>
    %269 = vector.extract_strided_slice %256 {offsets = [0, 0, 0], sizes = [2, 12, 8], strides = [1, 1, 1]} : vector<2x12x32xf32> to vector<2x12x8xf32>
    %270 = vector.extract_strided_slice %266 {offsets = [0, 0, 0], sizes = [2, 4, 8], strides = [1, 1, 1]} : vector<2x4x32xf32> to vector<2x4x8xf32>
    "tpu.trace_start"() <{level = 10 : i32, message = "bqd,bkd->bqk"}> : () -> ()
    %cst_123 = arith.constant dense<0.000000e+00> : vector<2x12x4xf32>
    %271 = tpu.matmul %269, %270, %cst_123 {dimension_numbers = #tpu.dot_dimension_numbers<[2], [2], [1], [1], [0, 0, 0, 1, 1, 1], [0], [0]>} : vector<2x12x8xf32>, vector<2x4x8xf32>, vector<2x12x4xf32> -> vector<2x12x4xf32>
    "tpu.trace_stop"() : () -> ()
    %cst_124 = arith.constant 0.353553385 : f32
    %272 = vector.broadcast %cst_124 : f32 to vector<2x12x4xf32>
    %273 = arith.mulf %271, %272 : vector<2x12x4xf32>
    %cst_125 = arith.constant dense<0xFF800000> : vector<2x12xf32>
    %274 = vector.multi_reduction <maximumf>, %273, %cst_125 [2] : vector<2x12x4xf32> to vector<2x12xf32>
    %275 = vector.shape_cast %274 : vector<2x12xf32> to vector<2x12x1xf32>
    %276 = vector.broadcast %275 : vector<2x12x1xf32> to vector<2x12x4xf32>
    %277 = arith.subf %273, %276 : vector<2x12x4xf32>
    %278 = math.exp %277 : vector<2x12x4xf32>
    %cst_126 = arith.constant dense<0.000000e+00> : vector<2x12xf32>
    %279 = vector.multi_reduction <add>, %278, %cst_126 [2] : vector<2x12x4xf32> to vector<2x12xf32>
    %280 = vector.shape_cast %279 : vector<2x12xf32> to vector<2x12x1xf32>
    %281 = tpu.reciprocal %280 {approx = true} : vector<2x12x1xf32> -> vector<2x12x1xf32>
    %282 = vector.broadcast %281 : vector<2x12x1xf32> to vector<2x12x4xf32>
    %283 = arith.mulf %278, %282 : vector<2x12x4xf32>
    %284 = vector.extract_strided_slice %268 {offsets = [0, 0, 0], sizes = [2, 4, 8], strides = [1, 1, 1]} : vector<2x4x32xf32> to vector<2x4x8xf32>
    "tpu.trace_start"() <{level = 10 : i32, message = "bqk,bkd->bqd"}> : () -> ()
    %cst_127 = arith.constant dense<0.000000e+00> : vector<2x12x8xf32>
    %285 = tpu.matmul %283, %284, %cst_127 {dimension_numbers = #tpu.dot_dimension_numbers<[2], [1], [1], [2], [0, 0, 0, 1, 1, 2], [0], [0]>} : vector<2x12x4xf32>, vector<2x4x8xf32>, vector<2x12x8xf32> -> vector<2x12x8xf32>
    "tpu.trace_stop"() : () -> ()
    %286 = vector.extract_strided_slice %256 {offsets = [0, 0, 8], sizes = [2, 12, 8], strides = [1, 1, 1]} : vector<2x12x32xf32> to vector<2x12x8xf32>
    %287 = vector.extract_strided_slice %266 {offsets = [0, 0, 8], sizes = [2, 4, 8], strides = [1, 1, 1]} : vector<2x4x32xf32> to vector<2x4x8xf32>
    "tpu.trace_start"() <{level = 10 : i32, message = "bqd,bkd->bqk"}> : () -> ()
    %cst_128 = arith.constant dense<0.000000e+00> : vector<2x12x4xf32>
    %288 = tpu.matmul %286, %287, %cst_128 {dimension_numbers = #tpu.dot_dimension_numbers<[2], [2], [1], [1], [0, 0, 0, 1, 1, 1], [0], [0]>} : vector<2x12x8xf32>, vector<2x4x8xf32>, vector<2x12x4xf32> -> vector<2x12x4xf32>
    "tpu.trace_stop"() : () -> ()
    %cst_129 = arith.constant 0.353553385 : f32
    %289 = vector.broadcast %cst_129 : f32 to vector<2x12x4xf32>
    %290 = arith.mulf %288, %289 : vector<2x12x4xf32>
    %cst_130 = arith.constant dense<0xFF800000> : vector<2x12xf32>
    %291 = vector.multi_reduction <maximumf>, %290, %cst_130 [2] : vector<2x12x4xf32> to vector<2x12xf32>
    %292 = vector.shape_cast %291 : vector<2x12xf32> to vector<2x12x1xf32>
    %293 = vector.broadcast %292 : vector<2x12x1xf32> to vector<2x12x4xf32>
    %294 = arith.subf %290, %293 : vector<2x12x4xf32>
    %295 = math.exp %294 : vector<2x12x4xf32>
    %cst_131 = arith.constant dense<0.000000e+00> : vector<2x12xf32>
    %296 = vector.multi_reduction <add>, %295, %cst_131 [2] : vector<2x12x4xf32> to vector<2x12xf32>
    %297 = vector.shape_cast %296 : vector<2x12xf32> to vector<2x12x1xf32>
    %298 = tpu.reciprocal %297 {approx = true} : vector<2x12x1xf32> -> vector<2x12x1xf32>
    %299 = vector.broadcast %298 : vector<2x12x1xf32> to vector<2x12x4xf32>
    %300 = arith.mulf %295, %299 : vector<2x12x4xf32>
    %301 = vector.extract_strided_slice %268 {offsets = [0, 0, 8], sizes = [2, 4, 8], strides = [1, 1, 1]} : vector<2x4x32xf32> to vector<2x4x8xf32>
    "tpu.trace_start"() <{level = 10 : i32, message = "bqk,bkd->bqd"}> : () -> ()
    %cst_132 = arith.constant dense<0.000000e+00> : vector<2x12x8xf32>
    %302 = tpu.matmul %300, %301, %cst_132 {dimension_numbers = #tpu.dot_dimension_numbers<[2], [1], [1], [2], [0, 0, 0, 1, 1, 2], [0], [0]>} : vector<2x12x4xf32>, vector<2x4x8xf32>, vector<2x12x8xf32> -> vector<2x12x8xf32>
    "tpu.trace_stop"() : () -> ()
    %303 = vector.extract_strided_slice %256 {offsets = [0, 0, 16], sizes = [2, 12, 8], strides = [1, 1, 1]} : vector<2x12x32xf32> to vector<2x12x8xf32>
    %304 = vector.extract_strided_slice %266 {offsets = [0, 0, 16], sizes = [2, 4, 8], strides = [1, 1, 1]} : vector<2x4x32xf32> to vector<2x4x8xf32>
    "tpu.trace_start"() <{level = 10 : i32, message = "bqd,bkd->bqk"}> : () -> ()
    %cst_133 = arith.constant dense<0.000000e+00> : vector<2x12x4xf32>
    %305 = tpu.matmul %303, %304, %cst_133 {dimension_numbers = #tpu.dot_dimension_numbers<[2], [2], [1], [1], [0, 0, 0, 1, 1, 1], [0], [0]>} : vector<2x12x8xf32>, vector<2x4x8xf32>, vector<2x12x4xf32> -> vector<2x12x4xf32>
    "tpu.trace_stop"() : () -> ()
    %cst_134 = arith.constant 0.353553385 : f32
    %306 = vector.broadcast %cst_134 : f32 to vector<2x12x4xf32>
    %307 = arith.mulf %305, %306 : vector<2x12x4xf32>
    %cst_135 = arith.constant dense<0xFF800000> : vector<2x12xf32>
    %308 = vector.multi_reduction <maximumf>, %307, %cst_135 [2] : vector<2x12x4xf32> to vector<2x12xf32>
    %309 = vector.shape_cast %308 : vector<2x12xf32> to vector<2x12x1xf32>
    %310 = vector.broadcast %309 : vector<2x12x1xf32> to vector<2x12x4xf32>
    %311 = arith.subf %307, %310 : vector<2x12x4xf32>
    %312 = math.exp %311 : vector<2x12x4xf32>
    %cst_136 = arith.constant dense<0.000000e+00> : vector<2x12xf32>
    %313 = vector.multi_reduction <add>, %312, %cst_136 [2] : vector<2x12x4xf32> to vector<2x12xf32>
    %314 = vector.shape_cast %313 : vector<2x12xf32> to vector<2x12x1xf32>
    %315 = tpu.reciprocal %314 {approx = true} : vector<2x12x1xf32> -> vector<2x12x1xf32>
    %316 = vector.broadcast %315 : vector<2x12x1xf32> to vector<2x12x4xf32>
    %317 = arith.mulf %312, %316 : vector<2x12x4xf32>
    %318 = vector.extract_strided_slice %268 {offsets = [0, 0, 16], sizes = [2, 4, 8], strides = [1, 1, 1]} : vector<2x4x32xf32> to vector<2x4x8xf32>
    "tpu.trace_start"() <{level = 10 : i32, message = "bqk,bkd->bqd"}> : () -> ()
    %cst_137 = arith.constant dense<0.000000e+00> : vector<2x12x8xf32>
    %319 = tpu.matmul %317, %318, %cst_137 {dimension_numbers = #tpu.dot_dimension_numbers<[2], [1], [1], [2], [0, 0, 0, 1, 1, 2], [0], [0]>} : vector<2x12x4xf32>, vector<2x4x8xf32>, vector<2x12x8xf32> -> vector<2x12x8xf32>
    "tpu.trace_stop"() : () -> ()
    %320 = vector.extract_strided_slice %256 {offsets = [0, 0, 24], sizes = [2, 12, 8], strides = [1, 1, 1]} : vector<2x12x32xf32> to vector<2x12x8xf32>
    %321 = vector.extract_strided_slice %266 {offsets = [0, 0, 24], sizes = [2, 4, 8], strides = [1, 1, 1]} : vector<2x4x32xf32> to vector<2x4x8xf32>
    "tpu.trace_start"() <{level = 10 : i32, message = "bqd,bkd->bqk"}> : () -> ()
    %cst_138 = arith.constant dense<0.000000e+00> : vector<2x12x4xf32>
    %322 = tpu.matmul %320, %321, %cst_138 {dimension_numbers = #tpu.dot_dimension_numbers<[2], [2], [1], [1], [0, 0, 0, 1, 1, 1], [0], [0]>} : vector<2x12x8xf32>, vector<2x4x8xf32>, vector<2x12x4xf32> -> vector<2x12x4xf32>
    "tpu.trace_stop"() : () -> ()
    %cst_139 = arith.constant 0.353553385 : f32
    %323 = vector.broadcast %cst_139 : f32 to vector<2x12x4xf32>
    %324 = arith.mulf %322, %323 : vector<2x12x4xf32>
    %cst_140 = arith.constant dense<0xFF800000> : vector<2x12xf32>
    %325 = vector.multi_reduction <maximumf>, %324, %cst_140 [2] : vector<2x12x4xf32> to vector<2x12xf32>
    %326 = vector.shape_cast %325 : vector<2x12xf32> to vector<2x12x1xf32>
    %327 = vector.broadcast %326 : vector<2x12x1xf32> to vector<2x12x4xf32>
    %328 = arith.subf %324, %327 : vector<2x12x4xf32>
    %329 = math.exp %328 : vector<2x12x4xf32>
    %cst_141 = arith.constant dense<0.000000e+00> : vector<2x12xf32>
    %330 = vector.multi_reduction <add>, %329, %cst_141 [2] : vector<2x12x4xf32> to vector<2x12xf32>
    %331 = vector.shape_cast %330 : vector<2x12xf32> to vector<2x12x1xf32>
    %332 = tpu.reciprocal %331 {approx = true} : vector<2x12x1xf32> -> vector<2x12x1xf32>
    %333 = vector.broadcast %332 : vector<2x12x1xf32> to vector<2x12x4xf32>
    %334 = arith.mulf %329, %333 : vector<2x12x4xf32>
    %335 = vector.extract_strided_slice %268 {offsets = [0, 0, 24], sizes = [2, 4, 8], strides = [1, 1, 1]} : vector<2x4x32xf32> to vector<2x4x8xf32>
    "tpu.trace_start"() <{level = 10 : i32, message = "bqk,bkd->bqd"}> : () -> ()
    %cst_142 = arith.constant dense<0.000000e+00> : vector<2x12x8xf32>
    %336 = tpu.matmul %334, %335, %cst_142 {dimension_numbers = #tpu.dot_dimension_numbers<[2], [1], [1], [2], [0, 0, 0, 1, 1, 2], [0], [0]>} : vector<2x12x4xf32>, vector<2x4x8xf32>, vector<2x12x8xf32> -> vector<2x12x8xf32>
    "tpu.trace_stop"() : () -> ()
    %337 = tpu.concatenate %285, %302, %319, %336 in 2 : vector<2x12x8xf32>, vector<2x12x8xf32>, vector<2x12x8xf32>, vector<2x12x8xf32> -> vector<2x12x32xf32>
    %338 = vector.shape_cast %337 : vector<2x12x32xf32> to vector<24x32xf32>
    %c1_143 = arith.constant 1 : index
    %c0_144 = arith.constant 0 : index
    %c0_145 = arith.constant 0 : index
    %339 = vector.load %arg13[%c1_143, %c0_144, %c0_145] : memref<2x32x32xf32, #tpu.memory_space<vmem>>, vector<1x32x32xf32>
    %340 = vector.shape_cast %339 : vector<1x32x32xf32> to vector<32x32xf32>
    %c1_146 = arith.constant 1 : index
    %c0_147 = arith.constant 0 : index
    %c0_148 = arith.constant 0 : index
    %341 = vector.load %arg14[%c1_146, %c0_147, %c0_148] : memref<2x1x32xf32, #tpu.memory_space<vmem>>, vector<1x1x32xf32>
    %342 = vector.shape_cast %341 : vector<1x1x32xf32> to vector<1x32xf32>
    %cst_149 = arith.constant dense<0.000000e+00> : vector<24x32xf32>
    %343 = tpu.matmul %338, %340, %cst_149 {dimension_numbers = #tpu.dot_dimension_numbers<[1], [0], [0], [1], [0, 0, 1, 1], [], []>} : vector<24x32xf32>, vector<32x32xf32>, vector<24x32xf32> -> vector<24x32xf32>
    %344 = vector.broadcast %342 : vector<1x32xf32> to vector<24x32xf32>
    %345 = arith.addf %343, %344 : vector<24x32xf32>
    %346 = vector.shape_cast %345 : vector<24x32xf32> to vector<2x12x32xf32>
    %347 = arith.addf %220, %346 : vector<2x12x32xf32>
    %348 = vector.shape_cast %347 : vector<2x12x32xf32> to vector<24x32xf32>
    %c1_150 = arith.constant 1 : index
    %c0_151 = arith.constant 0 : index
    %c0_152 = arith.constant 0 : index
    %349 = vector.load %arg15[%c1_150, %c0_151, %c0_152] : memref<2x1x32xf32, #tpu.memory_space<vmem>>, vector<1x1x32xf32>
    %350 = vector.shape_cast %349 : vector<1x1x32xf32> to vector<1x32xf32>
    %c1_153 = arith.constant 1 : index
    %c0_154 = arith.constant 0 : index
    %c0_155 = arith.constant 0 : index
    %351 = vector.load %arg16[%c1_153, %c0_154, %c0_155] : memref<2x1x32xf32, #tpu.memory_space<vmem>>, vector<1x1x32xf32>
    %352 = vector.shape_cast %351 : vector<1x1x32xf32> to vector<1x32xf32>
    %cst_156 = arith.constant dense<0.000000e+00> : vector<24xf32>
    %353 = vector.multi_reduction <add>, %348, %cst_156 [1] : vector<24x32xf32> to vector<24xf32>
    %354 = vector.shape_cast %353 : vector<24xf32> to vector<24x1xf32>
    %cst_157 = arith.constant 3.200000e+01 : f32
    %355 = vector.broadcast %cst_157 : f32 to vector<24x1xf32>
    %356 = arith.divf %354, %355 : vector<24x1xf32>
    %357 = vector.broadcast %356 : vector<24x1xf32> to vector<24x32xf32>
    %358 = arith.subf %348, %357 : vector<24x32xf32>
    %359 = arith.mulf %358, %358 : vector<24x32xf32>
    %cst_158 = arith.constant dense<0.000000e+00> : vector<24xf32>
    %360 = vector.multi_reduction <add>, %359, %cst_158 [1] : vector<24x32xf32> to vector<24xf32>
    %361 = vector.shape_cast %360 : vector<24xf32> to vector<24x1xf32>
    %cst_159 = arith.constant 3.200000e+01 : f32
    %362 = vector.broadcast %cst_159 : f32 to vector<24x1xf32>
    %363 = arith.divf %361, %362 : vector<24x1xf32>
    %364 = vector.broadcast %356 : vector<24x1xf32> to vector<24x32xf32>
    %365 = arith.subf %348, %364 : vector<24x32xf32>
    %cst_160 = arith.constant 9.99999974E-6 : f32
    %366 = vector.broadcast %cst_160 : f32 to vector<24x1xf32>
    %367 = arith.addf %363, %366 : vector<24x1xf32>
    %368 = math.rsqrt %367 : vector<24x1xf32>
    %369 = vector.broadcast %368 : vector<24x1xf32> to vector<24x32xf32>
    %370 = arith.mulf %365, %369 : vector<24x32xf32>
    %371 = vector.broadcast %350 : vector<1x32xf32> to vector<24x32xf32>
    %372 = arith.mulf %370, %371 : vector<24x32xf32>
    %373 = vector.broadcast %352 : vector<1x32xf32> to vector<24x32xf32>
    %374 = arith.addf %372, %373 : vector<24x32xf32>
    %c1_161 = arith.constant 1 : index
    %c0_162 = arith.constant 0 : index
    %c0_163 = arith.constant 0 : index
    %375 = vector.load %arg17[%c1_161, %c0_162, %c0_163] : memref<2x32x128xf32, #tpu.memory_space<vmem>>, vector<1x32x128xf32>
    %376 = vector.shape_cast %375 : vector<1x32x128xf32> to vector<32x128xf32>
    %c1_164 = arith.constant 1 : index
    %c0_165 = arith.constant 0 : index
    %c0_166 = arith.constant 0 : index
    %377 = vector.load %arg18[%c1_164, %c0_165, %c0_166] : memref<2x1x128xf32, #tpu.memory_space<vmem>>, vector<1x1x128xf32>
    %378 = vector.shape_cast %377 : vector<1x1x128xf32> to vector<1x128xf32>
    %cst_167 = arith.constant dense<0.000000e+00> : vector<24x128xf32>
    %379 = tpu.matmul %374, %376, %cst_167 {dimension_numbers = #tpu.dot_dimension_numbers<[1], [0], [0], [1], [0, 0, 1, 1], [], []>} : vector<24x32xf32>, vector<32x128xf32>, vector<24x128xf32> -> vector<24x128xf32>
    %380 = vector.broadcast %378 : vector<1x128xf32> to vector<24x128xf32>
    %381 = arith.addf %379, %380 : vector<24x128xf32>
    %382 = arith.mulf %381, %381 : vector<24x128xf32>
    %383 = arith.mulf %381, %382 : vector<24x128xf32>
    %cst_168 = arith.constant 4.471500e-02 : f32
    %384 = vector.broadcast %cst_168 : f32 to vector<24x128xf32>
    %385 = arith.mulf %384, %383 : vector<24x128xf32>
    %386 = arith.addf %381, %385 : vector<24x128xf32>
    %cst_169 = arith.constant 0.797884583 : f32
    %387 = vector.broadcast %cst_169 : f32 to vector<24x128xf32>
    %388 = arith.mulf %387, %386 : vector<24x128xf32>
    %389 = math.tanh %388 : vector<24x128xf32>
    %cst_170 = arith.constant 1.000000e+00 : f32
    %390 = vector.broadcast %cst_170 : f32 to vector<24x128xf32>
    %391 = arith.addf %390, %389 : vector<24x128xf32>
    %cst_171 = arith.constant 5.000000e-01 : f32
    %392 = vector.broadcast %cst_171 : f32 to vector<24x128xf32>
    %393 = arith.mulf %392, %391 : vector<24x128xf32>
    %394 = arith.mulf %381, %393 : vector<24x128xf32>
    %c1_172 = arith.constant 1 : index
    %c0_173 = arith.constant 0 : index
    %c0_174 = arith.constant 0 : index
    %395 = vector.load %arg19[%c1_172, %c0_173, %c0_174] : memref<2x128x32xf32, #tpu.memory_space<vmem>>, vector<1x128x32xf32>
    %396 = vector.shape_cast %395 : vector<1x128x32xf32> to vector<128x32xf32>
    %c1_175 = arith.constant 1 : index
    %c0_176 = arith.constant 0 : index
    %c0_177 = arith.constant 0 : index
    %397 = vector.load %arg20[%c1_175, %c0_176, %c0_177] : memref<2x1x32xf32, #tpu.memory_space<vmem>>, vector<1x1x32xf32>
    %398 = vector.shape_cast %397 : vector<1x1x32xf32> to vector<1x32xf32>
    %cst_178 = arith.constant dense<0.000000e+00> : vector<24x32xf32>
    %399 = tpu.matmul %394, %396, %cst_178 {dimension_numbers = #tpu.dot_dimension_numbers<[1], [0], [0], [1], [0, 0, 1, 1], [], []>} : vector<24x128xf32>, vector<128x32xf32>, vector<24x32xf32> -> vector<24x32xf32>
    %400 = vector.broadcast %398 : vector<1x32xf32> to vector<24x32xf32>
    %401 = arith.addf %399, %400 : vector<24x32xf32>
    %402 = vector.shape_cast %401 : vector<24x32xf32> to vector<2x12x32xf32>
    %403 = arith.addf %347, %402 : vector<2x12x32xf32>
    %404 = vector.shape_cast %403 : vector<2x12x32xf32> to vector<24x32xf32>
    %c0_179 = arith.constant 0 : index
    %c0_180 = arith.constant 0 : index
    %405 = vector.load %arg21[%c0_179, %c0_180] : memref<1x32xf32, #tpu.memory_space<vmem>>, vector<1x32xf32>
    %c0_181 = arith.constant 0 : index
    %c0_182 = arith.constant 0 : index
    %406 = vector.load %arg22[%c0_181, %c0_182] : memref<1x32xf32, #tpu.memory_space<vmem>>, vector<1x32xf32>
    %cst_183 = arith.constant dense<0.000000e+00> : vector<24xf32>
    %407 = vector.multi_reduction <add>, %404, %cst_183 [1] : vector<24x32xf32> to vector<24xf32>
    %408 = vector.shape_cast %407 : vector<24xf32> to vector<24x1xf32>
    %cst_184 = arith.constant 3.200000e+01 : f32
    %409 = vector.broadcast %cst_184 : f32 to vector<24x1xf32>
    %410 = arith.divf %408, %409 : vector<24x1xf32>
    %411 = vector.broadcast %410 : vector<24x1xf32> to vector<24x32xf32>
    %412 = arith.subf %404, %411 : vector<24x32xf32>
    %413 = arith.mulf %412, %412 : vector<24x32xf32>
    %cst_185 = arith.constant dense<0.000000e+00> : vector<24xf32>
    %414 = vector.multi_reduction <add>, %413, %cst_185 [1] : vector<24x32xf32> to vector<24xf32>
    %415 = vector.shape_cast %414 : vector<24xf32> to vector<24x1xf32>
    %cst_186 = arith.constant 3.200000e+01 : f32
    %416 = vector.broadcast %cst_186 : f32 to vector<24x1xf32>
    %417 = arith.divf %415, %416 : vector<24x1xf32>
    %418 = vector.broadcast %410 : vector<24x1xf32> to vector<24x32xf32>
    %419 = arith.subf %404, %418 : vector<24x32xf32>
    %cst_187 = arith.constant 9.99999974E-6 : f32
    %420 = vector.broadcast %cst_187 : f32 to vector<24x1xf32>
    %421 = arith.addf %417, %420 : vector<24x1xf32>
    %422 = math.rsqrt %421 : vector<24x1xf32>
    %423 = vector.broadcast %422 : vector<24x1xf32> to vector<24x32xf32>
    %424 = arith.mulf %419, %423 : vector<24x32xf32>
    %425 = vector.broadcast %405 : vector<1x32xf32> to vector<24x32xf32>
    %426 = arith.mulf %424, %425 : vector<24x32xf32>
    %427 = vector.broadcast %406 : vector<1x32xf32> to vector<24x32xf32>
    %428 = arith.addf %426, %427 : vector<24x32xf32>
    %c0_188 = arith.constant 0 : index
    %c0_189 = arith.constant 0 : index
    %429 = vector.load %arg23[%c0_188, %c0_189] : memref<32x48xf32, #tpu.memory_space<vmem>>, vector<32x48xf32>
    %c0_190 = arith.constant 0 : index
    %c0_191 = arith.constant 0 : index
    %430 = vector.load %arg24[%c0_190, %c0_191] : memref<1x48xf32, #tpu.memory_space<vmem>>, vector<1x48xf32>
    %cst_192 = arith.constant dense<0.000000e+00> : vector<24x48xf32>
    %431 = tpu.matmul %428, %429, %cst_192 {dimension_numbers = #tpu.dot_dimension_numbers<[1], [0], [0], [1], [0, 0, 1, 1], [], []>} : vector<24x32xf32>, vector<32x48xf32>, vector<24x48xf32> -> vector<24x48xf32>
    %432 = vector.broadcast %430 : vector<1x48xf32> to vector<24x48xf32>
    %433 = arith.addf %431, %432 : vector<24x48xf32>
    %434 = vector.shape_cast %433 : vector<24x48xf32> to vector<2x12x48xf32>
    %435 = vector.shape_cast %221 : vector<2x4x32xf32> to vector<8x32xf32>
    %c0_193 = arith.constant 0 : index
    %c0_194 = arith.constant 0 : index
    %436 = vector.load %arg23[%c0_193, %c0_194] : memref<32x48xf32, #tpu.memory_space<vmem>>, vector<32x48xf32>
    %c0_195 = arith.constant 0 : index
    %c0_196 = arith.constant 0 : index
    %437 = vector.load %arg24[%c0_195, %c0_196] : memref<1x48xf32, #tpu.memory_space<vmem>>, vector<1x48xf32>
    %cst_197 = arith.constant dense<0.000000e+00> : vector<8x48xf32>
    %438 = tpu.matmul %435, %436, %cst_197 {dimension_numbers = #tpu.dot_dimension_numbers<[1], [0], [0], [1], [0, 0, 1, 1], [], []>} : vector<8x32xf32>, vector<32x48xf32>, vector<8x48xf32> -> vector<8x48xf32>
    %439 = vector.broadcast %437 : vector<1x48xf32> to vector<8x48xf32>
    %440 = arith.addf %438, %439 : vector<8x48xf32>
    %441 = vector.shape_cast %440 : vector<8x48xf32> to vector<2x4x48xf32>
    %442 = tpu.iota {dimensions = array<i32: 2>} : vector<2x16x16xi32>
    %c0_198 = arith.constant 0 : index
    %c0_199 = arith.constant 0 : index
    %443 = vector.load %arg2[%c0_198, %c0_199] : memref<2x16xi32, #tpu.memory_space<vmem>>, vector<2x16xi32>
    %444 = vector.shape_cast %443 : vector<2x16xi32> to vector<2x16x1xi32>
    %445 = vector.broadcast %444 : vector<2x16x1xi32> to vector<2x16x16xi32>
    %446 = arith.cmpi eq, %442, %445 : vector<2x16x16xi32>
    %cst_200 = arith.constant 1.000000e+00 : f32
    %cst_201 = arith.constant 0.000000e+00 : f32
    %447 = vector.broadcast %cst_200 : f32 to vector<2x16x16xf32>
    %448 = vector.broadcast %cst_201 : f32 to vector<2x16x16xf32>
    %449 = arith.select %446, %447, %448 : vector<2x16x16xi1>, vector<2x16x16xf32>
    %450 = vector.extract_strided_slice %449 {offsets = [0, 0, 0], sizes = [2, 16, 4], strides = [1, 1, 1]} : vector<2x16x16xf32> to vector<2x16x4xf32>
    "tpu.trace_start"() <{level = 10 : i32, message = "bip,bpd->bid"}> : () -> ()
    %cst_202 = arith.constant dense<0.000000e+00> : vector<2x16x48xf32>
    %451 = tpu.matmul %450, %441, %cst_202 {dimension_numbers = #tpu.dot_dimension_numbers<[2], [1], [1], [2], [0, 0, 0, 1, 1, 2], [0], [0]>} : vector<2x16x4xf32>, vector<2x4x48xf32>, vector<2x16x48xf32> -> vector<2x16x48xf32>
    "tpu.trace_stop"() : () -> ()
    %452 = vector.extract_strided_slice %449 {offsets = [0, 0, 4], sizes = [2, 16, 12], strides = [1, 1, 1]} : vector<2x16x16xf32> to vector<2x16x12xf32>
    "tpu.trace_start"() <{level = 10 : i32, message = "bip,bpd->bid"}> : () -> ()
    %cst_203 = arith.constant dense<0.000000e+00> : vector<2x16x48xf32>
    %453 = tpu.matmul %452, %434, %cst_203 {dimension_numbers = #tpu.dot_dimension_numbers<[2], [1], [1], [2], [0, 0, 0, 1, 1, 2], [0], [0]>} : vector<2x16x12xf32>, vector<2x12x48xf32>, vector<2x16x48xf32> -> vector<2x16x48xf32>
    "tpu.trace_stop"() : () -> ()
    %454 = arith.addf %451, %453 : vector<2x16x48xf32>
    %c0_204 = arith.constant 0 : index
    %c0_205 = arith.constant 0 : index
    %c0_206 = arith.constant 0 : index
    %455 = vector.load %arg25[%c0_204, %c0_205, %c0_206] : memref<2x16x48xf32, #tpu.memory_space<vmem>>, vector<2x16x48xf32>
    tpu.vector_store %arg25[%c0_204, %c0_205, %c0_206], %454 {strides = array<i32>} : memref<2x16x48xf32, #tpu.memory_space<vmem>>, vector<2x16x48xf32>,
    return
  }
}

</mosaic_0001>

<llo_original>
// kernel: _lambda_.1
$region0: #{_lambda_.1}
  #allocation0 [shape = 'u32[]', space=smem, size = 0x4, offset = 0x4, fixed_abs, tag = 'smem constant byte address 0x4 - core index']
  #allocation1 [shape = 'u32[144,128]{1,0:T(1,128)}', space=vmem, size = 0x12000, scoped, tag = 'internal scratch']
  %s0 = inlined_call_operand.vmem [shape: f32[2,4,32], index: 0, kind: input, shape index: {}]
  %s1 = inlined_call_operand.vmem [shape: s32[2,16], index: 1, kind: input, shape index: {}]
  %s2 = inlined_call_operand.vmem [shape: s32[2,16], index: 2, kind: input, shape index: {}]
  %s3 = inlined_call_operand.vmem [shape: f32[16,32], index: 3, kind: input, shape index: {}]
  %s4 = inlined_call_operand.vmem [shape: f32[1,32], index: 4, kind: input, shape index: {}]
  %s5 = inlined_call_operand.vmem [shape: f32[32,32], index: 5, kind: input, shape index: {}]
  %s6 = inlined_call_operand.vmem [shape: f32[1,32], index: 6, kind: input, shape index: {}]
  %s7 = inlined_call_operand.vmem [shape: f32[2,1,32], index: 7, kind: input, shape index: {}]
  %s8 = inlined_call_operand.vmem [shape: f32[2,1,32], index: 8, kind: input, shape index: {}]
  %s9 = inlined_call_operand.vmem [shape: f32[2,32,32], index: 9, kind: input, shape index: {}]
  %s10 = inlined_call_operand.vmem [shape: f32[2,1,32], index: 10, kind: input, shape index: {}]
  %s11 = inlined_call_operand.vmem [shape: f32[2,32,64], index: 11, kind: input, shape index: {}]
  %s12 = inlined_call_operand.vmem [shape: f32[2,1,64], index: 12, kind: input, shape index: {}]
  %s13 = inlined_call_operand.vmem [shape: f32[2,32,32], index: 13, kind: input, shape index: {}]
  %s14 = inlined_call_operand.vmem [shape: f32[2,1,32], index: 14, kind: input, shape index: {}]
  %s15 = inlined_call_operand.vmem [shape: f32[2,1,32], index: 15, kind: input, shape index: {}]
  %s16 = inlined_call_operand.vmem [shape: f32[2,1,32], index: 16, kind: input, shape index: {}]
  %s17 = inlined_call_operand.vmem [shape: f32[2,32,128], index: 17, kind: input, shape index: {}]
  %s18 = inlined_call_operand.vmem [shape: f32[2,1,128], index: 18, kind: input, shape index: {}]
  %s19 = inlined_call_operand.vmem [shape: f32[2,128,32], index: 19, kind: input, shape index: {}]
  %s20 = inlined_call_operand.vmem [shape: f32[2,1,32], index: 20, kind: input, shape index: {}]
  %s21 = inlined_call_operand.vmem [shape: f32[1,32], index: 21, kind: input, shape index: {}]
  %s22 = inlined_call_operand.vmem [shape: f32[1,32], index: 22, kind: input, shape index: {}]
  %s23 = inlined_call_operand.vmem [shape: f32[32,48], index: 23, kind: input, shape index: {}]
  %s24 = inlined_call_operand.vmem [shape: f32[1,48], index: 24, kind: input, shape index: {}]
  %s25 = inlined_call_operand.hbm [shape: f32[2,16,48], index: 25, kind: output, shape index: {}]
  %s26 = sld [smem:[#allocation0]]
  $region110: #{_lambda_.1} parent=0
    _
  %s28 = ssub.s32 1, %s26
  %s29 = scalar_select 0, %s28, %s26
  $region1: #{_lambda_.1} parent=0
    #allocation2 [shape = 'u8[16384]{0}', space=vmem, size = 0x4000, scoped, tag = 'output window, operand 0, single buffered']
    #allocation3 [shape = 's32[1]{0}', space=sflag, size = 0x4, scoped, tag = 'scoped memory for _lambda_.1']
    %30 = vsyncpa [#allocation3], 0
    // Predicated region
    $region2: #{_lambda_.1} parent=1 // pred_check
      _
    $region3: #{_lambda_.1} parent=1 // pred_check_branch
      %32 = sbr.rel (0) target = $region5
    $region4: #{_lambda_.1} parent=1 // pred_region
      _
    $region5: #{_lambda_.1} parent=1 // pred_fallthru
      _
    // Predicated region
    $region6: #{_lambda_.1} parent=1 // pred_check
      _
    $region7: #{_lambda_.1} parent=1 // pred_check_branch
      %34 = sbr.rel (0) target = $region9
    $region8: #{_lambda_.1} parent=1 // pred_region
      _
    $region9: #{_lambda_.1} parent=1 // pred_fallthru
      _
    // Predicated region
    $region10: #{_lambda_.1} parent=1 // pred_check
      _
    $region11: #{_lambda_.1} parent=1 // pred_check_branch
      %36 = sbr.rel (0) target = $region13
    $region12: #{_lambda_.1} parent=1 // pred_region
      _
    $region13: #{_lambda_.1} parent=1 // pred_fallthru
      _
    // Predicated region
    $region14: #{_lambda_.1} parent=1 // pred_check
      _
    $region15: #{_lambda_.1} parent=1 // pred_check_branch
      %38 = sbr.rel (0) target = $region17
    $region16: #{_lambda_.1} parent=1 // pred_region
      _
    $region17: #{_lambda_.1} parent=1 // pred_fallthru
      _
    // Predicated region
    $region18: #{_lambda_.1} parent=1 // pred_check
      _
    $region19: #{_lambda_.1} parent=1 // pred_check_branch
      %40 = sbr.rel (0) target = $region21
    $region20: #{_lambda_.1} parent=1 // pred_region
      _
    $region21: #{_lambda_.1} parent=1 // pred_fallthru
      _
    // Predicated region
    $region22: #{_lambda_.1} parent=1 // pred_check
      _
    $region23: #{_lambda_.1} parent=1 // pred_check_branch
      %42 = sbr.rel (0) target = $region25
    $region24: #{_lambda_.1} parent=1 // pred_region
      _
    $region25: #{_lambda_.1} parent=1 // pred_fallthru
      _
    // Predicated region
    $region26: #{_lambda_.1} parent=1 // pred_check
      _
    $region27: #{_lambda_.1} parent=1 // pred_check_branch
      %44 = sbr.rel (0) target = $region29
    $region28: #{_lambda_.1} parent=1 // pred_region
      _
    $region29: #{_lambda_.1} parent=1 // pred_fallthru
      _
    // Predicated region
    $region30: #{_lambda_.1} parent=1 // pred_check
      _
    $region31: #{_lambda_.1} parent=1 // pred_check_branch
      %46 = sbr.rel (0) target = $region33
    $region32: #{_lambda_.1} parent=1 // pred_region
      _
    $region33: #{_lambda_.1} parent=1 // pred_fallthru
      _
    // Predicated region
    $region34: #{_lambda_.1} parent=1 // pred_check
      _
    $region35: #{_lambda_.1} parent=1 // pred_check_branch
      %48 = sbr.rel (0) target = $region37
    $region36: #{_lambda_.1} parent=1 // pred_region
      _
    $region37: #{_lambda_.1} parent=1 // pred_fallthru
      _
    // Predicated region
    $region38: #{_lambda_.1} parent=1 // pred_check
      _
    $region39: #{_lambda_.1} parent=1 // pred_check_branch
      %50 = sbr.rel (0) target = $region41
    $region40: #{_lambda_.1} parent=1 // pred_region
      _
    $region41: #{_lambda_.1} parent=1 // pred_fallthru
      _
    // Predicated region
    $region42: #{_lambda_.1} parent=1 // pred_check
      _
    $region43: #{_lambda_.1} parent=1 // pred_check_branch
      %52 = sbr.rel (0) target = $region45
    $region44: #{_lambda_.1} parent=1 // pred_region
      _
    $region45: #{_lambda_.1} parent=1 // pred_fallthru
      _
    // Predicated region
    $region46: #{_lambda_.1} parent=1 // pred_check
      _
    $region47: #{_lambda_.1} parent=1 // pred_check_branch
      %54 = sbr.rel (0) target = $region49
    $region48: #{_lambda_.1} parent=1 // pred_region
      _
    $region49: #{_lambda_.1} parent=1 // pred_fallthru
      _
    // Predicated region
    $region50: #{_lambda_.1} parent=1 // pred_check
      _
    $region51: #{_lambda_.1} parent=1 // pred_check_branch
      %56 = sbr.rel (0) target = $region53
    $region52: #{_lambda_.1} parent=1 // pred_region
      _
    $region53: #{_lambda_.1} parent=1 // pred_fallthru
      _
    // Predicated region
    $region54: #{_lambda_.1} parent=1 // pred_check
      _
    $region55: #{_lambda_.1} parent=1 // pred_check_branch
      %58 = sbr.rel (0) target = $region57
    $region56: #{_lambda_.1} parent=1 // pred_region
      _
    $region57: #{_lambda_.1} parent=1 // pred_fallthru
      _
    // Predicated region
    $region58: #{_lambda_.1} parent=1 // pred_check
      _
    $region59: #{_lambda_.1} parent=1 // pred_check_branch
      %60 = sbr.rel (0) target = $region61
    $region60: #{_lambda_.1} parent=1 // pred_region
      _
    $region61: #{_lambda_.1} parent=1 // pred_fallthru
      _
    // Predicated region
    $region62: #{_lambda_.1} parent=1 // pred_check
      _
    $region63: #{_lambda_.1} parent=1 // pred_check_branch
      %62 = sbr.rel (0) target = $region65
    $region64: #{_lambda_.1} parent=1 // pred_region
      _
    $region65: #{_lambda_.1} parent=1 // pred_fallthru
      _
    // Predicated region
    $region66: #{_lambda_.1} parent=1 // pred_check
      _
    $region67: #{_lambda_.1} parent=1 // pred_check_branch
      %64 = sbr.rel (0) target = $region69
    $region68: #{_lambda_.1} parent=1 // pred_region
      _
    $region69: #{_lambda_.1} parent=1 // pred_fallthru
      _
    // Predicated region
    $region70: #{_lambda_.1} parent=1 // pred_check
      _
    $region71: #{_lambda_.1} parent=1 // pred_check_branch
      %66 = sbr.rel (0) target = $region73
    $region72: #{_lambda_.1} parent=1 // pred_region
      _
    $region73: #{_lambda_.1} parent=1 // pred_fallthru
      _
    // Predicated region
    $region74: #{_lambda_.1} parent=1 // pred_check
      _
    $region75: #{_lambda_.1} parent=1 // pred_check_branch
      %68 = sbr.rel (0) target = $region77
    $region76: #{_lambda_.1} parent=1 // pred_region
      _
    $region77: #{_lambda_.1} parent=1 // pred_fallthru
      _
    // Predicated region
    $region78: #{_lambda_.1} parent=1 // pred_check
      _
    $region79: #{_lambda_.1} parent=1 // pred_check_branch
      %70 = sbr.rel (0) target = $region81
    $region80: #{_lambda_.1} parent=1 // pred_region
      _
    $region81: #{_lambda_.1} parent=1 // pred_fallthru
      _
    // Predicated region
    $region82: #{_lambda_.1} parent=1 // pred_check
      _
    $region83: #{_lambda_.1} parent=1 // pred_check_branch
      %72 = sbr.rel (0) target = $region85
    $region84: #{_lambda_.1} parent=1 // pred_region
      _
    $region85: #{_lambda_.1} parent=1 // pred_fallthru
      _
    // Predicated region
    $region86: #{_lambda_.1} parent=1 // pred_check
      _
    $region87: #{_lambda_.1} parent=1 // pred_check_branch
      %74 = sbr.rel (0) target = $region89
    $region88: #{_lambda_.1} parent=1 // pred_region
      _
    $region89: #{_lambda_.1} parent=1 // pred_fallthru
      _
    // Predicated region
    $region90: #{_lambda_.1} parent=1 // pred_check
      _
    $region91: #{_lambda_.1} parent=1 // pred_check_branch
      %76 = sbr.rel (0) target = $region93
    $region92: #{_lambda_.1} parent=1 // pred_region
      _
    $region93: #{_lambda_.1} parent=1 // pred_fallthru
      _
    // Predicated region
    $region94: #{_lambda_.1} parent=1 // pred_check
      _
    $region95: #{_lambda_.1} parent=1 // pred_check_branch
      %78 = sbr.rel (0) target = $region97
    $region96: #{_lambda_.1} parent=1 // pred_region
      _
    $region97: #{_lambda_.1} parent=1 // pred_fallthru
      _
    // Predicated region
    $region98: #{_lambda_.1} parent=1 // pred_check
      _
    $region99: #{_lambda_.1} parent=1 // pred_check_branch
      %80 = sbr.rel (0) target = $region101
    $region100: #{_lambda_.1} parent=1 // pred_region
      _
    $region101: #{_lambda_.1} parent=1 // pred_fallthru
      _
    %v81 = vld [vmem:[%s3] sm:$0xff]
    %v82 = vld [vmem:[%s3 + $0x8] sm:$0xff]
    %v83 = vld [vmem:[%s1] sm:$0x3]
    %v84 = vlaneseq
    %v85 = vand.u32 %v84, 127
    %v86 = vlaneseq
    %v87 = vshrl.u32 %v86, 7
    %v88 = vsub.s32 0, %v87
    %v89 = vrot.slane %v83, %v88
    %s91 = sor.u32 256, 4
    %92 = vbcast.lane.b32.xlu0 %v89, %s91
    %v93 = vpop.permute.xlu0 %92
    %s95 = sor.u32 256, 12
    %96 = vbcast.lane.b32.xlu0 %v89, %s95
    %v97 = vpop.permute.xlu0 %96
    %v98 = vlaneseq
    %v99 = vshrl.u32 %v98, 7
    %v100 = vsub.s32 1, %v99
    %v101 = vrot.slane %v83, %v100
    %s103 = sor.u32 256, 4
    %104 = vbcast.lane.b32.xlu0 %v101, %s103
    %v105 = vpop.permute.xlu0 %104
    %s107 = sor.u32 256, 12
    %108 = vbcast.lane.b32.xlu0 %v101, %s107
    %v109 = vpop.permute.xlu0 %108
    %vm110 = vcmp.eq.s32.totalorder %v85, %v93
    %vm111 = vcmp.eq.s32.totalorder %v85, %v97
    %vm112 = vcmp.eq.s32.totalorder %v85, %v105
    %vm113 = vcmp.eq.s32.totalorder %v85, %v109
    %v114 = vsel %vm110, 1.0, 0.0
    %v115 = vsel %vm111, 1.0, 0.0
    %v116 = vsel %vm112, 1.0, 0.0
    %v117 = vsel %vm113, 1.0, 0.0
    %119 = vbcast.lane.b32.xlu0 %v89, 256
    %v120 = vpop.permute.xlu0 %119
    %122 = vbcast.lane.b32.xlu0 %v101, 256
    %v123 = vpop.permute.xlu0 %122
    %vm124 = vcmp.eq.s32.totalorder %v85, %v120
    %vm125 = vcmp.eq.s32.totalorder %v85, %v123
    %v126 = vsel %vm124, 1.0, 0.0
    %v127 = vsel %vm125, 1.0, 0.0
    %v132 = vcombine.high %v114, %v114
    %v133 = vcombine.high %v116, %v116
    %v134 = vcombine.low %v114, %v132
    %v135 = vcombine.low %v115, %v116
    %v136 = vcombine.low %v133, %v117
    %vm137 = vcmask 130048
    %v138 = vsel %vm137, %v134, 0
    %v140 = vsel %vm137, %v135, 0
    %v142 = vsel %vm137, %v136, 0
    %144 = vmatprep.subr.mxu0 0.0
    %145 = vmatpush1.msra.mxu0 %v81
    %146 = vmatprep.subr.mxu0 0.0
    %147 = vmatpush1.msra.mxu0 %v82
    %148 = vmatprep.subr.mxu0 0.0
    %149 = vmatpush1.msra.mxu0 0.0
    %150 = vmatprep.subr.mxu0 0.0
    %151 = vmatpush1.msra.mxu0 0.0
    %152 = vmatprep.subr.mxu0 0.0
    %153 = vmatpush1.msra.mxu0 0.0
    %154 = vmatprep.subr.mxu0 0.0
    %155 = vmatpush1.msra.mxu0 0.0
    %156 = vmatprep.subr.mxu0 0.0
    %157 = vmatpush1.msra.mxu0 0.0
    %158 = vmatprep.subr.mxu0 0.0
    %159 = vmatpush1.msra.mxu0 0.0
    %160 = vmatprep.subr.mxu0 0.0
    %161 = vmatpush1.msra.mxu0 0.0
    %162 = vmatprep.subr.mxu0 0.0
    %163 = vmatpush1.msra.mxu0 0.0
    %164 = vmatprep.subr.mxu0 0.0
    %165 = vmatpush1.msra.mxu0 0.0
    %166 = vmatprep.subr.mxu0 0.0
    %167 = vmatpush1.msra.mxu0 0.0
    %168 = vmatprep.subr.mxu0 0.0
    %169 = vmatpush1.msra.mxu0 0.0
    %170 = vmatprep.subr.mxu0 0.0
    %171 = vmatpush1.msra.mxu0 0.0
    %172 = vmatprep.subr.mxu0 0.0
    %173 = vmatpush1.msra.mxu0 0.0
    %174 = vmatprep.subr.mxu0 0.0
    %175 = vmatpush1.msra.mxu0 0.0
    %176 = vmatprep.subr.mxu0 0.0
    %177 = vmatpush1.msra.mxu0 0.0
    %178 = vmatprep.subr.mxu0 0.0
    %179 = vmatpush1.msra.mxu0 0.0
    %180 = vmatprep.subr.mxu0 0.0
    %181 = vmatpush1.msra.mxu0 0.0
    %182 = vmatprep.subr.mxu0 0.0
    %183 = vmatpush1.msra.mxu0 0.0
    %184 = vmatprep.subr.mxu0 0.0
    %185 = vmatpush1.msra.mxu0 0.0
    %186 = vmatprep.subr.mxu0 0.0
    %187 = vmatpush1.msra.mxu0 0.0
    %188 = vmatprep.subr.mxu0 0.0
    %189 = vmatpush1.msra.mxu0 0.0
    %190 = vmatprep.subr.mxu0 0.0
    %191 = vmatpush1.msra.mxu0 0.0
    %192 = vmatprep.subr.mxu0 0.0
    %193 = vmatpush1.msra.mxu0 0.0
    %194 = vmatprep.subr.mxu0 0.0
    %195 = vmatpush1.msra.mxu0 0.0
    %196 = vmatprep.subr.mxu0 0.0
    %197 = vmatpush1.msra.mxu0 0.0
    %198 = vmatprep.subr.mxu0 0.0
    %199 = vmatpush1.msra.mxu0 0.0
    %200 = vmatprep.subr.mxu0 0.0
    %201 = vmatpush1.msra.mxu0 0.0
    %202 = vmatprep.subr.mxu0 0.0
    %203 = vmatpush1.msra.mxu0 0.0
    %204 = vmatprep.subr.mxu0 0.0
    %205 = vmatpush1.msra.mxu0 0.0
    %206 = vmatprep.subr.mxu0 0.0
    %207 = vmatpush1.msra.mxu0 0.0
    %208 = vmatprep.mubr.f32.mxu0 0.0
    %209 = vmatmul.mubr.f32.gmra.mrb[0].mxu0 %v138
    %v210 = vpop.f32.mrb[0].mxu0
    %v211 = vadd.f32 0.0, %v210
    %v212 = vpop.f32.mrb[0].mxu0
    %213 = vmatprep.mubr.f32.mxu0 0.0
    %214 = vmatmul.mubr.f32.gmra.mrb[0].mxu0 %v140
    %v215 = vpop.f32.mrb[0].mxu0
    %v216 = vadd.f32 0.0, %v215
    %v217 = vpop.f32.mrb[0].mxu0
    %218 = vmatprep.mubr.f32.mxu0 0.0
    %219 = vmatmul.mubr.f32.gmra.mrb[0].mxu0 %v142
    %v220 = vpop.f32.mrb[0].mxu0
    %v221 = vadd.f32 0.0, %v220
    %v222 = vpop.f32.mrb[0].mxu0
    %223 = vdwg.mxu0
    %v227 = vcombine.high %v211, %v211
    %v228 = vcombine.high %v216, %v216
    %v229 = vcombine.high %v221, %v221
    %v235 = vcombine.low %v126, %v127
    %v236 = vsel %vm137, %v235, 0
    %238 = vmatprep.subr.mxu0 0.0
    %239 = vmatpush1.msra.mxu0 %v81
    %240 = vmatprep.subr.mxu0 0.0
    %241 = vmatpush1.msra.mxu0 %v82
    %242 = vmatprep.subr.mxu0 0.0
    %243 = vmatpush1.msra.mxu0 0.0
    %244 = vmatprep.subr.mxu0 0.0
    %245 = vmatpush1.msra.mxu0 0.0
    %246 = vmatprep.subr.mxu0 0.0
    %247 = vmatpush1.msra.mxu0 0.0
    %248 = vmatprep.subr.mxu0 0.0
    %249 = vmatpush1.msra.mxu0 0.0
    %250 = vmatprep.subr.mxu0 0.0
    %251 = vmatpush1.msra.mxu0 0.0
    %252 = vmatprep.subr.mxu0 0.0
    %253 = vmatpush1.msra.mxu0 0.0
    %254 = vmatprep.subr.mxu0 0.0
    %255 = vmatpush1.msra.mxu0 0.0
    %256 = vmatprep.subr.mxu0 0.0
    %257 = vmatpush1.msra.mxu0 0.0
    %258 = vmatprep.subr.mxu0 0.0
    %259 = vmatpush1.msra.mxu0 0.0
    %260 = vmatprep.subr.mxu0 0.0
    %261 = vmatpush1.msra.mxu0 0.0
    %262 = vmatprep.subr.mxu0 0.0
    %263 = vmatpush1.msra.mxu0 0.0
    %264 = vmatprep.subr.mxu0 0.0
    %265 = vmatpush1.msra.mxu0 0.0
    %266 = vmatprep.subr.mxu0 0.0
    %267 = vmatpush1.msra.mxu0 0.0
    %268 = vmatprep.subr.mxu0 0.0
    %269 = vmatpush1.msra.mxu0 0.0
    %270 = vmatprep.subr.mxu0 0.0
    %271 = vmatpush1.msra.mxu0 0.0
    %272 = vmatprep.subr.mxu0 0.0
    %273 = vmatpush1.msra.mxu0 0.0
    %274 = vmatprep.subr.mxu0 0.0
    %275 = vmatpush1.msra.mxu0 0.0
    %276 = vmatprep.subr.mxu0 0.0
    %277 = vmatpush1.msra.mxu0 0.0
    %278 = vmatprep.subr.mxu0 0.0
    %279 = vmatpush1.msra.mxu0 0.0
    %280 = vmatprep.subr.mxu0 0.0
    %281 = vmatpush1.msra.mxu0 0.0
    %282 = vmatprep.subr.mxu0 0.0
    %283 = vmatpush1.msra.mxu0 0.0
    %284 = vmatprep.subr.mxu0 0.0
    %285 = vmatpush1.msra.mxu0 0.0
    %286 = vmatprep.subr.mxu0 0.0
    %287 = vmatpush1.msra.mxu0 0.0
    %288 = vmatprep.subr.mxu0 0.0
    %289 = vmatpush1.msra.mxu0 0.0
    %290 = vmatprep.subr.mxu0 0.0
    %291 = vmatpush1.msra.mxu0 0.0
    %292 = vmatprep.subr.mxu0 0.0
    %293 = vmatpush1.msra.mxu0 0.0
    %294 = vmatprep.subr.mxu0 0.0
    %295 = vmatpush1.msra.mxu0 0.0
    %296 = vmatprep.subr.mxu0 0.0
    %297 = vmatpush1.msra.mxu0 0.0
    %298 = vmatprep.subr.mxu0 0.0
    %299 = vmatpush1.msra.mxu0 0.0
    %300 = vmatprep.subr.mxu0 0.0
    %301 = vmatpush1.msra.mxu0 0.0
    %302 = vmatprep.mubr.f32.mxu0 0.0
    %303 = vmatmul.mubr.f32.gmra.mrb[0].mxu0 %v236
    %v304 = vpop.f32.mrb[0].mxu0
    %v305 = vadd.f32 0.0, %v304
    %v306 = vpop.f32.mrb[0].mxu0
    %307 = vdwg.mxu0
    %v309 = vcombine.high %v305, %v305
    %v311 = vld [vmem:[%s0] sm:$0xf]
    %v312 = vld [vmem:[%s0 + $0x4] sm:$0xf]
    %v313 = vld [vmem:[%s5] sm:$0xff]
    %v314 = vld [vmem:[%s5 + $0x8] sm:$0xff]
    %v315 = vld [vmem:[%s5 + $0x10] sm:$0xff]
    %v316 = vld [vmem:[%s5 + $0x18] sm:$0xff]
    %v317 = vld [vmem:[%s6] sm:$0x1]
    %v319 = vlaneseq
    %v320 = vshrl.u32 %v319, 7
    %v321 = vsub.s32 0, %v320
    %v322 = vrot.slane %v317, %v321
    %v326 = vcombine.low %v311, %v312
    %vm327 = vcmask 261120
    %v328 = vsel %vm327, %v326, 0
    %330 = vmatprep.subr.mxu0 0.0
    %331 = vmatpush1.msra.mxu0 %v313
    %332 = vmatprep.subr.mxu0 0.0
    %333 = vmatpush1.msra.mxu0 %v314
    %334 = vmatprep.subr.mxu0 0.0
    %335 = vmatpush1.msra.mxu0 %v315
    %336 = vmatprep.subr.mxu0 0.0
    %337 = vmatpush1.msra.mxu0 %v316
    %338 = vmatprep.subr.mxu0 0.0
    %339 = vmatpush1.msra.mxu0 0.0
    %340 = vmatprep.subr.mxu0 0.0
    %341 = vmatpush1.msra.mxu0 0.0
    %342 = vmatprep.subr.mxu0 0.0
    %343 = vmatpush1.msra.mxu0 0.0
    %344 = vmatprep.subr.mxu0 0.0
    %345 = vmatpush1.msra.mxu0 0.0
    %346 = vmatprep.subr.mxu0 0.0
    %347 = vmatpush1.msra.mxu0 0.0
    %348 = vmatprep.subr.mxu0 0.0
    %349 = vmatpush1.msra.mxu0 0.0
    %350 = vmatprep.subr.mxu0 0.0
    %351 = vmatpush1.msra.mxu0 0.0
    %352 = vmatprep.subr.mxu0 0.0
    %353 = vmatpush1.msra.mxu0 0.0
    %354 = vmatprep.subr.mxu0 0.0
    %355 = vmatpush1.msra.mxu0 0.0
    %356 = vmatprep.subr.mxu0 0.0
    %357 = vmatpush1.msra.mxu0 0.0
    %358 = vmatprep.subr.mxu0 0.0
    %359 = vmatpush1.msra.mxu0 0.0
    %360 = vmatprep.subr.mxu0 0.0
    %361 = vmatpush1.msra.mxu0 0.0
    %362 = vmatprep.subr.mxu0 0.0
    %363 = vmatpush1.msra.mxu0 0.0
    %364 = vmatprep.subr.mxu0 0.0
    %365 = vmatpush1.msra.mxu0 0.0
    %366 = vmatprep.subr.mxu0 0.0
    %367 = vmatpush1.msra.mxu0 0.0
    %368 = vmatprep.subr.mxu0 0.0
    %369 = vmatpush1.msra.mxu0 0.0
    %370 = vmatprep.subr.mxu0 0.0
    %371 = vmatpush1.msra.mxu0 0.0
    %372 = vmatprep.subr.mxu0 0.0
    %373 = vmatpush1.msra.mxu0 0.0
    %374 = vmatprep.subr.mxu0 0.0
    %375 = vmatpush1.msra.mxu0 0.0
    %376 = vmatprep.subr.mxu0 0.0
    %377 = vmatpush1.msra.mxu0 0.0
    %378 = vmatprep.subr.mxu0 0.0
    %379 = vmatpush1.msra.mxu0 0.0
    %380 = vmatprep.subr.mxu0 0.0
    %381 = vmatpush1.msra.mxu0 0.0
    %382 = vmatprep.subr.mxu0 0.0
    %383 = vmatpush1.msra.mxu0 0.0
    %384 = vmatprep.subr.mxu0 0.0
    %385 = vmatpush1.msra.mxu0 0.0
    %386 = vmatprep.subr.mxu0 0.0
    %387 = vmatpush1.msra.mxu0 0.0
    %388 = vmatprep.subr.mxu0 0.0
    %389 = vmatpush1.msra.mxu0 0.0
    %390 = vmatprep.subr.mxu0 0.0
    %391 = vmatpush1.msra.mxu0 0.0
    %392 = vmatprep.subr.mxu0 0.0
    %393 = vmatpush1.msra.mxu0 0.0
    %394 = vmatprep.mubr.f32.mxu0 0.0
    %395 = vmatmul.mubr.f32.gmra.mrb[0].mxu0 %v328
    %v396 = vpop.f32.mrb[0].mxu0
    %v397 = vadd.f32 %v322, %v396
    %v398 = vpop.f32.mrb[0].mxu0
    %399 = vdwg.mxu0
    %v401 = vcombine.high %v397, %v397
    %v403 = vld [vmem:[%s4] sm:$0x1]
    %v405 = vlaneseq
    %v406 = vshrl.u32 %v405, 7
    %v407 = vsub.s32 0, %v406
    %v408 = vrot.slane %v403, %v407
    %v410 = vcombine.high %v408, %v408
    %v412 = vadd.f32 %v408, %v211
    %v413 = vadd.f32 %v410, %v227
    %v414 = vadd.f32 %v408, %v216
    %v415 = vadd.f32 %v410, %v228
    %v416 = vadd.f32 %v408, %v221
    %v417 = vadd.f32 %v410, %v229
    %v418 = vadd.f32 %v397, %v305
    %v419 = vadd.f32 %v401, %v309
    %v420 = vld [vmem:[%s7] sm:$0x1]
    %v421 = vld [vmem:[%s8] sm:$0x1]
    %v428 = vcombine.low %v412, %v413
    %v429 = vcombine.low %v414, %v415
    %v430 = vcombine.low %v416, %v417
    %v434 = vsel %vm327, %v428, 0.0
    %435 = vadd.xlane.f32.xlu0 %v434
    %v436 = vpop.xlane.xlu0 %435
    %v437 = vsel %vm327, %v429, 0.0
    %438 = vadd.xlane.f32.xlu0 %v437
    %v439 = vpop.xlane.xlu0 %438
    %v440 = vsel %vm327, %v430, 0.0
    %441 = vadd.xlane.f32.xlu0 %v440
    %v442 = vpop.xlane.xlu0 %441
    %v443 = vrcp.pop 32.0
    %v444 = vmul.f32 %v436, %v443
    %v445 = vmul.f32 %v439, %v443
    %v446 = vmul.f32 %v442, %v443
    %v451 = vunpack.c.l.s4 839922192
    %v452 = vunpack.c.0.s8 %v451
    %v453 = vlaneseq
    %v454 = vshrl.u32 %v453, 7
    %v455 = vsub.s32 %v452, %v454
    %v456 = vrot.slane %v444, %v455
    %v458 = vunpack.c.l.s4 1985246804
    %v459 = vunpack.c.0.s8 %v458
    %v460 = vlaneseq
    %v461 = vshrl.u32 %v460, 7
    %v462 = vsub.s32 %v459, %v461
    %v463 = vrot.slane %v444, %v462
    %v465 = vunpack.c.l.s4 839922192
    %v466 = vunpack.c.0.s8 %v465
    %v467 = vlaneseq
    %v468 = vshrl.u32 %v467, 7
    %v469 = vsub.s32 %v466, %v468
    %v470 = vrot.slane %v445, %v469
    %v472 = vunpack.c.l.s4 1985246804
    %v473 = vunpack.c.0.s8 %v472
    %v474 = vlaneseq
    %v475 = vshrl.u32 %v474, 7
    %v476 = vsub.s32 %v473, %v475
    %v477 = vrot.slane %v445, %v476
    %v479 = vunpack.c.l.s4 839922192
    %v480 = vunpack.c.0.s8 %v479
    %v481 = vlaneseq
    %v482 = vshrl.u32 %v481, 7
    %v483 = vsub.s32 %v480, %v482
    %v484 = vrot.slane %v446, %v483
    %v486 = vunpack.c.l.s4 1985246804
    %v487 = vunpack.c.0.s8 %v486
    %v488 = vlaneseq
    %v489 = vshrl.u32 %v488, 7
    %v490 = vsub.s32 %v487, %v489
    %v491 = vrot.slane %v446, %v490
    %v498 = vsub.f32 %v412, %v456
    %v499 = vsub.f32 %v413, %v463
    %v500 = vsub.f32 %v414, %v470
    %v501 = vsub.f32 %v415, %v477
    %v502 = vsub.f32 %v416, %v484
    %v503 = vsub.f32 %v417, %v491
    %v504 = vmul.f32 %v498, %v498
    %v505 = vmul.f32 %v499, %v499
    %v506 = vmul.f32 %v500, %v500
    %v507 = vmul.f32 %v501, %v501
    %v508 = vmul.f32 %v502, %v502
    %v509 = vmul.f32 %v503, %v503
    %v516 = vcombine.low %v504, %v505
    %v517 = vcombine.low %v506, %v507
    %v518 = vcombine.low %v508, %v509
    %v522 = vsel %vm327, %v516, 0.0
    %523 = vadd.xlane.f32.xlu0 %v522
    %v524 = vpop.xlane.xlu0 %523
    %v525 = vsel %vm327, %v517, 0.0
    %526 = vadd.xlane.f32.xlu0 %v525
    %v527 = vpop.xlane.xlu0 %526
    %v528 = vsel %vm327, %v518, 0.0
    %529 = vadd.xlane.f32.xlu0 %v528
    %v530 = vpop.xlane.xlu0 %529
    %v531 = vmul.f32 %v524, %v443
    %v532 = vmul.f32 %v527, %v443
    %v533 = vmul.f32 %v530, %v443
    %v534 = vadd.f32 %v531, 1e-05
    %v535 = vadd.f32 %v532, 1e-05
    %v536 = vadd.f32 %v533, 1e-05
    %v537 = vrsqrt.pop %v534
    %v538 = vrsqrt.pop %v535
    %v539 = vrsqrt.pop %v536
    %v544 = vunpack.c.l.s4 839922192
    %v545 = vunpack.c.0.s8 %v544
    %v546 = vlaneseq
    %v547 = vshrl.u32 %v546, 7
    %v548 = vsub.s32 %v545, %v547
    %v549 = vrot.slane %v537, %v548
    %v551 = vunpack.c.l.s4 1985246804
    %v552 = vunpack.c.0.s8 %v551
    %v553 = vlaneseq
    %v554 = vshrl.u32 %v553, 7
    %v555 = vsub.s32 %v552, %v554
    %v556 = vrot.slane %v537, %v555
    %v558 = vunpack.c.l.s4 839922192
    %v559 = vunpack.c.0.s8 %v558
    %v560 = vlaneseq
    %v561 = vshrl.u32 %v560, 7
    %v562 = vsub.s32 %v559, %v561
    %v563 = vrot.slane %v538, %v562
    %v565 = vunpack.c.l.s4 1985246804
    %v566 = vunpack.c.0.s8 %v565
    %v567 = vlaneseq
    %v568 = vshrl.u32 %v567, 7
    %v569 = vsub.s32 %v566, %v568
    %v570 = vrot.slane %v538, %v569
    %v572 = vunpack.c.l.s4 839922192
    %v573 = vunpack.c.0.s8 %v572
    %v574 = vlaneseq
    %v575 = vshrl.u32 %v574, 7
    %v576 = vsub.s32 %v573, %v575
    %v577 = vrot.slane %v539, %v576
    %v579 = vunpack.c.l.s4 1985246804
    %v580 = vunpack.c.0.s8 %v579
    %v581 = vlaneseq
    %v582 = vshrl.u32 %v581, 7
    %v583 = vsub.s32 %v580, %v582
    %v584 = vrot.slane %v539, %v583
    %v591 = vmul.f32 %v498, %v549
    %v592 = vmul.f32 %v499, %v556
    %v593 = vmul.f32 %v500, %v563
    %v594 = vmul.f32 %v501, %v570
    %v595 = vmul.f32 %v502, %v577
    %v596 = vmul.f32 %v503, %v584
    %v598 = vlaneseq
    %v599 = vshrl.u32 %v598, 7
    %v600 = vsub.s32 0, %v599
    %v601 = vrot.slane %v420, %v600
    %v603 = vcombine.high %v601, %v601
    %v605 = vmul.f32 %v591, %v601
    %v606 = vmul.f32 %v592, %v603
    %v607 = vmul.f32 %v593, %v601
    %v608 = vmul.f32 %v594, %v603
    %v609 = vmul.f32 %v595, %v601
    %v610 = vmul.f32 %v596, %v603
    %v612 = vlaneseq
    %v613 = vshrl.u32 %v612, 7
    %v614 = vsub.s32 0, %v613
    %v615 = vrot.slane %v421, %v614
    %v617 = vcombine.high %v615, %v615
    %v619 = vadd.f32 %v605, %v615
    %v620 = vadd.f32 %v606, %v617
    %v621 = vadd.f32 %v607, %v615
    %v622 = vadd.f32 %v608, %v617
    %v623 = vadd.f32 %v609, %v615
    %v624 = vadd.f32 %v610, %v617
    %v625 = vld [vmem:[%s9] sm:$0xff]
    %v626 = vld [vmem:[%s9 + $0x8] sm:$0xff]
    %v627 = vld [vmem:[%s9 + $0x10] sm:$0xff]
    %v628 = vld [vmem:[%s9 + $0x18] sm:$0xff]
    %v629 = vld [vmem:[%s10] sm:$0x1]
    %v631 = vlaneseq
    %v632 = vshrl.u32 %v631, 7
    %v633 = vsub.s32 0, %v632
    %v634 = vrot.slane %v629, %v633
    %v642 = vcombine.low %v619, %v620
    %v643 = vcombine.low %v621, %v622
    %v644 = vcombine.low %v623, %v624
    %v645 = vsel %vm327, %v642, 0
    %v647 = vsel %vm327, %v643, 0
    %v649 = vsel %vm327, %v644, 0
    %651 = vmatprep.subr.mxu0 0.0
    %652 = vmatpush1.msra.mxu0 %v625
    %653 = vmatprep.subr.mxu0 0.0
    %654 = vmatpush1.msra.mxu0 %v626
    %655 = vmatprep.subr.mxu0 0.0
    %656 = vmatpush1.msra.mxu0 %v627
    %657 = vmatprep.subr.mxu0 0.0
    %658 = vmatpush1.msra.mxu0 %v628
    %659 = vmatprep.subr.mxu0 0.0
    %660 = vmatpush1.msra.mxu0 0.0
    %661 = vmatprep.subr.mxu0 0.0
    %662 = vmatpush1.msra.mxu0 0.0
    %663 = vmatprep.subr.mxu0 0.0
    %664 = vmatpush1.msra.mxu0 0.0
    %665 = vmatprep.subr.mxu0 0.0
    %666 = vmatpush1.msra.mxu0 0.0
    %667 = vmatprep.subr.mxu0 0.0
    %668 = vmatpush1.msra.mxu0 0.0
    %669 = vmatprep.subr.mxu0 0.0
    %670 = vmatpush1.msra.mxu0 0.0
    %671 = vmatprep.subr.mxu0 0.0
    %672 = vmatpush1.msra.mxu0 0.0
    %673 = vmatprep.subr.mxu0 0.0
    %674 = vmatpush1.msra.mxu0 0.0
    %675 = vmatprep.subr.mxu0 0.0
    %676 = vmatpush1.msra.mxu0 0.0
    %677 = vmatprep.subr.mxu0 0.0
    %678 = vmatpush1.msra.mxu0 0.0
    %679 = vmatprep.subr.mxu0 0.0
    %680 = vmatpush1.msra.mxu0 0.0
    %681 = vmatprep.subr.mxu0 0.0
    %682 = vmatpush1.msra.mxu0 0.0
    %683 = vmatprep.subr.mxu0 0.0
    %684 = vmatpush1.msra.mxu0 0.0
    %685 = vmatprep.subr.mxu0 0.0
    %686 = vmatpush1.msra.mxu0 0.0
    %687 = vmatprep.subr.mxu0 0.0
    %688 = vmatpush1.msra.mxu0 0.0
    %689 = vmatprep.subr.mxu0 0.0
    %690 = vmatpush1.msra.mxu0 0.0
    %691 = vmatprep.subr.mxu0 0.0
    %692 = vmatpush1.msra.mxu0 0.0
    %693 = vmatprep.subr.mxu0 0.0
    %694 = vmatpush1.msra.mxu0 0.0
    %695 = vmatprep.subr.mxu0 0.0
    %696 = vmatpush1.msra.mxu0 0.0
    %697 = vmatprep.subr.mxu0 0.0
    %698 = vmatpush1.msra.mxu0 0.0
    %699 = vmatprep.subr.mxu0 0.0
    %700 = vmatpush1.msra.mxu0 0.0
    %701 = vmatprep.subr.mxu0 0.0
    %702 = vmatpush1.msra.mxu0 0.0
    %703 = vmatprep.subr.mxu0 0.0
    %704 = vmatpush1.msra.mxu0 0.0
    %705 = vmatprep.subr.mxu0 0.0
    %706 = vmatpush1.msra.mxu0 0.0
    %707 = vmatprep.subr.mxu0 0.0
    %708 = vmatpush1.msra.mxu0 0.0
    %709 = vmatprep.subr.mxu0 0.0
    %710 = vmatpush1.msra.mxu0 0.0
    %711 = vmatprep.subr.mxu0 0.0
    %712 = vmatpush1.msra.mxu0 0.0
    %713 = vmatprep.subr.mxu0 0.0
    %714 = vmatpush1.msra.mxu0 0.0
    %715 = vmatprep.mubr.f32.mxu0 0.0
    %716 = vmatmul.mubr.f32.gmra.mrb[0].mxu0 %v645
    %v717 = vpop.f32.mrb[0].mxu0
    %v718 = vadd.f32 %v634, %v717
    %v719 = vpop.f32.mrb[0].mxu0
    %720 = vmatprep.mubr.f32.mxu0 0.0
    %721 = vmatmul.mubr.f32.gmra.mrb[0].mxu0 %v647
    %v722 = vpop.f32.mrb[0].mxu0
    %v723 = vadd.f32 %v634, %v722
    %v724 = vpop.f32.mrb[0].mxu0
    %725 = vmatprep.mubr.f32.mxu0 0.0
    %726 = vmatmul.mubr.f32.gmra.mrb[0].mxu0 %v649
    %v727 = vpop.f32.mrb[0].mxu0
    %v728 = vadd.f32 %v634, %v727
    %v729 = vpop.f32.mrb[0].mxu0
    %730 = vdwg.mxu0
    %v734 = vcombine.high %v718, %v718
    %v735 = vcombine.high %v723, %v723
    %v736 = vcombine.high %v728, %v728
    %v737 = vld [vmem:[%s11] sm:$0xff]
    %v738 = vld [vmem:[%s11 + $0x8] sm:$0xff]
    %v739 = vld [vmem:[%s11 + $0x10] sm:$0xff]
    %v740 = vld [vmem:[%s11 + $0x18] sm:$0xff]
    %v741 = vld [vmem:[%s12] sm:$0x1]
    %v743 = vlaneseq
    %v744 = vshrl.u32 %v743, 7
    %v745 = vsub.s32 0, %v744
    %v746 = vrot.slane %v741, %v745
    %v750 = vcombine.low %v418, %v419
    %v751 = vsel %vm327, %v750, 0
    %753 = vmatprep.subr.mxu0 0.0
    %754 = vmatpush1.msra.mxu0 %v737
    %755 = vmatprep.subr.mxu0 0.0
    %756 = vmatpush1.msra.mxu0 %v738
    %757 = vmatprep.subr.mxu0 0.0
    %758 = vmatpush1.msra.mxu0 %v739
    %759 = vmatprep.subr.mxu0 0.0
    %760 = vmatpush1.msra.mxu0 %v740
    %761 = vmatprep.subr.mxu0 0.0
    %762 = vmatpush1.msra.mxu0 0.0
    %763 = vmatprep.subr.mxu0 0.0
    %764 = vmatpush1.msra.mxu0 0.0
    %765 = vmatprep.subr.mxu0 0.0
    %766 = vmatpush1.msra.mxu0 0.0
    %767 = vmatprep.subr.mxu0 0.0
    %768 = vmatpush1.msra.mxu0 0.0
    %769 = vmatprep.subr.mxu0 0.0
    %770 = vmatpush1.msra.mxu0 0.0
    %771 = vmatprep.subr.mxu0 0.0
    %772 = vmatpush1.msra.mxu0 0.0
    %773 = vmatprep.subr.mxu0 0.0
    %774 = vmatpush1.msra.mxu0 0.0
    %775 = vmatprep.subr.mxu0 0.0
    %776 = vmatpush1.msra.mxu0 0.0
    %777 = vmatprep.subr.mxu0 0.0
    %778 = vmatpush1.msra.mxu0 0.0
    %779 = vmatprep.subr.mxu0 0.0
    %780 = vmatpush1.msra.mxu0 0.0
    %781 = vmatprep.subr.mxu0 0.0
    %782 = vmatpush1.msra.mxu0 0.0
    %783 = vmatprep.subr.mxu0 0.0
    %784 = vmatpush1.msra.mxu0 0.0
    %785 = vmatprep.subr.mxu0 0.0
    %786 = vmatpush1.msra.mxu0 0.0
    %787 = vmatprep.subr.mxu0 0.0
    %788 = vmatpush1.msra.mxu0 0.0
    %789 = vmatprep.subr.mxu0 0.0
    %790 = vmatpush1.msra.mxu0 0.0
    %791 = vmatprep.subr.mxu0 0.0
    %792 = vmatpush1.msra.mxu0 0.0
    %793 = vmatprep.subr.mxu0 0.0
    %794 = vmatpush1.msra.mxu0 0.0
    %795 = vmatprep.subr.mxu0 0.0
    %796 = vmatpush1.msra.mxu0 0.0
    %797 = vmatprep.subr.mxu0 0.0
    %798 = vmatpush1.msra.mxu0 0.0
    %799 = vmatprep.subr.mxu0 0.0
    %800 = vmatpush1.msra.mxu0 0.0
    %801 = vmatprep.subr.mxu0 0.0
    %802 = vmatpush1.msra.mxu0 0.0
    %803 = vmatprep.subr.mxu0 0.0
    %804 = vmatpush1.msra.mxu0 0.0
    %805 = vmatprep.subr.mxu0 0.0
    %806 = vmatpush1.msra.mxu0 0.0
    %807 = vmatprep.subr.mxu0 0.0
    %808 = vmatpush1.msra.mxu0 0.0
    %809 = vmatprep.subr.mxu0 0.0
    %810 = vmatpush1.msra.mxu0 0.0
    %811 = vmatprep.subr.mxu0 0.0
    %812 = vmatpush1.msra.mxu0 0.0
    %813 = vmatprep.subr.mxu0 0.0
    %814 = vmatpush1.msra.mxu0 0.0
    %815 = vmatprep.subr.mxu0 0.0
    %816 = vmatpush1.msra.mxu0 0.0
    %817 = vmatprep.mubr.f32.mxu0 0.0
    %818 = vmatmul.mubr.f32.gmra.mrb[0].mxu0 %v751
    %v819 = vpop.f32.mrb[0].mxu0
    %v820 = vadd.f32 %v746, %v819
    %v821 = vpop.f32.mrb[0].mxu0
    %822 = vdwg.mxu0
    %v824 = vcombine.high %v820, %v820
    %v825 = vcombine.low %v718, %v734
    %vm826 = vcmask 64512
    %v827 = vsel %vm826, %v825, 0
    %v829 = vsel %vm826, %v723, 0
    %v831 = vsel %vm826, %v820, 0
    %833 = vmatprep.subr.mxu0 0.0
    %834 = vmatpush1.xpose.msra.mxu0 %v831
    %835 = vmatprep.subr.mxu0 0.0
    %836 = vmatpush1.xpose.msra.mxu0 0.0
    %837 = vmatprep.subr.mxu0 0.0
    %838 = vmatpush1.xpose.msra.mxu0 0.0
    %839 = vmatprep.subr.mxu0 0.0
    %840 = vmatpush1.xpose.msra.mxu0 0.0
    %841 = vmatprep.subr.mxu0 0.0
    %842 = vmatpush1.xpose.msra.mxu0 0.0
    %843 = vmatprep.subr.mxu0 0.0
    %844 = vmatpush1.xpose.msra.mxu0 0.0
    %845 = vmatprep.subr.mxu0 0.0
    %846 = vmatpush1.xpose.msra.mxu0 0.0
    %847 = vmatprep.subr.mxu0 0.0
    %848 = vmatpush1.xpose.msra.mxu0 0.0
    %849 = vmatprep.subr.mxu0 0.0
    %850 = vmatpush1.xpose.msra.mxu0 0.0
    %851 = vmatprep.subr.mxu0 0.0
    %852 = vmatpush1.xpose.msra.mxu0 0.0
    %853 = vmatprep.subr.mxu0 0.0
    %854 = vmatpush1.xpose.msra.mxu0 0.0
    %855 = vmatprep.subr.mxu0 0.0
    %856 = vmatpush1.xpose.msra.mxu0 0.0
    %857 = vmatprep.subr.mxu0 0.0
    %858 = vmatpush1.xpose.msra.mxu0 0.0
    %859 = vmatprep.subr.mxu0 0.0
    %860 = vmatpush1.xpose.msra.mxu0 0.0
    %861 = vmatprep.subr.mxu0 0.0
    %862 = vmatpush1.xpose.msra.mxu0 0.0
    %863 = vmatprep.subr.mxu0 0.0
    %864 = vmatpush1.xpose.msra.mxu0 0.0
    %865 = vmatprep.subr.mxu0 0.0
    %866 = vmatpush1.xpose.msra.mxu0 0.0
    %867 = vmatprep.subr.mxu0 0.0
    %868 = vmatpush1.xpose.msra.mxu0 0.0
    %869 = vmatprep.subr.mxu0 0.0
    %870 = vmatpush1.xpose.msra.mxu0 0.0
    %871 = vmatprep.subr.mxu0 0.0
    %872 = vmatpush1.xpose.msra.mxu0 0.0
    %873 = vmatprep.subr.mxu0 0.0
    %874 = vmatpush1.xpose.msra.mxu0 0.0
    %875 = vmatprep.subr.mxu0 0.0
    %876 = vmatpush1.xpose.msra.mxu0 0.0
    %877 = vmatprep.subr.mxu0 0.0
    %878 = vmatpush1.xpose.msra.mxu0 0.0
    %879 = vmatprep.subr.mxu0 0.0
    %880 = vmatpush1.xpose.msra.mxu0 0.0
    %881 = vmatprep.subr.mxu0 0.0
    %882 = vmatpush1.xpose.msra.mxu0 0.0
    %883 = vmatprep.subr.mxu0 0.0
    %884 = vmatpush1.xpose.msra.mxu0 0.0
    %885 = vmatprep.subr.mxu0 0.0
    %886 = vmatpush1.xpose.msra.mxu0 0.0
    %887 = vmatprep.subr.mxu0 0.0
    %888 = vmatpush1.xpose.msra.mxu0 0.0
    %889 = vmatprep.subr.mxu0 0.0
    %890 = vmatpush1.xpose.msra.mxu0 0.0
    %891 = vmatprep.subr.mxu0 0.0
    %892 = vmatpush1.xpose.msra.mxu0 0.0
    %893 = vmatprep.subr.mxu0 0.0
    %894 = vmatpush1.xpose.msra.mxu0 0.0
    %895 = vmatprep.subr.mxu0 0.0
    %896 = vmatpush1.xpose.msra.mxu0 0.0
    %897 = vmatprep.mubr.f32.mxu0 0.0
    %898 = vmatmul.mubr.f32.gmra.mrb[0].mxu0 %v827
    %v899 = vpop.f32.mrb[0].mxu0
    %v900 = vadd.f32 0.0, %v899
    %v901 = vpop.f32.mrb[0].mxu0
    %902 = vmatprep.mubr.f32.mxu0 0.0
    %903 = vmatmul.mubr.f32.gmra.mrb[0].mxu0 %v829
    %v904 = vpop.f32.mrb[0].mxu0
    %v905 = vadd.f32 0.0, %v904
    %v906 = vpop.f32.mrb[0].mxu0
    %907 = vdwg.mxu0
    %v908 = vcombine.low %v735, %v728
    %v909 = vsel %vm826, %v908, 0
    %v911 = vsel %vm826, %v736, 0
    %v913 = vsel %vm826, %v824, 0
    %915 = vmatprep.subr.mxu0 0.0
    %916 = vmatpush1.xpose.msra.mxu0 %v913
    %917 = vmatprep.subr.mxu0 0.0
    %918 = vmatpush1.xpose.msra.mxu0 0.0
    %919 = vmatprep.subr.mxu0 0.0
    %920 = vmatpush1.xpose.msra.mxu0 0.0
    %921 = vmatprep.subr.mxu0 0.0
    %922 = vmatpush1.xpose.msra.mxu0 0.0
    %923 = vmatprep.subr.mxu0 0.0
    %924 = vmatpush1.xpose.msra.mxu0 0.0
    %925 = vmatprep.subr.mxu0 0.0
    %926 = vmatpush1.xpose.msra.mxu0 0.0
    %927 = vmatprep.subr.mxu0 0.0
    %928 = vmatpush1.xpose.msra.mxu0 0.0
    %929 = vmatprep.subr.mxu0 0.0
    %930 = vmatpush1.xpose.msra.mxu0 0.0
    %931 = vmatprep.subr.mxu0 0.0
    %932 = vmatpush1.xpose.msra.mxu0 0.0
    %933 = vmatprep.subr.mxu0 0.0
    %934 = vmatpush1.xpose.msra.mxu0 0.0
    %935 = vmatprep.subr.mxu0 0.0
    %936 = vmatpush1.xpose.msra.mxu0 0.0
    %937 = vmatprep.subr.mxu0 0.0
    %938 = vmatpush1.xpose.msra.mxu0 0.0
    %939 = vmatprep.subr.mxu0 0.0
    %940 = vmatpush1.xpose.msra.mxu0 0.0
    %941 = vmatprep.subr.mxu0 0.0
    %942 = vmatpush1.xpose.msra.mxu0 0.0
    %943 = vmatprep.subr.mxu0 0.0
    %944 = vmatpush1.xpose.msra.mxu0 0.0
    %945 = vmatprep.subr.mxu0 0.0
    %946 = vmatpush1.xpose.msra.mxu0 0.0
    %947 = vmatprep.subr.mxu0 0.0
    %948 = vmatpush1.xpose.msra.mxu0 0.0
    %949 = vmatprep.subr.mxu0 0.0
    %950 = vmatpush1.xpose.msra.mxu0 0.0
    %951 = vmatprep.subr.mxu0 0.0
    %952 = vmatpush1.xpose.msra.mxu0 0.0
    %953 = vmatprep.subr.mxu0 0.0
    %954 = vmatpush1.xpose.msra.mxu0 0.0
    %955 = vmatprep.subr.mxu0 0.0
    %956 = vmatpush1.xpose.msra.mxu0 0.0
    %957 = vmatprep.subr.mxu0 0.0
    %958 = vmatpush1.xpose.msra.mxu0 0.0
    %959 = vmatprep.subr.mxu0 0.0
    %960 = vmatpush1.xpose.msra.mxu0 0.0
    %961 = vmatprep.subr.mxu0 0.0
    %962 = vmatpush1.xpose.msra.mxu0 0.0
    %963 = vmatprep.subr.mxu0 0.0
    %964 = vmatpush1.xpose.msra.mxu0 0.0
    %965 = vmatprep.subr.mxu0 0.0
    %966 = vmatpush1.xpose.msra.mxu0 0.0
    %967 = vmatprep.subr.mxu0 0.0
    %968 = vmatpush1.xpose.msra.mxu0 0.0
    %969 = vmatprep.subr.mxu0 0.0
    %970 = vmatpush1.xpose.msra.mxu0 0.0
    %971 = vmatprep.subr.mxu0 0.0
    %972 = vmatpush1.xpose.msra.mxu0 0.0
    %973 = vmatprep.subr.mxu0 0.0
    %974 = vmatpush1.xpose.msra.mxu0 0.0
    %975 = vmatprep.subr.mxu0 0.0
    %976 = vmatpush1.xpose.msra.mxu0 0.0
    %977 = vmatprep.subr.mxu0 0.0
    %978 = vmatpush1.xpose.msra.mxu0 0.0
    %979 = vmatprep.mubr.f32.mxu0 0.0
    %980 = vmatmul.mubr.f32.gmra.mrb[0].mxu0 %v909
    %v981 = vpop.f32.mrb[0].mxu0
    %v982 = vadd.f32 0.0, %v981
    %v983 = vpop.f32.mrb[0].mxu0
    %984 = vmatprep.mubr.f32.mxu0 0.0
    %985 = vmatmul.mubr.f32.gmra.mrb[0].mxu0 %v911
    %v986 = vpop.f32.mrb[0].mxu0
    %v987 = vadd.f32 0.0, %v986
    %v988 = vpop.f32.mrb[0].mxu0
    %989 = vdwg.mxu0
    %v990 = vmul.f32 %v900, 0.35355338
    %v991 = vmul.f32 %v905, 0.35355338
    %v992 = vmul.f32 %v982, 0.35355338
    %v993 = vmul.f32 %v987, 0.35355338
    %vm994 = vcmask 31744
    %v995 = vsel %vm994, %v990, -inf
    %996 = vmax.xlane.f32.xlu0 %v995
    %v997 = vpop.xlane.xlu0 %996
    %vm998 = vcmask 27648
    %v999 = vsel %vm998, %v991, -inf
    %1000 = vmax.xlane.f32.xlu0 %v999
    %v1001 = vpop.xlane.xlu0 %1000
    %v1002 = vsel %vm994, %v992, -inf
    %1003 = vmax.xlane.f32.xlu0 %v1002
    %v1004 = vpop.xlane.xlu0 %1003
    %v1005 = vsel %vm998, %v993, -inf
    %1006 = vmax.xlane.f32.xlu0 %v1005
    %v1007 = vpop.xlane.xlu0 %1006
    %v1008 = vsub.f32 %v990, %v997
    %v1009 = vsub.f32 %v991, %v1001
    %v1010 = vsub.f32 %v992, %v1004
    %v1011 = vsub.f32 %v993, %v1007
    %v1012 = vmul.f32 %v1008, 1.442695
    %v1013 = vpow.pop %v1012
    %v1014 = vmul.f32 %v1009, 1.442695
    %v1015 = vpow.pop %v1014
    %v1016 = vmul.f32 %v1010, 1.442695
    %v1017 = vpow.pop %v1016
    %v1018 = vmul.f32 %v1011, 1.442695
    %v1019 = vpow.pop %v1018
    %v1020 = vsel %vm994, %v1013, 0.0
    %1021 = vadd.xlane.f32.xlu0 %v1020
    %v1022 = vpop.xlane.xlu0 %1021
    %v1023 = vsel %vm998, %v1015, 0.0
    %1024 = vadd.xlane.f32.xlu0 %v1023
    %v1025 = vpop.xlane.xlu0 %1024
    %v1026 = vsel %vm994, %v1017, 0.0
    %1027 = vadd.xlane.f32.xlu0 %v1026
    %v1028 = vpop.xlane.xlu0 %1027
    %v1029 = vsel %vm998, %v1019, 0.0
    %1030 = vadd.xlane.f32.xlu0 %v1029
    %v1031 = vpop.xlane.xlu0 %1030
    %v1032 = vrcp.pop %v1022
    %v1033 = vrcp.pop %v1025
    %v1034 = vrcp.pop %v1028
    %v1035 = vrcp.pop %v1031
    %v1036 = vmul.f32 %v1013, %v1032
    %v1037 = vmul.f32 %v1015, %v1033
    %v1038 = vmul.f32 %v1017, %v1034
    %v1039 = vmul.f32 %v1019, %v1035
    %1040 = vrot.lane.b32.xlu0 %v820, 96
    %v1041 = vpop.permute.xlu0 %1040
    %v1043 = vsel %vm994, %v1036, 0
    %v1046 = vsel %vm994, %v1037, 0
    %vm1048 = vcmask 1043456
    %v1049 = vsel %vm1048, %v1041, 0
    %1051 = vmatprep.subr.mxu0 0.0
    %1052 = vmatpush1.msra.mxu0 %v1049
    %1053 = vmatprep.subr.mxu0 0.0
    %1054 = vmatpush1.msra.mxu0 0.0
    %1055 = vmatprep.subr.mxu0 0.0
    %1056 = vmatpush1.msra.mxu0 0.0
    %1057 = vmatprep.subr.mxu0 0.0
    %1058 = vmatpush1.msra.mxu0 0.0
    %1059 = vmatprep.subr.mxu0 0.0
    %1060 = vmatpush1.msra.mxu0 0.0
    %1061 = vmatprep.subr.mxu0 0.0
    %1062 = vmatpush1.msra.mxu0 0.0
    %1063 = vmatprep.subr.mxu0 0.0
    %1064 = vmatpush1.msra.mxu0 0.0
    %1065 = vmatprep.subr.mxu0 0.0
    %1066 = vmatpush1.msra.mxu0 0.0
    %1067 = vmatprep.subr.mxu0 0.0
    %1068 = vmatpush1.msra.mxu0 0.0
    %1069 = vmatprep.subr.mxu0 0.0
    %1070 = vmatpush1.msra.mxu0 0.0
    %1071 = vmatprep.subr.mxu0 0.0
    %1072 = vmatpush1.msra.mxu0 0.0
    %1073 = vmatprep.subr.mxu0 0.0
    %1074 = vmatpush1.msra.mxu0 0.0
    %1075 = vmatprep.subr.mxu0 0.0
    %1076 = vmatpush1.msra.mxu0 0.0
    %1077 = vmatprep.subr.mxu0 0.0
    %1078 = vmatpush1.msra.mxu0 0.0
    %1079 = vmatprep.subr.mxu0 0.0
    %1080 = vmatpush1.msra.mxu0 0.0
    %1081 = vmatprep.subr.mxu0 0.0
    %1082 = vmatpush1.msra.mxu0 0.0
    %1083 = vmatprep.subr.mxu0 0.0
    %1084 = vmatpush1.msra.mxu0 0.0
    %1085 = vmatprep.subr.mxu0 0.0
    %1086 = vmatpush1.msra.mxu0 0.0
    %1087 = vmatprep.subr.mxu0 0.0
    %1088 = vmatpush1.msra.mxu0 0.0
    %1089 = vmatprep.subr.mxu0 0.0
    %1090 = vmatpush1.msra.mxu0 0.0
    %1091 = vmatprep.subr.mxu0 0.0
    %1092 = vmatpush1.msra.mxu0 0.0
    %1093 = vmatprep.subr.mxu0 0.0
    %1094 = vmatpush1.msra.mxu0 0.0
    %1095 = vmatprep.subr.mxu0 0.0
    %1096 = vmatpush1.msra.mxu0 0.0
    %1097 = vmatprep.subr.mxu0 0.0
    %1098 = vmatpush1.msra.mxu0 0.0
    %1099 = vmatprep.subr.mxu0 0.0
    %1100 = vmatpush1.msra.mxu0 0.0
    %1101 = vmatprep.subr.mxu0 0.0
    %1102 = vmatpush1.msra.mxu0 0.0
    %1103 = vmatprep.subr.mxu0 0.0
    %1104 = vmatpush1.msra.mxu0 0.0
    %1105 = vmatprep.subr.mxu0 0.0
    %1106 = vmatpush1.msra.mxu0 0.0
    %1107 = vmatprep.subr.mxu0 0.0
    %1108 = vmatpush1.msra.mxu0 0.0
    %1109 = vmatprep.subr.mxu0 0.0
    %1110 = vmatpush1.msra.mxu0 0.0
    %1111 = vmatprep.subr.mxu0 0.0
    %1112 = vmatpush1.msra.mxu0 0.0
    %1113 = vmatprep.subr.mxu0 0.0
    %1114 = vmatpush1.msra.mxu0 0.0
    %1115 = vmatprep.mubr.f32.mxu0 0.0
    %1116 = vmatmul.mubr.f32.gmra.mrb[0].mxu0 %v1043
    %v1117 = vpop.f32.mrb[0].mxu0
    %v1118 = vadd.f32 0.0, %v1117
    %v1119 = vpop.f32.mrb[0].mxu0
    %1120 = vmatprep.mubr.f32.mxu0 0.0
    %1121 = vmatmul.mubr.f32.gmra.mrb[0].mxu0 %v1046
    %v1122 = vpop.f32.mrb[0].mxu0
    %v1123 = vadd.f32 0.0, %v1122
    %v1124 = vpop.f32.mrb[0].mxu0
    %1125 = vdwg.mxu0
    %1126 = vrot.lane.b32.xlu0 %v824, 96
    %v1127 = vpop.permute.xlu0 %1126
    %v1129 = vsel %vm994, %v1038, 0
    %v1132 = vsel %vm994, %v1039, 0
    %v1134 = vsel %vm1048, %v1127, 0
    %1136 = vmatprep.subr.mxu0 0.0
    %1137 = vmatpush1.msra.mxu0 %v1134
    %1138 = vmatprep.subr.mxu0 0.0
    %1139 = vmatpush1.msra.mxu0 0.0
    %1140 = vmatprep.subr.mxu0 0.0
    %1141 = vmatpush1.msra.mxu0 0.0
    %1142 = vmatprep.subr.mxu0 0.0
    %1143 = vmatpush1.msra.mxu0 0.0
    %1144 = vmatprep.subr.mxu0 0.0
    %1145 = vmatpush1.msra.mxu0 0.0
    %1146 = vmatprep.subr.mxu0 0.0
    %1147 = vmatpush1.msra.mxu0 0.0
    %1148 = vmatprep.subr.mxu0 0.0
    %1149 = vmatpush1.msra.mxu0 0.0
    %1150 = vmatprep.subr.mxu0 0.0
    %1151 = vmatpush1.msra.mxu0 0.0
    %1152 = vmatprep.subr.mxu0 0.0
    %1153 = vmatpush1.msra.mxu0 0.0
    %1154 = vmatprep.subr.mxu0 0.0
    %1155 = vmatpush1.msra.mxu0 0.0
    %1156 = vmatprep.subr.mxu0 0.0
    %1157 = vmatpush1.msra.mxu0 0.0
    %1158 = vmatprep.subr.mxu0 0.0
    %1159 = vmatpush1.msra.mxu0 0.0
    %1160 = vmatprep.subr.mxu0 0.0
    %1161 = vmatpush1.msra.mxu0 0.0
    %1162 = vmatprep.subr.mxu0 0.0
    %1163 = vmatpush1.msra.mxu0 0.0
    %1164 = vmatprep.subr.mxu0 0.0
    %1165 = vmatpush1.msra.mxu0 0.0
    %1166 = vmatprep.subr.mxu0 0.0
    %1167 = vmatpush1.msra.mxu0 0.0
    %1168 = vmatprep.subr.mxu0 0.0
    %1169 = vmatpush1.msra.mxu0 0.0
    %1170 = vmatprep.subr.mxu0 0.0
    %1171 = vmatpush1.msra.mxu0 0.0
    %1172 = vmatprep.subr.mxu0 0.0
    %1173 = vmatpush1.msra.mxu0 0.0
    %1174 = vmatprep.subr.mxu0 0.0
    %1175 = vmatpush1.msra.mxu0 0.0
    %1176 = vmatprep.subr.mxu0 0.0
    %1177 = vmatpush1.msra.mxu0 0.0
    %1178 = vmatprep.subr.mxu0 0.0
    %1179 = vmatpush1.msra.mxu0 0.0
    %1180 = vmatprep.subr.mxu0 0.0
    %1181 = vmatpush1.msra.mxu0 0.0
    %1182 = vmatprep.subr.mxu0 0.0
    %1183 = vmatpush1.msra.mxu0 0.0
    %1184 = vmatprep.subr.mxu0 0.0
    %1185 = vmatpush1.msra.mxu0 0.0
    %1186 = vmatprep.subr.mxu0 0.0
    %1187 = vmatpush1.msra.mxu0 0.0
    %1188 = vmatprep.subr.mxu0 0.0
    %1189 = vmatpush1.msra.mxu0 0.0
    %1190 = vmatprep.subr.mxu0 0.0
    %1191 = vmatpush1.msra.mxu0 0.0
    %1192 = vmatprep.subr.mxu0 0.0
    %1193 = vmatpush1.msra.mxu0 0.0
    %1194 = vmatprep.subr.mxu0 0.0
    %1195 = vmatpush1.msra.mxu0 0.0
    %1196 = vmatprep.subr.mxu0 0.0
    %1197 = vmatpush1.msra.mxu0 0.0
    %1198 = vmatprep.subr.mxu0 0.0
    %1199 = vmatpush1.msra.mxu0 0.0
    %1200 = vmatprep.mubr.f32.mxu0 0.0
    %1201 = vmatmul.mubr.f32.gmra.mrb[0].mxu0 %v1129
    %v1202 = vpop.f32.mrb[0].mxu0
    %v1203 = vadd.f32 0.0, %v1202
    %v1204 = vpop.f32.mrb[0].mxu0
    %1205 = vmatprep.mubr.f32.mxu0 0.0
    %1206 = vmatmul.mubr.f32.gmra.mrb[0].mxu0 %v1132
    %v1207 = vpop.f32.mrb[0].mxu0
    %v1208 = vadd.f32 0.0, %v1207
    %v1209 = vpop.f32.mrb[0].mxu0
    %1210 = vdwg.mxu0
    %1211 = vrot.lane.b32.xlu0 %v825, 120
    %v1212 = vpop.permute.xlu0 %1211
    %1213 = vrot.lane.b32.xlu0 %v723, 120
    %v1214 = vpop.permute.xlu0 %1213
    %1215 = vrot.lane.b32.xlu0 %v820, 120
    %v1216 = vpop.permute.xlu0 %1215
    %v1217 = vsel %vm826, %v1212, 0
    %v1219 = vsel %vm826, %v1214, 0
    %v1221 = vsel %vm826, %v1216, 0
    %1223 = vmatprep.subr.mxu0 0.0
    %1224 = vmatpush1.xpose.msra.mxu0 %v1221
    %1225 = vmatprep.subr.mxu0 0.0
    %1226 = vmatpush1.xpose.msra.mxu0 0.0
    %1227 = vmatprep.subr.mxu0 0.0
    %1228 = vmatpush1.xpose.msra.mxu0 0.0
    %1229 = vmatprep.subr.mxu0 0.0
    %1230 = vmatpush1.xpose.msra.mxu0 0.0
    %1231 = vmatprep.subr.mxu0 0.0
    %1232 = vmatpush1.xpose.msra.mxu0 0.0
    %1233 = vmatprep.subr.mxu0 0.0
    %1234 = vmatpush1.xpose.msra.mxu0 0.0
    %1235 = vmatprep.subr.mxu0 0.0
    %1236 = vmatpush1.xpose.msra.mxu0 0.0
    %1237 = vmatprep.subr.mxu0 0.0
    %1238 = vmatpush1.xpose.msra.mxu0 0.0
    %1239 = vmatprep.subr.mxu0 0.0
    %1240 = vmatpush1.xpose.msra.mxu0 0.0
    %1241 = vmatprep.subr.mxu0 0.0
    %1242 = vmatpush1.xpose.msra.mxu0 0.0
    %1243 = vmatprep.subr.mxu0 0.0
    %1244 = vmatpush1.xpose.msra.mxu0 0.0
    %1245 = vmatprep.subr.mxu0 0.0
    %1246 = vmatpush1.xpose.msra.mxu0 0.0
    %1247 = vmatprep.subr.mxu0 0.0
    %1248 = vmatpush1.xpose.msra.mxu0 0.0
    %1249 = vmatprep.subr.mxu0 0.0
    %1250 = vmatpush1.xpose.msra.mxu0 0.0
    %1251 = vmatprep.subr.mxu0 0.0
    %1252 = vmatpush1.xpose.msra.mxu0 0.0
    %1253 = vmatprep.subr.mxu0 0.0
    %1254 = vmatpush1.xpose.msra.mxu0 0.0
    %1255 = vmatprep.subr.mxu0 0.0
    %1256 = vmatpush1.xpose.msra.mxu0 0.0
    %1257 = vmatprep.subr.mxu0 0.0
    %1258 = vmatpush1.xpose.msra.mxu0 0.0
    %1259 = vmatprep.subr.mxu0 0.0
    %1260 = vmatpush1.xpose.msra.mxu0 0.0
    %1261 = vmatprep.subr.mxu0 0.0
    %1262 = vmatpush1.xpose.msra.mxu0 0.0
    %1263 = vmatprep.subr.mxu0 0.0
    %1264 = vmatpush1.xpose.msra.mxu0 0.0
    %1265 = vmatprep.subr.mxu0 0.0
    %1266 = vmatpush1.xpose.msra.mxu0 0.0
    %1267 = vmatprep.subr.mxu0 0.0
    %1268 = vmatpush1.xpose.msra.mxu0 0.0
    %1269 = vmatprep.subr.mxu0 0.0
    %1270 = vmatpush1.xpose.msra.mxu0 0.0
    %1271 = vmatprep.subr.mxu0 0.0
    %1272 = vmatpush1.xpose.msra.mxu0 0.0
    %1273 = vmatprep.subr.mxu0 0.0
    %1274 = vmatpush1.xpose.msra.mxu0 0.0
    %1275 = vmatprep.subr.mxu0 0.0
    %1276 = vmatpush1.xpose.msra.mxu0 0.0
    %1277 = vmatprep.subr.mxu0 0.0
    %1278 = vmatpush1.xpose.msra.mxu0 0.0
    %1279 = vmatprep.subr.mxu0 0.0
    %1280 = vmatpush1.xpose.msra.mxu0 0.0
    %1281 = vmatprep.subr.mxu0 0.0
    %1282 = vmatpush1.xpose.msra.mxu0 0.0
    %1283 = vmatprep.subr.mxu0 0.0
    %1284 = vmatpush1.xpose.msra.mxu0 0.0
    %1285 = vmatprep.subr.mxu0 0.0
    %1286 = vmatpush1.xpose.msra.mxu0 0.0
    %1287 = vmatprep.mubr.f32.mxu0 0.0
    %1288 = vmatmul.mubr.f32.gmra.mrb[0].mxu0 %v1217
    %v1289 = vpop.f32.mrb[0].mxu0
    %v1290 = vadd.f32 0.0, %v1289
    %v1291 = vpop.f32.mrb[0].mxu0
    %1292 = vmatprep.mubr.f32.mxu0 0.0
    %1293 = vmatmul.mubr.f32.gmra.mrb[0].mxu0 %v1219
    %v1294 = vpop.f32.mrb[0].mxu0
    %v1295 = vadd.f32 0.0, %v1294
    %v1296 = vpop.f32.mrb[0].mxu0
    %1297 = vdwg.mxu0
    %1298 = vrot.lane.b32.xlu0 %v908, 120
    %v1299 = vpop.permute.xlu0 %1298
    %1300 = vrot.lane.b32.xlu0 %v736, 120
    %v1301 = vpop.permute.xlu0 %1300
    %1302 = vrot.lane.b32.xlu0 %v824, 120
    %v1303 = vpop.permute.xlu0 %1302
    %v1304 = vsel %vm826, %v1299, 0
    %v1306 = vsel %vm826, %v1301, 0
    %v1308 = vsel %vm826, %v1303, 0
    %1310 = vmatprep.subr.mxu0 0.0
    %1311 = vmatpush1.xpose.msra.mxu0 %v1308
    %1312 = vmatprep.subr.mxu0 0.0
    %1313 = vmatpush1.xpose.msra.mxu0 0.0
    %1314 = vmatprep.subr.mxu0 0.0
    %1315 = vmatpush1.xpose.msra.mxu0 0.0
    %1316 = vmatprep.subr.mxu0 0.0
    %1317 = vmatpush1.xpose.msra.mxu0 0.0
    %1318 = vmatprep.subr.mxu0 0.0
    %1319 = vmatpush1.xpose.msra.mxu0 0.0
    %1320 = vmatprep.subr.mxu0 0.0
    %1321 = vmatpush1.xpose.msra.mxu0 0.0
    %1322 = vmatprep.subr.mxu0 0.0
    %1323 = vmatpush1.xpose.msra.mxu0 0.0
    %1324 = vmatprep.subr.mxu0 0.0
    %1325 = vmatpush1.xpose.msra.mxu0 0.0
    %1326 = vmatprep.subr.mxu0 0.0
    %1327 = vmatpush1.xpose.msra.mxu0 0.0
    %1328 = vmatprep.subr.mxu0 0.0
    %1329 = vmatpush1.xpose.msra.mxu0 0.0
    %1330 = vmatprep.subr.mxu0 0.0
    %1331 = vmatpush1.xpose.msra.mxu0 0.0
    %1332 = vmatprep.subr.mxu0 0.0
    %1333 = vmatpush1.xpose.msra.mxu0 0.0
    %1334 = vmatprep.subr.mxu0 0.0
    %1335 = vmatpush1.xpose.msra.mxu0 0.0
    %1336 = vmatprep.subr.mxu0 0.0
    %1337 = vmatpush1.xpose.msra.mxu0 0.0
    %1338 = vmatprep.subr.mxu0 0.0
    %1339 = vmatpush1.xpose.msra.mxu0 0.0
    %1340 = vmatprep.subr.mxu0 0.0
    %1341 = vmatpush1.xpose.msra.mxu0 0.0
    %1342 = vmatprep.subr.mxu0 0.0
    %1343 = vmatpush1.xpose.msra.mxu0 0.0
    %1344 = vmatprep.subr.mxu0 0.0
    %1345 = vmatpush1.xpose.msra.mxu0 0.0
    %1346 = vmatprep.subr.mxu0 0.0
    %1347 = vmatpush1.xpose.msra.mxu0 0.0
    %1348 = vmatprep.subr.mxu0 0.0
    %1349 = vmatpush1.xpose.msra.mxu0 0.0
    %1350 = vmatprep.subr.mxu0 0.0
    %1351 = vmatpush1.xpose.msra.mxu0 0.0
    %1352 = vmatprep.subr.mxu0 0.0
    %1353 = vmatpush1.xpose.msra.mxu0 0.0
    %1354 = vmatprep.subr.mxu0 0.0
    %1355 = vmatpush1.xpose.msra.mxu0 0.0
    %1356 = vmatprep.subr.mxu0 0.0
    %1357 = vmatpush1.xpose.msra.mxu0 0.0
    %1358 = vmatprep.subr.mxu0 0.0
    %1359 = vmatpush1.xpose.msra.mxu0 0.0
    %1360 = vmatprep.subr.mxu0 0.0
    %1361 = vmatpush1.xpose.msra.mxu0 0.0
    %1362 = vmatprep.subr.mxu0 0.0
    %1363 = vmatpush1.xpose.msra.mxu0 0.0
    %1364 = vmatprep.subr.mxu0 0.0
    %1365 = vmatpush1.xpose.msra.mxu0 0.0
    %1366 = vmatprep.subr.mxu0 0.0
    %1367 = vmatpush1.xpose.msra.mxu0 0.0
    %1368 = vmatprep.subr.mxu0 0.0
    %1369 = vmatpush1.xpose.msra.mxu0 0.0
    %1370 = vmatprep.subr.mxu0 0.0
    %1371 = vmatpush1.xpose.msra.mxu0 0.0
    %1372 = vmatprep.subr.mxu0 0.0
    %1373 = vmatpush1.xpose.msra.mxu0 0.0
    %1374 = vmatprep.mubr.f32.mxu0 0.0
    %1375 = vmatmul.mubr.f32.gmra.mrb[0].mxu0 %v1304
    %v1376 = vpop.f32.mrb[0].mxu0
    %v1377 = vadd.f32 0.0, %v1376
    %v1378 = vpop.f32.mrb[0].mxu0
    %1379 = vmatprep.mubr.f32.mxu0 0.0
    %1380 = vmatmul.mubr.f32.gmra.mrb[0].mxu0 %v1306
    %v1381 = vpop.f32.mrb[0].mxu0
    %v1382 = vadd.f32 0.0, %v1381
    %v1383 = vpop.f32.mrb[0].mxu0
    %1384 = vdwg.mxu0
    %v1385 = vmul.f32 %v1290, 0.35355338
    %v1386 = vmul.f32 %v1295, 0.35355338
    %v1387 = vmul.f32 %v1377, 0.35355338
    %v1388 = vmul.f32 %v1382, 0.35355338
    %v1389 = vsel %vm994, %v1385, -inf
    %1390 = vmax.xlane.f32.xlu0 %v1389
    %v1391 = vpop.xlane.xlu0 %1390
    %v1392 = vsel %vm998, %v1386, -inf
    %1393 = vmax.xlane.f32.xlu0 %v1392
    %v1394 = vpop.xlane.xlu0 %1393
    %v1395 = vsel %vm994, %v1387, -inf
    %1396 = vmax.xlane.f32.xlu0 %v1395
    %v1397 = vpop.xlane.xlu0 %1396
    %v1398 = vsel %vm998, %v1388, -inf
    %1399 = vmax.xlane.f32.xlu0 %v1398
    %v1400 = vpop.xlane.xlu0 %1399
    %v1401 = vsub.f32 %v1385, %v1391
    %v1402 = vsub.f32 %v1386, %v1394
    %v1403 = vsub.f32 %v1387, %v1397
    %v1404 = vsub.f32 %v1388, %v1400
    %v1405 = vmul.f32 %v1401, 1.442695
    %v1406 = vpow.pop %v1405
    %v1407 = vmul.f32 %v1402, 1.442695
    %v1408 = vpow.pop %v1407
    %v1409 = vmul.f32 %v1403, 1.442695
    %v1410 = vpow.pop %v1409
    %v1411 = vmul.f32 %v1404, 1.442695
    %v1412 = vpow.pop %v1411
    %v1413 = vsel %vm994, %v1406, 0.0
    %1414 = vadd.xlane.f32.xlu0 %v1413
    %v1415 = vpop.xlane.xlu0 %1414
    %v1416 = vsel %vm998, %v1408, 0.0
    %1417 = vadd.xlane.f32.xlu0 %v1416
    %v1418 = vpop.xlane.xlu0 %1417
    %v1419 = vsel %vm994, %v1410, 0.0
    %1420 = vadd.xlane.f32.xlu0 %v1419
    %v1421 = vpop.xlane.xlu0 %1420
    %v1422 = vsel %vm998, %v1412, 0.0
    %1423 = vadd.xlane.f32.xlu0 %v1422
    %v1424 = vpop.xlane.xlu0 %1423
    %v1425 = vrcp.pop %v1415
    %v1426 = vrcp.pop %v1418
    %v1427 = vrcp.pop %v1421
    %v1428 = vrcp.pop %v1424
    %v1429 = vmul.f32 %v1406, %v1425
    %v1430 = vmul.f32 %v1408, %v1426
    %v1431 = vmul.f32 %v1410, %v1427
    %v1432 = vmul.f32 %v1412, %v1428
    %1433 = vrot.lane.b32.xlu0 %v820, 88
    %v1434 = vpop.permute.xlu0 %1433
    %v1436 = vsel %vm994, %v1429, 0
    %v1439 = vsel %vm994, %v1430, 0
    %v1441 = vsel %vm1048, %v1434, 0
    %1443 = vmatprep.subr.mxu0 0.0
    %1444 = vmatpush1.msra.mxu0 %v1441
    %1445 = vmatprep.subr.mxu0 0.0
    %1446 = vmatpush1.msra.mxu0 0.0
    %1447 = vmatprep.subr.mxu0 0.0
    %1448 = vmatpush1.msra.mxu0 0.0
    %1449 = vmatprep.subr.mxu0 0.0
    %1450 = vmatpush1.msra.mxu0 0.0
    %1451 = vmatprep.subr.mxu0 0.0
    %1452 = vmatpush1.msra.mxu0 0.0
    %1453 = vmatprep.subr.mxu0 0.0
    %1454 = vmatpush1.msra.mxu0 0.0
    %1455 = vmatprep.subr.mxu0 0.0
    %1456 = vmatpush1.msra.mxu0 0.0
    %1457 = vmatprep.subr.mxu0 0.0
    %1458 = vmatpush1.msra.mxu0 0.0
    %1459 = vmatprep.subr.mxu0 0.0
    %1460 = vmatpush1.msra.mxu0 0.0
    %1461 = vmatprep.subr.mxu0 0.0
    %1462 = vmatpush1.msra.mxu0 0.0
    %1463 = vmatprep.subr.mxu0 0.0
    %1464 = vmatpush1.msra.mxu0 0.0
    %1465 = vmatprep.subr.mxu0 0.0
    %1466 = vmatpush1.msra.mxu0 0.0
    %1467 = vmatprep.subr.mxu0 0.0
    %1468 = vmatpush1.msra.mxu0 0.0
    %1469 = vmatprep.subr.mxu0 0.0
    %1470 = vmatpush1.msra.mxu0 0.0
    %1471 = vmatprep.subr.mxu0 0.0
    %1472 = vmatpush1.msra.mxu0 0.0
    %1473 = vmatprep.subr.mxu0 0.0
    %1474 = vmatpush1.msra.mxu0 0.0
    %1475 = vmatprep.subr.mxu0 0.0
    %1476 = vmatpush1.msra.mxu0 0.0
    %1477 = vmatprep.subr.mxu0 0.0
    %1478 = vmatpush1.msra.mxu0 0.0
    %1479 = vmatprep.subr.mxu0 0.0
    %1480 = vmatpush1.msra.mxu0 0.0
    %1481 = vmatprep.subr.mxu0 0.0
    %1482 = vmatpush1.msra.mxu0 0.0
    %1483 = vmatprep.subr.mxu0 0.0
    %1484 = vmatpush1.msra.mxu0 0.0
    %1485 = vmatprep.subr.mxu0 0.0
    %1486 = vmatpush1.msra.mxu0 0.0
    %1487 = vmatprep.subr.mxu0 0.0
    %1488 = vmatpush1.msra.mxu0 0.0
    %1489 = vmatprep.subr.mxu0 0.0
    %1490 = vmatpush1.msra.mxu0 0.0
    %1491 = vmatprep.subr.mxu0 0.0
    %1492 = vmatpush1.msra.mxu0 0.0
    %1493 = vmatprep.subr.mxu0 0.0
    %1494 = vmatpush1.msra.mxu0 0.0
    %1495 = vmatprep.subr.mxu0 0.0
    %1496 = vmatpush1.msra.mxu0 0.0
    %1497 = vmatprep.subr.mxu0 0.0
    %1498 = vmatpush1.msra.mxu0 0.0
    %1499 = vmatprep.subr.mxu0 0.0
    %1500 = vmatpush1.msra.mxu0 0.0
    %1501 = vmatprep.subr.mxu0 0.0
    %1502 = vmatpush1.msra.mxu0 0.0
    %1503 = vmatprep.subr.mxu0 0.0
    %1504 = vmatpush1.msra.mxu0 0.0
    %1505 = vmatprep.subr.mxu0 0.0
    %1506 = vmatpush1.msra.mxu0 0.0
    %1507 = vmatprep.mubr.f32.mxu0 0.0
    %1508 = vmatmul.mubr.f32.gmra.mrb[0].mxu0 %v1436
    %v1509 = vpop.f32.mrb[0].mxu0
    %v1510 = vadd.f32 0.0, %v1509
    %v1511 = vpop.f32.mrb[0].mxu0
    %1512 = vmatprep.mubr.f32.mxu0 0.0
    %1513 = vmatmul.mubr.f32.gmra.mrb[0].mxu0 %v1439
    %v1514 = vpop.f32.mrb[0].mxu0
    %v1515 = vadd.f32 0.0, %v1514
    %v1516 = vpop.f32.mrb[0].mxu0
    %1517 = vdwg.mxu0
    %1518 = vrot.lane.b32.xlu0 %v824, 88
    %v1519 = vpop.permute.xlu0 %1518
    %v1521 = vsel %vm994, %v1431, 0
    %v1524 = vsel %vm994, %v1432, 0
    %v1526 = vsel %vm1048, %v1519, 0
    %1528 = vmatprep.subr.mxu0 0.0
    %1529 = vmatpush1.msra.mxu0 %v1526
    %1530 = vmatprep.subr.mxu0 0.0
    %1531 = vmatpush1.msra.mxu0 0.0
    %1532 = vmatprep.subr.mxu0 0.0
    %1533 = vmatpush1.msra.mxu0 0.0
    %1534 = vmatprep.subr.mxu0 0.0
    %1535 = vmatpush1.msra.mxu0 0.0
    %1536 = vmatprep.subr.mxu0 0.0
    %1537 = vmatpush1.msra.mxu0 0.0
    %1538 = vmatprep.subr.mxu0 0.0
    %1539 = vmatpush1.msra.mxu0 0.0
    %1540 = vmatprep.subr.mxu0 0.0
    %1541 = vmatpush1.msra.mxu0 0.0
    %1542 = vmatprep.subr.mxu0 0.0
    %1543 = vmatpush1.msra.mxu0 0.0
    %1544 = vmatprep.subr.mxu0 0.0
    %1545 = vmatpush1.msra.mxu0 0.0
    %1546 = vmatprep.subr.mxu0 0.0
    %1547 = vmatpush1.msra.mxu0 0.0
    %1548 = vmatprep.subr.mxu0 0.0
    %1549 = vmatpush1.msra.mxu0 0.0
    %1550 = vmatprep.subr.mxu0 0.0
    %1551 = vmatpush1.msra.mxu0 0.0
    %1552 = vmatprep.subr.mxu0 0.0
    %1553 = vmatpush1.msra.mxu0 0.0
    %1554 = vmatprep.subr.mxu0 0.0
    %1555 = vmatpush1.msra.mxu0 0.0
    %1556 = vmatprep.subr.mxu0 0.0
    %1557 = vmatpush1.msra.mxu0 0.0
    %1558 = vmatprep.subr.mxu0 0.0
    %1559 = vmatpush1.msra.mxu0 0.0
    %1560 = vmatprep.subr.mxu0 0.0
    %1561 = vmatpush1.msra.mxu0 0.0
    %1562 = vmatprep.subr.mxu0 0.0
    %1563 = vmatpush1.msra.mxu0 0.0
    %1564 = vmatprep.subr.mxu0 0.0
    %1565 = vmatpush1.msra.mxu0 0.0
    %1566 = vmatprep.subr.mxu0 0.0
    %1567 = vmatpush1.msra.mxu0 0.0
    %1568 = vmatprep.subr.mxu0 0.0
    %1569 = vmatpush1.msra.mxu0 0.0
    %1570 = vmatprep.subr.mxu0 0.0
    %1571 = vmatpush1.msra.mxu0 0.0
    %1572 = vmatprep.subr.mxu0 0.0
    %1573 = vmatpush1.msra.mxu0 0.0
    %1574 = vmatprep.subr.mxu0 0.0
    %1575 = vmatpush1.msra.mxu0 0.0
    %1576 = vmatprep.subr.mxu0 0.0
    %1577 = vmatpush1.msra.mxu0 0.0
    %1578 = vmatprep.subr.mxu0 0.0
    %1579 = vmatpush1.msra.mxu0 0.0
    %1580 = vmatprep.subr.mxu0 0.0
    %1581 = vmatpush1.msra.mxu0 0.0
    %1582 = vmatprep.subr.mxu0 0.0
    %1583 = vmatpush1.msra.mxu0 0.0
    %1584 = vmatprep.subr.mxu0 0.0
    %1585 = vmatpush1.msra.mxu0 0.0
    %1586 = vmatprep.subr.mxu0 0.0
    %1587 = vmatpush1.msra.mxu0 0.0
    %1588 = vmatprep.subr.mxu0 0.0
    %1589 = vmatpush1.msra.mxu0 0.0
    %1590 = vmatprep.subr.mxu0 0.0
    %1591 = vmatpush1.msra.mxu0 0.0
    %1592 = vmatprep.mubr.f32.mxu0 0.0
    %1593 = vmatmul.mubr.f32.gmra.mrb[0].mxu0 %v1521
    %v1594 = vpop.f32.mrb[0].mxu0
    %v1595 = vadd.f32 0.0, %v1594
    %v1596 = vpop.f32.mrb[0].mxu0
    %1597 = vmatprep.mubr.f32.mxu0 0.0
    %1598 = vmatmul.mubr.f32.gmra.mrb[0].mxu0 %v1524
    %v1599 = vpop.f32.mrb[0].mxu0
    %v1600 = vadd.f32 0.0, %v1599
    %v1601 = vpop.f32.mrb[0].mxu0
    %1602 = vdwg.mxu0
    %1603 = vrot.lane.b32.xlu0 %v825, 112
    %v1604 = vpop.permute.xlu0 %1603
    %1605 = vrot.lane.b32.xlu0 %v723, 112
    %v1606 = vpop.permute.xlu0 %1605
    %1607 = vrot.lane.b32.xlu0 %v820, 112
    %v1608 = vpop.permute.xlu0 %1607
    %v1609 = vsel %vm826, %v1604, 0
    %v1611 = vsel %vm826, %v1606, 0
    %v1613 = vsel %vm826, %v1608, 0
    %1615 = vmatprep.subr.mxu0 0.0
    %1616 = vmatpush1.xpose.msra.mxu0 %v1613
    %1617 = vmatprep.subr.mxu0 0.0
    %1618 = vmatpush1.xpose.msra.mxu0 0.0
    %1619 = vmatprep.subr.mxu0 0.0
    %1620 = vmatpush1.xpose.msra.mxu0 0.0
    %1621 = vmatprep.subr.mxu0 0.0
    %1622 = vmatpush1.xpose.msra.mxu0 0.0
    %1623 = vmatprep.subr.mxu0 0.0
    %1624 = vmatpush1.xpose.msra.mxu0 0.0
    %1625 = vmatprep.subr.mxu0 0.0
    %1626 = vmatpush1.xpose.msra.mxu0 0.0
    %1627 = vmatprep.subr.mxu0 0.0
    %1628 = vmatpush1.xpose.msra.mxu0 0.0
    %1629 = vmatprep.subr.mxu0 0.0
    %1630 = vmatpush1.xpose.msra.mxu0 0.0
    %1631 = vmatprep.subr.mxu0 0.0
    %1632 = vmatpush1.xpose.msra.mxu0 0.0
    %1633 = vmatprep.subr.mxu0 0.0
    %1634 = vmatpush1.xpose.msra.mxu0 0.0
    %1635 = vmatprep.subr.mxu0 0.0
    %1636 = vmatpush1.xpose.msra.mxu0 0.0
    %1637 = vmatprep.subr.mxu0 0.0
    %1638 = vmatpush1.xpose.msra.mxu0 0.0
    %1639 = vmatprep.subr.mxu0 0.0
    %1640 = vmatpush1.xpose.msra.mxu0 0.0
    %1641 = vmatprep.subr.mxu0 0.0
    %1642 = vmatpush1.xpose.msra.mxu0 0.0
    %1643 = vmatprep.subr.mxu0 0.0
    %1644 = vmatpush1.xpose.msra.mxu0 0.0
    %1645 = vmatprep.subr.mxu0 0.0
    %1646 = vmatpush1.xpose.msra.mxu0 0.0
    %1647 = vmatprep.subr.mxu0 0.0
    %1648 = vmatpush1.xpose.msra.mxu0 0.0
    %1649 = vmatprep.subr.mxu0 0.0
    %1650 = vmatpush1.xpose.msra.mxu0 0.0
    %1651 = vmatprep.subr.mxu0 0.0
    %1652 = vmatpush1.xpose.msra.mxu0 0.0
    %1653 = vmatprep.subr.mxu0 0.0
    %1654 = vmatpush1.xpose.msra.mxu0 0.0
    %1655 = vmatprep.subr.mxu0 0.0
    %1656 = vmatpush1.xpose.msra.mxu0 0.0
    %1657 = vmatprep.subr.mxu0 0.0
    %1658 = vmatpush1.xpose.msra.mxu0 0.0
    %1659 = vmatprep.subr.mxu0 0.0
    %1660 = vmatpush1.xpose.msra.mxu0 0.0
    %1661 = vmatprep.subr.mxu0 0.0
    %1662 = vmatpush1.xpose.msra.mxu0 0.0
    %1663 = vmatprep.subr.mxu0 0.0
    %1664 = vmatpush1.xpose.msra.mxu0 0.0
    %1665 = vmatprep.subr.mxu0 0.0
    %1666 = vmatpush1.xpose.msra.mxu0 0.0
    %1667 = vmatprep.subr.mxu0 0.0
    %1668 = vmatpush1.xpose.msra.mxu0 0.0
    %1669 = vmatprep.subr.mxu0 0.0
    %1670 = vmatpush1.xpose.msra.mxu0 0.0
    %1671 = vmatprep.subr.mxu0 0.0
    %1672 = vmatpush1.xpose.msra.mxu0 0.0
    %1673 = vmatprep.subr.mxu0 0.0
    %1674 = vmatpush1.xpose.msra.mxu0 0.0
    %1675 = vmatprep.subr.mxu0 0.0
    %1676 = vmatpush1.xpose.msra.mxu0 0.0
    %1677 = vmatprep.subr.mxu0 0.0
    %1678 = vmatpush1.xpose.msra.mxu0 0.0
    %1679 = vmatprep.mubr.f32.mxu0 0.0
    %1680 = vmatmul.mubr.f32.gmra.mrb[0].mxu0 %v1609
    %v1681 = vpop.f32.mrb[0].mxu0
    %v1682 = vadd.f32 0.0, %v1681
    %v1683 = vpop.f32.mrb[0].mxu0
    %1684 = vmatprep.mubr.f32.mxu0 0.0
    %1685 = vmatmul.mubr.f32.gmra.mrb[0].mxu0 %v1611
    %v1686 = vpop.f32.mrb[0].mxu0
    %v1687 = vadd.f32 0.0, %v1686
    %v1688 = vpop.f32.mrb[0].mxu0
    %1689 = vdwg.mxu0
    %1690 = vrot.lane.b32.xlu0 %v908, 112
    %v1691 = vpop.permute.xlu0 %1690
    %1692 = vrot.lane.b32.xlu0 %v736, 112
    %v1693 = vpop.permute.xlu0 %1692
    %1694 = vrot.lane.b32.xlu0 %v824, 112
    %v1695 = vpop.permute.xlu0 %1694
    %v1696 = vsel %vm826, %v1691, 0
    %v1698 = vsel %vm826, %v1693, 0
    %v1700 = vsel %vm826, %v1695, 0
    %1702 = vmatprep.subr.mxu0 0.0
    %1703 = vmatpush1.xpose.msra.mxu0 %v1700
    %1704 = vmatprep.subr.mxu0 0.0
    %1705 = vmatpush1.xpose.msra.mxu0 0.0
    %1706 = vmatprep.subr.mxu0 0.0
    %1707 = vmatpush1.xpose.msra.mxu0 0.0
    %1708 = vmatprep.subr.mxu0 0.0
    %1709 = vmatpush1.xpose.msra.mxu0 0.0
    %1710 = vmatprep.subr.mxu0 0.0
    %1711 = vmatpush1.xpose.msra.mxu0 0.0
    %1712 = vmatprep.subr.mxu0 0.0
    %1713 = vmatpush1.xpose.msra.mxu0 0.0
    %1714 = vmatprep.subr.mxu0 0.0
    %1715 = vmatpush1.xpose.msra.mxu0 0.0
    %1716 = vmatprep.subr.mxu0 0.0
    %1717 = vmatpush1.xpose.msra.mxu0 0.0
    %1718 = vmatprep.subr.mxu0 0.0
    %1719 = vmatpush1.xpose.msra.mxu0 0.0
    %1720 = vmatprep.subr.mxu0 0.0
    %1721 = vmatpush1.xpose.msra.mxu0 0.0
    %1722 = vmatprep.subr.mxu0 0.0
    %1723 = vmatpush1.xpose.msra.mxu0 0.0
    %1724 = vmatprep.subr.mxu0 0.0
    %1725 = vmatpush1.xpose.msra.mxu0 0.0
    %1726 = vmatprep.subr.mxu0 0.0
    %1727 = vmatpush1.xpose.msra.mxu0 0.0
    %1728 = vmatprep.subr.mxu0 0.0
    %1729 = vmatpush1.xpose.msra.mxu0 0.0
    %1730 = vmatprep.subr.mxu0 0.0
    %1731 = vmatpush1.xpose.msra.mxu0 0.0
    %1732 = vmatprep.subr.mxu0 0.0
    %1733 = vmatpush1.xpose.msra.mxu0 0.0
    %1734 = vmatprep.subr.mxu0 0.0
    %1735 = vmatpush1.xpose.msra.mxu0 0.0
    %1736 = vmatprep.subr.mxu0 0.0
    %1737 = vmatpush1.xpose.msra.mxu0 0.0
    %1738 = vmatprep.subr.mxu0 0.0
    %1739 = vmatpush1.xpose.msra.mxu0 0.0
    %1740 = vmatprep.subr.mxu0 0.0
    %1741 = vmatpush1.xpose.msra.mxu0 0.0
    %1742 = vmatprep.subr.mxu0 0.0
    %1743 = vmatpush1.xpose.msra.mxu0 0.0
    %1744 = vmatprep.subr.mxu0 0.0
    %1745 = vmatpush1.xpose.msra.mxu0 0.0
    %1746 = vmatprep.subr.mxu0 0.0
    %1747 = vmatpush1.xpose.msra.mxu0 0.0
    %1748 = vmatprep.subr.mxu0 0.0
    %1749 = vmatpush1.xpose.msra.mxu0 0.0
    %1750 = vmatprep.subr.mxu0 0.0
    %1751 = vmatpush1.xpose.msra.mxu0 0.0
    %1752 = vmatprep.subr.mxu0 0.0
    %1753 = vmatpush1.xpose.msra.mxu0 0.0
    %1754 = vmatprep.subr.mxu0 0.0
    %1755 = vmatpush1.xpose.msra.mxu0 0.0
    %1756 = vmatprep.subr.mxu0 0.0
    %1757 = vmatpush1.xpose.msra.mxu0 0.0
    %1758 = vmatprep.subr.mxu0 0.0
    %1759 = vmatpush1.xpose.msra.mxu0 0.0
    %1760 = vmatprep.subr.mxu0 0.0
    %1761 = vmatpush1.xpose.msra.mxu0 0.0
    %1762 = vmatprep.subr.mxu0 0.0
    %1763 = vmatpush1.xpose.msra.mxu0 0.0
    %1764 = vmatprep.subr.mxu0 0.0
    %1765 = vmatpush1.xpose.msra.mxu0 0.0
    %1766 = vmatprep.mubr.f32.mxu0 0.0
    %1767 = vmatmul.mubr.f32.gmra.mrb[0].mxu0 %v1696
    %v1768 = vpop.f32.mrb[0].mxu0
    %v1769 = vadd.f32 0.0, %v1768
    %v1770 = vpop.f32.mrb[0].mxu0
    %1771 = vmatprep.mubr.f32.mxu0 0.0
    %1772 = vmatmul.mubr.f32.gmra.mrb[0].mxu0 %v1698
    %v1773 = vpop.f32.mrb[0].mxu0
    %v1774 = vadd.f32 0.0, %v1773
    %v1775 = vpop.f32.mrb[0].mxu0
    %1776 = vdwg.mxu0
    %v1777 = vmul.f32 %v1682, 0.35355338
    %v1778 = vmul.f32 %v1687, 0.35355338
    %v1779 = vmul.f32 %v1769, 0.35355338
    %v1780 = vmul.f32 %v1774, 0.35355338
    %v1781 = vsel %vm994, %v1777, -inf
    %1782 = vmax.xlane.f32.xlu0 %v1781
    %v1783 = vpop.xlane.xlu0 %1782
    %v1784 = vsel %vm998, %v1778, -inf
    %1785 = vmax.xlane.f32.xlu0 %v1784
    %v1786 = vpop.xlane.xlu0 %1785
    %v1787 = vsel %vm994, %v1779, -inf
    %1788 = vmax.xlane.f32.xlu0 %v1787
    %v1789 = vpop.xlane.xlu0 %1788
    %v1790 = vsel %vm998, %v1780, -inf
    %1791 = vmax.xlane.f32.xlu0 %v1790
    %v1792 = vpop.xlane.xlu0 %1791
    %v1793 = vsub.f32 %v1777, %v1783
    %v1794 = vsub.f32 %v1778, %v1786
    %v1795 = vsub.f32 %v1779, %v1789
    %v1796 = vsub.f32 %v1780, %v1792
    %v1797 = vmul.f32 %v1793, 1.442695
    %v1798 = vpow.pop %v1797
    %v1799 = vmul.f32 %v1794, 1.442695
    %v1800 = vpow.pop %v1799
    %v1801 = vmul.f32 %v1795, 1.442695
    %v1802 = vpow.pop %v1801
    %v1803 = vmul.f32 %v1796, 1.442695
    %v1804 = vpow.pop %v1803
    %v1805 = vsel %vm994, %v1798, 0.0
    %1806 = vadd.xlane.f32.xlu0 %v1805
    %v1807 = vpop.xlane.xlu0 %1806
    %v1808 = vsel %vm998, %v1800, 0.0
    %1809 = vadd.xlane.f32.xlu0 %v1808
    %v1810 = vpop.xlane.xlu0 %1809
    %v1811 = vsel %vm994, %v1802, 0.0
    %1812 = vadd.xlane.f32.xlu0 %v1811
    %v1813 = vpop.xlane.xlu0 %1812
    %v1814 = vsel %vm998, %v1804, 0.0
    %1815 = vadd.xlane.f32.xlu0 %v1814
    %v1816 = vpop.xlane.xlu0 %1815
    %v1817 = vrcp.pop %v1807
    %v1818 = vrcp.pop %v1810
    %v1819 = vrcp.pop %v1813
    %v1820 = vrcp.pop %v1816
    %v1821 = vmul.f32 %v1798, %v1817
    %v1822 = vmul.f32 %v1800, %v1818
    %v1823 = vmul.f32 %v1802, %v1819
    %v1824 = vmul.f32 %v1804, %v1820
    %1825 = vrot.lane.b32.xlu0 %v820, 80
    %v1826 = vpop.permute.xlu0 %1825
    %v1828 = vsel %vm994, %v1821, 0
    %v1831 = vsel %vm994, %v1822, 0
    %v1833 = vsel %vm1048, %v1826, 0
    %1835 = vmatprep.subr.mxu0 0.0
    %1836 = vmatpush1.msra.mxu0 %v1833
    %1837 = vmatprep.subr.mxu0 0.0
    %1838 = vmatpush1.msra.mxu0 0.0
    %1839 = vmatprep.subr.mxu0 0.0
    %1840 = vmatpush1.msra.mxu0 0.0
    %1841 = vmatprep.subr.mxu0 0.0
    %1842 = vmatpush1.msra.mxu0 0.0
    %1843 = vmatprep.subr.mxu0 0.0
    %1844 = vmatpush1.msra.mxu0 0.0
    %1845 = vmatprep.subr.mxu0 0.0
    %1846 = vmatpush1.msra.mxu0 0.0
    %1847 = vmatprep.subr.mxu0 0.0
    %1848 = vmatpush1.msra.mxu0 0.0
    %1849 = vmatprep.subr.mxu0 0.0
    %1850 = vmatpush1.msra.mxu0 0.0
    %1851 = vmatprep.subr.mxu0 0.0
    %1852 = vmatpush1.msra.mxu0 0.0
    %1853 = vmatprep.subr.mxu0 0.0
    %1854 = vmatpush1.msra.mxu0 0.0
    %1855 = vmatprep.subr.mxu0 0.0
    %1856 = vmatpush1.msra.mxu0 0.0
    %1857 = vmatprep.subr.mxu0 0.0
    %1858 = vmatpush1.msra.mxu0 0.0
    %1859 = vmatprep.subr.mxu0 0.0
    %1860 = vmatpush1.msra.mxu0 0.0
    %1861 = vmatprep.subr.mxu0 0.0
    %1862 = vmatpush1.msra.mxu0 0.0
    %1863 = vmatprep.subr.mxu0 0.0
    %1864 = vmatpush1.msra.mxu0 0.0
    %1865 = vmatprep.subr.mxu0 0.0
    %1866 = vmatpush1.msra.mxu0 0.0
    %1867 = vmatprep.subr.mxu0 0.0
    %1868 = vmatpush1.msra.mxu0 0.0
    %1869 = vmatprep.subr.mxu0 0.0
    %1870 = vmatpush1.msra.mxu0 0.0
    %1871 = vmatprep.subr.mxu0 0.0
    %1872 = vmatpush1.msra.mxu0 0.0
    %1873 = vmatprep.subr.mxu0 0.0
    %1874 = vmatpush1.msra.mxu0 0.0
    %1875 = vmatprep.subr.mxu0 0.0
    %1876 = vmatpush1.msra.mxu0 0.0
    %1877 = vmatprep.subr.mxu0 0.0
    %1878 = vmatpush1.msra.mxu0 0.0
    %1879 = vmatprep.subr.mxu0 0.0
    %1880 = vmatpush1.msra.mxu0 0.0
    %1881 = vmatprep.subr.mxu0 0.0
    %1882 = vmatpush1.msra.mxu0 0.0
    %1883 = vmatprep.subr.mxu0 0.0
    %1884 = vmatpush1.msra.mxu0 0.0
    %1885 = vmatprep.subr.mxu0 0.0
    %1886 = vmatpush1.msra.mxu0 0.0
    %1887 = vmatprep.subr.mxu0 0.0
    %1888 = vmatpush1.msra.mxu0 0.0
    %1889 = vmatprep.subr.mxu0 0.0
    %1890 = vmatpush1.msra.mxu0 0.0
    %1891 = vmatprep.subr.mxu0 0.0
    %1892 = vmatpush1.msra.mxu0 0.0
    %1893 = vmatprep.subr.mxu0 0.0
    %1894 = vmatpush1.msra.mxu0 0.0
    %1895 = vmatprep.subr.mxu0 0.0
    %1896 = vmatpush1.msra.mxu0 0.0
    %1897 = vmatprep.subr.mxu0 0.0
    %1898 = vmatpush1.msra.mxu0 0.0
    %1899 = vmatprep.mubr.f32.mxu0 0.0
    %1900 = vmatmul.mubr.f32.gmra.mrb[0].mxu0 %v1828
    %v1901 = vpop.f32.mrb[0].mxu0
    %v1902 = vadd.f32 0.0, %v1901
    %v1903 = vpop.f32.mrb[0].mxu0
    %1904 = vmatprep.mubr.f32.mxu0 0.0
    %1905 = vmatmul.mubr.f32.gmra.mrb[0].mxu0 %v1831
    %v1906 = vpop.f32.mrb[0].mxu0
    %v1907 = vadd.f32 0.0, %v1906
    %v1908 = vpop.f32.mrb[0].mxu0
    %1909 = vdwg.mxu0
    %1910 = vrot.lane.b32.xlu0 %v824, 80
    %v1911 = vpop.permute.xlu0 %1910
    %v1913 = vsel %vm994, %v1823, 0
    %v1916 = vsel %vm994, %v1824, 0
    %v1918 = vsel %vm1048, %v1911, 0
    %1920 = vmatprep.subr.mxu0 0.0
    %1921 = vmatpush1.msra.mxu0 %v1918
    %1922 = vmatprep.subr.mxu0 0.0
    %1923 = vmatpush1.msra.mxu0 0.0
    %1924 = vmatprep.subr.mxu0 0.0
    %1925 = vmatpush1.msra.mxu0 0.0
    %1926 = vmatprep.subr.mxu0 0.0
    %1927 = vmatpush1.msra.mxu0 0.0
    %1928 = vmatprep.subr.mxu0 0.0
    %1929 = vmatpush1.msra.mxu0 0.0
    %1930 = vmatprep.subr.mxu0 0.0
    %1931 = vmatpush1.msra.mxu0 0.0
    %1932 = vmatprep.subr.mxu0 0.0
    %1933 = vmatpush1.msra.mxu0 0.0
    %1934 = vmatprep.subr.mxu0 0.0
    %1935 = vmatpush1.msra.mxu0 0.0
    %1936 = vmatprep.subr.mxu0 0.0
    %1937 = vmatpush1.msra.mxu0 0.0
    %1938 = vmatprep.subr.mxu0 0.0
    %1939 = vmatpush1.msra.mxu0 0.0
    %1940 = vmatprep.subr.mxu0 0.0
    %1941 = vmatpush1.msra.mxu0 0.0
    %1942 = vmatprep.subr.mxu0 0.0
    %1943 = vmatpush1.msra.mxu0 0.0
    %1944 = vmatprep.subr.mxu0 0.0
    %1945 = vmatpush1.msra.mxu0 0.0
    %1946 = vmatprep.subr.mxu0 0.0
    %1947 = vmatpush1.msra.mxu0 0.0
    %1948 = vmatprep.subr.mxu0 0.0
    %1949 = vmatpush1.msra.mxu0 0.0
    %1950 = vmatprep.subr.mxu0 0.0
    %1951 = vmatpush1.msra.mxu0 0.0
    %1952 = vmatprep.subr.mxu0 0.0
    %1953 = vmatpush1.msra.mxu0 0.0
    %1954 = vmatprep.subr.mxu0 0.0
    %1955 = vmatpush1.msra.mxu0 0.0
    %1956 = vmatprep.subr.mxu0 0.0
    %1957 = vmatpush1.msra.mxu0 0.0
    %1958 = vmatprep.subr.mxu0 0.0
    %1959 = vmatpush1.msra.mxu0 0.0
    %1960 = vmatprep.subr.mxu0 0.0
    %1961 = vmatpush1.msra.mxu0 0.0
    %1962 = vmatprep.subr.mxu0 0.0
    %1963 = vmatpush1.msra.mxu0 0.0
    %1964 = vmatprep.subr.mxu0 0.0
    %1965 = vmatpush1.msra.mxu0 0.0
    %1966 = vmatprep.subr.mxu0 0.0
    %1967 = vmatpush1.msra.mxu0 0.0
    %1968 = vmatprep.subr.mxu0 0.0
    %1969 = vmatpush1.msra.mxu0 0.0
    %1970 = vmatprep.subr.mxu0 0.0
    %1971 = vmatpush1.msra.mxu0 0.0
    %1972 = vmatprep.subr.mxu0 0.0
    %1973 = vmatpush1.msra.mxu0 0.0
    %1974 = vmatprep.subr.mxu0 0.0
    %1975 = vmatpush1.msra.mxu0 0.0
    %1976 = vmatprep.subr.mxu0 0.0
    %1977 = vmatpush1.msra.mxu0 0.0
    %1978 = vmatprep.subr.mxu0 0.0
    %1979 = vmatpush1.msra.mxu0 0.0
    %1980 = vmatprep.subr.mxu0 0.0
    %1981 = vmatpush1.msra.mxu0 0.0
    %1982 = vmatprep.subr.mxu0 0.0
    %1983 = vmatpush1.msra.mxu0 0.0
    %1984 = vmatprep.mubr.f32.mxu0 0.0
    %1985 = vmatmul.mubr.f32.gmra.mrb[0].mxu0 %v1913
    %v1986 = vpop.f32.mrb[0].mxu0
    %v1987 = vadd.f32 0.0, %v1986
    %v1988 = vpop.f32.mrb[0].mxu0
    %1989 = vmatprep.mubr.f32.mxu0 0.0
    %1990 = vmatmul.mubr.f32.gmra.mrb[0].mxu0 %v1916
    %v1991 = vpop.f32.mrb[0].mxu0
    %v1992 = vadd.f32 0.0, %v1991
    %v1993 = vpop.f32.mrb[0].mxu0
    %1994 = vdwg.mxu0
    %1995 = vrot.lane.b32.xlu0 %v825, 104
    %v1996 = vpop.permute.xlu0 %1995
    %1997 = vrot.lane.b32.xlu0 %v723, 104
    %v1998 = vpop.permute.xlu0 %1997
    %1999 = vrot.lane.b32.xlu0 %v820, 104
    %v2000 = vpop.permute.xlu0 %1999
    %v2001 = vsel %vm826, %v1996, 0
    %v2003 = vsel %vm826, %v1998, 0
    %v2005 = vsel %vm826, %v2000, 0
    %2007 = vmatprep.subr.mxu0 0.0
    %2008 = vmatpush1.xpose.msra.mxu0 %v2005
    %2009 = vmatprep.subr.mxu0 0.0
    %2010 = vmatpush1.xpose.msra.mxu0 0.0
    %2011 = vmatprep.subr.mxu0 0.0
    %2012 = vmatpush1.xpose.msra.mxu0 0.0
    %2013 = vmatprep.subr.mxu0 0.0
    %2014 = vmatpush1.xpose.msra.mxu0 0.0
    %2015 = vmatprep.subr.mxu0 0.0
    %2016 = vmatpush1.xpose.msra.mxu0 0.0
    %2017 = vmatprep.subr.mxu0 0.0
    %2018 = vmatpush1.xpose.msra.mxu0 0.0
    %2019 = vmatprep.subr.mxu0 0.0
    %2020 = vmatpush1.xpose.msra.mxu0 0.0
    %2021 = vmatprep.subr.mxu0 0.0
    %2022 = vmatpush1.xpose.msra.mxu0 0.0
    %2023 = vmatprep.subr.mxu0 0.0
    %2024 = vmatpush1.xpose.msra.mxu0 0.0
    %2025 = vmatprep.subr.mxu0 0.0
    %2026 = vmatpush1.xpose.msra.mxu0 0.0
    %2027 = vmatprep.subr.mxu0 0.0
    %2028 = vmatpush1.xpose.msra.mxu0 0.0
    %2029 = vmatprep.subr.mxu0 0.0
    %2030 = vmatpush1.xpose.msra.mxu0 0.0
    %2031 = vmatprep.subr.mxu0 0.0
    %2032 = vmatpush1.xpose.msra.mxu0 0.0
    %2033 = vmatprep.subr.mxu0 0.0
    %2034 = vmatpush1.xpose.msra.mxu0 0.0
    %2035 = vmatprep.subr.mxu0 0.0
    %2036 = vmatpush1.xpose.msra.mxu0 0.0
    %2037 = vmatprep.subr.mxu0 0.0
    %2038 = vmatpush1.xpose.msra.mxu0 0.0
    %2039 = vmatprep.subr.mxu0 0.0
    %2040 = vmatpush1.xpose.msra.mxu0 0.0
    %2041 = vmatprep.subr.mxu0 0.0
    %2042 = vmatpush1.xpose.msra.mxu0 0.0
    %2043 = vmatprep.subr.mxu0 0.0
    %2044 = vmatpush1.xpose.msra.mxu0 0.0
    %2045 = vmatprep.subr.mxu0 0.0
    %2046 = vmatpush1.xpose.msra.mxu0 0.0
    %2047 = vmatprep.subr.mxu0 0.0
    %2048 = vmatpush1.xpose.msra.mxu0 0.0
    %2049 = vmatprep.subr.mxu0 0.0
    %2050 = vmatpush1.xpose.msra.mxu0 0.0
    %2051 = vmatprep.subr.mxu0 0.0
    %2052 = vmatpush1.xpose.msra.mxu0 0.0
    %2053 = vmatprep.subr.mxu0 0.0
    %2054 = vmatpush1.xpose.msra.mxu0 0.0
    %2055 = vmatprep.subr.mxu0 0.0
    %2056 = vmatpush1.xpose.msra.mxu0 0.0
    %2057 = vmatprep.subr.mxu0 0.0
    %2058 = vmatpush1.xpose.msra.mxu0 0.0
    %2059 = vmatprep.subr.mxu0 0.0
    %2060 = vmatpush1.xpose.msra.mxu0 0.0
    %2061 = vmatprep.subr.mxu0 0.0
    %2062 = vmatpush1.xpose.msra.mxu0 0.0
    %2063 = vmatprep.subr.mxu0 0.0
    %2064 = vmatpush1.xpose.msra.mxu0 0.0
    %2065 = vmatprep.subr.mxu0 0.0
    %2066 = vmatpush1.xpose.msra.mxu0 0.0
    %2067 = vmatprep.subr.mxu0 0.0
    %2068 = vmatpush1.xpose.msra.mxu0 0.0
    %2069 = vmatprep.subr.mxu0 0.0
    %2070 = vmatpush1.xpose.msra.mxu0 0.0
    %2071 = vmatprep.mubr.f32.mxu0 0.0
    %2072 = vmatmul.mubr.f32.gmra.mrb[0].mxu0 %v2001
    %v2073 = vpop.f32.mrb[0].mxu0
    %v2074 = vadd.f32 0.0, %v2073
    %v2075 = vpop.f32.mrb[0].mxu0
    %2076 = vmatprep.mubr.f32.mxu0 0.0
    %2077 = vmatmul.mubr.f32.gmra.mrb[0].mxu0 %v2003
    %v2078 = vpop.f32.mrb[0].mxu0
    %v2079 = vadd.f32 0.0, %v2078
    %v2080 = vpop.f32.mrb[0].mxu0
    %2081 = vdwg.mxu0
    %2082 = vrot.lane.b32.xlu0 %v908, 104
    %v2083 = vpop.permute.xlu0 %2082
    %2084 = vrot.lane.b32.xlu0 %v736, 104
    %v2085 = vpop.permute.xlu0 %2084
    %2086 = vrot.lane.b32.xlu0 %v824, 104
    %v2087 = vpop.permute.xlu0 %2086
    %v2088 = vsel %vm826, %v2083, 0
    %v2090 = vsel %vm826, %v2085, 0
    %v2092 = vsel %vm826, %v2087, 0
    %2094 = vmatprep.subr.mxu0 0.0
    %2095 = vmatpush1.xpose.msra.mxu0 %v2092
    %2096 = vmatprep.subr.mxu0 0.0
    %2097 = vmatpush1.xpose.msra.mxu0 0.0
    %2098 = vmatprep.subr.mxu0 0.0
    %2099 = vmatpush1.xpose.msra.mxu0 0.0
    %2100 = vmatprep.subr.mxu0 0.0
    %2101 = vmatpush1.xpose.msra.mxu0 0.0
    %2102 = vmatprep.subr.mxu0 0.0
    %2103 = vmatpush1.xpose.msra.mxu0 0.0
    %2104 = vmatprep.subr.mxu0 0.0
    %2105 = vmatpush1.xpose.msra.mxu0 0.0
    %2106 = vmatprep.subr.mxu0 0.0
    %2107 = vmatpush1.xpose.msra.mxu0 0.0
    %2108 = vmatprep.subr.mxu0 0.0
    %2109 = vmatpush1.xpose.msra.mxu0 0.0
    %2110 = vmatprep.subr.mxu0 0.0
    %2111 = vmatpush1.xpose.msra.mxu0 0.0
    %2112 = vmatprep.subr.mxu0 0.0
    %2113 = vmatpush1.xpose.msra.mxu0 0.0
    %2114 = vmatprep.subr.mxu0 0.0
    %2115 = vmatpush1.xpose.msra.mxu0 0.0
    %2116 = vmatprep.subr.mxu0 0.0
    %2117 = vmatpush1.xpose.msra.mxu0 0.0
    %2118 = vmatprep.subr.mxu0 0.0
    %2119 = vmatpush1.xpose.msra.mxu0 0.0
    %2120 = vmatprep.subr.mxu0 0.0
    %2121 = vmatpush1.xpose.msra.mxu0 0.0
    %2122 = vmatprep.subr.mxu0 0.0
    %2123 = vmatpush1.xpose.msra.mxu0 0.0
    %2124 = vmatprep.subr.mxu0 0.0
    %2125 = vmatpush1.xpose.msra.mxu0 0.0
    %2126 = vmatprep.subr.mxu0 0.0
    %2127 = vmatpush1.xpose.msra.mxu0 0.0
    %2128 = vmatprep.subr.mxu0 0.0
    %2129 = vmatpush1.xpose.msra.mxu0 0.0
    %2130 = vmatprep.subr.mxu0 0.0
    %2131 = vmatpush1.xpose.msra.mxu0 0.0
    %2132 = vmatprep.subr.mxu0 0.0
    %2133 = vmatpush1.xpose.msra.mxu0 0.0
    %2134 = vmatprep.subr.mxu0 0.0
    %2135 = vmatpush1.xpose.msra.mxu0 0.0
    %2136 = vmatprep.subr.mxu0 0.0
    %2137 = vmatpush1.xpose.msra.mxu0 0.0
    %2138 = vmatprep.subr.mxu0 0.0
    %2139 = vmatpush1.xpose.msra.mxu0 0.0
    %2140 = vmatprep.subr.mxu0 0.0
    %2141 = vmatpush1.xpose.msra.mxu0 0.0
    %2142 = vmatprep.subr.mxu0 0.0
    %2143 = vmatpush1.xpose.msra.mxu0 0.0
    %2144 = vmatprep.subr.mxu0 0.0
    %2145 = vmatpush1.xpose.msra.mxu0 0.0
    %2146 = vmatprep.subr.mxu0 0.0
    %2147 = vmatpush1.xpose.msra.mxu0 0.0
    %2148 = vmatprep.subr.mxu0 0.0
    %2149 = vmatpush1.xpose.msra.mxu0 0.0
    %2150 = vmatprep.subr.mxu0 0.0
    %2151 = vmatpush1.xpose.msra.mxu0 0.0
    %2152 = vmatprep.subr.mxu0 0.0
    %2153 = vmatpush1.xpose.msra.mxu0 0.0
    %2154 = vmatprep.subr.mxu0 0.0
    %2155 = vmatpush1.xpose.msra.mxu0 0.0
    %2156 = vmatprep.subr.mxu0 0.0
    %2157 = vmatpush1.xpose.msra.mxu0 0.0
    %2158 = vmatprep.mubr.f32.mxu0 0.0
    %2159 = vmatmul.mubr.f32.gmra.mrb[0].mxu0 %v2088
    %v2160 = vpop.f32.mrb[0].mxu0
    %v2161 = vadd.f32 0.0, %v2160
    %v2162 = vpop.f32.mrb[0].mxu0
    %2163 = vmatprep.mubr.f32.mxu0 0.0
    %2164 = vmatmul.mubr.f32.gmra.mrb[0].mxu0 %v2090
    %v2165 = vpop.f32.mrb[0].mxu0
    %v2166 = vadd.f32 0.0, %v2165
    %v2167 = vpop.f32.mrb[0].mxu0
    %2168 = vdwg.mxu0
    %v2169 = vmul.f32 %v2074, 0.35355338
    %v2170 = vmul.f32 %v2079, 0.35355338
    %v2171 = vmul.f32 %v2161, 0.35355338
    %v2172 = vmul.f32 %v2166, 0.35355338
    %v2173 = vsel %vm994, %v2169, -inf
    %2174 = vmax.xlane.f32.xlu0 %v2173
    %v2175 = vpop.xlane.xlu0 %2174
    %v2176 = vsel %vm998, %v2170, -inf
    %2177 = vmax.xlane.f32.xlu0 %v2176
    %v2178 = vpop.xlane.xlu0 %2177
    %v2179 = vsel %vm994, %v2171, -inf
    %2180 = vmax.xlane.f32.xlu0 %v2179
    %v2181 = vpop.xlane.xlu0 %2180
    %v2182 = vsel %vm998, %v2172, -inf
    %2183 = vmax.xlane.f32.xlu0 %v2182
    %v2184 = vpop.xlane.xlu0 %2183
    %v2185 = vsub.f32 %v2169, %v2175
    %v2186 = vsub.f32 %v2170, %v2178
    %v2187 = vsub.f32 %v2171, %v2181
    %v2188 = vsub.f32 %v2172, %v2184
    %v2189 = vmul.f32 %v2185, 1.442695
    %v2190 = vpow.pop %v2189
    %v2191 = vmul.f32 %v2186, 1.442695
    %v2192 = vpow.pop %v2191
    %v2193 = vmul.f32 %v2187, 1.442695
    %v2194 = vpow.pop %v2193
    %v2195 = vmul.f32 %v2188, 1.442695
    %v2196 = vpow.pop %v2195
    %v2197 = vsel %vm994, %v2190, 0.0
    %2198 = vadd.xlane.f32.xlu0 %v2197
    %v2199 = vpop.xlane.xlu0 %2198
    %v2200 = vsel %vm998, %v2192, 0.0
    %2201 = vadd.xlane.f32.xlu0 %v2200
    %v2202 = vpop.xlane.xlu0 %2201
    %v2203 = vsel %vm994, %v2194, 0.0
    %2204 = vadd.xlane.f32.xlu0 %v2203
    %v2205 = vpop.xlane.xlu0 %2204
    %v2206 = vsel %vm998, %v2196, 0.0
    %2207 = vadd.xlane.f32.xlu0 %v2206
    %v2208 = vpop.xlane.xlu0 %2207
    %v2209 = vrcp.pop %v2199
    %v2210 = vrcp.pop %v2202
    %v2211 = vrcp.pop %v2205
    %v2212 = vrcp.pop %v2208
    %v2213 = vmul.f32 %v2190, %v2209
    %v2214 = vmul.f32 %v2192, %v2210
    %v2215 = vmul.f32 %v2194, %v2211
    %v2216 = vmul.f32 %v2196, %v2212
    %2217 = vrot.lane.b32.xlu0 %v820, 72
    %v2218 = vpop.permute.xlu0 %2217
    %v2220 = vsel %vm994, %v2213, 0
    %v2223 = vsel %vm994, %v2214, 0
    %v2225 = vsel %vm1048, %v2218, 0
    %2227 = vmatprep.subr.mxu0 0.0
    %2228 = vmatpush1.msra.mxu0 %v2225
    %2229 = vmatprep.subr.mxu0 0.0
    %2230 = vmatpush1.msra.mxu0 0.0
    %2231 = vmatprep.subr.mxu0 0.0
    %2232 = vmatpush1.msra.mxu0 0.0
    %2233 = vmatprep.subr.mxu0 0.0
    %2234 = vmatpush1.msra.mxu0 0.0
    %2235 = vmatprep.subr.mxu0 0.0
    %2236 = vmatpush1.msra.mxu0 0.0
    %2237 = vmatprep.subr.mxu0 0.0
    %2238 = vmatpush1.msra.mxu0 0.0
    %2239 = vmatprep.subr.mxu0 0.0
    %2240 = vmatpush1.msra.mxu0 0.0
    %2241 = vmatprep.subr.mxu0 0.0
    %2242 = vmatpush1.msra.mxu0 0.0
    %2243 = vmatprep.subr.mxu0 0.0
    %2244 = vmatpush1.msra.mxu0 0.0
    %2245 = vmatprep.subr.mxu0 0.0
    %2246 = vmatpush1.msra.mxu0 0.0
    %2247 = vmatprep.subr.mxu0 0.0
    %2248 = vmatpush1.msra.mxu0 0.0
    %2249 = vmatprep.subr.mxu0 0.0
    %2250 = vmatpush1.msra.mxu0 0.0
    %2251 = vmatprep.subr.mxu0 0.0
    %2252 = vmatpush1.msra.mxu0 0.0
    %2253 = vmatprep.subr.mxu0 0.0
    %2254 = vmatpush1.msra.mxu0 0.0
    %2255 = vmatprep.subr.mxu0 0.0
    %2256 = vmatpush1.msra.mxu0 0.0
    %2257 = vmatprep.subr.mxu0 0.0
    %2258 = vmatpush1.msra.mxu0 0.0
    %2259 = vmatprep.subr.mxu0 0.0
    %2260 = vmatpush1.msra.mxu0 0.0
    %2261 = vmatprep.subr.mxu0 0.0
    %2262 = vmatpush1.msra.mxu0 0.0
    %2263 = vmatprep.subr.mxu0 0.0
    %2264 = vmatpush1.msra.mxu0 0.0
    %2265 = vmatprep.subr.mxu0 0.0
    %2266 = vmatpush1.msra.mxu0 0.0
    %2267 = vmatprep.subr.mxu0 0.0
    %2268 = vmatpush1.msra.mxu0 0.0
    %2269 = vmatprep.subr.mxu0 0.0
    %2270 = vmatpush1.msra.mxu0 0.0
    %2271 = vmatprep.subr.mxu0 0.0
    %2272 = vmatpush1.msra.mxu0 0.0
    %2273 = vmatprep.subr.mxu0 0.0
    %2274 = vmatpush1.msra.mxu0 0.0
    %2275 = vmatprep.subr.mxu0 0.0
    %2276 = vmatpush1.msra.mxu0 0.0
    %2277 = vmatprep.subr.mxu0 0.0
    %2278 = vmatpush1.msra.mxu0 0.0
    %2279 = vmatprep.subr.mxu0 0.0
    %2280 = vmatpush1.msra.mxu0 0.0
    %2281 = vmatprep.subr.mxu0 0.0
    %2282 = vmatpush1.msra.mxu0 0.0
    %2283 = vmatprep.subr.mxu0 0.0
    %2284 = vmatpush1.msra.mxu0 0.0
    %2285 = vmatprep.subr.mxu0 0.0
    %2286 = vmatpush1.msra.mxu0 0.0
    %2287 = vmatprep.subr.mxu0 0.0
    %2288 = vmatpush1.msra.mxu0 0.0
    %2289 = vmatprep.subr.mxu0 0.0
    %2290 = vmatpush1.msra.mxu0 0.0
    %2291 = vmatprep.mubr.f32.mxu0 0.0
    %2292 = vmatmul.mubr.f32.gmra.mrb[0].mxu0 %v2220
    %v2293 = vpop.f32.mrb[0].mxu0
    %v2294 = vadd.f32 0.0, %v2293
    %v2295 = vpop.f32.mrb[0].mxu0
    %2296 = vmatprep.mubr.f32.mxu0 0.0
    %2297 = vmatmul.mubr.f32.gmra.mrb[0].mxu0 %v2223
    %v2298 = vpop.f32.mrb[0].mxu0
    %v2299 = vadd.f32 0.0, %v2298
    %v2300 = vpop.f32.mrb[0].mxu0
    %2301 = vdwg.mxu0
    %2302 = vrot.lane.b32.xlu0 %v824, 72
    %v2303 = vpop.permute.xlu0 %2302
    %v2305 = vsel %vm994, %v2215, 0
    %v2308 = vsel %vm994, %v2216, 0
    %v2310 = vsel %vm1048, %v2303, 0
    %2312 = vmatprep.subr.mxu0 0.0
    %2313 = vmatpush1.msra.mxu0 %v2310
    %2314 = vmatprep.subr.mxu0 0.0
    %2315 = vmatpush1.msra.mxu0 0.0
    %2316 = vmatprep.subr.mxu0 0.0
    %2317 = vmatpush1.msra.mxu0 0.0
    %2318 = vmatprep.subr.mxu0 0.0
    %2319 = vmatpush1.msra.mxu0 0.0
    %2320 = vmatprep.subr.mxu0 0.0
    %2321 = vmatpush1.msra.mxu0 0.0
    %2322 = vmatprep.subr.mxu0 0.0
    %2323 = vmatpush1.msra.mxu0 0.0
    %2324 = vmatprep.subr.mxu0 0.0
    %2325 = vmatpush1.msra.mxu0 0.0
    %2326 = vmatprep.subr.mxu0 0.0
    %2327 = vmatpush1.msra.mxu0 0.0
    %2328 = vmatprep.subr.mxu0 0.0
    %2329 = vmatpush1.msra.mxu0 0.0
    %2330 = vmatprep.subr.mxu0 0.0
    %2331 = vmatpush1.msra.mxu0 0.0
    %2332 = vmatprep.subr.mxu0 0.0
    %2333 = vmatpush1.msra.mxu0 0.0
    %2334 = vmatprep.subr.mxu0 0.0
    %2335 = vmatpush1.msra.mxu0 0.0
    %2336 = vmatprep.subr.mxu0 0.0
    %2337 = vmatpush1.msra.mxu0 0.0
    %2338 = vmatprep.subr.mxu0 0.0
    %2339 = vmatpush1.msra.mxu0 0.0
    %2340 = vmatprep.subr.mxu0 0.0
    %2341 = vmatpush1.msra.mxu0 0.0
    %2342 = vmatprep.subr.mxu0 0.0
    %2343 = vmatpush1.msra.mxu0 0.0
    %2344 = vmatprep.subr.mxu0 0.0
    %2345 = vmatpush1.msra.mxu0 0.0
    %2346 = vmatprep.subr.mxu0 0.0
    %2347 = vmatpush1.msra.mxu0 0.0
    %2348 = vmatprep.subr.mxu0 0.0
    %2349 = vmatpush1.msra.mxu0 0.0
    %2350 = vmatprep.subr.mxu0 0.0
    %2351 = vmatpush1.msra.mxu0 0.0
    %2352 = vmatprep.subr.mxu0 0.0
    %2353 = vmatpush1.msra.mxu0 0.0
    %2354 = vmatprep.subr.mxu0 0.0
    %2355 = vmatpush1.msra.mxu0 0.0
    %2356 = vmatprep.subr.mxu0 0.0
    %2357 = vmatpush1.msra.mxu0 0.0
    %2358 = vmatprep.subr.mxu0 0.0
    %2359 = vmatpush1.msra.mxu0 0.0
    %2360 = vmatprep.subr.mxu0 0.0
    %2361 = vmatpush1.msra.mxu0 0.0
    %2362 = vmatprep.subr.mxu0 0.0
    %2363 = vmatpush1.msra.mxu0 0.0
    %2364 = vmatprep.subr.mxu0 0.0
    %2365 = vmatpush1.msra.mxu0 0.0
    %2366 = vmatprep.subr.mxu0 0.0
    %2367 = vmatpush1.msra.mxu0 0.0
    %2368 = vmatprep.subr.mxu0 0.0
    %2369 = vmatpush1.msra.mxu0 0.0
    %2370 = vmatprep.subr.mxu0 0.0
    %2371 = vmatpush1.msra.mxu0 0.0
    %2372 = vmatprep.subr.mxu0 0.0
    %2373 = vmatpush1.msra.mxu0 0.0
    %2374 = vmatprep.subr.mxu0 0.0
    %2375 = vmatpush1.msra.mxu0 0.0
    %2376 = vmatprep.mubr.f32.mxu0 0.0
    %2377 = vmatmul.mubr.f32.gmra.mrb[0].mxu0 %v2305
    %v2378 = vpop.f32.mrb[0].mxu0
    %v2379 = vadd.f32 0.0, %v2378
    %v2380 = vpop.f32.mrb[0].mxu0
    %2381 = vmatprep.mubr.f32.mxu0 0.0
    %2382 = vmatmul.mubr.f32.gmra.mrb[0].mxu0 %v2308
    %v2383 = vpop.f32.mrb[0].mxu0
    %v2384 = vadd.f32 0.0, %v2383
    %v2385 = vpop.f32.mrb[0].mxu0
    %2386 = vdwg.mxu0
    %2391 = vrot.lane.b32.xlu0 %v1510, 8
    %v2392 = vpop.permute.xlu0 %2391
    %2393 = vrot.lane.b32.xlu0 %v1515, 8
    %v2394 = vpop.permute.xlu0 %2393
    %2395 = vrot.lane.b32.xlu0 %v1595, 8
    %v2396 = vpop.permute.xlu0 %2395
    %2397 = vrot.lane.b32.xlu0 %v1600, 8
    %v2398 = vpop.permute.xlu0 %2397
    %2407 = vrot.lane.b32.xlu0 %v1902, 16
    %v2408 = vpop.permute.xlu0 %2407
    %2409 = vrot.lane.b32.xlu0 %v1907, 16
    %v2410 = vpop.permute.xlu0 %2409
    %2411 = vrot.lane.b32.xlu0 %v1987, 16
    %v2412 = vpop.permute.xlu0 %2411
    %2413 = vrot.lane.b32.xlu0 %v1992, 16
    %v2414 = vpop.permute.xlu0 %2413
    %2423 = vrot.lane.b32.xlu0 %v2294, 24
    %v2424 = vpop.permute.xlu0 %2423
    %2425 = vrot.lane.b32.xlu0 %v2299, 24
    %v2426 = vpop.permute.xlu0 %2425
    %2427 = vrot.lane.b32.xlu0 %v2379, 24
    %v2428 = vpop.permute.xlu0 %2427
    %2429 = vrot.lane.b32.xlu0 %v2384, 24
    %v2430 = vpop.permute.xlu0 %2429
    %v2435 = vsel %vm826, %v1118, %v2392
    %v2436 = vsel %vm826, %v1123, %v2394
    %v2437 = vsel %vm826, %v1203, %v2396
    %v2438 = vsel %vm826, %v1208, %v2398
    %v2439 = vsel %vm137, %v2435, %v2408
    %v2440 = vsel %vm137, %v2436, %v2410
    %v2441 = vsel %vm137, %v2437, %v2412
    %v2442 = vsel %vm137, %v2438, %v2414
    %vm2443 = vcmask 195584
    %v2444 = vsel %vm2443, %v2439, %v2424
    %v2445 = vsel %vm2443, %v2440, %v2426
    %v2446 = vsel %vm2443, %v2441, %v2428
    %v2447 = vsel %vm2443, %v2442, %v2430
    %v2452 = vcombine.high %v2444, %v2444
    %v2453 = vcombine.high %v2446, %v2446
    %v2454 = vld [vmem:[%s13] sm:$0xff]
    %v2455 = vld [vmem:[%s13 + $0x8] sm:$0xff]
    %v2456 = vld [vmem:[%s13 + $0x10] sm:$0xff]
    %v2457 = vld [vmem:[%s13 + $0x18] sm:$0xff]
    %v2458 = vld [vmem:[%s14] sm:$0x1]
    %v2460 = vlaneseq
    %v2461 = vshrl.u32 %v2460, 7
    %v2462 = vsub.s32 0, %v2461
    %v2463 = vrot.slane %v2458, %v2462
    %v2465 = vcombine.low %v2444, %v2452
    %v2466 = vcombine.low %v2445, %v2446
    %v2467 = vcombine.low %v2453, %v2447
    %v2468 = vsel %vm327, %v2465, 0
    %v2470 = vsel %vm327, %v2466, 0
    %v2472 = vsel %vm327, %v2467, 0
    %2474 = vmatprep.subr.mxu0 0.0
    %2475 = vmatpush1.msra.mxu0 %v2454
    %2476 = vmatprep.subr.mxu0 0.0
    %2477 = vmatpush1.msra.mxu0 %v2455
    %2478 = vmatprep.subr.mxu0 0.0
    %2479 = vmatpush1.msra.mxu0 %v2456
    %2480 = vmatprep.subr.mxu0 0.0
    %2481 = vmatpush1.msra.mxu0 %v2457
    %2482 = vmatprep.subr.mxu0 0.0
    %2483 = vmatpush1.msra.mxu0 0.0
    %2484 = vmatprep.subr.mxu0 0.0
    %2485 = vmatpush1.msra.mxu0 0.0
    %2486 = vmatprep.subr.mxu0 0.0
    %2487 = vmatpush1.msra.mxu0 0.0
    %2488 = vmatprep.subr.mxu0 0.0
    %2489 = vmatpush1.msra.mxu0 0.0
    %2490 = vmatprep.subr.mxu0 0.0
    %2491 = vmatpush1.msra.mxu0 0.0
    %2492 = vmatprep.subr.mxu0 0.0
    %2493 = vmatpush1.msra.mxu0 0.0
    %2494 = vmatprep.subr.mxu0 0.0
    %2495 = vmatpush1.msra.mxu0 0.0
    %2496 = vmatprep.subr.mxu0 0.0
    %2497 = vmatpush1.msra.mxu0 0.0
    %2498 = vmatprep.subr.mxu0 0.0
    %2499 = vmatpush1.msra.mxu0 0.0
    %2500 = vmatprep.subr.mxu0 0.0
    %2501 = vmatpush1.msra.mxu0 0.0
    %2502 = vmatprep.subr.mxu0 0.0
    %2503 = vmatpush1.msra.mxu0 0.0
    %2504 = vmatprep.subr.mxu0 0.0
    %2505 = vmatpush1.msra.mxu0 0.0
    %2506 = vmatprep.subr.mxu0 0.0
    %2507 = vmatpush1.msra.mxu0 0.0
    %2508 = vmatprep.subr.mxu0 0.0
    %2509 = vmatpush1.msra.mxu0 0.0
    %2510 = vmatprep.subr.mxu0 0.0
    %2511 = vmatpush1.msra.mxu0 0.0
    %2512 = vmatprep.subr.mxu0 0.0
    %2513 = vmatpush1.msra.mxu0 0.0
    %2514 = vmatprep.subr.mxu0 0.0
    %2515 = vmatpush1.msra.mxu0 0.0
    %2516 = vmatprep.subr.mxu0 0.0
    %2517 = vmatpush1.msra.mxu0 0.0
    %2518 = vmatprep.subr.mxu0 0.0
    %2519 = vmatpush1.msra.mxu0 0.0
    %2520 = vmatprep.subr.mxu0 0.0
    %2521 = vmatpush1.msra.mxu0 0.0
    %2522 = vmatprep.subr.mxu0 0.0
    %2523 = vmatpush1.msra.mxu0 0.0
    %2524 = vmatprep.subr.mxu0 0.0
    %2525 = vmatpush1.msra.mxu0 0.0
    %2526 = vmatprep.subr.mxu0 0.0
    %2527 = vmatpush1.msra.mxu0 0.0
    %2528 = vmatprep.subr.mxu0 0.0
    %2529 = vmatpush1.msra.mxu0 0.0
    %2530 = vmatprep.subr.mxu0 0.0
    %2531 = vmatpush1.msra.mxu0 0.0
    %2532 = vmatprep.subr.mxu0 0.0
    %2533 = vmatpush1.msra.mxu0 0.0
    %2534 = vmatprep.subr.mxu0 0.0
    %2535 = vmatpush1.msra.mxu0 0.0
    %2536 = vmatprep.subr.mxu0 0.0
    %2537 = vmatpush1.msra.mxu0 0.0
    %2538 = vmatprep.mubr.f32.mxu0 0.0
    %2539 = vmatmul.mubr.f32.gmra.mrb[0].mxu0 %v2468
    %v2540 = vpop.f32.mrb[0].mxu0
    %v2541 = vadd.f32 %v2463, %v2540
    %v2542 = vpop.f32.mrb[0].mxu0
    %2543 = vmatprep.mubr.f32.mxu0 0.0
    %2544 = vmatmul.mubr.f32.gmra.mrb[0].mxu0 %v2470
    %v2545 = vpop.f32.mrb[0].mxu0
    %v2546 = vadd.f32 %v2463, %v2545
    %v2547 = vpop.f32.mrb[0].mxu0
    %2548 = vmatprep.mubr.f32.mxu0 0.0
    %2549 = vmatmul.mubr.f32.gmra.mrb[0].mxu0 %v2472
    %v2550 = vpop.f32.mrb[0].mxu0
    %v2551 = vadd.f32 %v2463, %v2550
    %v2552 = vpop.f32.mrb[0].mxu0
    %2553 = vdwg.mxu0
    %v2557 = vcombine.high %v2541, %v2541
    %v2558 = vcombine.high %v2546, %v2546
    %v2559 = vcombine.high %v2551, %v2551
    %v2563 = vadd.f32 %v412, %v2541
    %v2564 = vadd.f32 %v413, %v2557
    %v2565 = vadd.f32 %v414, %v2546
    %v2566 = vadd.f32 %v415, %v2558
    %v2567 = vadd.f32 %v416, %v2551
    %v2568 = vadd.f32 %v417, %v2559
    %v2569 = vld [vmem:[%s15] sm:$0x1]
    %v2570 = vld [vmem:[%s16] sm:$0x1]
    %v2577 = vcombine.low %v2563, %v2564
    %v2578 = vcombine.low %v2565, %v2566
    %v2579 = vcombine.low %v2567, %v2568
    %v2583 = vsel %vm327, %v2577, 0.0
    %2584 = vadd.xlane.f32.xlu0 %v2583
    %v2585 = vpop.xlane.xlu0 %2584
    %v2586 = vsel %vm327, %v2578, 0.0
    %2587 = vadd.xlane.f32.xlu0 %v2586
    %v2588 = vpop.xlane.xlu0 %2587
    %v2589 = vsel %vm327, %v2579, 0.0
    %2590 = vadd.xlane.f32.xlu0 %v2589
    %v2591 = vpop.xlane.xlu0 %2590
    %v2592 = vmul.f32 %v2585, %v443
    %v2593 = vmul.f32 %v2588, %v443
    %v2594 = vmul.f32 %v2591, %v443
    %v2599 = vunpack.c.l.s4 839922192
    %v2600 = vunpack.c.0.s8 %v2599
    %v2601 = vlaneseq
    %v2602 = vshrl.u32 %v2601, 7
    %v2603 = vsub.s32 %v2600, %v2602
    %v2604 = vrot.slane %v2592, %v2603
    %v2606 = vunpack.c.l.s4 1985246804
    %v2607 = vunpack.c.0.s8 %v2606
    %v2608 = vlaneseq
    %v2609 = vshrl.u32 %v2608, 7
    %v2610 = vsub.s32 %v2607, %v2609
    %v2611 = vrot.slane %v2592, %v2610
    %v2613 = vunpack.c.l.s4 839922192
    %v2614 = vunpack.c.0.s8 %v2613
    %v2615 = vlaneseq
    %v2616 = vshrl.u32 %v2615, 7
    %v2617 = vsub.s32 %v2614, %v2616
    %v2618 = vrot.slane %v2593, %v2617
    %v2620 = vunpack.c.l.s4 1985246804
    %v2621 = vunpack.c.0.s8 %v2620
    %v2622 = vlaneseq
    %v2623 = vshrl.u32 %v2622, 7
    %v2624 = vsub.s32 %v2621, %v2623
    %v2625 = vrot.slane %v2593, %v2624
    %v2627 = vunpack.c.l.s4 839922192
    %v2628 = vunpack.c.0.s8 %v2627
    %v2629 = vlaneseq
    %v2630 = vshrl.u32 %v2629, 7
    %v2631 = vsub.s32 %v2628, %v2630
    %v2632 = vrot.slane %v2594, %v2631
    %v2634 = vunpack.c.l.s4 1985246804
    %v2635 = vunpack.c.0.s8 %v2634
    %v2636 = vlaneseq
    %v2637 = vshrl.u32 %v2636, 7
    %v2638 = vsub.s32 %v2635, %v2637
    %v2639 = vrot.slane %v2594, %v2638
    %v2646 = vsub.f32 %v2563, %v2604
    %v2647 = vsub.f32 %v2564, %v2611
    %v2648 = vsub.f32 %v2565, %v2618
    %v2649 = vsub.f32 %v2566, %v2625
    %v2650 = vsub.f32 %v2567, %v2632
    %v2651 = vsub.f32 %v2568, %v2639
    %v2652 = vmul.f32 %v2646, %v2646
    %v2653 = vmul.f32 %v2647, %v2647
    %v2654 = vmul.f32 %v2648, %v2648
    %v2655 = vmul.f32 %v2649, %v2649
    %v2656 = vmul.f32 %v2650, %v2650
    %v2657 = vmul.f32 %v2651, %v2651
    %v2664 = vcombine.low %v2652, %v2653
    %v2665 = vcombine.low %v2654, %v2655
    %v2666 = vcombine.low %v2656, %v2657
    %v2670 = vsel %vm327, %v2664, 0.0
    %2671 = vadd.xlane.f32.xlu0 %v2670
    %v2672 = vpop.xlane.xlu0 %2671
    %v2673 = vsel %vm327, %v2665, 0.0
    %2674 = vadd.xlane.f32.xlu0 %v2673
    %v2675 = vpop.xlane.xlu0 %2674
    %v2676 = vsel %vm327, %v2666, 0.0
    %2677 = vadd.xlane.f32.xlu0 %v2676
    %v2678 = vpop.xlane.xlu0 %2677
    %v2679 = vmul.f32 %v2672, %v443
    %v2680 = vmul.f32 %v2675, %v443
    %v2681 = vmul.f32 %v2678, %v443
    %v2682 = vadd.f32 %v2679, 1e-05
    %v2683 = vadd.f32 %v2680, 1e-05
    %v2684 = vadd.f32 %v2681, 1e-05
    %v2685 = vrsqrt.pop %v2682
    %v2686 = vrsqrt.pop %v2683
    %v2687 = vrsqrt.pop %v2684
    %v2692 = vunpack.c.l.s4 839922192
    %v2693 = vunpack.c.0.s8 %v2692
    %v2694 = vlaneseq
    %v2695 = vshrl.u32 %v2694, 7
    %v2696 = vsub.s32 %v2693, %v2695
    %v2697 = vrot.slane %v2685, %v2696
    %v2699 = vunpack.c.l.s4 1985246804
    %v2700 = vunpack.c.0.s8 %v2699
    %v2701 = vlaneseq
    %v2702 = vshrl.u32 %v2701, 7
    %v2703 = vsub.s32 %v2700, %v2702
    %v2704 = vrot.slane %v2685, %v2703
    %v2706 = vunpack.c.l.s4 839922192
    %v2707 = vunpack.c.0.s8 %v2706
    %v2708 = vlaneseq
    %v2709 = vshrl.u32 %v2708, 7
    %v2710 = vsub.s32 %v2707, %v2709
    %v2711 = vrot.slane %v2686, %v2710
    %v2713 = vunpack.c.l.s4 1985246804
    %v2714 = vunpack.c.0.s8 %v2713
    %v2715 = vlaneseq
    %v2716 = vshrl.u32 %v2715, 7
    %v2717 = vsub.s32 %v2714, %v2716
    %v2718 = vrot.slane %v2686, %v2717
    %v2720 = vunpack.c.l.s4 839922192
    %v2721 = vunpack.c.0.s8 %v2720
    %v2722 = vlaneseq
    %v2723 = vshrl.u32 %v2722, 7
    %v2724 = vsub.s32 %v2721, %v2723
    %v2725 = vrot.slane %v2687, %v2724
    %v2727 = vunpack.c.l.s4 1985246804
    %v2728 = vunpack.c.0.s8 %v2727
    %v2729 = vlaneseq
    %v2730 = vshrl.u32 %v2729, 7
    %v2731 = vsub.s32 %v2728, %v2730
    %v2732 = vrot.slane %v2687, %v2731
    %v2739 = vmul.f32 %v2646, %v2697
    %v2740 = vmul.f32 %v2647, %v2704
    %v2741 = vmul.f32 %v2648, %v2711
    %v2742 = vmul.f32 %v2649, %v2718
    %v2743 = vmul.f32 %v2650, %v2725
    %v2744 = vmul.f32 %v2651, %v2732
    %v2746 = vlaneseq
    %v2747 = vshrl.u32 %v2746, 7
    %v2748 = vsub.s32 0, %v2747
    %v2749 = vrot.slane %v2569, %v2748
    %v2751 = vcombine.high %v2749, %v2749
    %v2753 = vmul.f32 %v2739, %v2749
    %v2754 = vmul.f32 %v2740, %v2751
    %v2755 = vmul.f32 %v2741, %v2749
    %v2756 = vmul.f32 %v2742, %v2751
    %v2757 = vmul.f32 %v2743, %v2749
    %v2758 = vmul.f32 %v2744, %v2751
    %v2760 = vlaneseq
    %v2761 = vshrl.u32 %v2760, 7
    %v2762 = vsub.s32 0, %v2761
    %v2763 = vrot.slane %v2570, %v2762
    %v2765 = vcombine.high %v2763, %v2763
    %v2767 = vadd.f32 %v2753, %v2763
    %v2768 = vadd.f32 %v2754, %v2765
    %v2769 = vadd.f32 %v2755, %v2763
    %v2770 = vadd.f32 %v2756, %v2765
    %v2771 = vadd.f32 %v2757, %v2763
    %v2772 = vadd.f32 %v2758, %v2765
    %v2773 = vld [vmem:[%s17] sm:$0xff]
    %v2774 = vld [vmem:[%s17 + $0x8] sm:$0xff]
    %v2775 = vld [vmem:[%s17 + $0x10] sm:$0xff]
    %v2776 = vld [vmem:[%s17 + $0x18] sm:$0xff]
    %v2777 = vld [vmem:[%s18] sm:$0x1]
    %v2779 = vlaneseq
    %v2780 = vshrl.u32 %v2779, 7
    %v2781 = vsub.s32 0, %v2780
    %v2782 = vrot.slane %v2777, %v2781
    %v2790 = vcombine.low %v2767, %v2768
    %v2791 = vcombine.low %v2769, %v2770
    %v2792 = vcombine.low %v2771, %v2772
    %v2793 = vsel %vm327, %v2790, 0
    %v2795 = vsel %vm327, %v2791, 0
    %v2797 = vsel %vm327, %v2792, 0
    %2799 = vmatprep.subr.mxu0 0.0
    %2800 = vmatpush1.msra.mxu0 %v2773
    %2801 = vmatprep.subr.mxu0 0.0
    %2802 = vmatpush1.msra.mxu0 %v2774
    %2803 = vmatprep.subr.mxu0 0.0
    %2804 = vmatpush1.msra.mxu0 %v2775
    %2805 = vmatprep.subr.mxu0 0.0
    %2806 = vmatpush1.msra.mxu0 %v2776
    %2807 = vmatprep.subr.mxu0 0.0
    %2808 = vmatpush1.msra.mxu0 0.0
    %2809 = vmatprep.subr.mxu0 0.0
    %2810 = vmatpush1.msra.mxu0 0.0
    %2811 = vmatprep.subr.mxu0 0.0
    %2812 = vmatpush1.msra.mxu0 0.0
    %2813 = vmatprep.subr.mxu0 0.0
    %2814 = vmatpush1.msra.mxu0 0.0
    %2815 = vmatprep.subr.mxu0 0.0
    %2816 = vmatpush1.msra.mxu0 0.0
    %2817 = vmatprep.subr.mxu0 0.0
    %2818 = vmatpush1.msra.mxu0 0.0
    %2819 = vmatprep.subr.mxu0 0.0
    %2820 = vmatpush1.msra.mxu0 0.0
    %2821 = vmatprep.subr.mxu0 0.0
    %2822 = vmatpush1.msra.mxu0 0.0
    %2823 = vmatprep.subr.mxu0 0.0
    %2824 = vmatpush1.msra.mxu0 0.0
    %2825 = vmatprep.subr.mxu0 0.0
    %2826 = vmatpush1.msra.mxu0 0.0
    %2827 = vmatprep.subr.mxu0 0.0
    %2828 = vmatpush1.msra.mxu0 0.0
    %2829 = vmatprep.subr.mxu0 0.0
    %2830 = vmatpush1.msra.mxu0 0.0
    %2831 = vmatprep.subr.mxu0 0.0
    %2832 = vmatpush1.msra.mxu0 0.0
    %2833 = vmatprep.subr.mxu0 0.0
    %2834 = vmatpush1.msra.mxu0 0.0
    %2835 = vmatprep.subr.mxu0 0.0
    %2836 = vmatpush1.msra.mxu0 0.0
    %2837 = vmatprep.subr.mxu0 0.0
    %2838 = vmatpush1.msra.mxu0 0.0
    %2839 = vmatprep.subr.mxu0 0.0
    %2840 = vmatpush1.msra.mxu0 0.0
    %2841 = vmatprep.subr.mxu0 0.0
    %2842 = vmatpush1.msra.mxu0 0.0
    %2843 = vmatprep.subr.mxu0 0.0
    %2844 = vmatpush1.msra.mxu0 0.0
    %2845 = vmatprep.subr.mxu0 0.0
    %2846 = vmatpush1.msra.mxu0 0.0
    %2847 = vmatprep.subr.mxu0 0.0
    %2848 = vmatpush1.msra.mxu0 0.0
    %2849 = vmatprep.subr.mxu0 0.0
    %2850 = vmatpush1.msra.mxu0 0.0
    %2851 = vmatprep.subr.mxu0 0.0
    %2852 = vmatpush1.msra.mxu0 0.0
    %2853 = vmatprep.subr.mxu0 0.0
    %2854 = vmatpush1.msra.mxu0 0.0
    %2855 = vmatprep.subr.mxu0 0.0
    %2856 = vmatpush1.msra.mxu0 0.0
    %2857 = vmatprep.subr.mxu0 0.0
    %2858 = vmatpush1.msra.mxu0 0.0
    %2859 = vmatprep.subr.mxu0 0.0
    %2860 = vmatpush1.msra.mxu0 0.0
    %2861 = vmatprep.subr.mxu0 0.0
    %2862 = vmatpush1.msra.mxu0 0.0
    %2863 = vmatprep.mubr.f32.mxu0 0.0
    %2864 = vmatmul.mubr.f32.gmra.mrb[0].mxu0 %v2793
    %v2865 = vpop.f32.mrb[0].mxu0
    %v2866 = vadd.f32 %v2782, %v2865
    %v2867 = vpop.f32.mrb[0].mxu0
    %2868 = vmatprep.mubr.f32.mxu0 0.0
    %2869 = vmatmul.mubr.f32.gmra.mrb[0].mxu0 %v2795
    %v2870 = vpop.f32.mrb[0].mxu0
    %v2871 = vadd.f32 %v2782, %v2870
    %v2872 = vpop.f32.mrb[0].mxu0
    %2873 = vmatprep.mubr.f32.mxu0 0.0
    %2874 = vmatmul.mubr.f32.gmra.mrb[0].mxu0 %v2797
    %v2875 = vpop.f32.mrb[0].mxu0
    %v2876 = vadd.f32 %v2782, %v2875
    %v2877 = vpop.f32.mrb[0].mxu0
    %2878 = vdwg.mxu0
    %v2879 = vmul.f32 %v2866, %v2866
    %v2880 = vmul.f32 %v2871, %v2871
    %v2881 = vmul.f32 %v2876, %v2876
    %v2882 = vmul.f32 %v2866, %v2879
    %v2883 = vmul.f32 %v2871, %v2880
    %v2884 = vmul.f32 %v2876, %v2881
    %v2885 = vmul.f32 %v2882, 0.044715
    %v2886 = vmul.f32 %v2883, 0.044715
    %v2887 = vmul.f32 %v2884, 0.044715
    %v2888 = vadd.f32 %v2866, %v2885
    %v2889 = vadd.f32 %v2871, %v2886
    %v2890 = vadd.f32 %v2876, %v2887
    %v2891 = vmul.f32 %v2888, 0.7978846
    %v2892 = vmul.f32 %v2889, 0.7978846
    %v2893 = vmul.f32 %v2890, 0.7978846
    %v2894 = vtanh.pop %v2891
    %v2895 = vtanh.pop %v2892
    %v2896 = vtanh.pop %v2893
    %v2897 = vadd.f32 %v2894, 1.0
    %v2898 = vadd.f32 %v2895, 1.0
    %v2899 = vadd.f32 %v2896, 1.0
    %v2900 = vmul.f32 %v2897, 0.5
    %v2901 = vmul.f32 %v2898, 0.5
    %v2902 = vmul.f32 %v2899, 0.5
    %v2903 = vmul.f32 %v2866, %v2900
    %v2904 = vmul.f32 %v2871, %v2901
    %v2905 = vmul.f32 %v2876, %v2902
    %v2906 = vld [vmem:[%s19] sm:$0xff]
    %v2907 = vld [vmem:[%s19 + $0x8] sm:$0xff]
    %v2908 = vld [vmem:[%s19 + $0x10] sm:$0xff]
    %v2909 = vld [vmem:[%s19 + $0x18] sm:$0xff]
    %v2910 = vld [vmem:[%s19 + $0x20] sm:$0xff]
    %v2911 = vld [vmem:[%s19 + $0x28] sm:$0xff]
    %v2912 = vld [vmem:[%s19 + $0x30] sm:$0xff]
    %v2913 = vld [vmem:[%s19 + $0x38] sm:$0xff]
    %v2914 = vld [vmem:[%s19 + $0x40] sm:$0xff]
    %v2915 = vld [vmem:[%s19 + $0x48] sm:$0xff]
    %v2916 = vld [vmem:[%s19 + $0x50] sm:$0xff]
    %v2917 = vld [vmem:[%s19 + $0x58] sm:$0xff]
    %v2918 = vld [vmem:[%s19 + $0x60] sm:$0xff]
    %v2919 = vld [vmem:[%s19 + $0x68] sm:$0xff]
    %v2920 = vld [vmem:[%s19 + $0x70] sm:$0xff]
    %v2921 = vld [vmem:[%s19 + $0x78] sm:$0xff]
    %v2922 = vld [vmem:[%s20] sm:$0x1]
    %v2924 = vlaneseq
    %v2925 = vshrl.u32 %v2924, 7
    %v2926 = vsub.s32 0, %v2925
    %v2927 = vrot.slane %v2922, %v2926
    %2929 = vmatprep.subr.mxu0 0.0
    %2930 = vmatpush1.msra.mxu0 %v2906
    %2931 = vmatprep.subr.mxu0 0.0
    %2932 = vmatpush1.msra.mxu0 %v2907
    %2933 = vmatprep.subr.mxu0 0.0
    %2934 = vmatpush1.msra.mxu0 %v2908
    %2935 = vmatprep.subr.mxu0 0.0
    %2936 = vmatpush1.msra.mxu0 %v2909
    %2937 = vmatprep.subr.mxu0 0.0
    %2938 = vmatpush1.msra.mxu0 %v2910
    %2939 = vmatprep.subr.mxu0 0.0
    %2940 = vmatpush1.msra.mxu0 %v2911
    %2941 = vmatprep.subr.mxu0 0.0
    %2942 = vmatpush1.msra.mxu0 %v2912
    %2943 = vmatprep.subr.mxu0 0.0
    %2944 = vmatpush1.msra.mxu0 %v2913
    %2945 = vmatprep.subr.mxu0 0.0
    %2946 = vmatpush1.msra.mxu0 %v2914
    %2947 = vmatprep.subr.mxu0 0.0
    %2948 = vmatpush1.msra.mxu0 %v2915
    %2949 = vmatprep.subr.mxu0 0.0
    %2950 = vmatpush1.msra.mxu0 %v2916
    %2951 = vmatprep.subr.mxu0 0.0
    %2952 = vmatpush1.msra.mxu0 %v2917
    %2953 = vmatprep.subr.mxu0 0.0
    %2954 = vmatpush1.msra.mxu0 %v2918
    %2955 = vmatprep.subr.mxu0 0.0
    %2956 = vmatpush1.msra.mxu0 %v2919
    %2957 = vmatprep.subr.mxu0 0.0
    %2958 = vmatpush1.msra.mxu0 %v2920
    %2959 = vmatprep.subr.mxu0 0.0
    %2960 = vmatpush1.msra.mxu0 %v2921
    %2961 = vmatprep.subr.mxu0 0.0
    %2962 = vmatpush1.msra.mxu0 0.0
    %2963 = vmatprep.subr.mxu0 0.0
    %2964 = vmatpush1.msra.mxu0 0.0
    %2965 = vmatprep.subr.mxu0 0.0
    %2966 = vmatpush1.msra.mxu0 0.0
    %2967 = vmatprep.subr.mxu0 0.0
    %2968 = vmatpush1.msra.mxu0 0.0
    %2969 = vmatprep.subr.mxu0 0.0
    %2970 = vmatpush1.msra.mxu0 0.0
    %2971 = vmatprep.subr.mxu0 0.0
    %2972 = vmatpush1.msra.mxu0 0.0
    %2973 = vmatprep.subr.mxu0 0.0
    %2974 = vmatpush1.msra.mxu0 0.0
    %2975 = vmatprep.subr.mxu0 0.0
    %2976 = vmatpush1.msra.mxu0 0.0
    %2977 = vmatprep.subr.mxu0 0.0
    %2978 = vmatpush1.msra.mxu0 0.0
    %2979 = vmatprep.subr.mxu0 0.0
    %2980 = vmatpush1.msra.mxu0 0.0
    %2981 = vmatprep.subr.mxu0 0.0
    %2982 = vmatpush1.msra.mxu0 0.0
    %2983 = vmatprep.subr.mxu0 0.0
    %2984 = vmatpush1.msra.mxu0 0.0
    %2985 = vmatprep.subr.mxu0 0.0
    %2986 = vmatpush1.msra.mxu0 0.0
    %2987 = vmatprep.subr.mxu0 0.0
    %2988 = vmatpush1.msra.mxu0 0.0
    %2989 = vmatprep.subr.mxu0 0.0
    %2990 = vmatpush1.msra.mxu0 0.0
    %2991 = vmatprep.subr.mxu0 0.0
    %2992 = vmatpush1.msra.mxu0 0.0
    %2993 = vmatprep.mubr.f32.mxu0 0.0
    %2994 = vmatmul.mubr.f32.gmra.mrb[0].mxu0 %v2903
    %v2995 = vpop.f32.mrb[0].mxu0
    %v2996 = vadd.f32 %v2927, %v2995
    %v2997 = vpop.f32.mrb[0].mxu0
    %2998 = vmatprep.mubr.f32.mxu0 0.0
    %2999 = vmatmul.mubr.f32.gmra.mrb[0].mxu0 %v2904
    %v3000 = vpop.f32.mrb[0].mxu0
    %v3001 = vadd.f32 %v2927, %v3000
    %v3002 = vpop.f32.mrb[0].mxu0
    %3003 = vmatprep.mubr.f32.mxu0 0.0
    %3004 = vmatmul.mubr.f32.gmra.mrb[0].mxu0 %v2905
    %v3005 = vpop.f32.mrb[0].mxu0
    %v3006 = vadd.f32 %v2927, %v3005
    %v3007 = vpop.f32.mrb[0].mxu0
    %3008 = vdwg.mxu0
    %v3012 = vcombine.high %v2996, %v2996
    %v3013 = vcombine.high %v3001, %v3001
    %v3014 = vcombine.high %v3006, %v3006
    %v3018 = vadd.f32 %v2563, %v2996
    %v3019 = vadd.f32 %v2564, %v3012
    %v3020 = vadd.f32 %v2565, %v3001
    %v3021 = vadd.f32 %v2566, %v3013
    %v3022 = vadd.f32 %v2567, %v3006
    %v3023 = vadd.f32 %v2568, %v3014
    %v3024 = vadd.f32 %v3018, %v211
    %v3025 = vadd.f32 %v3019, %v227
    %v3026 = vadd.f32 %v3020, %v216
    %v3027 = vadd.f32 %v3021, %v228
    %v3028 = vadd.f32 %v3022, %v221
    %v3029 = vadd.f32 %v3023, %v229
    %v3030 = vadd.f32 %v418, %v305
    %v3031 = vadd.f32 %v419, %v309
    %s3032 = scalar_lea.vmem %s7, 1
    %v3033 = vld [vmem:[%s3032] sm:$0x1]
    %s3034 = scalar_lea.vmem %s8, 1
    %v3035 = vld [vmem:[%s3034] sm:$0x1]
    %v3042 = vcombine.low %v3024, %v3025
    %v3043 = vcombine.low %v3026, %v3027
    %v3044 = vcombine.low %v3028, %v3029
    %v3048 = vsel %vm327, %v3042, 0.0
    %3049 = vadd.xlane.f32.xlu0 %v3048
    %v3050 = vpop.xlane.xlu0 %3049
    %v3051 = vsel %vm327, %v3043, 0.0
    %3052 = vadd.xlane.f32.xlu0 %v3051
    %v3053 = vpop.xlane.xlu0 %3052
    %v3054 = vsel %vm327, %v3044, 0.0
    %3055 = vadd.xlane.f32.xlu0 %v3054
    %v3056 = vpop.xlane.xlu0 %3055
    %v3057 = vmul.f32 %v3050, %v443
    %v3058 = vmul.f32 %v3053, %v443
    %v3059 = vmul.f32 %v3056, %v443
    %v3064 = vunpack.c.l.s4 839922192
    %v3065 = vunpack.c.0.s8 %v3064
    %v3066 = vlaneseq
    %v3067 = vshrl.u32 %v3066, 7
    %v3068 = vsub.s32 %v3065, %v3067
    %v3069 = vrot.slane %v3057, %v3068
    %v3071 = vunpack.c.l.s4 1985246804
    %v3072 = vunpack.c.0.s8 %v3071
    %v3073 = vlaneseq
    %v3074 = vshrl.u32 %v3073, 7
    %v3075 = vsub.s32 %v3072, %v3074
    %v3076 = vrot.slane %v3057, %v3075
    %v3078 = vunpack.c.l.s4 839922192
    %v3079 = vunpack.c.0.s8 %v3078
    %v3080 = vlaneseq
    %v3081 = vshrl.u32 %v3080, 7
    %v3082 = vsub.s32 %v3079, %v3081
    %v3083 = vrot.slane %v3058, %v3082
    %v3085 = vunpack.c.l.s4 1985246804
    %v3086 = vunpack.c.0.s8 %v3085
    %v3087 = vlaneseq
    %v3088 = vshrl.u32 %v3087, 7
    %v3089 = vsub.s32 %v3086, %v3088
    %v3090 = vrot.slane %v3058, %v3089
    %v3092 = vunpack.c.l.s4 839922192
    %v3093 = vunpack.c.0.s8 %v3092
    %v3094 = vlaneseq
    %v3095 = vshrl.u32 %v3094, 7
    %v3096 = vsub.s32 %v3093, %v3095
    %v3097 = vrot.slane %v3059, %v3096
    %v3099 = vunpack.c.l.s4 1985246804
    %v3100 = vunpack.c.0.s8 %v3099
    %v3101 = vlaneseq
    %v3102 = vshrl.u32 %v3101, 7
    %v3103 = vsub.s32 %v3100, %v3102
    %v3104 = vrot.slane %v3059, %v3103
    %v3111 = vsub.f32 %v3024, %v3069
    %v3112 = vsub.f32 %v3025, %v3076
    %v3113 = vsub.f32 %v3026, %v3083
    %v3114 = vsub.f32 %v3027, %v3090
    %v3115 = vsub.f32 %v3028, %v3097
    %v3116 = vsub.f32 %v3029, %v3104
    %v3117 = vmul.f32 %v3111, %v3111
    %v3118 = vmul.f32 %v3112, %v3112
    %v3119 = vmul.f32 %v3113, %v3113
    %v3120 = vmul.f32 %v3114, %v3114
    %v3121 = vmul.f32 %v3115, %v3115
    %v3122 = vmul.f32 %v3116, %v3116
    %v3129 = vcombine.low %v3117, %v3118
    %v3130 = vcombine.low %v3119, %v3120
    %v3131 = vcombine.low %v3121, %v3122
    %v3135 = vsel %vm327, %v3129, 0.0
    %3136 = vadd.xlane.f32.xlu0 %v3135
    %v3137 = vpop.xlane.xlu0 %3136
    %v3138 = vsel %vm327, %v3130, 0.0
    %3139 = vadd.xlane.f32.xlu0 %v3138
    %v3140 = vpop.xlane.xlu0 %3139
    %v3141 = vsel %vm327, %v3131, 0.0
    %3142 = vadd.xlane.f32.xlu0 %v3141
    %v3143 = vpop.xlane.xlu0 %3142
    %v3144 = vmul.f32 %v3137, %v443
    %v3145 = vmul.f32 %v3140, %v443
    %v3146 = vmul.f32 %v3143, %v443
    %v3147 = vadd.f32 %v3144, 1e-05
    %v3148 = vadd.f32 %v3145, 1e-05
    %v3149 = vadd.f32 %v3146, 1e-05
    %v3150 = vrsqrt.pop %v3147
    %v3151 = vrsqrt.pop %v3148
    %v3152 = vrsqrt.pop %v3149
    %v3157 = vunpack.c.l.s4 839922192
    %v3158 = vunpack.c.0.s8 %v3157
    %v3159 = vlaneseq
    %v3160 = vshrl.u32 %v3159, 7
    %v3161 = vsub.s32 %v3158, %v3160
    %v3162 = vrot.slane %v3150, %v3161
    %v3164 = vunpack.c.l.s4 1985246804
    %v3165 = vunpack.c.0.s8 %v3164
    %v3166 = vlaneseq
    %v3167 = vshrl.u32 %v3166, 7
    %v3168 = vsub.s32 %v3165, %v3167
    %v3169 = vrot.slane %v3150, %v3168
    %v3171 = vunpack.c.l.s4 839922192
    %v3172 = vunpack.c.0.s8 %v3171
    %v3173 = vlaneseq
    %v3174 = vshrl.u32 %v3173, 7
    %v3175 = vsub.s32 %v3172, %v3174
    %v3176 = vrot.slane %v3151, %v3175
    %v3178 = vunpack.c.l.s4 1985246804
    %v3179 = vunpack.c.0.s8 %v3178
    %v3180 = vlaneseq
    %v3181 = vshrl.u32 %v3180, 7
    %v3182 = vsub.s32 %v3179, %v3181
    %v3183 = vrot.slane %v3151, %v3182
    %v3185 = vunpack.c.l.s4 839922192
    %v3186 = vunpack.c.0.s8 %v3185
    %v3187 = vlaneseq
    %v3188 = vshrl.u32 %v3187, 7
    %v3189 = vsub.s32 %v3186, %v3188
    %v3190 = vrot.slane %v3152, %v3189
    %v3192 = vunpack.c.l.s4 1985246804
    %v3193 = vunpack.c.0.s8 %v3192
    %v3194 = vlaneseq
    %v3195 = vshrl.u32 %v3194, 7
    %v3196 = vsub.s32 %v3193, %v3195
    %v3197 = vrot.slane %v3152, %v3196
    %v3204 = vmul.f32 %v3111, %v3162
    %v3205 = vmul.f32 %v3112, %v3169
    %v3206 = vmul.f32 %v3113, %v3176
    %v3207 = vmul.f32 %v3114, %v3183
    %v3208 = vmul.f32 %v3115, %v3190
    %v3209 = vmul.f32 %v3116, %v3197
    %v3211 = vlaneseq
    %v3212 = vshrl.u32 %v3211, 7
    %v3213 = vsub.s32 0, %v3212
    %v3214 = vrot.slane %v3033, %v3213
    %v3216 = vcombine.high %v3214, %v3214
    %v3218 = vmul.f32 %v3204, %v3214
    %v3219 = vmul.f32 %v3205, %v3216
    %v3220 = vmul.f32 %v3206, %v3214
    %v3221 = vmul.f32 %v3207, %v3216
    %v3222 = vmul.f32 %v3208, %v3214
    %v3223 = vmul.f32 %v3209, %v3216
    %v3225 = vlaneseq
    %v3226 = vshrl.u32 %v3225, 7
    %v3227 = vsub.s32 0, %v3226
    %v3228 = vrot.slane %v3035, %v3227
    %v3230 = vcombine.high %v3228, %v3228
    %v3232 = vadd.f32 %v3218, %v3228
    %v3233 = vadd.f32 %v3219, %v3230
    %v3234 = vadd.f32 %v3220, %v3228
    %v3235 = vadd.f32 %v3221, %v3230
    %v3236 = vadd.f32 %v3222, %v3228
    %v3237 = vadd.f32 %v3223, %v3230
    %s3238 = scalar_lea.vmem %s9, 32
    %v3239 = vld [vmem:[%s3238] sm:$0xff]
    %v3240 = vld [vmem:[%s3238 + $0x8] sm:$0xff]
    %v3241 = vld [vmem:[%s3238 + $0x10] sm:$0xff]
    %v3242 = vld [vmem:[%s3238 + $0x18] sm:$0xff]
    %s3243 = scalar_lea.vmem %s10, 1
    %v3244 = vld [vmem:[%s3243] sm:$0x1]
    %v3246 = vlaneseq
    %v3247 = vshrl.u32 %v3246, 7
    %v3248 = vsub.s32 0, %v3247
    %v3249 = vrot.slane %v3244, %v3248
    %v3257 = vcombine.low %v3232, %v3233
    %v3258 = vcombine.low %v3234, %v3235
    %v3259 = vcombine.low %v3236, %v3237
    %v3260 = vsel %vm327, %v3257, 0
    %v3262 = vsel %vm327, %v3258, 0
    %v3264 = vsel %vm327, %v3259, 0
    %3266 = vmatprep.subr.mxu0 0.0
    %3267 = vmatpush1.msra.mxu0 %v3239
    %3268 = vmatprep.subr.mxu0 0.0
    %3269 = vmatpush1.msra.mxu0 %v3240
    %3270 = vmatprep.subr.mxu0 0.0
    %3271 = vmatpush1.msra.mxu0 %v3241
    %3272 = vmatprep.subr.mxu0 0.0
    %3273 = vmatpush1.msra.mxu0 %v3242
    %3274 = vmatprep.subr.mxu0 0.0
    %3275 = vmatpush1.msra.mxu0 0.0
    %3276 = vmatprep.subr.mxu0 0.0
    %3277 = vmatpush1.msra.mxu0 0.0
    %3278 = vmatprep.subr.mxu0 0.0
    %3279 = vmatpush1.msra.mxu0 0.0
    %3280 = vmatprep.subr.mxu0 0.0
    %3281 = vmatpush1.msra.mxu0 0.0
    %3282 = vmatprep.subr.mxu0 0.0
    %3283 = vmatpush1.msra.mxu0 0.0
    %3284 = vmatprep.subr.mxu0 0.0
    %3285 = vmatpush1.msra.mxu0 0.0
    %3286 = vmatprep.subr.mxu0 0.0
    %3287 = vmatpush1.msra.mxu0 0.0
    %3288 = vmatprep.subr.mxu0 0.0
    %3289 = vmatpush1.msra.mxu0 0.0
    %3290 = vmatprep.subr.mxu0 0.0
    %3291 = vmatpush1.msra.mxu0 0.0
    %3292 = vmatprep.subr.mxu0 0.0
    %3293 = vmatpush1.msra.mxu0 0.0
    %3294 = vmatprep.subr.mxu0 0.0
    %3295 = vmatpush1.msra.mxu0 0.0
    %3296 = vmatprep.subr.mxu0 0.0
    %3297 = vmatpush1.msra.mxu0 0.0
    %3298 = vmatprep.subr.mxu0 0.0
    %3299 = vmatpush1.msra.mxu0 0.0
    %3300 = vmatprep.subr.mxu0 0.0
    %3301 = vmatpush1.msra.mxu0 0.0
    %3302 = vmatprep.subr.mxu0 0.0
    %3303 = vmatpush1.msra.mxu0 0.0
    %3304 = vmatprep.subr.mxu0 0.0
    %3305 = vmatpush1.msra.mxu0 0.0
    %3306 = vmatprep.subr.mxu0 0.0
    %3307 = vmatpush1.msra.mxu0 0.0
    %3308 = vmatprep.subr.mxu0 0.0
    %3309 = vmatpush1.msra.mxu0 0.0
    %3310 = vmatprep.subr.mxu0 0.0
    %3311 = vmatpush1.msra.mxu0 0.0
    %3312 = vmatprep.subr.mxu0 0.0
    %3313 = vmatpush1.msra.mxu0 0.0
    %3314 = vmatprep.subr.mxu0 0.0
    %3315 = vmatpush1.msra.mxu0 0.0
    %3316 = vmatprep.subr.mxu0 0.0
    %3317 = vmatpush1.msra.mxu0 0.0
    %3318 = vmatprep.subr.mxu0 0.0
    %3319 = vmatpush1.msra.mxu0 0.0
    %3320 = vmatprep.subr.mxu0 0.0
    %3321 = vmatpush1.msra.mxu0 0.0
    %3322 = vmatprep.subr.mxu0 0.0
    %3323 = vmatpush1.msra.mxu0 0.0
    %3324 = vmatprep.subr.mxu0 0.0
    %3325 = vmatpush1.msra.mxu0 0.0
    %3326 = vmatprep.subr.mxu0 0.0
    %3327 = vmatpush1.msra.mxu0 0.0
    %3328 = vmatprep.subr.mxu0 0.0
    %3329 = vmatpush1.msra.mxu0 0.0
    %3330 = vmatprep.mubr.f32.mxu0 0.0
    %3331 = vmatmul.mubr.f32.gmra.mrb[0].mxu0 %v3260
    %v3332 = vpop.f32.mrb[0].mxu0
    %v3333 = vadd.f32 %v3249, %v3332
    %v3334 = vpop.f32.mrb[0].mxu0
    %3335 = vmatprep.mubr.f32.mxu0 0.0
    %3336 = vmatmul.mubr.f32.gmra.mrb[0].mxu0 %v3262
    %v3337 = vpop.f32.mrb[0].mxu0
    %v3338 = vadd.f32 %v3249, %v3337
    %v3339 = vpop.f32.mrb[0].mxu0
    %3340 = vmatprep.mubr.f32.mxu0 0.0
    %3341 = vmatmul.mubr.f32.gmra.mrb[0].mxu0 %v3264
    %v3342 = vpop.f32.mrb[0].mxu0
    %v3343 = vadd.f32 %v3249, %v3342
    %v3344 = vpop.f32.mrb[0].mxu0
    %3345 = vdwg.mxu0
    %v3349 = vcombine.high %v3333, %v3333
    %v3350 = vcombine.high %v3338, %v3338
    %v3351 = vcombine.high %v3343, %v3343
    %s3352 = scalar_lea.vmem %s11, 32
    %v3353 = vld [vmem:[%s3352] sm:$0xff]
    %v3354 = vld [vmem:[%s3352 + $0x8] sm:$0xff]
    %v3355 = vld [vmem:[%s3352 + $0x10] sm:$0xff]
    %v3356 = vld [vmem:[%s3352 + $0x18] sm:$0xff]
    %s3357 = scalar_lea.vmem %s12, 1
    %v3358 = vld [vmem:[%s3357] sm:$0x1]
    %v3360 = vlaneseq
    %v3361 = vshrl.u32 %v3360, 7
    %v3362 = vsub.s32 0, %v3361
    %v3363 = vrot.slane %v3358, %v3362
    %v3367 = vcombine.low %v3030, %v3031
    %v3368 = vsel %vm327, %v3367, 0
    %3370 = vmatprep.subr.mxu0 0.0
    %3371 = vmatpush1.msra.mxu0 %v3353
    %3372 = vmatprep.subr.mxu0 0.0
    %3373 = vmatpush1.msra.mxu0 %v3354
    %3374 = vmatprep.subr.mxu0 0.0
    %3375 = vmatpush1.msra.mxu0 %v3355
    %3376 = vmatprep.subr.mxu0 0.0
    %3377 = vmatpush1.msra.mxu0 %v3356
    %3378 = vmatprep.subr.mxu0 0.0
    %3379 = vmatpush1.msra.mxu0 0.0
    %3380 = vmatprep.subr.mxu0 0.0
    %3381 = vmatpush1.msra.mxu0 0.0
    %3382 = vmatprep.subr.mxu0 0.0
    %3383 = vmatpush1.msra.mxu0 0.0
    %3384 = vmatprep.subr.mxu0 0.0
    %3385 = vmatpush1.msra.mxu0 0.0
    %3386 = vmatprep.subr.mxu0 0.0
    %3387 = vmatpush1.msra.mxu0 0.0
    %3388 = vmatprep.subr.mxu0 0.0
    %3389 = vmatpush1.msra.mxu0 0.0
    %3390 = vmatprep.subr.mxu0 0.0
    %3391 = vmatpush1.msra.mxu0 0.0
    %3392 = vmatprep.subr.mxu0 0.0
    %3393 = vmatpush1.msra.mxu0 0.0
    %3394 = vmatprep.subr.mxu0 0.0
    %3395 = vmatpush1.msra.mxu0 0.0
    %3396 = vmatprep.subr.mxu0 0.0
    %3397 = vmatpush1.msra.mxu0 0.0
    %3398 = vmatprep.subr.mxu0 0.0
    %3399 = vmatpush1.msra.mxu0 0.0
    %3400 = vmatprep.subr.mxu0 0.0
    %3401 = vmatpush1.msra.mxu0 0.0
    %3402 = vmatprep.subr.mxu0 0.0
    %3403 = vmatpush1.msra.mxu0 0.0
    %3404 = vmatprep.subr.mxu0 0.0
    %3405 = vmatpush1.msra.mxu0 0.0
    %3406 = vmatprep.subr.mxu0 0.0
    %3407 = vmatpush1.msra.mxu0 0.0
    %3408 = vmatprep.subr.mxu0 0.0
    %3409 = vmatpush1.msra.mxu0 0.0
    %3410 = vmatprep.subr.mxu0 0.0
    %3411 = vmatpush1.msra.mxu0 0.0
    %3412 = vmatprep.subr.mxu0 0.0
    %3413 = vmatpush1.msra.mxu0 0.0
    %3414 = vmatprep.subr.mxu0 0.0
    %3415 = vmatpush1.msra.mxu0 0.0
    %3416 = vmatprep.subr.mxu0 0.0
    %3417 = vmatpush1.msra.mxu0 0.0
    %3418 = vmatprep.subr.mxu0 0.0
    %3419 = vmatpush1.msra.mxu0 0.0
    %3420 = vmatprep.subr.mxu0 0.0
    %3421 = vmatpush1.msra.mxu0 0.0
    %3422 = vmatprep.subr.mxu0 0.0
    %3423 = vmatpush1.msra.mxu0 0.0
    %3424 = vmatprep.subr.mxu0 0.0
    %3425 = vmatpush1.msra.mxu0 0.0
    %3426 = vmatprep.subr.mxu0 0.0
    %3427 = vmatpush1.msra.mxu0 0.0
    %3428 = vmatprep.subr.mxu0 0.0
    %3429 = vmatpush1.msra.mxu0 0.0
    %3430 = vmatprep.subr.mxu0 0.0
    %3431 = vmatpush1.msra.mxu0 0.0
    %3432 = vmatprep.subr.mxu0 0.0
    %3433 = vmatpush1.msra.mxu0 0.0
    %3434 = vmatprep.mubr.f32.mxu0 0.0
    %3435 = vmatmul.mubr.f32.gmra.mrb[0].mxu0 %v3368
    %v3436 = vpop.f32.mrb[0].mxu0
    %v3437 = vadd.f32 %v3363, %v3436
    %v3438 = vpop.f32.mrb[0].mxu0
    %3439 = vdwg.mxu0
    %v3441 = vcombine.high %v3437, %v3437
    %v3442 = vcombine.low %v3333, %v3349
    %v3443 = vsel %vm826, %v3442, 0
    %v3445 = vsel %vm826, %v3338, 0
    %v3447 = vsel %vm826, %v3437, 0
    %3449 = vmatprep.subr.mxu0 0.0
    %3450 = vmatpush1.xpose.msra.mxu0 %v3447
    %3451 = vmatprep.subr.mxu0 0.0
    %3452 = vmatpush1.xpose.msra.mxu0 0.0
    %3453 = vmatprep.subr.mxu0 0.0
    %3454 = vmatpush1.xpose.msra.mxu0 0.0
    %3455 = vmatprep.subr.mxu0 0.0
    %3456 = vmatpush1.xpose.msra.mxu0 0.0
    %3457 = vmatprep.subr.mxu0 0.0
    %3458 = vmatpush1.xpose.msra.mxu0 0.0
    %3459 = vmatprep.subr.mxu0 0.0
    %3460 = vmatpush1.xpose.msra.mxu0 0.0
    %3461 = vmatprep.subr.mxu0 0.0
    %3462 = vmatpush1.xpose.msra.mxu0 0.0
    %3463 = vmatprep.subr.mxu0 0.0
    %3464 = vmatpush1.xpose.msra.mxu0 0.0
    %3465 = vmatprep.subr.mxu0 0.0
    %3466 = vmatpush1.xpose.msra.mxu0 0.0
    %3467 = vmatprep.subr.mxu0 0.0
    %3468 = vmatpush1.xpose.msra.mxu0 0.0
    %3469 = vmatprep.subr.mxu0 0.0
    %3470 = vmatpush1.xpose.msra.mxu0 0.0
    %3471 = vmatprep.subr.mxu0 0.0
    %3472 = vmatpush1.xpose.msra.mxu0 0.0
    %3473 = vmatprep.subr.mxu0 0.0
    %3474 = vmatpush1.xpose.msra.mxu0 0.0
    %3475 = vmatprep.subr.mxu0 0.0
    %3476 = vmatpush1.xpose.msra.mxu0 0.0
    %3477 = vmatprep.subr.mxu0 0.0
    %3478 = vmatpush1.xpose.msra.mxu0 0.0
    %3479 = vmatprep.subr.mxu0 0.0
    %3480 = vmatpush1.xpose.msra.mxu0 0.0
    %3481 = vmatprep.subr.mxu0 0.0
    %3482 = vmatpush1.xpose.msra.mxu0 0.0
    %3483 = vmatprep.subr.mxu0 0.0
    %3484 = vmatpush1.xpose.msra.mxu0 0.0
    %3485 = vmatprep.subr.mxu0 0.0
    %3486 = vmatpush1.xpose.msra.mxu0 0.0
    %3487 = vmatprep.subr.mxu0 0.0
    %3488 = vmatpush1.xpose.msra.mxu0 0.0
    %3489 = vmatprep.subr.mxu0 0.0
    %3490 = vmatpush1.xpose.msra.mxu0 0.0
    %3491 = vmatprep.subr.mxu0 0.0
    %3492 = vmatpush1.xpose.msra.mxu0 0.0
    %3493 = vmatprep.subr.mxu0 0.0
    %3494 = vmatpush1.xpose.msra.mxu0 0.0
    %3495 = vmatprep.subr.mxu0 0.0
    %3496 = vmatpush1.xpose.msra.mxu0 0.0
    %3497 = vmatprep.subr.mxu0 0.0
    %3498 = vmatpush1.xpose.msra.mxu0 0.0
    %3499 = vmatprep.subr.mxu0 0.0
    %3500 = vmatpush1.xpose.msra.mxu0 0.0
    %3501 = vmatprep.subr.mxu0 0.0
    %3502 = vmatpush1.xpose.msra.mxu0 0.0
    %3503 = vmatprep.subr.mxu0 0.0
    %3504 = vmatpush1.xpose.msra.mxu0 0.0
    %3505 = vmatprep.subr.mxu0 0.0
    %3506 = vmatpush1.xpose.msra.mxu0 0.0
    %3507 = vmatprep.subr.mxu0 0.0
    %3508 = vmatpush1.xpose.msra.mxu0 0.0
    %3509 = vmatprep.subr.mxu0 0.0
    %3510 = vmatpush1.xpose.msra.mxu0 0.0
    %3511 = vmatprep.subr.mxu0 0.0
    %3512 = vmatpush1.xpose.msra.mxu0 0.0
    %3513 = vmatprep.mubr.f32.mxu0 0.0
    %3514 = vmatmul.mubr.f32.gmra.mrb[0].mxu0 %v3443
    %v3515 = vpop.f32.mrb[0].mxu0
    %v3516 = vadd.f32 0.0, %v3515
    %v3517 = vpop.f32.mrb[0].mxu0
    %3518 = vmatprep.mubr.f32.mxu0 0.0
    %3519 = vmatmul.mubr.f32.gmra.mrb[0].mxu0 %v3445
    %v3520 = vpop.f32.mrb[0].mxu0
    %v3521 = vadd.f32 0.0, %v3520
    %v3522 = vpop.f32.mrb[0].mxu0
    %3523 = vdwg.mxu0
    %v3524 = vcombine.low %v3350, %v3343
    %v3525 = vsel %vm826, %v3524, 0
    %v3527 = vsel %vm826, %v3351, 0
    %v3529 = vsel %vm826, %v3441, 0
    %3531 = vmatprep.subr.mxu0 0.0
    %3532 = vmatpush1.xpose.msra.mxu0 %v3529
    %3533 = vmatprep.subr.mxu0 0.0
    %3534 = vmatpush1.xpose.msra.mxu0 0.0
    %3535 = vmatprep.subr.mxu0 0.0
    %3536 = vmatpush1.xpose.msra.mxu0 0.0
    %3537 = vmatprep.subr.mxu0 0.0
    %3538 = vmatpush1.xpose.msra.mxu0 0.0
    %3539 = vmatprep.subr.mxu0 0.0
    %3540 = vmatpush1.xpose.msra.mxu0 0.0
    %3541 = vmatprep.subr.mxu0 0.0
    %3542 = vmatpush1.xpose.msra.mxu0 0.0
    %3543 = vmatprep.subr.mxu0 0.0
    %3544 = vmatpush1.xpose.msra.mxu0 0.0
    %3545 = vmatprep.subr.mxu0 0.0
    %3546 = vmatpush1.xpose.msra.mxu0 0.0
    %3547 = vmatprep.subr.mxu0 0.0
    %3548 = vmatpush1.xpose.msra.mxu0 0.0
    %3549 = vmatprep.subr.mxu0 0.0
    %3550 = vmatpush1.xpose.msra.mxu0 0.0
    %3551 = vmatprep.subr.mxu0 0.0
    %3552 = vmatpush1.xpose.msra.mxu0 0.0
    %3553 = vmatprep.subr.mxu0 0.0
    %3554 = vmatpush1.xpose.msra.mxu0 0.0
    %3555 = vmatprep.subr.mxu0 0.0
    %3556 = vmatpush1.xpose.msra.mxu0 0.0
    %3557 = vmatprep.subr.mxu0 0.0
    %3558 = vmatpush1.xpose.msra.mxu0 0.0
    %3559 = vmatprep.subr.mxu0 0.0
    %3560 = vmatpush1.xpose.msra.mxu0 0.0
    %3561 = vmatprep.subr.mxu0 0.0
    %3562 = vmatpush1.xpose.msra.mxu0 0.0
    %3563 = vmatprep.subr.mxu0 0.0
    %3564 = vmatpush1.xpose.msra.mxu0 0.0
    %3565 = vmatprep.subr.mxu0 0.0
    %3566 = vmatpush1.xpose.msra.mxu0 0.0
    %3567 = vmatprep.subr.mxu0 0.0
    %3568 = vmatpush1.xpose.msra.mxu0 0.0
    %3569 = vmatprep.subr.mxu0 0.0
    %3570 = vmatpush1.xpose.msra.mxu0 0.0
    %3571 = vmatprep.subr.mxu0 0.0
    %3572 = vmatpush1.xpose.msra.mxu0 0.0
    %3573 = vmatprep.subr.mxu0 0.0
    %3574 = vmatpush1.xpose.msra.mxu0 0.0
    %3575 = vmatprep.subr.mxu0 0.0
    %3576 = vmatpush1.xpose.msra.mxu0 0.0
    %3577 = vmatprep.subr.mxu0 0.0
    %3578 = vmatpush1.xpose.msra.mxu0 0.0
    %3579 = vmatprep.subr.mxu0 0.0
    %3580 = vmatpush1.xpose.msra.mxu0 0.0
    %3581 = vmatprep.subr.mxu0 0.0
    %3582 = vmatpush1.xpose.msra.mxu0 0.0
    %3583 = vmatprep.subr.mxu0 0.0
    %3584 = vmatpush1.xpose.msra.mxu0 0.0
    %3585 = vmatprep.subr.mxu0 0.0
    %3586 = vmatpush1.xpose.msra.mxu0 0.0
    %3587 = vmatprep.subr.mxu0 0.0
    %3588 = vmatpush1.xpose.msra.mxu0 0.0
    %3589 = vmatprep.subr.mxu0 0.0
    %3590 = vmatpush1.xpose.msra.mxu0 0.0
    %3591 = vmatprep.subr.mxu0 0.0
    %3592 = vmatpush1.xpose.msra.mxu0 0.0
    %3593 = vmatprep.subr.mxu0 0.0
    %3594 = vmatpush1.xpose.msra.mxu0 0.0
    %3595 = vmatprep.mubr.f32.mxu0 0.0
    %3596 = vmatmul.mubr.f32.gmra.mrb[0].mxu0 %v3525
    %v3597 = vpop.f32.mrb[0].mxu0
    %v3598 = vadd.f32 0.0, %v3597
    %v3599 = vpop.f32.mrb[0].mxu0
    %3600 = vmatprep.mubr.f32.mxu0 0.0
    %3601 = vmatmul.mubr.f32.gmra.mrb[0].mxu0 %v3527
    %v3602 = vpop.f32.mrb[0].mxu0
    %v3603 = vadd.f32 0.0, %v3602
    %v3604 = vpop.f32.mrb[0].mxu0
    %3605 = vdwg.mxu0
    %v3606 = vmul.f32 %v3516, 0.35355338
    %v3607 = vmul.f32 %v3521, 0.35355338
    %v3608 = vmul.f32 %v3598, 0.35355338
    %v3609 = vmul.f32 %v3603, 0.35355338
    %v3610 = vsel %vm994, %v3606, -inf
    %3611 = vmax.xlane.f32.xlu0 %v3610
    %v3612 = vpop.xlane.xlu0 %3611
    %v3613 = vsel %vm998, %v3607, -inf
    %3614 = vmax.xlane.f32.xlu0 %v3613
    %v3615 = vpop.xlane.xlu0 %3614
    %v3616 = vsel %vm994, %v3608, -inf
    %3617 = vmax.xlane.f32.xlu0 %v3616
    %v3618 = vpop.xlane.xlu0 %3617
    %v3619 = vsel %vm998, %v3609, -inf
    %3620 = vmax.xlane.f32.xlu0 %v3619
    %v3621 = vpop.xlane.xlu0 %3620
    %v3622 = vsub.f32 %v3606, %v3612
    %v3623 = vsub.f32 %v3607, %v3615
    %v3624 = vsub.f32 %v3608, %v3618
    %v3625 = vsub.f32 %v3609, %v3621
    %v3626 = vmul.f32 %v3622, 1.442695
    %v3627 = vpow.pop %v3626
    %v3628 = vmul.f32 %v3623, 1.442695
    %v3629 = vpow.pop %v3628
    %v3630 = vmul.f32 %v3624, 1.442695
    %v3631 = vpow.pop %v3630
    %v3632 = vmul.f32 %v3625, 1.442695
    %v3633 = vpow.pop %v3632
    %v3634 = vsel %vm994, %v3627, 0.0
    %3635 = vadd.xlane.f32.xlu0 %v3634
    %v3636 = vpop.xlane.xlu0 %3635
    %v3637 = vsel %vm998, %v3629, 0.0
    %3638 = vadd.xlane.f32.xlu0 %v3637
    %v3639 = vpop.xlane.xlu0 %3638
    %v3640 = vsel %vm994, %v3631, 0.0
    %3641 = vadd.xlane.f32.xlu0 %v3640
    %v3642 = vpop.xlane.xlu0 %3641
    %v3643 = vsel %vm998, %v3633, 0.0
    %3644 = vadd.xlane.f32.xlu0 %v3643
    %v3645 = vpop.xlane.xlu0 %3644
    %v3646 = vrcp.pop %v3636
    %v3647 = vrcp.pop %v3639
    %v3648 = vrcp.pop %v3642
    %v3649 = vrcp.pop %v3645
    %v3650 = vmul.f32 %v3627, %v3646
    %v3651 = vmul.f32 %v3629, %v3647
    %v3652 = vmul.f32 %v3631, %v3648
    %v3653 = vmul.f32 %v3633, %v3649
    %3654 = vrot.lane.b32.xlu0 %v3437, 96
    %v3655 = vpop.permute.xlu0 %3654
    %v3657 = vsel %vm994, %v3650, 0
    %v3660 = vsel %vm994, %v3651, 0
    %v3662 = vsel %vm1048, %v3655, 0
    %3664 = vmatprep.subr.mxu0 0.0
    %3665 = vmatpush1.msra.mxu0 %v3662
    %3666 = vmatprep.subr.mxu0 0.0
    %3667 = vmatpush1.msra.mxu0 0.0
    %3668 = vmatprep.subr.mxu0 0.0
    %3669 = vmatpush1.msra.mxu0 0.0
    %3670 = vmatprep.subr.mxu0 0.0
    %3671 = vmatpush1.msra.mxu0 0.0
    %3672 = vmatprep.subr.mxu0 0.0
    %3673 = vmatpush1.msra.mxu0 0.0
    %3674 = vmatprep.subr.mxu0 0.0
    %3675 = vmatpush1.msra.mxu0 0.0
    %3676 = vmatprep.subr.mxu0 0.0
    %3677 = vmatpush1.msra.mxu0 0.0
    %3678 = vmatprep.subr.mxu0 0.0
    %3679 = vmatpush1.msra.mxu0 0.0
    %3680 = vmatprep.subr.mxu0 0.0
    %3681 = vmatpush1.msra.mxu0 0.0
    %3682 = vmatprep.subr.mxu0 0.0
    %3683 = vmatpush1.msra.mxu0 0.0
    %3684 = vmatprep.subr.mxu0 0.0
    %3685 = vmatpush1.msra.mxu0 0.0
    %3686 = vmatprep.subr.mxu0 0.0
    %3687 = vmatpush1.msra.mxu0 0.0
    %3688 = vmatprep.subr.mxu0 0.0
    %3689 = vmatpush1.msra.mxu0 0.0
    %3690 = vmatprep.subr.mxu0 0.0
    %3691 = vmatpush1.msra.mxu0 0.0
    %3692 = vmatprep.subr.mxu0 0.0
    %3693 = vmatpush1.msra.mxu0 0.0
    %3694 = vmatprep.subr.mxu0 0.0
    %3695 = vmatpush1.msra.mxu0 0.0
    %3696 = vmatprep.subr.mxu0 0.0
    %3697 = vmatpush1.msra.mxu0 0.0
    %3698 = vmatprep.subr.mxu0 0.0
    %3699 = vmatpush1.msra.mxu0 0.0
    %3700 = vmatprep.subr.mxu0 0.0
    %3701 = vmatpush1.msra.mxu0 0.0
    %3702 = vmatprep.subr.mxu0 0.0
    %3703 = vmatpush1.msra.mxu0 0.0
    %3704 = vmatprep.subr.mxu0 0.0
    %3705 = vmatpush1.msra.mxu0 0.0
    %3706 = vmatprep.subr.mxu0 0.0
    %3707 = vmatpush1.msra.mxu0 0.0
    %3708 = vmatprep.subr.mxu0 0.0
    %3709 = vmatpush1.msra.mxu0 0.0
    %3710 = vmatprep.subr.mxu0 0.0
    %3711 = vmatpush1.msra.mxu0 0.0
    %3712 = vmatprep.subr.mxu0 0.0
    %3713 = vmatpush1.msra.mxu0 0.0
    %3714 = vmatprep.subr.mxu0 0.0
    %3715 = vmatpush1.msra.mxu0 0.0
    %3716 = vmatprep.subr.mxu0 0.0
    %3717 = vmatpush1.msra.mxu0 0.0
    %3718 = vmatprep.subr.mxu0 0.0
    %3719 = vmatpush1.msra.mxu0 0.0
    %3720 = vmatprep.subr.mxu0 0.0
    %3721 = vmatpush1.msra.mxu0 0.0
    %3722 = vmatprep.subr.mxu0 0.0
    %3723 = vmatpush1.msra.mxu0 0.0
    %3724 = vmatprep.subr.mxu0 0.0
    %3725 = vmatpush1.msra.mxu0 0.0
    %3726 = vmatprep.subr.mxu0 0.0
    %3727 = vmatpush1.msra.mxu0 0.0
    %3728 = vmatprep.mubr.f32.mxu0 0.0
    %3729 = vmatmul.mubr.f32.gmra.mrb[0].mxu0 %v3657
    %v3730 = vpop.f32.mrb[0].mxu0
    %v3731 = vadd.f32 0.0, %v3730
    %v3732 = vpop.f32.mrb[0].mxu0
    %3733 = vmatprep.mubr.f32.mxu0 0.0
    %3734 = vmatmul.mubr.f32.gmra.mrb[0].mxu0 %v3660
    %v3735 = vpop.f32.mrb[0].mxu0
    %v3736 = vadd.f32 0.0, %v3735
    %v3737 = vpop.f32.mrb[0].mxu0
    %3738 = vdwg.mxu0
    %3739 = vrot.lane.b32.xlu0 %v3441, 96
    %v3740 = vpop.permute.xlu0 %3739
    %v3742 = vsel %vm994, %v3652, 0
    %v3745 = vsel %vm994, %v3653, 0
    %v3747 = vsel %vm1048, %v3740, 0
    %3749 = vmatprep.subr.mxu0 0.0
    %3750 = vmatpush1.msra.mxu0 %v3747
    %3751 = vmatprep.subr.mxu0 0.0
    %3752 = vmatpush1.msra.mxu0 0.0
    %3753 = vmatprep.subr.mxu0 0.0
    %3754 = vmatpush1.msra.mxu0 0.0
    %3755 = vmatprep.subr.mxu0 0.0
    %3756 = vmatpush1.msra.mxu0 0.0
    %3757 = vmatprep.subr.mxu0 0.0
    %3758 = vmatpush1.msra.mxu0 0.0
    %3759 = vmatprep.subr.mxu0 0.0
    %3760 = vmatpush1.msra.mxu0 0.0
    %3761 = vmatprep.subr.mxu0 0.0
    %3762 = vmatpush1.msra.mxu0 0.0
    %3763 = vmatprep.subr.mxu0 0.0
    %3764 = vmatpush1.msra.mxu0 0.0
    %3765 = vmatprep.subr.mxu0 0.0
    %3766 = vmatpush1.msra.mxu0 0.0
    %3767 = vmatprep.subr.mxu0 0.0
    %3768 = vmatpush1.msra.mxu0 0.0
    %3769 = vmatprep.subr.mxu0 0.0
    %3770 = vmatpush1.msra.mxu0 0.0
    %3771 = vmatprep.subr.mxu0 0.0
    %3772 = vmatpush1.msra.mxu0 0.0
    %3773 = vmatprep.subr.mxu0 0.0
    %3774 = vmatpush1.msra.mxu0 0.0
    %3775 = vmatprep.subr.mxu0 0.0
    %3776 = vmatpush1.msra.mxu0 0.0
    %3777 = vmatprep.subr.mxu0 0.0
    %3778 = vmatpush1.msra.mxu0 0.0
    %3779 = vmatprep.subr.mxu0 0.0
    %3780 = vmatpush1.msra.mxu0 0.0
    %3781 = vmatprep.subr.mxu0 0.0
    %3782 = vmatpush1.msra.mxu0 0.0
    %3783 = vmatprep.subr.mxu0 0.0
    %3784 = vmatpush1.msra.mxu0 0.0
    %3785 = vmatprep.subr.mxu0 0.0
    %3786 = vmatpush1.msra.mxu0 0.0
    %3787 = vmatprep.subr.mxu0 0.0
    %3788 = vmatpush1.msra.mxu0 0.0
    %3789 = vmatprep.subr.mxu0 0.0
    %3790 = vmatpush1.msra.mxu0 0.0
    %3791 = vmatprep.subr.mxu0 0.0
    %3792 = vmatpush1.msra.mxu0 0.0
    %3793 = vmatprep.subr.mxu0 0.0
    %3794 = vmatpush1.msra.mxu0 0.0
    %3795 = vmatprep.subr.mxu0 0.0
    %3796 = vmatpush1.msra.mxu0 0.0
    %3797 = vmatprep.subr.mxu0 0.0
    %3798 = vmatpush1.msra.mxu0 0.0
    %3799 = vmatprep.subr.mxu0 0.0
    %3800 = vmatpush1.msra.mxu0 0.0
    %3801 = vmatprep.subr.mxu0 0.0
    %3802 = vmatpush1.msra.mxu0 0.0
    %3803 = vmatprep.subr.mxu0 0.0
    %3804 = vmatpush1.msra.mxu0 0.0
    %3805 = vmatprep.subr.mxu0 0.0
    %3806 = vmatpush1.msra.mxu0 0.0
    %3807 = vmatprep.subr.mxu0 0.0
    %3808 = vmatpush1.msra.mxu0 0.0
    %3809 = vmatprep.subr.mxu0 0.0
    %3810 = vmatpush1.msra.mxu0 0.0
    %3811 = vmatprep.subr.mxu0 0.0
    %3812 = vmatpush1.msra.mxu0 0.0
    %3813 = vmatprep.mubr.f32.mxu0 0.0
    %3814 = vmatmul.mubr.f32.gmra.mrb[0].mxu0 %v3742
    %v3815 = vpop.f32.mrb[0].mxu0
    %v3816 = vadd.f32 0.0, %v3815
    %v3817 = vpop.f32.mrb[0].mxu0
    %3818 = vmatprep.mubr.f32.mxu0 0.0
    %3819 = vmatmul.mubr.f32.gmra.mrb[0].mxu0 %v3745
    %v3820 = vpop.f32.mrb[0].mxu0
    %v3821 = vadd.f32 0.0, %v3820
    %v3822 = vpop.f32.mrb[0].mxu0
    %3823 = vdwg.mxu0
    %3824 = vrot.lane.b32.xlu0 %v3442, 120
    %v3825 = vpop.permute.xlu0 %3824
    %3826 = vrot.lane.b32.xlu0 %v3338, 120
    %v3827 = vpop.permute.xlu0 %3826
    %3828 = vrot.lane.b32.xlu0 %v3437, 120
    %v3829 = vpop.permute.xlu0 %3828
    %v3830 = vsel %vm826, %v3825, 0
    %v3832 = vsel %vm826, %v3827, 0
    %v3834 = vsel %vm826, %v3829, 0
    %3836 = vmatprep.subr.mxu0 0.0
    %3837 = vmatpush1.xpose.msra.mxu0 %v3834
    %3838 = vmatprep.subr.mxu0 0.0
    %3839 = vmatpush1.xpose.msra.mxu0 0.0
    %3840 = vmatprep.subr.mxu0 0.0
    %3841 = vmatpush1.xpose.msra.mxu0 0.0
    %3842 = vmatprep.subr.mxu0 0.0
    %3843 = vmatpush1.xpose.msra.mxu0 0.0
    %3844 = vmatprep.subr.mxu0 0.0
    %3845 = vmatpush1.xpose.msra.mxu0 0.0
    %3846 = vmatprep.subr.mxu0 0.0
    %3847 = vmatpush1.xpose.msra.mxu0 0.0
    %3848 = vmatprep.subr.mxu0 0.0
    %3849 = vmatpush1.xpose.msra.mxu0 0.0
    %3850 = vmatprep.subr.mxu0 0.0
    %3851 = vmatpush1.xpose.msra.mxu0 0.0
    %3852 = vmatprep.subr.mxu0 0.0
    %3853 = vmatpush1.xpose.msra.mxu0 0.0
    %3854 = vmatprep.subr.mxu0 0.0
    %3855 = vmatpush1.xpose.msra.mxu0 0.0
    %3856 = vmatprep.subr.mxu0 0.0
    %3857 = vmatpush1.xpose.msra.mxu0 0.0
    %3858 = vmatprep.subr.mxu0 0.0
    %3859 = vmatpush1.xpose.msra.mxu0 0.0
    %3860 = vmatprep.subr.mxu0 0.0
    %3861 = vmatpush1.xpose.msra.mxu0 0.0
    %3862 = vmatprep.subr.mxu0 0.0
    %3863 = vmatpush1.xpose.msra.mxu0 0.0
    %3864 = vmatprep.subr.mxu0 0.0
    %3865 = vmatpush1.xpose.msra.mxu0 0.0
    %3866 = vmatprep.subr.mxu0 0.0
    %3867 = vmatpush1.xpose.msra.mxu0 0.0
    %3868 = vmatprep.subr.mxu0 0.0
    %3869 = vmatpush1.xpose.msra.mxu0 0.0
    %3870 = vmatprep.subr.mxu0 0.0
    %3871 = vmatpush1.xpose.msra.mxu0 0.0
    %3872 = vmatprep.subr.mxu0 0.0
    %3873 = vmatpush1.xpose.msra.mxu0 0.0
    %3874 = vmatprep.subr.mxu0 0.0
    %3875 = vmatpush1.xpose.msra.mxu0 0.0
    %3876 = vmatprep.subr.mxu0 0.0
    %3877 = vmatpush1.xpose.msra.mxu0 0.0
    %3878 = vmatprep.subr.mxu0 0.0
    %3879 = vmatpush1.xpose.msra.mxu0 0.0
    %3880 = vmatprep.subr.mxu0 0.0
    %3881 = vmatpush1.xpose.msra.mxu0 0.0
    %3882 = vmatprep.subr.mxu0 0.0
    %3883 = vmatpush1.xpose.msra.mxu0 0.0
    %3884 = vmatprep.subr.mxu0 0.0
    %3885 = vmatpush1.xpose.msra.mxu0 0.0
    %3886 = vmatprep.subr.mxu0 0.0
    %3887 = vmatpush1.xpose.msra.mxu0 0.0
    %3888 = vmatprep.subr.mxu0 0.0
    %3889 = vmatpush1.xpose.msra.mxu0 0.0
    %3890 = vmatprep.subr.mxu0 0.0
    %3891 = vmatpush1.xpose.msra.mxu0 0.0
    %3892 = vmatprep.subr.mxu0 0.0
    %3893 = vmatpush1.xpose.msra.mxu0 0.0
    %3894 = vmatprep.subr.mxu0 0.0
    %3895 = vmatpush1.xpose.msra.mxu0 0.0
    %3896 = vmatprep.subr.mxu0 0.0
    %3897 = vmatpush1.xpose.msra.mxu0 0.0
    %3898 = vmatprep.subr.mxu0 0.0
    %3899 = vmatpush1.xpose.msra.mxu0 0.0
    %3900 = vmatprep.mubr.f32.mxu0 0.0
    %3901 = vmatmul.mubr.f32.gmra.mrb[0].mxu0 %v3830
    %v3902 = vpop.f32.mrb[0].mxu0
    %v3903 = vadd.f32 0.0, %v3902
    %v3904 = vpop.f32.mrb[0].mxu0
    %3905 = vmatprep.mubr.f32.mxu0 0.0
    %3906 = vmatmul.mubr.f32.gmra.mrb[0].mxu0 %v3832
    %v3907 = vpop.f32.mrb[0].mxu0
    %v3908 = vadd.f32 0.0, %v3907
    %v3909 = vpop.f32.mrb[0].mxu0
    %3910 = vdwg.mxu0
    %3911 = vrot.lane.b32.xlu0 %v3524, 120
    %v3912 = vpop.permute.xlu0 %3911
    %3913 = vrot.lane.b32.xlu0 %v3351, 120
    %v3914 = vpop.permute.xlu0 %3913
    %3915 = vrot.lane.b32.xlu0 %v3441, 120
    %v3916 = vpop.permute.xlu0 %3915
    %v3917 = vsel %vm826, %v3912, 0
    %v3919 = vsel %vm826, %v3914, 0
    %v3921 = vsel %vm826, %v3916, 0
    %3923 = vmatprep.subr.mxu0 0.0
    %3924 = vmatpush1.xpose.msra.mxu0 %v3921
    %3925 = vmatprep.subr.mxu0 0.0
    %3926 = vmatpush1.xpose.msra.mxu0 0.0
    %3927 = vmatprep.subr.mxu0 0.0
    %3928 = vmatpush1.xpose.msra.mxu0 0.0
    %3929 = vmatprep.subr.mxu0 0.0
    %3930 = vmatpush1.xpose.msra.mxu0 0.0
    %3931 = vmatprep.subr.mxu0 0.0
    %3932 = vmatpush1.xpose.msra.mxu0 0.0
    %3933 = vmatprep.subr.mxu0 0.0
    %3934 = vmatpush1.xpose.msra.mxu0 0.0
    %3935 = vmatprep.subr.mxu0 0.0
    %3936 = vmatpush1.xpose.msra.mxu0 0.0
    %3937 = vmatprep.subr.mxu0 0.0
    %3938 = vmatpush1.xpose.msra.mxu0 0.0
    %3939 = vmatprep.subr.mxu0 0.0
    %3940 = vmatpush1.xpose.msra.mxu0 0.0
    %3941 = vmatprep.subr.mxu0 0.0
    %3942 = vmatpush1.xpose.msra.mxu0 0.0
    %3943 = vmatprep.subr.mxu0 0.0
    %3944 = vmatpush1.xpose.msra.mxu0 0.0
    %3945 = vmatprep.subr.mxu0 0.0
    %3946 = vmatpush1.xpose.msra.mxu0 0.0
    %3947 = vmatprep.subr.mxu0 0.0
    %3948 = vmatpush1.xpose.msra.mxu0 0.0
    %3949 = vmatprep.subr.mxu0 0.0
    %3950 = vmatpush1.xpose.msra.mxu0 0.0
    %3951 = vmatprep.subr.mxu0 0.0
    %3952 = vmatpush1.xpose.msra.mxu0 0.0
    %3953 = vmatprep.subr.mxu0 0.0
    %3954 = vmatpush1.xpose.msra.mxu0 0.0
    %3955 = vmatprep.subr.mxu0 0.0
    %3956 = vmatpush1.xpose.msra.mxu0 0.0
    %3957 = vmatprep.subr.mxu0 0.0
    %3958 = vmatpush1.xpose.msra.mxu0 0.0
    %3959 = vmatprep.subr.mxu0 0.0
    %3960 = vmatpush1.xpose.msra.mxu0 0.0
    %3961 = vmatprep.subr.mxu0 0.0
    %3962 = vmatpush1.xpose.msra.mxu0 0.0
    %3963 = vmatprep.subr.mxu0 0.0
    %3964 = vmatpush1.xpose.msra.mxu0 0.0
    %3965 = vmatprep.subr.mxu0 0.0
    %3966 = vmatpush1.xpose.msra.mxu0 0.0
    %3967 = vmatprep.subr.mxu0 0.0
    %3968 = vmatpush1.xpose.msra.mxu0 0.0
    %3969 = vmatprep.subr.mxu0 0.0
    %3970 = vmatpush1.xpose.msra.mxu0 0.0
    %3971 = vmatprep.subr.mxu0 0.0
    %3972 = vmatpush1.xpose.msra.mxu0 0.0
    %3973 = vmatprep.subr.mxu0 0.0
    %3974 = vmatpush1.xpose.msra.mxu0 0.0
    %3975 = vmatprep.subr.mxu0 0.0
    %3976 = vmatpush1.xpose.msra.mxu0 0.0
    %3977 = vmatprep.subr.mxu0 0.0
    %3978 = vmatpush1.xpose.msra.mxu0 0.0
    %3979 = vmatprep.subr.mxu0 0.0
    %3980 = vmatpush1.xpose.msra.mxu0 0.0
    %3981 = vmatprep.subr.mxu0 0.0
    %3982 = vmatpush1.xpose.msra.mxu0 0.0
    %3983 = vmatprep.subr.mxu0 0.0
    %3984 = vmatpush1.xpose.msra.mxu0 0.0
    %3985 = vmatprep.subr.mxu0 0.0
    %3986 = vmatpush1.xpose.msra.mxu0 0.0
    %3987 = vmatprep.mubr.f32.mxu0 0.0
    %3988 = vmatmul.mubr.f32.gmra.mrb[0].mxu0 %v3917
    %v3989 = vpop.f32.mrb[0].mxu0
    %v3990 = vadd.f32 0.0, %v3989
    %v3991 = vpop.f32.mrb[0].mxu0
    %3992 = vmatprep.mubr.f32.mxu0 0.0
    %3993 = vmatmul.mubr.f32.gmra.mrb[0].mxu0 %v3919
    %v3994 = vpop.f32.mrb[0].mxu0
    %v3995 = vadd.f32 0.0, %v3994
    %v3996 = vpop.f32.mrb[0].mxu0
    %3997 = vdwg.mxu0
    %v3998 = vmul.f32 %v3903, 0.35355338
    %v3999 = vmul.f32 %v3908, 0.35355338
    %v4000 = vmul.f32 %v3990, 0.35355338
    %v4001 = vmul.f32 %v3995, 0.35355338
    %v4002 = vsel %vm994, %v3998, -inf
    %4003 = vmax.xlane.f32.xlu0 %v4002
    %v4004 = vpop.xlane.xlu0 %4003
    %v4005 = vsel %vm998, %v3999, -inf
    %4006 = vmax.xlane.f32.xlu0 %v4005
    %v4007 = vpop.xlane.xlu0 %4006
    %v4008 = vsel %vm994, %v4000, -inf
    %4009 = vmax.xlane.f32.xlu0 %v4008
    %v4010 = vpop.xlane.xlu0 %4009
    %v4011 = vsel %vm998, %v4001, -inf
    %4012 = vmax.xlane.f32.xlu0 %v4011
    %v4013 = vpop.xlane.xlu0 %4012
    %v4014 = vsub.f32 %v3998, %v4004
    %v4015 = vsub.f32 %v3999, %v4007
    %v4016 = vsub.f32 %v4000, %v4010
    %v4017 = vsub.f32 %v4001, %v4013
    %v4018 = vmul.f32 %v4014, 1.442695
    %v4019 = vpow.pop %v4018
    %v4020 = vmul.f32 %v4015, 1.442695
    %v4021 = vpow.pop %v4020
    %v4022 = vmul.f32 %v4016, 1.442695
    %v4023 = vpow.pop %v4022
    %v4024 = vmul.f32 %v4017, 1.442695
    %v4025 = vpow.pop %v4024
    %v4026 = vsel %vm994, %v4019, 0.0
    %4027 = vadd.xlane.f32.xlu0 %v4026
    %v4028 = vpop.xlane.xlu0 %4027
    %v4029 = vsel %vm998, %v4021, 0.0
    %4030 = vadd.xlane.f32.xlu0 %v4029
    %v4031 = vpop.xlane.xlu0 %4030
    %v4032 = vsel %vm994, %v4023, 0.0
    %4033 = vadd.xlane.f32.xlu0 %v4032
    %v4034 = vpop.xlane.xlu0 %4033
    %v4035 = vsel %vm998, %v4025, 0.0
    %4036 = vadd.xlane.f32.xlu0 %v4035
    %v4037 = vpop.xlane.xlu0 %4036
    %v4038 = vrcp.pop %v4028
    %v4039 = vrcp.pop %v4031
    %v4040 = vrcp.pop %v4034
    %v4041 = vrcp.pop %v4037
    %v4042 = vmul.f32 %v4019, %v4038
    %v4043 = vmul.f32 %v4021, %v4039
    %v4044 = vmul.f32 %v4023, %v4040
    %v4045 = vmul.f32 %v4025, %v4041
    %4046 = vrot.lane.b32.xlu0 %v3437, 88
    %v4047 = vpop.permute.xlu0 %4046
    %v4049 = vsel %vm994, %v4042, 0
    %v4052 = vsel %vm994, %v4043, 0
    %v4054 = vsel %vm1048, %v4047, 0
    %4056 = vmatprep.subr.mxu0 0.0
    %4057 = vmatpush1.msra.mxu0 %v4054
    %4058 = vmatprep.subr.mxu0 0.0
    %4059 = vmatpush1.msra.mxu0 0.0
    %4060 = vmatprep.subr.mxu0 0.0
    %4061 = vmatpush1.msra.mxu0 0.0
    %4062 = vmatprep.subr.mxu0 0.0
    %4063 = vmatpush1.msra.mxu0 0.0
    %4064 = vmatprep.subr.mxu0 0.0
    %4065 = vmatpush1.msra.mxu0 0.0
    %4066 = vmatprep.subr.mxu0 0.0
    %4067 = vmatpush1.msra.mxu0 0.0
    %4068 = vmatprep.subr.mxu0 0.0
    %4069 = vmatpush1.msra.mxu0 0.0
    %4070 = vmatprep.subr.mxu0 0.0
    %4071 = vmatpush1.msra.mxu0 0.0
    %4072 = vmatprep.subr.mxu0 0.0
    %4073 = vmatpush1.msra.mxu0 0.0
    %4074 = vmatprep.subr.mxu0 0.0
    %4075 = vmatpush1.msra.mxu0 0.0
    %4076 = vmatprep.subr.mxu0 0.0
    %4077 = vmatpush1.msra.mxu0 0.0
    %4078 = vmatprep.subr.mxu0 0.0
    %4079 = vmatpush1.msra.mxu0 0.0
    %4080 = vmatprep.subr.mxu0 0.0
    %4081 = vmatpush1.msra.mxu0 0.0
    %4082 = vmatprep.subr.mxu0 0.0
    %4083 = vmatpush1.msra.mxu0 0.0
    %4084 = vmatprep.subr.mxu0 0.0
    %4085 = vmatpush1.msra.mxu0 0.0
    %4086 = vmatprep.subr.mxu0 0.0
    %4087 = vmatpush1.msra.mxu0 0.0
    %4088 = vmatprep.subr.mxu0 0.0
    %4089 = vmatpush1.msra.mxu0 0.0
    %4090 = vmatprep.subr.mxu0 0.0
    %4091 = vmatpush1.msra.mxu0 0.0
    %4092 = vmatprep.subr.mxu0 0.0
    %4093 = vmatpush1.msra.mxu0 0.0
    %4094 = vmatprep.subr.mxu0 0.0
    %4095 = vmatpush1.msra.mxu0 0.0
    %4096 = vmatprep.subr.mxu0 0.0
    %4097 = vmatpush1.msra.mxu0 0.0
    %4098 = vmatprep.subr.mxu0 0.0
    %4099 = vmatpush1.msra.mxu0 0.0
    %4100 = vmatprep.subr.mxu0 0.0
    %4101 = vmatpush1.msra.mxu0 0.0
    %4102 = vmatprep.subr.mxu0 0.0
    %4103 = vmatpush1.msra.mxu0 0.0
    %4104 = vmatprep.subr.mxu0 0.0
    %4105 = vmatpush1.msra.mxu0 0.0
    %4106 = vmatprep.subr.mxu0 0.0
    %4107 = vmatpush1.msra.mxu0 0.0
    %4108 = vmatprep.subr.mxu0 0.0
    %4109 = vmatpush1.msra.mxu0 0.0
    %4110 = vmatprep.subr.mxu0 0.0
    %4111 = vmatpush1.msra.mxu0 0.0
    %4112 = vmatprep.subr.mxu0 0.0
    %4113 = vmatpush1.msra.mxu0 0.0
    %4114 = vmatprep.subr.mxu0 0.0
    %4115 = vmatpush1.msra.mxu0 0.0
    %4116 = vmatprep.subr.mxu0 0.0
    %4117 = vmatpush1.msra.mxu0 0.0
    %4118 = vmatprep.subr.mxu0 0.0
    %4119 = vmatpush1.msra.mxu0 0.0
    %4120 = vmatprep.mubr.f32.mxu0 0.0
    %4121 = vmatmul.mubr.f32.gmra.mrb[0].mxu0 %v4049
    %v4122 = vpop.f32.mrb[0].mxu0
    %v4123 = vadd.f32 0.0, %v4122
    %v4124 = vpop.f32.mrb[0].mxu0
    %4125 = vmatprep.mubr.f32.mxu0 0.0
    %4126 = vmatmul.mubr.f32.gmra.mrb[0].mxu0 %v4052
    %v4127 = vpop.f32.mrb[0].mxu0
    %v4128 = vadd.f32 0.0, %v4127
    %v4129 = vpop.f32.mrb[0].mxu0
    %4130 = vdwg.mxu0
    %4131 = vrot.lane.b32.xlu0 %v3441, 88
    %v4132 = vpop.permute.xlu0 %4131
    %v4134 = vsel %vm994, %v4044, 0
    %v4137 = vsel %vm994, %v4045, 0
    %v4139 = vsel %vm1048, %v4132, 0
    %4141 = vmatprep.subr.mxu0 0.0
    %4142 = vmatpush1.msra.mxu0 %v4139
    %4143 = vmatprep.subr.mxu0 0.0
    %4144 = vmatpush1.msra.mxu0 0.0
    %4145 = vmatprep.subr.mxu0 0.0
    %4146 = vmatpush1.msra.mxu0 0.0
    %4147 = vmatprep.subr.mxu0 0.0
    %4148 = vmatpush1.msra.mxu0 0.0
    %4149 = vmatprep.subr.mxu0 0.0
    %4150 = vmatpush1.msra.mxu0 0.0
    %4151 = vmatprep.subr.mxu0 0.0
    %4152 = vmatpush1.msra.mxu0 0.0
    %4153 = vmatprep.subr.mxu0 0.0
    %4154 = vmatpush1.msra.mxu0 0.0
    %4155 = vmatprep.subr.mxu0 0.0
    %4156 = vmatpush1.msra.mxu0 0.0
    %4157 = vmatprep.subr.mxu0 0.0
    %4158 = vmatpush1.msra.mxu0 0.0
    %4159 = vmatprep.subr.mxu0 0.0
    %4160 = vmatpush1.msra.mxu0 0.0
    %4161 = vmatprep.subr.mxu0 0.0
    %4162 = vmatpush1.msra.mxu0 0.0
    %4163 = vmatprep.subr.mxu0 0.0
    %4164 = vmatpush1.msra.mxu0 0.0
    %4165 = vmatprep.subr.mxu0 0.0
    %4166 = vmatpush1.msra.mxu0 0.0
    %4167 = vmatprep.subr.mxu0 0.0
    %4168 = vmatpush1.msra.mxu0 0.0
    %4169 = vmatprep.subr.mxu0 0.0
    %4170 = vmatpush1.msra.mxu0 0.0
    %4171 = vmatprep.subr.mxu0 0.0
    %4172 = vmatpush1.msra.mxu0 0.0
    %4173 = vmatprep.subr.mxu0 0.0
    %4174 = vmatpush1.msra.mxu0 0.0
    %4175 = vmatprep.subr.mxu0 0.0
    %4176 = vmatpush1.msra.mxu0 0.0
    %4177 = vmatprep.subr.mxu0 0.0
    %4178 = vmatpush1.msra.mxu0 0.0
    %4179 = vmatprep.subr.mxu0 0.0
    %4180 = vmatpush1.msra.mxu0 0.0
    %4181 = vmatprep.subr.mxu0 0.0
    %4182 = vmatpush1.msra.mxu0 0.0
    %4183 = vmatprep.subr.mxu0 0.0
    %4184 = vmatpush1.msra.mxu0 0.0
    %4185 = vmatprep.subr.mxu0 0.0
    %4186 = vmatpush1.msra.mxu0 0.0
    %4187 = vmatprep.subr.mxu0 0.0
    %4188 = vmatpush1.msra.mxu0 0.0
    %4189 = vmatprep.subr.mxu0 0.0
    %4190 = vmatpush1.msra.mxu0 0.0
    %4191 = vmatprep.subr.mxu0 0.0
    %4192 = vmatpush1.msra.mxu0 0.0
    %4193 = vmatprep.subr.mxu0 0.0
    %4194 = vmatpush1.msra.mxu0 0.0
    %4195 = vmatprep.subr.mxu0 0.0
    %4196 = vmatpush1.msra.mxu0 0.0
    %4197 = vmatprep.subr.mxu0 0.0
    %4198 = vmatpush1.msra.mxu0 0.0
    %4199 = vmatprep.subr.mxu0 0.0
    %4200 = vmatpush1.msra.mxu0 0.0
    %4201 = vmatprep.subr.mxu0 0.0
    %4202 = vmatpush1.msra.mxu0 0.0
    %4203 = vmatprep.subr.mxu0 0.0
    %4204 = vmatpush1.msra.mxu0 0.0
    %4205 = vmatprep.mubr.f32.mxu0 0.0
    %4206 = vmatmul.mubr.f32.gmra.mrb[0].mxu0 %v4134
    %v4207 = vpop.f32.mrb[0].mxu0
    %v4208 = vadd.f32 0.0, %v4207
    %v4209 = vpop.f32.mrb[0].mxu0
    %4210 = vmatprep.mubr.f32.mxu0 0.0
    %4211 = vmatmul.mubr.f32.gmra.mrb[0].mxu0 %v4137
    %v4212 = vpop.f32.mrb[0].mxu0
    %v4213 = vadd.f32 0.0, %v4212
    %v4214 = vpop.f32.mrb[0].mxu0
    %4215 = vdwg.mxu0
    %4216 = vrot.lane.b32.xlu0 %v3442, 112
    %v4217 = vpop.permute.xlu0 %4216
    %4218 = vrot.lane.b32.xlu0 %v3338, 112
    %v4219 = vpop.permute.xlu0 %4218
    %4220 = vrot.lane.b32.xlu0 %v3437, 112
    %v4221 = vpop.permute.xlu0 %4220
    %v4222 = vsel %vm826, %v4217, 0
    %v4224 = vsel %vm826, %v4219, 0
    %v4226 = vsel %vm826, %v4221, 0
    %4228 = vmatprep.subr.mxu0 0.0
    %4229 = vmatpush1.xpose.msra.mxu0 %v4226
    %4230 = vmatprep.subr.mxu0 0.0
    %4231 = vmatpush1.xpose.msra.mxu0 0.0
    %4232 = vmatprep.subr.mxu0 0.0
    %4233 = vmatpush1.xpose.msra.mxu0 0.0
    %4234 = vmatprep.subr.mxu0 0.0
    %4235 = vmatpush1.xpose.msra.mxu0 0.0
    %4236 = vmatprep.subr.mxu0 0.0
    %4237 = vmatpush1.xpose.msra.mxu0 0.0
    %4238 = vmatprep.subr.mxu0 0.0
    %4239 = vmatpush1.xpose.msra.mxu0 0.0
    %4240 = vmatprep.subr.mxu0 0.0
    %4241 = vmatpush1.xpose.msra.mxu0 0.0
    %4242 = vmatprep.subr.mxu0 0.0
    %4243 = vmatpush1.xpose.msra.mxu0 0.0
    %4244 = vmatprep.subr.mxu0 0.0
    %4245 = vmatpush1.xpose.msra.mxu0 0.0
    %4246 = vmatprep.subr.mxu0 0.0
    %4247 = vmatpush1.xpose.msra.mxu0 0.0
    %4248 = vmatprep.subr.mxu0 0.0
    %4249 = vmatpush1.xpose.msra.mxu0 0.0
    %4250 = vmatprep.subr.mxu0 0.0
    %4251 = vmatpush1.xpose.msra.mxu0 0.0
    %4252 = vmatprep.subr.mxu0 0.0
    %4253 = vmatpush1.xpose.msra.mxu0 0.0
    %4254 = vmatprep.subr.mxu0 0.0
    %4255 = vmatpush1.xpose.msra.mxu0 0.0
    %4256 = vmatprep.subr.mxu0 0.0
    %4257 = vmatpush1.xpose.msra.mxu0 0.0
    %4258 = vmatprep.subr.mxu0 0.0
    %4259 = vmatpush1.xpose.msra.mxu0 0.0
    %4260 = vmatprep.subr.mxu0 0.0
    %4261 = vmatpush1.xpose.msra.mxu0 0.0
    %4262 = vmatprep.subr.mxu0 0.0
    %4263 = vmatpush1.xpose.msra.mxu0 0.0
    %4264 = vmatprep.subr.mxu0 0.0
    %4265 = vmatpush1.xpose.msra.mxu0 0.0
    %4266 = vmatprep.subr.mxu0 0.0
    %4267 = vmatpush1.xpose.msra.mxu0 0.0
    %4268 = vmatprep.subr.mxu0 0.0
    %4269 = vmatpush1.xpose.msra.mxu0 0.0
    %4270 = vmatprep.subr.mxu0 0.0
    %4271 = vmatpush1.xpose.msra.mxu0 0.0
    %4272 = vmatprep.subr.mxu0 0.0
    %4273 = vmatpush1.xpose.msra.mxu0 0.0
    %4274 = vmatprep.subr.mxu0 0.0
    %4275 = vmatpush1.xpose.msra.mxu0 0.0
    %4276 = vmatprep.subr.mxu0 0.0
    %4277 = vmatpush1.xpose.msra.mxu0 0.0
    %4278 = vmatprep.subr.mxu0 0.0
    %4279 = vmatpush1.xpose.msra.mxu0 0.0
    %4280 = vmatprep.subr.mxu0 0.0
    %4281 = vmatpush1.xpose.msra.mxu0 0.0
    %4282 = vmatprep.subr.mxu0 0.0
    %4283 = vmatpush1.xpose.msra.mxu0 0.0
    %4284 = vmatprep.subr.mxu0 0.0
    %4285 = vmatpush1.xpose.msra.mxu0 0.0
    %4286 = vmatprep.subr.mxu0 0.0
    %4287 = vmatpush1.xpose.msra.mxu0 0.0
    %4288 = vmatprep.subr.mxu0 0.0
    %4289 = vmatpush1.xpose.msra.mxu0 0.0
    %4290 = vmatprep.subr.mxu0 0.0
    %4291 = vmatpush1.xpose.msra.mxu0 0.0
    %4292 = vmatprep.mubr.f32.mxu0 0.0
    %4293 = vmatmul.mubr.f32.gmra.mrb[0].mxu0 %v4222
    %v4294 = vpop.f32.mrb[0].mxu0
    %v4295 = vadd.f32 0.0, %v4294
    %v4296 = vpop.f32.mrb[0].mxu0
    %4297 = vmatprep.mubr.f32.mxu0 0.0
    %4298 = vmatmul.mubr.f32.gmra.mrb[0].mxu0 %v4224
    %v4299 = vpop.f32.mrb[0].mxu0
    %v4300 = vadd.f32 0.0, %v4299
    %v4301 = vpop.f32.mrb[0].mxu0
    %4302 = vdwg.mxu0
    %4303 = vrot.lane.b32.xlu0 %v3524, 112
    %v4304 = vpop.permute.xlu0 %4303
    %4305 = vrot.lane.b32.xlu0 %v3351, 112
    %v4306 = vpop.permute.xlu0 %4305
    %4307 = vrot.lane.b32.xlu0 %v3441, 112
    %v4308 = vpop.permute.xlu0 %4307
    %v4309 = vsel %vm826, %v4304, 0
    %v4311 = vsel %vm826, %v4306, 0
    %v4313 = vsel %vm826, %v4308, 0
    %4315 = vmatprep.subr.mxu0 0.0
    %4316 = vmatpush1.xpose.msra.mxu0 %v4313
    %4317 = vmatprep.subr.mxu0 0.0
    %4318 = vmatpush1.xpose.msra.mxu0 0.0
    %4319 = vmatprep.subr.mxu0 0.0
    %4320 = vmatpush1.xpose.msra.mxu0 0.0
    %4321 = vmatprep.subr.mxu0 0.0
    %4322 = vmatpush1.xpose.msra.mxu0 0.0
    %4323 = vmatprep.subr.mxu0 0.0
    %4324 = vmatpush1.xpose.msra.mxu0 0.0
    %4325 = vmatprep.subr.mxu0 0.0
    %4326 = vmatpush1.xpose.msra.mxu0 0.0
    %4327 = vmatprep.subr.mxu0 0.0
    %4328 = vmatpush1.xpose.msra.mxu0 0.0
    %4329 = vmatprep.subr.mxu0 0.0
    %4330 = vmatpush1.xpose.msra.mxu0 0.0
    %4331 = vmatprep.subr.mxu0 0.0
    %4332 = vmatpush1.xpose.msra.mxu0 0.0
    %4333 = vmatprep.subr.mxu0 0.0
    %4334 = vmatpush1.xpose.msra.mxu0 0.0
    %4335 = vmatprep.subr.mxu0 0.0
    %4336 = vmatpush1.xpose.msra.mxu0 0.0
    %4337 = vmatprep.subr.mxu0 0.0
    %4338 = vmatpush1.xpose.msra.mxu0 0.0
    %4339 = vmatprep.subr.mxu0 0.0
    %4340 = vmatpush1.xpose.msra.mxu0 0.0
    %4341 = vmatprep.subr.mxu0 0.0
    %4342 = vmatpush1.xpose.msra.mxu0 0.0
    %4343 = vmatprep.subr.mxu0 0.0
    %4344 = vmatpush1.xpose.msra.mxu0 0.0
    %4345 = vmatprep.subr.mxu0 0.0
    %4346 = vmatpush1.xpose.msra.mxu0 0.0
    %4347 = vmatprep.subr.mxu0 0.0
    %4348 = vmatpush1.xpose.msra.mxu0 0.0
    %4349 = vmatprep.subr.mxu0 0.0
    %4350 = vmatpush1.xpose.msra.mxu0 0.0
    %4351 = vmatprep.subr.mxu0 0.0
    %4352 = vmatpush1.xpose.msra.mxu0 0.0
    %4353 = vmatprep.subr.mxu0 0.0
    %4354 = vmatpush1.xpose.msra.mxu0 0.0
    %4355 = vmatprep.subr.mxu0 0.0
    %4356 = vmatpush1.xpose.msra.mxu0 0.0
    %4357 = vmatprep.subr.mxu0 0.0
    %4358 = vmatpush1.xpose.msra.mxu0 0.0
    %4359 = vmatprep.subr.mxu0 0.0
    %4360 = vmatpush1.xpose.msra.mxu0 0.0
    %4361 = vmatprep.subr.mxu0 0.0
    %4362 = vmatpush1.xpose.msra.mxu0 0.0
    %4363 = vmatprep.subr.mxu0 0.0
    %4364 = vmatpush1.xpose.msra.mxu0 0.0
    %4365 = vmatprep.subr.mxu0 0.0
    %4366 = vmatpush1.xpose.msra.mxu0 0.0
    %4367 = vmatprep.subr.mxu0 0.0
    %4368 = vmatpush1.xpose.msra.mxu0 0.0
    %4369 = vmatprep.subr.mxu0 0.0
    %4370 = vmatpush1.xpose.msra.mxu0 0.0
    %4371 = vmatprep.subr.mxu0 0.0
    %4372 = vmatpush1.xpose.msra.mxu0 0.0
    %4373 = vmatprep.subr.mxu0 0.0
    %4374 = vmatpush1.xpose.msra.mxu0 0.0
    %4375 = vmatprep.subr.mxu0 0.0
    %4376 = vmatpush1.xpose.msra.mxu0 0.0
    %4377 = vmatprep.subr.mxu0 0.0
    %4378 = vmatpush1.xpose.msra.mxu0 0.0
    %4379 = vmatprep.mubr.f32.mxu0 0.0
    %4380 = vmatmul.mubr.f32.gmra.mrb[0].mxu0 %v4309
    %v4381 = vpop.f32.mrb[0].mxu0
    %v4382 = vadd.f32 0.0, %v4381
    %v4383 = vpop.f32.mrb[0].mxu0
    %4384 = vmatprep.mubr.f32.mxu0 0.0
    %4385 = vmatmul.mubr.f32.gmra.mrb[0].mxu0 %v4311
    %v4386 = vpop.f32.mrb[0].mxu0
    %v4387 = vadd.f32 0.0, %v4386
    %v4388 = vpop.f32.mrb[0].mxu0
    %4389 = vdwg.mxu0
    %v4390 = vmul.f32 %v4295, 0.35355338
    %v4391 = vmul.f32 %v4300, 0.35355338
    %v4392 = vmul.f32 %v4382, 0.35355338
    %v4393 = vmul.f32 %v4387, 0.35355338
    %v4394 = vsel %vm994, %v4390, -inf
    %4395 = vmax.xlane.f32.xlu0 %v4394
    %v4396 = vpop.xlane.xlu0 %4395
    %v4397 = vsel %vm998, %v4391, -inf
    %4398 = vmax.xlane.f32.xlu0 %v4397
    %v4399 = vpop.xlane.xlu0 %4398
    %v4400 = vsel %vm994, %v4392, -inf
    %4401 = vmax.xlane.f32.xlu0 %v4400
    %v4402 = vpop.xlane.xlu0 %4401
    %v4403 = vsel %vm998, %v4393, -inf
    %4404 = vmax.xlane.f32.xlu0 %v4403
    %v4405 = vpop.xlane.xlu0 %4404
    %v4406 = vsub.f32 %v4390, %v4396
    %v4407 = vsub.f32 %v4391, %v4399
    %v4408 = vsub.f32 %v4392, %v4402
    %v4409 = vsub.f32 %v4393, %v4405
    %v4410 = vmul.f32 %v4406, 1.442695
    %v4411 = vpow.pop %v4410
    %v4412 = vmul.f32 %v4407, 1.442695
    %v4413 = vpow.pop %v4412
    %v4414 = vmul.f32 %v4408, 1.442695
    %v4415 = vpow.pop %v4414
    %v4416 = vmul.f32 %v4409, 1.442695
    %v4417 = vpow.pop %v4416
    %v4418 = vsel %vm994, %v4411, 0.0
    %4419 = vadd.xlane.f32.xlu0 %v4418
    %v4420 = vpop.xlane.xlu0 %4419
    %v4421 = vsel %vm998, %v4413, 0.0
    %4422 = vadd.xlane.f32.xlu0 %v4421
    %v4423 = vpop.xlane.xlu0 %4422
    %v4424 = vsel %vm994, %v4415, 0.0
    %4425 = vadd.xlane.f32.xlu0 %v4424
    %v4426 = vpop.xlane.xlu0 %4425
    %v4427 = vsel %vm998, %v4417, 0.0
    %4428 = vadd.xlane.f32.xlu0 %v4427
    %v4429 = vpop.xlane.xlu0 %4428
    %v4430 = vrcp.pop %v4420
    %v4431 = vrcp.pop %v4423
    %v4432 = vrcp.pop %v4426
    %v4433 = vrcp.pop %v4429
    %v4434 = vmul.f32 %v4411, %v4430
    %v4435 = vmul.f32 %v4413, %v4431
    %v4436 = vmul.f32 %v4415, %v4432
    %v4437 = vmul.f32 %v4417, %v4433
    %4438 = vrot.lane.b32.xlu0 %v3437, 80
    %v4439 = vpop.permute.xlu0 %4438
    %v4441 = vsel %vm994, %v4434, 0
    %v4444 = vsel %vm994, %v4435, 0
    %v4446 = vsel %vm1048, %v4439, 0
    %4448 = vmatprep.subr.mxu0 0.0
    %4449 = vmatpush1.msra.mxu0 %v4446
    %4450 = vmatprep.subr.mxu0 0.0
    %4451 = vmatpush1.msra.mxu0 0.0
    %4452 = vmatprep.subr.mxu0 0.0
    %4453 = vmatpush1.msra.mxu0 0.0
    %4454 = vmatprep.subr.mxu0 0.0
    %4455 = vmatpush1.msra.mxu0 0.0
    %4456 = vmatprep.subr.mxu0 0.0
    %4457 = vmatpush1.msra.mxu0 0.0
    %4458 = vmatprep.subr.mxu0 0.0
    %4459 = vmatpush1.msra.mxu0 0.0
    %4460 = vmatprep.subr.mxu0 0.0
    %4461 = vmatpush1.msra.mxu0 0.0
    %4462 = vmatprep.subr.mxu0 0.0
    %4463 = vmatpush1.msra.mxu0 0.0
    %4464 = vmatprep.subr.mxu0 0.0
    %4465 = vmatpush1.msra.mxu0 0.0
    %4466 = vmatprep.subr.mxu0 0.0
    %4467 = vmatpush1.msra.mxu0 0.0
    %4468 = vmatprep.subr.mxu0 0.0
    %4469 = vmatpush1.msra.mxu0 0.0
    %4470 = vmatprep.subr.mxu0 0.0
    %4471 = vmatpush1.msra.mxu0 0.0
    %4472 = vmatprep.subr.mxu0 0.0
    %4473 = vmatpush1.msra.mxu0 0.0
    %4474 = vmatprep.subr.mxu0 0.0
    %4475 = vmatpush1.msra.mxu0 0.0
    %4476 = vmatprep.subr.mxu0 0.0
    %4477 = vmatpush1.msra.mxu0 0.0
    %4478 = vmatprep.subr.mxu0 0.0
    %4479 = vmatpush1.msra.mxu0 0.0
    %4480 = vmatprep.subr.mxu0 0.0
    %4481 = vmatpush1.msra.mxu0 0.0
    %4482 = vmatprep.subr.mxu0 0.0
    %4483 = vmatpush1.msra.mxu0 0.0
    %4484 = vmatprep.subr.mxu0 0.0
    %4485 = vmatpush1.msra.mxu0 0.0
    %4486 = vmatprep.subr.mxu0 0.0
    %4487 = vmatpush1.msra.mxu0 0.0
    %4488 = vmatprep.subr.mxu0 0.0
    %4489 = vmatpush1.msra.mxu0 0.0
    %4490 = vmatprep.subr.mxu0 0.0
    %4491 = vmatpush1.msra.mxu0 0.0
    %4492 = vmatprep.subr.mxu0 0.0
    %4493 = vmatpush1.msra.mxu0 0.0
    %4494 = vmatprep.subr.mxu0 0.0
    %4495 = vmatpush1.msra.mxu0 0.0
    %4496 = vmatprep.subr.mxu0 0.0
    %4497 = vmatpush1.msra.mxu0 0.0
    %4498 = vmatprep.subr.mxu0 0.0
    %4499 = vmatpush1.msra.mxu0 0.0
    %4500 = vmatprep.subr.mxu0 0.0
    %4501 = vmatpush1.msra.mxu0 0.0
    %4502 = vmatprep.subr.mxu0 0.0
    %4503 = vmatpush1.msra.mxu0 0.0
    %4504 = vmatprep.subr.mxu0 0.0
    %4505 = vmatpush1.msra.mxu0 0.0
    %4506 = vmatprep.subr.mxu0 0.0
    %4507 = vmatpush1.msra.mxu0 0.0
    %4508 = vmatprep.subr.mxu0 0.0
    %4509 = vmatpush1.msra.mxu0 0.0
    %4510 = vmatprep.subr.mxu0 0.0
    %4511 = vmatpush1.msra.mxu0 0.0
    %4512 = vmatprep.mubr.f32.mxu0 0.0
    %4513 = vmatmul.mubr.f32.gmra.mrb[0].mxu0 %v4441
    %v4514 = vpop.f32.mrb[0].mxu0
    %v4515 = vadd.f32 0.0, %v4514
    %v4516 = vpop.f32.mrb[0].mxu0
    %4517 = vmatprep.mubr.f32.mxu0 0.0
    %4518 = vmatmul.mubr.f32.gmra.mrb[0].mxu0 %v4444
    %v4519 = vpop.f32.mrb[0].mxu0
    %v4520 = vadd.f32 0.0, %v4519
    %v4521 = vpop.f32.mrb[0].mxu0
    %4522 = vdwg.mxu0
    %4523 = vrot.lane.b32.xlu0 %v3441, 80
    %v4524 = vpop.permute.xlu0 %4523
    %v4526 = vsel %vm994, %v4436, 0
    %v4529 = vsel %vm994, %v4437, 0
    %v4531 = vsel %vm1048, %v4524, 0
    %4533 = vmatprep.subr.mxu0 0.0
    %4534 = vmatpush1.msra.mxu0 %v4531
    %4535 = vmatprep.subr.mxu0 0.0
    %4536 = vmatpush1.msra.mxu0 0.0
    %4537 = vmatprep.subr.mxu0 0.0
    %4538 = vmatpush1.msra.mxu0 0.0
    %4539 = vmatprep.subr.mxu0 0.0
    %4540 = vmatpush1.msra.mxu0 0.0
    %4541 = vmatprep.subr.mxu0 0.0
    %4542 = vmatpush1.msra.mxu0 0.0
    %4543 = vmatprep.subr.mxu0 0.0
    %4544 = vmatpush1.msra.mxu0 0.0
    %4545 = vmatprep.subr.mxu0 0.0
    %4546 = vmatpush1.msra.mxu0 0.0
    %4547 = vmatprep.subr.mxu0 0.0
    %4548 = vmatpush1.msra.mxu0 0.0
    %4549 = vmatprep.subr.mxu0 0.0
    %4550 = vmatpush1.msra.mxu0 0.0
    %4551 = vmatprep.subr.mxu0 0.0
    %4552 = vmatpush1.msra.mxu0 0.0
    %4553 = vmatprep.subr.mxu0 0.0
    %4554 = vmatpush1.msra.mxu0 0.0
    %4555 = vmatprep.subr.mxu0 0.0
    %4556 = vmatpush1.msra.mxu0 0.0
    %4557 = vmatprep.subr.mxu0 0.0
    %4558 = vmatpush1.msra.mxu0 0.0
    %4559 = vmatprep.subr.mxu0 0.0
    %4560 = vmatpush1.msra.mxu0 0.0
    %4561 = vmatprep.subr.mxu0 0.0
    %4562 = vmatpush1.msra.mxu0 0.0
    %4563 = vmatprep.subr.mxu0 0.0
    %4564 = vmatpush1.msra.mxu0 0.0
    %4565 = vmatprep.subr.mxu0 0.0
    %4566 = vmatpush1.msra.mxu0 0.0
    %4567 = vmatprep.subr.mxu0 0.0
    %4568 = vmatpush1.msra.mxu0 0.0
    %4569 = vmatprep.subr.mxu0 0.0
    %4570 = vmatpush1.msra.mxu0 0.0
    %4571 = vmatprep.subr.mxu0 0.0
    %4572 = vmatpush1.msra.mxu0 0.0
    %4573 = vmatprep.subr.mxu0 0.0
    %4574 = vmatpush1.msra.mxu0 0.0
    %4575 = vmatprep.subr.mxu0 0.0
    %4576 = vmatpush1.msra.mxu0 0.0
    %4577 = vmatprep.subr.mxu0 0.0
    %4578 = vmatpush1.msra.mxu0 0.0
    %4579 = vmatprep.subr.mxu0 0.0
    %4580 = vmatpush1.msra.mxu0 0.0
    %4581 = vmatprep.subr.mxu0 0.0
    %4582 = vmatpush1.msra.mxu0 0.0
    %4583 = vmatprep.subr.mxu0 0.0
    %4584 = vmatpush1.msra.mxu0 0.0
    %4585 = vmatprep.subr.mxu0 0.0
    %4586 = vmatpush1.msra.mxu0 0.0
    %4587 = vmatprep.subr.mxu0 0.0
    %4588 = vmatpush1.msra.mxu0 0.0
    %4589 = vmatprep.subr.mxu0 0.0
    %4590 = vmatpush1.msra.mxu0 0.0
    %4591 = vmatprep.subr.mxu0 0.0
    %4592 = vmatpush1.msra.mxu0 0.0
    %4593 = vmatprep.subr.mxu0 0.0
    %4594 = vmatpush1.msra.mxu0 0.0
    %4595 = vmatprep.subr.mxu0 0.0
    %4596 = vmatpush1.msra.mxu0 0.0
    %4597 = vmatprep.mubr.f32.mxu0 0.0
    %4598 = vmatmul.mubr.f32.gmra.mrb[0].mxu0 %v4526
    %v4599 = vpop.f32.mrb[0].mxu0
    %v4600 = vadd.f32 0.0, %v4599
    %v4601 = vpop.f32.mrb[0].mxu0
    %4602 = vmatprep.mubr.f32.mxu0 0.0
    %4603 = vmatmul.mubr.f32.gmra.mrb[0].mxu0 %v4529
    %v4604 = vpop.f32.mrb[0].mxu0
    %v4605 = vadd.f32 0.0, %v4604
    %v4606 = vpop.f32.mrb[0].mxu0
    %4607 = vdwg.mxu0
    %4608 = vrot.lane.b32.xlu0 %v3442, 104
    %v4609 = vpop.permute.xlu0 %4608
    %4610 = vrot.lane.b32.xlu0 %v3338, 104
    %v4611 = vpop.permute.xlu0 %4610
    %4612 = vrot.lane.b32.xlu0 %v3437, 104
    %v4613 = vpop.permute.xlu0 %4612
    %v4614 = vsel %vm826, %v4609, 0
    %v4616 = vsel %vm826, %v4611, 0
    %v4618 = vsel %vm826, %v4613, 0
    %4620 = vmatprep.subr.mxu0 0.0
    %4621 = vmatpush1.xpose.msra.mxu0 %v4618
    %4622 = vmatprep.subr.mxu0 0.0
    %4623 = vmatpush1.xpose.msra.mxu0 0.0
    %4624 = vmatprep.subr.mxu0 0.0
    %4625 = vmatpush1.xpose.msra.mxu0 0.0
    %4626 = vmatprep.subr.mxu0 0.0
    %4627 = vmatpush1.xpose.msra.mxu0 0.0
    %4628 = vmatprep.subr.mxu0 0.0
    %4629 = vmatpush1.xpose.msra.mxu0 0.0
    %4630 = vmatprep.subr.mxu0 0.0
    %4631 = vmatpush1.xpose.msra.mxu0 0.0
    %4632 = vmatprep.subr.mxu0 0.0
    %4633 = vmatpush1.xpose.msra.mxu0 0.0
    %4634 = vmatprep.subr.mxu0 0.0
    %4635 = vmatpush1.xpose.msra.mxu0 0.0
    %4636 = vmatprep.subr.mxu0 0.0
    %4637 = vmatpush1.xpose.msra.mxu0 0.0
    %4638 = vmatprep.subr.mxu0 0.0
    %4639 = vmatpush1.xpose.msra.mxu0 0.0
    %4640 = vmatprep.subr.mxu0 0.0
    %4641 = vmatpush1.xpose.msra.mxu0 0.0
    %4642 = vmatprep.subr.mxu0 0.0
    %4643 = vmatpush1.xpose.msra.mxu0 0.0
    %4644 = vmatprep.subr.mxu0 0.0
    %4645 = vmatpush1.xpose.msra.mxu0 0.0
    %4646 = vmatprep.subr.mxu0 0.0
    %4647 = vmatpush1.xpose.msra.mxu0 0.0
    %4648 = vmatprep.subr.mxu0 0.0
    %4649 = vmatpush1.xpose.msra.mxu0 0.0
    %4650 = vmatprep.subr.mxu0 0.0
    %4651 = vmatpush1.xpose.msra.mxu0 0.0
    %4652 = vmatprep.subr.mxu0 0.0
    %4653 = vmatpush1.xpose.msra.mxu0 0.0
    %4654 = vmatprep.subr.mxu0 0.0
    %4655 = vmatpush1.xpose.msra.mxu0 0.0
    %4656 = vmatprep.subr.mxu0 0.0
    %4657 = vmatpush1.xpose.msra.mxu0 0.0
    %4658 = vmatprep.subr.mxu0 0.0
    %4659 = vmatpush1.xpose.msra.mxu0 0.0
    %4660 = vmatprep.subr.mxu0 0.0
    %4661 = vmatpush1.xpose.msra.mxu0 0.0
    %4662 = vmatprep.subr.mxu0 0.0
    %4663 = vmatpush1.xpose.msra.mxu0 0.0
    %4664 = vmatprep.subr.mxu0 0.0
    %4665 = vmatpush1.xpose.msra.mxu0 0.0
    %4666 = vmatprep.subr.mxu0 0.0
    %4667 = vmatpush1.xpose.msra.mxu0 0.0
    %4668 = vmatprep.subr.mxu0 0.0
    %4669 = vmatpush1.xpose.msra.mxu0 0.0
    %4670 = vmatprep.subr.mxu0 0.0
    %4671 = vmatpush1.xpose.msra.mxu0 0.0
    %4672 = vmatprep.subr.mxu0 0.0
    %4673 = vmatpush1.xpose.msra.mxu0 0.0
    %4674 = vmatprep.subr.mxu0 0.0
    %4675 = vmatpush1.xpose.msra.mxu0 0.0
    %4676 = vmatprep.subr.mxu0 0.0
    %4677 = vmatpush1.xpose.msra.mxu0 0.0
    %4678 = vmatprep.subr.mxu0 0.0
    %4679 = vmatpush1.xpose.msra.mxu0 0.0
    %4680 = vmatprep.subr.mxu0 0.0
    %4681 = vmatpush1.xpose.msra.mxu0 0.0
    %4682 = vmatprep.subr.mxu0 0.0
    %4683 = vmatpush1.xpose.msra.mxu0 0.0
    %4684 = vmatprep.mubr.f32.mxu0 0.0
    %4685 = vmatmul.mubr.f32.gmra.mrb[0].mxu0 %v4614
    %v4686 = vpop.f32.mrb[0].mxu0
    %v4687 = vadd.f32 0.0, %v4686
    %v4688 = vpop.f32.mrb[0].mxu0
    %4689 = vmatprep.mubr.f32.mxu0 0.0
    %4690 = vmatmul.mubr.f32.gmra.mrb[0].mxu0 %v4616
    %v4691 = vpop.f32.mrb[0].mxu0
    %v4692 = vadd.f32 0.0, %v4691
    %v4693 = vpop.f32.mrb[0].mxu0
    %4694 = vdwg.mxu0
    %4695 = vrot.lane.b32.xlu0 %v3524, 104
    %v4696 = vpop.permute.xlu0 %4695
    %4697 = vrot.lane.b32.xlu0 %v3351, 104
    %v4698 = vpop.permute.xlu0 %4697
    %4699 = vrot.lane.b32.xlu0 %v3441, 104
    %v4700 = vpop.permute.xlu0 %4699
    %v4701 = vsel %vm826, %v4696, 0
    %v4703 = vsel %vm826, %v4698, 0
    %v4705 = vsel %vm826, %v4700, 0
    %4707 = vmatprep.subr.mxu0 0.0
    %4708 = vmatpush1.xpose.msra.mxu0 %v4705
    %4709 = vmatprep.subr.mxu0 0.0
    %4710 = vmatpush1.xpose.msra.mxu0 0.0
    %4711 = vmatprep.subr.mxu0 0.0
    %4712 = vmatpush1.xpose.msra.mxu0 0.0
    %4713 = vmatprep.subr.mxu0 0.0
    %4714 = vmatpush1.xpose.msra.mxu0 0.0
    %4715 = vmatprep.subr.mxu0 0.0
    %4716 = vmatpush1.xpose.msra.mxu0 0.0
    %4717 = vmatprep.subr.mxu0 0.0
    %4718 = vmatpush1.xpose.msra.mxu0 0.0
    %4719 = vmatprep.subr.mxu0 0.0
    %4720 = vmatpush1.xpose.msra.mxu0 0.0
    %4721 = vmatprep.subr.mxu0 0.0
    %4722 = vmatpush1.xpose.msra.mxu0 0.0
    %4723 = vmatprep.subr.mxu0 0.0
    %4724 = vmatpush1.xpose.msra.mxu0 0.0
    %4725 = vmatprep.subr.mxu0 0.0
    %4726 = vmatpush1.xpose.msra.mxu0 0.0
    %4727 = vmatprep.subr.mxu0 0.0
    %4728 = vmatpush1.xpose.msra.mxu0 0.0
    %4729 = vmatprep.subr.mxu0 0.0
    %4730 = vmatpush1.xpose.msra.mxu0 0.0
    %4731 = vmatprep.subr.mxu0 0.0
    %4732 = vmatpush1.xpose.msra.mxu0 0.0
    %4733 = vmatprep.subr.mxu0 0.0
    %4734 = vmatpush1.xpose.msra.mxu0 0.0
    %4735 = vmatprep.subr.mxu0 0.0
    %4736 = vmatpush1.xpose.msra.mxu0 0.0
    %4737 = vmatprep.subr.mxu0 0.0
    %4738 = vmatpush1.xpose.msra.mxu0 0.0
    %4739 = vmatprep.subr.mxu0 0.0
    %4740 = vmatpush1.xpose.msra.mxu0 0.0
    %4741 = vmatprep.subr.mxu0 0.0
    %4742 = vmatpush1.xpose.msra.mxu0 0.0
    %4743 = vmatprep.subr.mxu0 0.0
    %4744 = vmatpush1.xpose.msra.mxu0 0.0
    %4745 = vmatprep.subr.mxu0 0.0
    %4746 = vmatpush1.xpose.msra.mxu0 0.0
    %4747 = vmatprep.subr.mxu0 0.0
    %4748 = vmatpush1.xpose.msra.mxu0 0.0
    %4749 = vmatprep.subr.mxu0 0.0
    %4750 = vmatpush1.xpose.msra.mxu0 0.0
    %4751 = vmatprep.subr.mxu0 0.0
    %4752 = vmatpush1.xpose.msra.mxu0 0.0
    %4753 = vmatprep.subr.mxu0 0.0
    %4754 = vmatpush1.xpose.msra.mxu0 0.0
    %4755 = vmatprep.subr.mxu0 0.0
    %4756 = vmatpush1.xpose.msra.mxu0 0.0
    %4757 = vmatprep.subr.mxu0 0.0
    %4758 = vmatpush1.xpose.msra.mxu0 0.0
    %4759 = vmatprep.subr.mxu0 0.0
    %4760 = vmatpush1.xpose.msra.mxu0 0.0
    %4761 = vmatprep.subr.mxu0 0.0
    %4762 = vmatpush1.xpose.msra.mxu0 0.0
    %4763 = vmatprep.subr.mxu0 0.0
    %4764 = vmatpush1.xpose.msra.mxu0 0.0
    %4765 = vmatprep.subr.mxu0 0.0
    %4766 = vmatpush1.xpose.msra.mxu0 0.0
    %4767 = vmatprep.subr.mxu0 0.0
    %4768 = vmatpush1.xpose.msra.mxu0 0.0
    %4769 = vmatprep.subr.mxu0 0.0
    %4770 = vmatpush1.xpose.msra.mxu0 0.0
    %4771 = vmatprep.mubr.f32.mxu0 0.0
    %4772 = vmatmul.mubr.f32.gmra.mrb[0].mxu0 %v4701
    %v4773 = vpop.f32.mrb[0].mxu0
    %v4774 = vadd.f32 0.0, %v4773
    %v4775 = vpop.f32.mrb[0].mxu0
    %4776 = vmatprep.mubr.f32.mxu0 0.0
    %4777 = vmatmul.mubr.f32.gmra.mrb[0].mxu0 %v4703
    %v4778 = vpop.f32.mrb[0].mxu0
    %v4779 = vadd.f32 0.0, %v4778
    %v4780 = vpop.f32.mrb[0].mxu0
    %4781 = vdwg.mxu0
    %v4782 = vmul.f32 %v4687, 0.35355338
    %v4783 = vmul.f32 %v4692, 0.35355338
    %v4784 = vmul.f32 %v4774, 0.35355338
    %v4785 = vmul.f32 %v4779, 0.35355338
    %v4786 = vsel %vm994, %v4782, -inf
    %4787 = vmax.xlane.f32.xlu0 %v4786
    %v4788 = vpop.xlane.xlu0 %4787
    %v4789 = vsel %vm998, %v4783, -inf
    %4790 = vmax.xlane.f32.xlu0 %v4789
    %v4791 = vpop.xlane.xlu0 %4790
    %v4792 = vsel %vm994, %v4784, -inf
    %4793 = vmax.xlane.f32.xlu0 %v4792
    %v4794 = vpop.xlane.xlu0 %4793
    %v4795 = vsel %vm998, %v4785, -inf
    %4796 = vmax.xlane.f32.xlu0 %v4795
    %v4797 = vpop.xlane.xlu0 %4796
    %v4798 = vsub.f32 %v4782, %v4788
    %v4799 = vsub.f32 %v4783, %v4791
    %v4800 = vsub.f32 %v4784, %v4794
    %v4801 = vsub.f32 %v4785, %v4797
    %v4802 = vmul.f32 %v4798, 1.442695
    %v4803 = vpow.pop %v4802
    %v4804 = vmul.f32 %v4799, 1.442695
    %v4805 = vpow.pop %v4804
    %v4806 = vmul.f32 %v4800, 1.442695
    %v4807 = vpow.pop %v4806
    %v4808 = vmul.f32 %v4801, 1.442695
    %v4809 = vpow.pop %v4808
    %v4810 = vsel %vm994, %v4803, 0.0
    %4811 = vadd.xlane.f32.xlu0 %v4810
    %v4812 = vpop.xlane.xlu0 %4811
    %v4813 = vsel %vm998, %v4805, 0.0
    %4814 = vadd.xlane.f32.xlu0 %v4813
    %v4815 = vpop.xlane.xlu0 %4814
    %v4816 = vsel %vm994, %v4807, 0.0
    %4817 = vadd.xlane.f32.xlu0 %v4816
    %v4818 = vpop.xlane.xlu0 %4817
    %v4819 = vsel %vm998, %v4809, 0.0
    %4820 = vadd.xlane.f32.xlu0 %v4819
    %v4821 = vpop.xlane.xlu0 %4820
    %v4822 = vrcp.pop %v4812
    %v4823 = vrcp.pop %v4815
    %v4824 = vrcp.pop %v4818
    %v4825 = vrcp.pop %v4821
    %v4826 = vmul.f32 %v4803, %v4822
    %v4827 = vmul.f32 %v4805, %v4823
    %v4828 = vmul.f32 %v4807, %v4824
    %v4829 = vmul.f32 %v4809, %v4825
    %4830 = vrot.lane.b32.xlu0 %v3437, 72
    %v4831 = vpop.permute.xlu0 %4830
    %v4833 = vsel %vm994, %v4826, 0
    %v4836 = vsel %vm994, %v4827, 0
    %v4838 = vsel %vm1048, %v4831, 0
    %4840 = vmatprep.subr.mxu0 0.0
    %4841 = vmatpush1.msra.mxu0 %v4838
    %4842 = vmatprep.subr.mxu0 0.0
    %4843 = vmatpush1.msra.mxu0 0.0
    %4844 = vmatprep.subr.mxu0 0.0
    %4845 = vmatpush1.msra.mxu0 0.0
    %4846 = vmatprep.subr.mxu0 0.0
    %4847 = vmatpush1.msra.mxu0 0.0
    %4848 = vmatprep.subr.mxu0 0.0
    %4849 = vmatpush1.msra.mxu0 0.0
    %4850 = vmatprep.subr.mxu0 0.0
    %4851 = vmatpush1.msra.mxu0 0.0
    %4852 = vmatprep.subr.mxu0 0.0
    %4853 = vmatpush1.msra.mxu0 0.0
    %4854 = vmatprep.subr.mxu0 0.0
    %4855 = vmatpush1.msra.mxu0 0.0
    %4856 = vmatprep.subr.mxu0 0.0
    %4857 = vmatpush1.msra.mxu0 0.0
    %4858 = vmatprep.subr.mxu0 0.0
    %4859 = vmatpush1.msra.mxu0 0.0
    %4860 = vmatprep.subr.mxu0 0.0
    %4861 = vmatpush1.msra.mxu0 0.0
    %4862 = vmatprep.subr.mxu0 0.0
    %4863 = vmatpush1.msra.mxu0 0.0
    %4864 = vmatprep.subr.mxu0 0.0
    %4865 = vmatpush1.msra.mxu0 0.0
    %4866 = vmatprep.subr.mxu0 0.0
    %4867 = vmatpush1.msra.mxu0 0.0
    %4868 = vmatprep.subr.mxu0 0.0
    %4869 = vmatpush1.msra.mxu0 0.0
    %4870 = vmatprep.subr.mxu0 0.0
    %4871 = vmatpush1.msra.mxu0 0.0
    %4872 = vmatprep.subr.mxu0 0.0
    %4873 = vmatpush1.msra.mxu0 0.0
    %4874 = vmatprep.subr.mxu0 0.0
    %4875 = vmatpush1.msra.mxu0 0.0
    %4876 = vmatprep.subr.mxu0 0.0
    %4877 = vmatpush1.msra.mxu0 0.0
    %4878 = vmatprep.subr.mxu0 0.0
    %4879 = vmatpush1.msra.mxu0 0.0
    %4880 = vmatprep.subr.mxu0 0.0
    %4881 = vmatpush1.msra.mxu0 0.0
    %4882 = vmatprep.subr.mxu0 0.0
    %4883 = vmatpush1.msra.mxu0 0.0
    %4884 = vmatprep.subr.mxu0 0.0
    %4885 = vmatpush1.msra.mxu0 0.0
    %4886 = vmatprep.subr.mxu0 0.0
    %4887 = vmatpush1.msra.mxu0 0.0
    %4888 = vmatprep.subr.mxu0 0.0
    %4889 = vmatpush1.msra.mxu0 0.0
    %4890 = vmatprep.subr.mxu0 0.0
    %4891 = vmatpush1.msra.mxu0 0.0
    %4892 = vmatprep.subr.mxu0 0.0
    %4893 = vmatpush1.msra.mxu0 0.0
    %4894 = vmatprep.subr.mxu0 0.0
    %4895 = vmatpush1.msra.mxu0 0.0
    %4896 = vmatprep.subr.mxu0 0.0
    %4897 = vmatpush1.msra.mxu0 0.0
    %4898 = vmatprep.subr.mxu0 0.0
    %4899 = vmatpush1.msra.mxu0 0.0
    %4900 = vmatprep.subr.mxu0 0.0
    %4901 = vmatpush1.msra.mxu0 0.0
    %4902 = vmatprep.subr.mxu0 0.0
    %4903 = vmatpush1.msra.mxu0 0.0
    %4904 = vmatprep.mubr.f32.mxu0 0.0
    %4905 = vmatmul.mubr.f32.gmra.mrb[0].mxu0 %v4833
    %v4906 = vpop.f32.mrb[0].mxu0
    %v4907 = vadd.f32 0.0, %v4906
    %v4908 = vpop.f32.mrb[0].mxu0
    %4909 = vmatprep.mubr.f32.mxu0 0.0
    %4910 = vmatmul.mubr.f32.gmra.mrb[0].mxu0 %v4836
    %v4911 = vpop.f32.mrb[0].mxu0
    %v4912 = vadd.f32 0.0, %v4911
    %v4913 = vpop.f32.mrb[0].mxu0
    %4914 = vdwg.mxu0
    %4915 = vrot.lane.b32.xlu0 %v3441, 72
    %v4916 = vpop.permute.xlu0 %4915
    %v4918 = vsel %vm994, %v4828, 0
    %v4921 = vsel %vm994, %v4829, 0
    %v4923 = vsel %vm1048, %v4916, 0
    %4925 = vmatprep.subr.mxu0 0.0
    %4926 = vmatpush1.msra.mxu0 %v4923
    %4927 = vmatprep.subr.mxu0 0.0
    %4928 = vmatpush1.msra.mxu0 0.0
    %4929 = vmatprep.subr.mxu0 0.0
    %4930 = vmatpush1.msra.mxu0 0.0
    %4931 = vmatprep.subr.mxu0 0.0
    %4932 = vmatpush1.msra.mxu0 0.0
    %4933 = vmatprep.subr.mxu0 0.0
    %4934 = vmatpush1.msra.mxu0 0.0
    %4935 = vmatprep.subr.mxu0 0.0
    %4936 = vmatpush1.msra.mxu0 0.0
    %4937 = vmatprep.subr.mxu0 0.0
    %4938 = vmatpush1.msra.mxu0 0.0
    %4939 = vmatprep.subr.mxu0 0.0
    %4940 = vmatpush1.msra.mxu0 0.0
    %4941 = vmatprep.subr.mxu0 0.0
    %4942 = vmatpush1.msra.mxu0 0.0
    %4943 = vmatprep.subr.mxu0 0.0
    %4944 = vmatpush1.msra.mxu0 0.0
    %4945 = vmatprep.subr.mxu0 0.0
    %4946 = vmatpush1.msra.mxu0 0.0
    %4947 = vmatprep.subr.mxu0 0.0
    %4948 = vmatpush1.msra.mxu0 0.0
    %4949 = vmatprep.subr.mxu0 0.0
    %4950 = vmatpush1.msra.mxu0 0.0
    %4951 = vmatprep.subr.mxu0 0.0
    %4952 = vmatpush1.msra.mxu0 0.0
    %4953 = vmatprep.subr.mxu0 0.0
    %4954 = vmatpush1.msra.mxu0 0.0
    %4955 = vmatprep.subr.mxu0 0.0
    %4956 = vmatpush1.msra.mxu0 0.0
    %4957 = vmatprep.subr.mxu0 0.0
    %4958 = vmatpush1.msra.mxu0 0.0
    %4959 = vmatprep.subr.mxu0 0.0
    %4960 = vmatpush1.msra.mxu0 0.0
    %4961 = vmatprep.subr.mxu0 0.0
    %4962 = vmatpush1.msra.mxu0 0.0
    %4963 = vmatprep.subr.mxu0 0.0
    %4964 = vmatpush1.msra.mxu0 0.0
    %4965 = vmatprep.subr.mxu0 0.0
    %4966 = vmatpush1.msra.mxu0 0.0
    %4967 = vmatprep.subr.mxu0 0.0
    %4968 = vmatpush1.msra.mxu0 0.0
    %4969 = vmatprep.subr.mxu0 0.0
    %4970 = vmatpush1.msra.mxu0 0.0
    %4971 = vmatprep.subr.mxu0 0.0
    %4972 = vmatpush1.msra.mxu0 0.0
    %4973 = vmatprep.subr.mxu0 0.0
    %4974 = vmatpush1.msra.mxu0 0.0
    %4975 = vmatprep.subr.mxu0 0.0
    %4976 = vmatpush1.msra.mxu0 0.0
    %4977 = vmatprep.subr.mxu0 0.0
    %4978 = vmatpush1.msra.mxu0 0.0
    %4979 = vmatprep.subr.mxu0 0.0
    %4980 = vmatpush1.msra.mxu0 0.0
    %4981 = vmatprep.subr.mxu0 0.0
    %4982 = vmatpush1.msra.mxu0 0.0
    %4983 = vmatprep.subr.mxu0 0.0
    %4984 = vmatpush1.msra.mxu0 0.0
    %4985 = vmatprep.subr.mxu0 0.0
    %4986 = vmatpush1.msra.mxu0 0.0
    %4987 = vmatprep.subr.mxu0 0.0
    %4988 = vmatpush1.msra.mxu0 0.0
    %4989 = vmatprep.mubr.f32.mxu0 0.0
    %4990 = vmatmul.mubr.f32.gmra.mrb[0].mxu0 %v4918
    %v4991 = vpop.f32.mrb[0].mxu0
    %v4992 = vadd.f32 0.0, %v4991
    %v4993 = vpop.f32.mrb[0].mxu0
    %4994 = vmatprep.mubr.f32.mxu0 0.0
    %4995 = vmatmul.mubr.f32.gmra.mrb[0].mxu0 %v4921
    %v4996 = vpop.f32.mrb[0].mxu0
    %v4997 = vadd.f32 0.0, %v4996
    %v4998 = vpop.f32.mrb[0].mxu0
    %4999 = vdwg.mxu0
    %5004 = vrot.lane.b32.xlu0 %v4123, 8
    %v5005 = vpop.permute.xlu0 %5004
    %5006 = vrot.lane.b32.xlu0 %v4128, 8
    %v5007 = vpop.permute.xlu0 %5006
    %5008 = vrot.lane.b32.xlu0 %v4208, 8
    %v5009 = vpop.permute.xlu0 %5008
    %5010 = vrot.lane.b32.xlu0 %v4213, 8
    %v5011 = vpop.permute.xlu0 %5010
    %5020 = vrot.lane.b32.xlu0 %v4515, 16
    %v5021 = vpop.permute.xlu0 %5020
    %5022 = vrot.lane.b32.xlu0 %v4520, 16
    %v5023 = vpop.permute.xlu0 %5022
    %5024 = vrot.lane.b32.xlu0 %v4600, 16
    %v5025 = vpop.permute.xlu0 %5024
    %5026 = vrot.lane.b32.xlu0 %v4605, 16
    %v5027 = vpop.permute.xlu0 %5026
    %5036 = vrot.lane.b32.xlu0 %v4907, 24
    %v5037 = vpop.permute.xlu0 %5036
    %5038 = vrot.lane.b32.xlu0 %v4912, 24
    %v5039 = vpop.permute.xlu0 %5038
    %5040 = vrot.lane.b32.xlu0 %v4992, 24
    %v5041 = vpop.permute.xlu0 %5040
    %5042 = vrot.lane.b32.xlu0 %v4997, 24
    %v5043 = vpop.permute.xlu0 %5042
    %v5048 = vsel %vm826, %v3731, %v5005
    %v5049 = vsel %vm826, %v3736, %v5007
    %v5050 = vsel %vm826, %v3816, %v5009
    %v5051 = vsel %vm826, %v3821, %v5011
    %v5052 = vsel %vm137, %v5048, %v5021
    %v5053 = vsel %vm137, %v5049, %v5023
    %v5054 = vsel %vm137, %v5050, %v5025
    %v5055 = vsel %vm137, %v5051, %v5027
    %v5056 = vsel %vm2443, %v5052, %v5037
    %v5057 = vsel %vm2443, %v5053, %v5039
    %v5058 = vsel %vm2443, %v5054, %v5041
    %v5059 = vsel %vm2443, %v5055, %v5043
    %v5064 = vcombine.high %v5056, %v5056
    %v5065 = vcombine.high %v5058, %v5058
    %s5066 = scalar_lea.vmem %s13, 32
    %v5067 = vld [vmem:[%s5066] sm:$0xff]
    %v5068 = vld [vmem:[%s5066 + $0x8] sm:$0xff]
    %v5069 = vld [vmem:[%s5066 + $0x10] sm:$0xff]
    %v5070 = vld [vmem:[%s5066 + $0x18] sm:$0xff]
    %s5071 = scalar_lea.vmem %s14, 1
    %v5072 = vld [vmem:[%s5071] sm:$0x1]
    %v5074 = vlaneseq
    %v5075 = vshrl.u32 %v5074, 7
    %v5076 = vsub.s32 0, %v5075
    %v5077 = vrot.slane %v5072, %v5076
    %v5079 = vcombine.low %v5056, %v5064
    %v5080 = vcombine.low %v5057, %v5058
    %v5081 = vcombine.low %v5065, %v5059
    %v5082 = vsel %vm327, %v5079, 0
    %v5084 = vsel %vm327, %v5080, 0
    %v5086 = vsel %vm327, %v5081, 0
    %5088 = vmatprep.subr.mxu0 0.0
    %5089 = vmatpush1.msra.mxu0 %v5067
    %5090 = vmatprep.subr.mxu0 0.0
    %5091 = vmatpush1.msra.mxu0 %v5068
    %5092 = vmatprep.subr.mxu0 0.0
    %5093 = vmatpush1.msra.mxu0 %v5069
    %5094 = vmatprep.subr.mxu0 0.0
    %5095 = vmatpush1.msra.mxu0 %v5070
    %5096 = vmatprep.subr.mxu0 0.0
    %5097 = vmatpush1.msra.mxu0 0.0
    %5098 = vmatprep.subr.mxu0 0.0
    %5099 = vmatpush1.msra.mxu0 0.0
    %5100 = vmatprep.subr.mxu0 0.0
    %5101 = vmatpush1.msra.mxu0 0.0
    %5102 = vmatprep.subr.mxu0 0.0
    %5103 = vmatpush1.msra.mxu0 0.0
    %5104 = vmatprep.subr.mxu0 0.0
    %5105 = vmatpush1.msra.mxu0 0.0
    %5106 = vmatprep.subr.mxu0 0.0
    %5107 = vmatpush1.msra.mxu0 0.0
    %5108 = vmatprep.subr.mxu0 0.0
    %5109 = vmatpush1.msra.mxu0 0.0
    %5110 = vmatprep.subr.mxu0 0.0
    %5111 = vmatpush1.msra.mxu0 0.0
    %5112 = vmatprep.subr.mxu0 0.0
    %5113 = vmatpush1.msra.mxu0 0.0
    %5114 = vmatprep.subr.mxu0 0.0
    %5115 = vmatpush1.msra.mxu0 0.0
    %5116 = vmatprep.subr.mxu0 0.0
    %5117 = vmatpush1.msra.mxu0 0.0
    %5118 = vmatprep.subr.mxu0 0.0
    %5119 = vmatpush1.msra.mxu0 0.0
    %5120 = vmatprep.subr.mxu0 0.0
    %5121 = vmatpush1.msra.mxu0 0.0
    %5122 = vmatprep.subr.mxu0 0.0
    %5123 = vmatpush1.msra.mxu0 0.0
    %5124 = vmatprep.subr.mxu0 0.0
    %5125 = vmatpush1.msra.mxu0 0.0
    %5126 = vmatprep.subr.mxu0 0.0
    %5127 = vmatpush1.msra.mxu0 0.0
    %5128 = vmatprep.subr.mxu0 0.0
    %5129 = vmatpush1.msra.mxu0 0.0
    %5130 = vmatprep.subr.mxu0 0.0
    %5131 = vmatpush1.msra.mxu0 0.0
    %5132 = vmatprep.subr.mxu0 0.0
    %5133 = vmatpush1.msra.mxu0 0.0
    %5134 = vmatprep.subr.mxu0 0.0
    %5135 = vmatpush1.msra.mxu0 0.0
    %5136 = vmatprep.subr.mxu0 0.0
    %5137 = vmatpush1.msra.mxu0 0.0
    %5138 = vmatprep.subr.mxu0 0.0
    %5139 = vmatpush1.msra.mxu0 0.0
    %5140 = vmatprep.subr.mxu0 0.0
    %5141 = vmatpush1.msra.mxu0 0.0
    %5142 = vmatprep.subr.mxu0 0.0
    %5143 = vmatpush1.msra.mxu0 0.0
    %5144 = vmatprep.subr.mxu0 0.0
    %5145 = vmatpush1.msra.mxu0 0.0
    %5146 = vmatprep.subr.mxu0 0.0
    %5147 = vmatpush1.msra.mxu0 0.0
    %5148 = vmatprep.subr.mxu0 0.0
    %5149 = vmatpush1.msra.mxu0 0.0
    %5150 = vmatprep.subr.mxu0 0.0
    %5151 = vmatpush1.msra.mxu0 0.0
    %5152 = vmatprep.mubr.f32.mxu0 0.0
    %5153 = vmatmul.mubr.f32.gmra.mrb[0].mxu0 %v5082
    %v5154 = vpop.f32.mrb[0].mxu0
    %v5155 = vadd.f32 %v5077, %v5154
    %v5156 = vpop.f32.mrb[0].mxu0
    %5157 = vmatprep.mubr.f32.mxu0 0.0
    %5158 = vmatmul.mubr.f32.gmra.mrb[0].mxu0 %v5084
    %v5159 = vpop.f32.mrb[0].mxu0
    %v5160 = vadd.f32 %v5077, %v5159
    %v5161 = vpop.f32.mrb[0].mxu0
    %5162 = vmatprep.mubr.f32.mxu0 0.0
    %5163 = vmatmul.mubr.f32.gmra.mrb[0].mxu0 %v5086
    %v5164 = vpop.f32.mrb[0].mxu0
    %v5165 = vadd.f32 %v5077, %v5164
    %v5166 = vpop.f32.mrb[0].mxu0
    %5167 = vdwg.mxu0
    %v5171 = vcombine.high %v5155, %v5155
    %v5172 = vcombine.high %v5160, %v5160
    %v5173 = vcombine.high %v5165, %v5165
    %v5177 = vadd.f32 %v3024, %v5155
    %v5178 = vadd.f32 %v3025, %v5171
    %v5179 = vadd.f32 %v3026, %v5160
    %v5180 = vadd.f32 %v3027, %v5172
    %v5181 = vadd.f32 %v3028, %v5165
    %v5182 = vadd.f32 %v3029, %v5173
    %s5183 = scalar_lea.vmem %s15, 1
    %v5184 = vld [vmem:[%s5183] sm:$0x1]
    %s5185 = scalar_lea.vmem %s16, 1
    %v5186 = vld [vmem:[%s5185] sm:$0x1]
    %v5193 = vcombine.low %v5177, %v5178
    %v5194 = vcombine.low %v5179, %v5180
    %v5195 = vcombine.low %v5181, %v5182
    %v5199 = vsel %vm327, %v5193, 0.0
    %5200 = vadd.xlane.f32.xlu0 %v5199
    %v5201 = vpop.xlane.xlu0 %5200
    %v5202 = vsel %vm327, %v5194, 0.0
    %5203 = vadd.xlane.f32.xlu0 %v5202
    %v5204 = vpop.xlane.xlu0 %5203
    %v5205 = vsel %vm327, %v5195, 0.0
    %5206 = vadd.xlane.f32.xlu0 %v5205
    %v5207 = vpop.xlane.xlu0 %5206
    %v5208 = vmul.f32 %v5201, %v443
    %v5209 = vmul.f32 %v5204, %v443
    %v5210 = vmul.f32 %v5207, %v443
    %v5215 = vunpack.c.l.s4 839922192
    %v5216 = vunpack.c.0.s8 %v5215
    %v5217 = vlaneseq
    %v5218 = vshrl.u32 %v5217, 7
    %v5219 = vsub.s32 %v5216, %v5218
    %v5220 = vrot.slane %v5208, %v5219
    %v5222 = vunpack.c.l.s4 1985246804
    %v5223 = vunpack.c.0.s8 %v5222
    %v5224 = vlaneseq
    %v5225 = vshrl.u32 %v5224, 7
    %v5226 = vsub.s32 %v5223, %v5225
    %v5227 = vrot.slane %v5208, %v5226
    %v5229 = vunpack.c.l.s4 839922192
    %v5230 = vunpack.c.0.s8 %v5229
    %v5231 = vlaneseq
    %v5232 = vshrl.u32 %v5231, 7
    %v5233 = vsub.s32 %v5230, %v5232
    %v5234 = vrot.slane %v5209, %v5233
    %v5236 = vunpack.c.l.s4 1985246804
    %v5237 = vunpack.c.0.s8 %v5236
    %v5238 = vlaneseq
    %v5239 = vshrl.u32 %v5238, 7
    %v5240 = vsub.s32 %v5237, %v5239
    %v5241 = vrot.slane %v5209, %v5240
    %v5243 = vunpack.c.l.s4 839922192
    %v5244 = vunpack.c.0.s8 %v5243
    %v5245 = vlaneseq
    %v5246 = vshrl.u32 %v5245, 7
    %v5247 = vsub.s32 %v5244, %v5246
    %v5248 = vrot.slane %v5210, %v5247
    %v5250 = vunpack.c.l.s4 1985246804
    %v5251 = vunpack.c.0.s8 %v5250
    %v5252 = vlaneseq
    %v5253 = vshrl.u32 %v5252, 7
    %v5254 = vsub.s32 %v5251, %v5253
    %v5255 = vrot.slane %v5210, %v5254
    %v5262 = vsub.f32 %v5177, %v5220
    %v5263 = vsub.f32 %v5178, %v5227
    %v5264 = vsub.f32 %v5179, %v5234
    %v5265 = vsub.f32 %v5180, %v5241
    %v5266 = vsub.f32 %v5181, %v5248
    %v5267 = vsub.f32 %v5182, %v5255
    %v5268 = vmul.f32 %v5262, %v5262
    %v5269 = vmul.f32 %v5263, %v5263
    %v5270 = vmul.f32 %v5264, %v5264
    %v5271 = vmul.f32 %v5265, %v5265
    %v5272 = vmul.f32 %v5266, %v5266
    %v5273 = vmul.f32 %v5267, %v5267
    %v5280 = vcombine.low %v5268, %v5269
    %v5281 = vcombine.low %v5270, %v5271
    %v5282 = vcombine.low %v5272, %v5273
    %v5286 = vsel %vm327, %v5280, 0.0
    %5287 = vadd.xlane.f32.xlu0 %v5286
    %v5288 = vpop.xlane.xlu0 %5287
    %v5289 = vsel %vm327, %v5281, 0.0
    %5290 = vadd.xlane.f32.xlu0 %v5289
    %v5291 = vpop.xlane.xlu0 %5290
    %v5292 = vsel %vm327, %v5282, 0.0
    %5293 = vadd.xlane.f32.xlu0 %v5292
    %v5294 = vpop.xlane.xlu0 %5293
    %v5295 = vmul.f32 %v5288, %v443
    %v5296 = vmul.f32 %v5291, %v443
    %v5297 = vmul.f32 %v5294, %v443
    %v5298 = vadd.f32 %v5295, 1e-05
    %v5299 = vadd.f32 %v5296, 1e-05
    %v5300 = vadd.f32 %v5297, 1e-05
    %v5301 = vrsqrt.pop %v5298
    %v5302 = vrsqrt.pop %v5299
    %v5303 = vrsqrt.pop %v5300
    %v5308 = vunpack.c.l.s4 839922192
    %v5309 = vunpack.c.0.s8 %v5308
    %v5310 = vlaneseq
    %v5311 = vshrl.u32 %v5310, 7
    %v5312 = vsub.s32 %v5309, %v5311
    %v5313 = vrot.slane %v5301, %v5312
    %v5315 = vunpack.c.l.s4 1985246804
    %v5316 = vunpack.c.0.s8 %v5315
    %v5317 = vlaneseq
    %v5318 = vshrl.u32 %v5317, 7
    %v5319 = vsub.s32 %v5316, %v5318
    %v5320 = vrot.slane %v5301, %v5319
    %v5322 = vunpack.c.l.s4 839922192
    %v5323 = vunpack.c.0.s8 %v5322
    %v5324 = vlaneseq
    %v5325 = vshrl.u32 %v5324, 7
    %v5326 = vsub.s32 %v5323, %v5325
    %v5327 = vrot.slane %v5302, %v5326
    %v5329 = vunpack.c.l.s4 1985246804
    %v5330 = vunpack.c.0.s8 %v5329
    %v5331 = vlaneseq
    %v5332 = vshrl.u32 %v5331, 7
    %v5333 = vsub.s32 %v5330, %v5332
    %v5334 = vrot.slane %v5302, %v5333
    %v5336 = vunpack.c.l.s4 839922192
    %v5337 = vunpack.c.0.s8 %v5336
    %v5338 = vlaneseq
    %v5339 = vshrl.u32 %v5338, 7
    %v5340 = vsub.s32 %v5337, %v5339
    %v5341 = vrot.slane %v5303, %v5340
    %v5343 = vunpack.c.l.s4 1985246804
    %v5344 = vunpack.c.0.s8 %v5343
    %v5345 = vlaneseq
    %v5346 = vshrl.u32 %v5345, 7
    %v5347 = vsub.s32 %v5344, %v5346
    %v5348 = vrot.slane %v5303, %v5347
    %v5355 = vmul.f32 %v5262, %v5313
    %v5356 = vmul.f32 %v5263, %v5320
    %v5357 = vmul.f32 %v5264, %v5327
    %v5358 = vmul.f32 %v5265, %v5334
    %v5359 = vmul.f32 %v5266, %v5341
    %v5360 = vmul.f32 %v5267, %v5348
    %v5362 = vlaneseq
    %v5363 = vshrl.u32 %v5362, 7
    %v5364 = vsub.s32 0, %v5363
    %v5365 = vrot.slane %v5184, %v5364
    %v5367 = vcombine.high %v5365, %v5365
    %v5369 = vmul.f32 %v5355, %v5365
    %v5370 = vmul.f32 %v5356, %v5367
    %v5371 = vmul.f32 %v5357, %v5365
    %v5372 = vmul.f32 %v5358, %v5367
    %v5373 = vmul.f32 %v5359, %v5365
    %v5374 = vmul.f32 %v5360, %v5367
    %v5376 = vlaneseq
    %v5377 = vshrl.u32 %v5376, 7
    %v5378 = vsub.s32 0, %v5377
    %v5379 = vrot.slane %v5186, %v5378
    %v5381 = vcombine.high %v5379, %v5379
    %v5383 = vadd.f32 %v5369, %v5379
    %v5384 = vadd.f32 %v5370, %v5381
    %v5385 = vadd.f32 %v5371, %v5379
    %v5386 = vadd.f32 %v5372, %v5381
    %v5387 = vadd.f32 %v5373, %v5379
    %v5388 = vadd.f32 %v5374, %v5381
    %s5389 = scalar_lea.vmem %s17, 32
    %v5390 = vld [vmem:[%s5389] sm:$0xff]
    %v5391 = vld [vmem:[%s5389 + $0x8] sm:$0xff]
    %v5392 = vld [vmem:[%s5389 + $0x10] sm:$0xff]
    %v5393 = vld [vmem:[%s5389 + $0x18] sm:$0xff]
    %s5394 = scalar_lea.vmem %s18, 1
    %v5395 = vld [vmem:[%s5394] sm:$0x1]
    %v5397 = vlaneseq
    %v5398 = vshrl.u32 %v5397, 7
    %v5399 = vsub.s32 0, %v5398
    %v5400 = vrot.slane %v5395, %v5399
    %v5408 = vcombine.low %v5383, %v5384
    %v5409 = vcombine.low %v5385, %v5386
    %v5410 = vcombine.low %v5387, %v5388
    %v5411 = vsel %vm327, %v5408, 0
    %v5413 = vsel %vm327, %v5409, 0
    %v5415 = vsel %vm327, %v5410, 0
    %5417 = vmatprep.subr.mxu0 0.0
    %5418 = vmatpush1.msra.mxu0 %v5390
    %5419 = vmatprep.subr.mxu0 0.0
    %5420 = vmatpush1.msra.mxu0 %v5391
    %5421 = vmatprep.subr.mxu0 0.0
    %5422 = vmatpush1.msra.mxu0 %v5392
    %5423 = vmatprep.subr.mxu0 0.0
    %5424 = vmatpush1.msra.mxu0 %v5393
    %5425 = vmatprep.subr.mxu0 0.0
    %5426 = vmatpush1.msra.mxu0 0.0
    %5427 = vmatprep.subr.mxu0 0.0
    %5428 = vmatpush1.msra.mxu0 0.0
    %5429 = vmatprep.subr.mxu0 0.0
    %5430 = vmatpush1.msra.mxu0 0.0
    %5431 = vmatprep.subr.mxu0 0.0
    %5432 = vmatpush1.msra.mxu0 0.0
    %5433 = vmatprep.subr.mxu0 0.0
    %5434 = vmatpush1.msra.mxu0 0.0
    %5435 = vmatprep.subr.mxu0 0.0
    %5436 = vmatpush1.msra.mxu0 0.0
    %5437 = vmatprep.subr.mxu0 0.0
    %5438 = vmatpush1.msra.mxu0 0.0
    %5439 = vmatprep.subr.mxu0 0.0
    %5440 = vmatpush1.msra.mxu0 0.0
    %5441 = vmatprep.subr.mxu0 0.0
    %5442 = vmatpush1.msra.mxu0 0.0
    %5443 = vmatprep.subr.mxu0 0.0
    %5444 = vmatpush1.msra.mxu0 0.0
    %5445 = vmatprep.subr.mxu0 0.0
    %5446 = vmatpush1.msra.mxu0 0.0
    %5447 = vmatprep.subr.mxu0 0.0
    %5448 = vmatpush1.msra.mxu0 0.0
    %5449 = vmatprep.subr.mxu0 0.0
    %5450 = vmatpush1.msra.mxu0 0.0
    %5451 = vmatprep.subr.mxu0 0.0
    %5452 = vmatpush1.msra.mxu0 0.0
    %5453 = vmatprep.subr.mxu0 0.0
    %5454 = vmatpush1.msra.mxu0 0.0
    %5455 = vmatprep.subr.mxu0 0.0
    %5456 = vmatpush1.msra.mxu0 0.0
    %5457 = vmatprep.subr.mxu0 0.0
    %5458 = vmatpush1.msra.mxu0 0.0
    %5459 = vmatprep.subr.mxu0 0.0
    %5460 = vmatpush1.msra.mxu0 0.0
    %5461 = vmatprep.subr.mxu0 0.0
    %5462 = vmatpush1.msra.mxu0 0.0
    %5463 = vmatprep.subr.mxu0 0.0
    %5464 = vmatpush1.msra.mxu0 0.0
    %5465 = vmatprep.subr.mxu0 0.0
    %5466 = vmatpush1.msra.mxu0 0.0
    %5467 = vmatprep.subr.mxu0 0.0
    %5468 = vmatpush1.msra.mxu0 0.0
    %5469 = vmatprep.subr.mxu0 0.0
    %5470 = vmatpush1.msra.mxu0 0.0
    %5471 = vmatprep.subr.mxu0 0.0
    %5472 = vmatpush1.msra.mxu0 0.0
    %5473 = vmatprep.subr.mxu0 0.0
    %5474 = vmatpush1.msra.mxu0 0.0
    %5475 = vmatprep.subr.mxu0 0.0
    %5476 = vmatpush1.msra.mxu0 0.0
    %5477 = vmatprep.subr.mxu0 0.0
    %5478 = vmatpush1.msra.mxu0 0.0
    %5479 = vmatprep.subr.mxu0 0.0
    %5480 = vmatpush1.msra.mxu0 0.0
    %5481 = vmatprep.mubr.f32.mxu0 0.0
    %5482 = vmatmul.mubr.f32.gmra.mrb[0].mxu0 %v5411
    %v5483 = vpop.f32.mrb[0].mxu0
    %v5484 = vadd.f32 %v5400, %v5483
    %v5485 = vpop.f32.mrb[0].mxu0
    %5486 = vmatprep.mubr.f32.mxu0 0.0
    %5487 = vmatmul.mubr.f32.gmra.mrb[0].mxu0 %v5413
    %v5488 = vpop.f32.mrb[0].mxu0
    %v5489 = vadd.f32 %v5400, %v5488
    %v5490 = vpop.f32.mrb[0].mxu0
    %5491 = vmatprep.mubr.f32.mxu0 0.0
    %5492 = vmatmul.mubr.f32.gmra.mrb[0].mxu0 %v5415
    %v5493 = vpop.f32.mrb[0].mxu0
    %v5494 = vadd.f32 %v5400, %v5493
    %v5495 = vpop.f32.mrb[0].mxu0
    %5496 = vdwg.mxu0
    %v5497 = vmul.f32 %v5484, %v5484
    %v5498 = vmul.f32 %v5489, %v5489
    %v5499 = vmul.f32 %v5494, %v5494
    %v5500 = vmul.f32 %v5484, %v5497
    %v5501 = vmul.f32 %v5489, %v5498
    %v5502 = vmul.f32 %v5494, %v5499
    %v5503 = vmul.f32 %v5500, 0.044715
    %v5504 = vmul.f32 %v5501, 0.044715
    %v5505 = vmul.f32 %v5502, 0.044715
    %v5506 = vadd.f32 %v5484, %v5503
    %v5507 = vadd.f32 %v5489, %v5504
    %v5508 = vadd.f32 %v5494, %v5505
    %v5509 = vmul.f32 %v5506, 0.7978846
    %v5510 = vmul.f32 %v5507, 0.7978846
    %v5511 = vmul.f32 %v5508, 0.7978846
    %v5512 = vtanh.pop %v5509
    %v5513 = vtanh.pop %v5510
    %v5514 = vtanh.pop %v5511
    %v5515 = vadd.f32 %v5512, 1.0
    %v5516 = vadd.f32 %v5513, 1.0
    %v5517 = vadd.f32 %v5514, 1.0
    %v5518 = vmul.f32 %v5515, 0.5
    %v5519 = vmul.f32 %v5516, 0.5
    %v5520 = vmul.f32 %v5517, 0.5
    %v5521 = vmul.f32 %v5484, %v5518
    %v5522 = vmul.f32 %v5489, %v5519
    %v5523 = vmul.f32 %v5494, %v5520
    %s5524 = scalar_lea.vmem %s19, 128
    %v5525 = vld [vmem:[%s5524] sm:$0xff]
    %v5526 = vld [vmem:[%s5524 + $0x8] sm:$0xff]
    %v5527 = vld [vmem:[%s5524 + $0x10] sm:$0xff]
    %v5528 = vld [vmem:[%s5524 + $0x18] sm:$0xff]
    %v5529 = vld [vmem:[%s5524 + $0x20] sm:$0xff]
    %v5530 = vld [vmem:[%s5524 + $0x28] sm:$0xff]
    %v5531 = vld [vmem:[%s5524 + $0x30] sm:$0xff]
    %v5532 = vld [vmem:[%s5524 + $0x38] sm:$0xff]
    %v5533 = vld [vmem:[%s5524 + $0x40] sm:$0xff]
    %v5534 = vld [vmem:[%s5524 + $0x48] sm:$0xff]
    %v5535 = vld [vmem:[%s5524 + $0x50] sm:$0xff]
    %v5536 = vld [vmem:[%s5524 + $0x58] sm:$0xff]
    %v5537 = vld [vmem:[%s5524 + $0x60] sm:$0xff]
    %v5538 = vld [vmem:[%s5524 + $0x68] sm:$0xff]
    %v5539 = vld [vmem:[%s5524 + $0x70] sm:$0xff]
    %v5540 = vld [vmem:[%s5524 + $0x78] sm:$0xff]
    %s5541 = scalar_lea.vmem %s20, 1
    %v5542 = vld [vmem:[%s5541] sm:$0x1]
    %v5544 = vlaneseq
    %v5545 = vshrl.u32 %v5544, 7
    %v5546 = vsub.s32 0, %v5545
    %v5547 = vrot.slane %v5542, %v5546
    %5549 = vmatprep.subr.mxu0 0.0
    %5550 = vmatpush1.msra.mxu0 %v5525
    %5551 = vmatprep.subr.mxu0 0.0
    %5552 = vmatpush1.msra.mxu0 %v5526
    %5553 = vmatprep.subr.mxu0 0.0
    %5554 = vmatpush1.msra.mxu0 %v5527
    %5555 = vmatprep.subr.mxu0 0.0
    %5556 = vmatpush1.msra.mxu0 %v5528
    %5557 = vmatprep.subr.mxu0 0.0
    %5558 = vmatpush1.msra.mxu0 %v5529
    %5559 = vmatprep.subr.mxu0 0.0
    %5560 = vmatpush1.msra.mxu0 %v5530
    %5561 = vmatprep.subr.mxu0 0.0
    %5562 = vmatpush1.msra.mxu0 %v5531
    %5563 = vmatprep.subr.mxu0 0.0
    %5564 = vmatpush1.msra.mxu0 %v5532
    %5565 = vmatprep.subr.mxu0 0.0
    %5566 = vmatpush1.msra.mxu0 %v5533
    %5567 = vmatprep.subr.mxu0 0.0
    %5568 = vmatpush1.msra.mxu0 %v5534
    %5569 = vmatprep.subr.mxu0 0.0
    %5570 = vmatpush1.msra.mxu0 %v5535
    %5571 = vmatprep.subr.mxu0 0.0
    %5572 = vmatpush1.msra.mxu0 %v5536
    %5573 = vmatprep.subr.mxu0 0.0
    %5574 = vmatpush1.msra.mxu0 %v5537
    %5575 = vmatprep.subr.mxu0 0.0
    %5576 = vmatpush1.msra.mxu0 %v5538
    %5577 = vmatprep.subr.mxu0 0.0
    %5578 = vmatpush1.msra.mxu0 %v5539
    %5579 = vmatprep.subr.mxu0 0.0
    %5580 = vmatpush1.msra.mxu0 %v5540
    %5581 = vmatprep.subr.mxu0 0.0
    %5582 = vmatpush1.msra.mxu0 0.0
    %5583 = vmatprep.subr.mxu0 0.0
    %5584 = vmatpush1.msra.mxu0 0.0
    %5585 = vmatprep.subr.mxu0 0.0
    %5586 = vmatpush1.msra.mxu0 0.0
    %5587 = vmatprep.subr.mxu0 0.0
    %5588 = vmatpush1.msra.mxu0 0.0
    %5589 = vmatprep.subr.mxu0 0.0
    %5590 = vmatpush1.msra.mxu0 0.0
    %5591 = vmatprep.subr.mxu0 0.0
    %5592 = vmatpush1.msra.mxu0 0.0
    %5593 = vmatprep.subr.mxu0 0.0
    %5594 = vmatpush1.msra.mxu0 0.0
    %5595 = vmatprep.subr.mxu0 0.0
    %5596 = vmatpush1.msra.mxu0 0.0
    %5597 = vmatprep.subr.mxu0 0.0
    %5598 = vmatpush1.msra.mxu0 0.0
    %5599 = vmatprep.subr.mxu0 0.0
    %5600 = vmatpush1.msra.mxu0 0.0
    %5601 = vmatprep.subr.mxu0 0.0
    %5602 = vmatpush1.msra.mxu0 0.0
    %5603 = vmatprep.subr.mxu0 0.0
    %5604 = vmatpush1.msra.mxu0 0.0
    %5605 = vmatprep.subr.mxu0 0.0
    %5606 = vmatpush1.msra.mxu0 0.0
    %5607 = vmatprep.subr.mxu0 0.0
    %5608 = vmatpush1.msra.mxu0 0.0
    %5609 = vmatprep.subr.mxu0 0.0
    %5610 = vmatpush1.msra.mxu0 0.0
    %5611 = vmatprep.subr.mxu0 0.0
    %5612 = vmatpush1.msra.mxu0 0.0
    %5613 = vmatprep.mubr.f32.mxu0 0.0
    %5614 = vmatmul.mubr.f32.gmra.mrb[0].mxu0 %v5521
    %v5615 = vpop.f32.mrb[0].mxu0
    %v5616 = vadd.f32 %v5547, %v5615
    %v5617 = vpop.f32.mrb[0].mxu0
    %5618 = vmatprep.mubr.f32.mxu0 0.0
    %5619 = vmatmul.mubr.f32.gmra.mrb[0].mxu0 %v5522
    %v5620 = vpop.f32.mrb[0].mxu0
    %v5621 = vadd.f32 %v5547, %v5620
    %v5622 = vpop.f32.mrb[0].mxu0
    %5623 = vmatprep.mubr.f32.mxu0 0.0
    %5624 = vmatmul.mubr.f32.gmra.mrb[0].mxu0 %v5523
    %v5625 = vpop.f32.mrb[0].mxu0
    %v5626 = vadd.f32 %v5547, %v5625
    %v5627 = vpop.f32.mrb[0].mxu0
    %5628 = vdwg.mxu0
    %v5632 = vcombine.high %v5616, %v5616
    %v5633 = vcombine.high %v5621, %v5621
    %v5634 = vcombine.high %v5626, %v5626
    %v5638 = vadd.f32 %v5177, %v5616
    %v5639 = vadd.f32 %v5178, %v5632
    %v5640 = vadd.f32 %v5179, %v5621
    %v5641 = vadd.f32 %v5180, %v5633
    %v5642 = vadd.f32 %v5181, %v5626
    %v5643 = vadd.f32 %v5182, %v5634
    %v5644 = vld [vmem:[%s21] sm:$0x1]
    %v5645 = vld [vmem:[%s22] sm:$0x1]
    %v5652 = vcombine.low %v5638, %v5639
    %v5653 = vcombine.low %v5640, %v5641
    %v5654 = vcombine.low %v5642, %v5643
    %v5658 = vsel %vm327, %v5652, 0.0
    %5659 = vadd.xlane.f32.xlu0 %v5658
    %v5660 = vpop.xlane.xlu0 %5659
    %v5661 = vsel %vm327, %v5653, 0.0
    %5662 = vadd.xlane.f32.xlu0 %v5661
    %v5663 = vpop.xlane.xlu0 %5662
    %v5664 = vsel %vm327, %v5654, 0.0
    %5665 = vadd.xlane.f32.xlu0 %v5664
    %v5666 = vpop.xlane.xlu0 %5665
    %v5667 = vmul.f32 %v5660, %v443
    %v5668 = vmul.f32 %v5663, %v443
    %v5669 = vmul.f32 %v5666, %v443
    %v5674 = vunpack.c.l.s4 839922192
    %v5675 = vunpack.c.0.s8 %v5674
    %v5676 = vlaneseq
    %v5677 = vshrl.u32 %v5676, 7
    %v5678 = vsub.s32 %v5675, %v5677
    %v5679 = vrot.slane %v5667, %v5678
    %v5681 = vunpack.c.l.s4 1985246804
    %v5682 = vunpack.c.0.s8 %v5681
    %v5683 = vlaneseq
    %v5684 = vshrl.u32 %v5683, 7
    %v5685 = vsub.s32 %v5682, %v5684
    %v5686 = vrot.slane %v5667, %v5685
    %v5688 = vunpack.c.l.s4 839922192
    %v5689 = vunpack.c.0.s8 %v5688
    %v5690 = vlaneseq
    %v5691 = vshrl.u32 %v5690, 7
    %v5692 = vsub.s32 %v5689, %v5691
    %v5693 = vrot.slane %v5668, %v5692
    %v5695 = vunpack.c.l.s4 1985246804
    %v5696 = vunpack.c.0.s8 %v5695
    %v5697 = vlaneseq
    %v5698 = vshrl.u32 %v5697, 7
    %v5699 = vsub.s32 %v5696, %v5698
    %v5700 = vrot.slane %v5668, %v5699
    %v5702 = vunpack.c.l.s4 839922192
    %v5703 = vunpack.c.0.s8 %v5702
    %v5704 = vlaneseq
    %v5705 = vshrl.u32 %v5704, 7
    %v5706 = vsub.s32 %v5703, %v5705
    %v5707 = vrot.slane %v5669, %v5706
    %v5709 = vunpack.c.l.s4 1985246804
    %v5710 = vunpack.c.0.s8 %v5709
    %v5711 = vlaneseq
    %v5712 = vshrl.u32 %v5711, 7
    %v5713 = vsub.s32 %v5710, %v5712
    %v5714 = vrot.slane %v5669, %v5713
    %v5721 = vsub.f32 %v5638, %v5679
    %v5722 = vsub.f32 %v5639, %v5686
    %v5723 = vsub.f32 %v5640, %v5693
    %v5724 = vsub.f32 %v5641, %v5700
    %v5725 = vsub.f32 %v5642, %v5707
    %v5726 = vsub.f32 %v5643, %v5714
    %v5727 = vmul.f32 %v5721, %v5721
    %v5728 = vmul.f32 %v5722, %v5722
    %v5729 = vmul.f32 %v5723, %v5723
    %v5730 = vmul.f32 %v5724, %v5724
    %v5731 = vmul.f32 %v5725, %v5725
    %v5732 = vmul.f32 %v5726, %v5726
    %v5739 = vcombine.low %v5727, %v5728
    %v5740 = vcombine.low %v5729, %v5730
    %v5741 = vcombine.low %v5731, %v5732
    %v5745 = vsel %vm327, %v5739, 0.0
    %5746 = vadd.xlane.f32.xlu0 %v5745
    %v5747 = vpop.xlane.xlu0 %5746
    %v5748 = vsel %vm327, %v5740, 0.0
    %5749 = vadd.xlane.f32.xlu0 %v5748
    %v5750 = vpop.xlane.xlu0 %5749
    %v5751 = vsel %vm327, %v5741, 0.0
    %5752 = vadd.xlane.f32.xlu0 %v5751
    %v5753 = vpop.xlane.xlu0 %5752
    %v5754 = vmul.f32 %v5747, %v443
    %v5755 = vmul.f32 %v5750, %v443
    %v5756 = vmul.f32 %v5753, %v443
    %v5757 = vadd.f32 %v5754, 1e-05
    %v5758 = vadd.f32 %v5755, 1e-05
    %v5759 = vadd.f32 %v5756, 1e-05
    %v5760 = vrsqrt.pop %v5757
    %v5761 = vrsqrt.pop %v5758
    %v5762 = vrsqrt.pop %v5759
    %v5767 = vunpack.c.l.s4 839922192
    %v5768 = vunpack.c.0.s8 %v5767
    %v5769 = vlaneseq
    %v5770 = vshrl.u32 %v5769, 7
    %v5771 = vsub.s32 %v5768, %v5770
    %v5772 = vrot.slane %v5760, %v5771
    %v5774 = vunpack.c.l.s4 1985246804
    %v5775 = vunpack.c.0.s8 %v5774
    %v5776 = vlaneseq
    %v5777 = vshrl.u32 %v5776, 7
    %v5778 = vsub.s32 %v5775, %v5777
    %v5779 = vrot.slane %v5760, %v5778
    %v5781 = vunpack.c.l.s4 839922192
    %v5782 = vunpack.c.0.s8 %v5781
    %v5783 = vlaneseq
    %v5784 = vshrl.u32 %v5783, 7
    %v5785 = vsub.s32 %v5782, %v5784
    %v5786 = vrot.slane %v5761, %v5785
    %v5788 = vunpack.c.l.s4 1985246804
    %v5789 = vunpack.c.0.s8 %v5788
    %v5790 = vlaneseq
    %v5791 = vshrl.u32 %v5790, 7
    %v5792 = vsub.s32 %v5789, %v5791
    %v5793 = vrot.slane %v5761, %v5792
    %v5795 = vunpack.c.l.s4 839922192
    %v5796 = vunpack.c.0.s8 %v5795
    %v5797 = vlaneseq
    %v5798 = vshrl.u32 %v5797, 7
    %v5799 = vsub.s32 %v5796, %v5798
    %v5800 = vrot.slane %v5762, %v5799
    %v5802 = vunpack.c.l.s4 1985246804
    %v5803 = vunpack.c.0.s8 %v5802
    %v5804 = vlaneseq
    %v5805 = vshrl.u32 %v5804, 7
    %v5806 = vsub.s32 %v5803, %v5805
    %v5807 = vrot.slane %v5762, %v5806
    %v5814 = vmul.f32 %v5721, %v5772
    %v5815 = vmul.f32 %v5722, %v5779
    %v5816 = vmul.f32 %v5723, %v5786
    %v5817 = vmul.f32 %v5724, %v5793
    %v5818 = vmul.f32 %v5725, %v5800
    %v5819 = vmul.f32 %v5726, %v5807
    %v5821 = vlaneseq
    %v5822 = vshrl.u32 %v5821, 7
    %v5823 = vsub.s32 0, %v5822
    %v5824 = vrot.slane %v5644, %v5823
    %v5826 = vcombine.high %v5824, %v5824
    %v5828 = vmul.f32 %v5814, %v5824
    %v5829 = vmul.f32 %v5815, %v5826
    %v5830 = vmul.f32 %v5816, %v5824
    %v5831 = vmul.f32 %v5817, %v5826
    %v5832 = vmul.f32 %v5818, %v5824
    %v5833 = vmul.f32 %v5819, %v5826
    %v5835 = vlaneseq
    %v5836 = vshrl.u32 %v5835, 7
    %v5837 = vsub.s32 0, %v5836
    %v5838 = vrot.slane %v5645, %v5837
    %v5840 = vcombine.high %v5838, %v5838
    %v5842 = vadd.f32 %v5828, %v5838
    %v5843 = vadd.f32 %v5829, %v5840
    %v5844 = vadd.f32 %v5830, %v5838
    %v5845 = vadd.f32 %v5831, %v5840
    %v5846 = vadd.f32 %v5832, %v5838
    %v5847 = vadd.f32 %v5833, %v5840
    %v5848 = vld [vmem:[%s23] sm:$0xff]
    %v5849 = vld [vmem:[%s23 + $0x8] sm:$0xff]
    %v5850 = vld [vmem:[%s23 + $0x10] sm:$0xff]
    %v5851 = vld [vmem:[%s23 + $0x18] sm:$0xff]
    %v5852 = vld [vmem:[%s24] sm:$0x1]
    %v5854 = vlaneseq
    %v5855 = vshrl.u32 %v5854, 7
    %v5856 = vsub.s32 0, %v5855
    %v5857 = vrot.slane %v5852, %v5856
    %v5865 = vcombine.low %v5842, %v5843
    %v5866 = vcombine.low %v5844, %v5845
    %v5867 = vcombine.low %v5846, %v5847
    %v5868 = vsel %vm327, %v5865, 0
    %v5870 = vsel %vm327, %v5866, 0
    %v5872 = vsel %vm327, %v5867, 0
    %5874 = vmatprep.subr.mxu0 0.0
    %5875 = vmatpush1.msra.mxu0 %v5848
    %5876 = vmatprep.subr.mxu0 0.0
    %5877 = vmatpush1.msra.mxu0 %v5849
    %5878 = vmatprep.subr.mxu0 0.0
    %5879 = vmatpush1.msra.mxu0 %v5850
    %5880 = vmatprep.subr.mxu0 0.0
    %5881 = vmatpush1.msra.mxu0 %v5851
    %5882 = vmatprep.subr.mxu0 0.0
    %5883 = vmatpush1.msra.mxu0 0.0
    %5884 = vmatprep.subr.mxu0 0.0
    %5885 = vmatpush1.msra.mxu0 0.0
    %5886 = vmatprep.subr.mxu0 0.0
    %5887 = vmatpush1.msra.mxu0 0.0
    %5888 = vmatprep.subr.mxu0 0.0
    %5889 = vmatpush1.msra.mxu0 0.0
    %5890 = vmatprep.subr.mxu0 0.0
    %5891 = vmatpush1.msra.mxu0 0.0
    %5892 = vmatprep.subr.mxu0 0.0
    %5893 = vmatpush1.msra.mxu0 0.0
    %5894 = vmatprep.subr.mxu0 0.0
    %5895 = vmatpush1.msra.mxu0 0.0
    %5896 = vmatprep.subr.mxu0 0.0
    %5897 = vmatpush1.msra.mxu0 0.0
    %5898 = vmatprep.subr.mxu0 0.0
    %5899 = vmatpush1.msra.mxu0 0.0
    %5900 = vmatprep.subr.mxu0 0.0
    %5901 = vmatpush1.msra.mxu0 0.0
    %5902 = vmatprep.subr.mxu0 0.0
    %5903 = vmatpush1.msra.mxu0 0.0
    %5904 = vmatprep.subr.mxu0 0.0
    %5905 = vmatpush1.msra.mxu0 0.0
    %5906 = vmatprep.subr.mxu0 0.0
    %5907 = vmatpush1.msra.mxu0 0.0
    %5908 = vmatprep.subr.mxu0 0.0
    %5909 = vmatpush1.msra.mxu0 0.0
    %5910 = vmatprep.subr.mxu0 0.0
    %5911 = vmatpush1.msra.mxu0 0.0
    %5912 = vmatprep.subr.mxu0 0.0
    %5913 = vmatpush1.msra.mxu0 0.0
    %5914 = vmatprep.subr.mxu0 0.0
    %5915 = vmatpush1.msra.mxu0 0.0
    %5916 = vmatprep.subr.mxu0 0.0
    %5917 = vmatpush1.msra.mxu0 0.0
    %5918 = vmatprep.subr.mxu0 0.0
    %5919 = vmatpush1.msra.mxu0 0.0
    %5920 = vmatprep.subr.mxu0 0.0
    %5921 = vmatpush1.msra.mxu0 0.0
    %5922 = vmatprep.subr.mxu0 0.0
    %5923 = vmatpush1.msra.mxu0 0.0
    %5924 = vmatprep.subr.mxu0 0.0
    %5925 = vmatpush1.msra.mxu0 0.0
    %5926 = vmatprep.subr.mxu0 0.0
    %5927 = vmatpush1.msra.mxu0 0.0
    %5928 = vmatprep.subr.mxu0 0.0
    %5929 = vmatpush1.msra.mxu0 0.0
    %5930 = vmatprep.subr.mxu0 0.0
    %5931 = vmatpush1.msra.mxu0 0.0
    %5932 = vmatprep.subr.mxu0 0.0
    %5933 = vmatpush1.msra.mxu0 0.0
    %5934 = vmatprep.subr.mxu0 0.0
    %5935 = vmatpush1.msra.mxu0 0.0
    %5936 = vmatprep.subr.mxu0 0.0
    %5937 = vmatpush1.msra.mxu0 0.0
    %5938 = vmatprep.mubr.f32.mxu0 0.0
    %5939 = vmatmul.mubr.f32.gmra.mrb[0].mxu0 %v5868
    %v5940 = vpop.f32.mrb[0].mxu0
    %v5941 = vadd.f32 %v5857, %v5940
    %v5942 = vpop.f32.mrb[0].mxu0
    %5943 = vmatprep.mubr.f32.mxu0 0.0
    %5944 = vmatmul.mubr.f32.gmra.mrb[0].mxu0 %v5870
    %v5945 = vpop.f32.mrb[0].mxu0
    %v5946 = vadd.f32 %v5857, %v5945
    %v5947 = vpop.f32.mrb[0].mxu0
    %5948 = vmatprep.mubr.f32.mxu0 0.0
    %5949 = vmatmul.mubr.f32.gmra.mrb[0].mxu0 %v5872
    %v5950 = vpop.f32.mrb[0].mxu0
    %v5951 = vadd.f32 %v5857, %v5950
    %v5952 = vpop.f32.mrb[0].mxu0
    %5953 = vdwg.mxu0
    %v5957 = vcombine.high %v5941, %v5941
    %v5958 = vcombine.high %v5946, %v5946
    %v5959 = vcombine.high %v5951, %v5951
    %5960 = vmatprep.subr.mxu0 0.0
    %5961 = vmatpush1.msra.mxu0 %v5848
    %5962 = vmatprep.subr.mxu0 0.0
    %5963 = vmatpush1.msra.mxu0 %v5849
    %5964 = vmatprep.subr.mxu0 0.0
    %5965 = vmatpush1.msra.mxu0 %v5850
    %5966 = vmatprep.subr.mxu0 0.0
    %5967 = vmatpush1.msra.mxu0 %v5851
    %5968 = vmatprep.subr.mxu0 0.0
    %5969 = vmatpush1.msra.mxu0 0.0
    %5970 = vmatprep.subr.mxu0 0.0
    %5971 = vmatpush1.msra.mxu0 0.0
    %5972 = vmatprep.subr.mxu0 0.0
    %5973 = vmatpush1.msra.mxu0 0.0
    %5974 = vmatprep.subr.mxu0 0.0
    %5975 = vmatpush1.msra.mxu0 0.0
    %5976 = vmatprep.subr.mxu0 0.0
    %5977 = vmatpush1.msra.mxu0 0.0
    %5978 = vmatprep.subr.mxu0 0.0
    %5979 = vmatpush1.msra.mxu0 0.0
    %5980 = vmatprep.subr.mxu0 0.0
    %5981 = vmatpush1.msra.mxu0 0.0
    %5982 = vmatprep.subr.mxu0 0.0
    %5983 = vmatpush1.msra.mxu0 0.0
    %5984 = vmatprep.subr.mxu0 0.0
    %5985 = vmatpush1.msra.mxu0 0.0
    %5986 = vmatprep.subr.mxu0 0.0
    %5987 = vmatpush1.msra.mxu0 0.0
    %5988 = vmatprep.subr.mxu0 0.0
    %5989 = vmatpush1.msra.mxu0 0.0
    %5990 = vmatprep.subr.mxu0 0.0
    %5991 = vmatpush1.msra.mxu0 0.0
    %5992 = vmatprep.subr.mxu0 0.0
    %5993 = vmatpush1.msra.mxu0 0.0
    %5994 = vmatprep.subr.mxu0 0.0
    %5995 = vmatpush1.msra.mxu0 0.0
    %5996 = vmatprep.subr.mxu0 0.0
    %5997 = vmatpush1.msra.mxu0 0.0
    %5998 = vmatprep.subr.mxu0 0.0
    %5999 = vmatpush1.msra.mxu0 0.0
    %6000 = vmatprep.subr.mxu0 0.0
    %6001 = vmatpush1.msra.mxu0 0.0
    %6002 = vmatprep.subr.mxu0 0.0
    %6003 = vmatpush1.msra.mxu0 0.0
    %6004 = vmatprep.subr.mxu0 0.0
    %6005 = vmatpush1.msra.mxu0 0.0
    %6006 = vmatprep.subr.mxu0 0.0
    %6007 = vmatpush1.msra.mxu0 0.0
    %6008 = vmatprep.subr.mxu0 0.0
    %6009 = vmatpush1.msra.mxu0 0.0
    %6010 = vmatprep.subr.mxu0 0.0
    %6011 = vmatpush1.msra.mxu0 0.0
    %6012 = vmatprep.subr.mxu0 0.0
    %6013 = vmatpush1.msra.mxu0 0.0
    %6014 = vmatprep.subr.mxu0 0.0
    %6015 = vmatpush1.msra.mxu0 0.0
    %6016 = vmatprep.subr.mxu0 0.0
    %6017 = vmatpush1.msra.mxu0 0.0
    %6018 = vmatprep.subr.mxu0 0.0
    %6019 = vmatpush1.msra.mxu0 0.0
    %6020 = vmatprep.subr.mxu0 0.0
    %6021 = vmatpush1.msra.mxu0 0.0
    %6022 = vmatprep.subr.mxu0 0.0
    %6023 = vmatpush1.msra.mxu0 0.0
    %6024 = vmatprep.mubr.f32.mxu0 0.0
    %6025 = vmatmul.mubr.f32.gmra.mrb[0].mxu0 %v3368
    %v6026 = vpop.f32.mrb[0].mxu0
    %v6027 = vadd.f32 %v5857, %v6026
    %v6028 = vpop.f32.mrb[0].mxu0
    %6029 = vdwg.mxu0
    %v6031 = vcombine.high %v6027, %v6027
    %v6032 = vld [vmem:[%s2] sm:$0x3]
    %v6033 = vlaneseq
    %v6034 = vshrl.u32 %v6033, 7
    %v6035 = vsub.s32 0, %v6034
    %v6036 = vrot.slane %v6032, %v6035
    %6038 = vbcast.lane.b32.xlu0 %v6036, 256
    %v6039 = vpop.permute.xlu0 %6038
    %s6041 = sor.u32 256, 8
    %6042 = vbcast.lane.b32.xlu0 %v6036, %s6041
    %v6043 = vpop.permute.xlu0 %6042
    %v6044 = vlaneseq
    %v6045 = vshrl.u32 %v6044, 7
    %v6046 = vsub.s32 1, %v6045
    %v6047 = vrot.slane %v6032, %v6046
    %6049 = vbcast.lane.b32.xlu0 %v6047, 256
    %v6050 = vpop.permute.xlu0 %6049
    %s6052 = sor.u32 256, 8
    %6053 = vbcast.lane.b32.xlu0 %v6047, %s6052
    %v6054 = vpop.permute.xlu0 %6053
    %vm6055 = vcmp.eq.s32.totalorder %v85, %v6039
    %vm6056 = vcmp.eq.s32.totalorder %v85, %v6043
    %vm6057 = vcmp.eq.s32.totalorder %v85, %v6050
    %vm6058 = vcmp.eq.s32.totalorder %v85, %v6054
    %v6059 = vsel %vm6055, 1.0, 0.0
    %v6060 = vsel %vm6056, 1.0, 0.0
    %v6061 = vsel %vm6057, 1.0, 0.0
    %v6062 = vsel %vm6058, 1.0, 0.0
    %6065 = vrot.lane.b32.xlu0 %v6059, 124
    %v6066 = vpop.permute.xlu0 %6065
    %6067 = vrot.lane.b32.xlu0 %v6060, 124
    %v6068 = vpop.permute.xlu0 %6067
    %v6069 = vcombine.low %v5941, %v5957
    %vm6071 = vcmask 97280
    %v6072 = vsel %vm6071, %v6066, 0
    %v6074 = vsel %vm6071, %v6068, 0
    %v6076 = vsel %vm1048, %v5946, 0
    %6078 = vmatprep.subr.mxu0 0.0
    %6079 = vmatpush1.msra.mxu0 %v6069
    %6080 = vmatprep.subr.mxu0 0.0
    %6081 = vmatpush1.msra.mxu0 %v6076
    %6082 = vmatprep.subr.mxu0 0.0
    %6083 = vmatpush1.msra.mxu0 0.0
    %6084 = vmatprep.subr.mxu0 0.0
    %6085 = vmatpush1.msra.mxu0 0.0
    %6086 = vmatprep.subr.mxu0 0.0
    %6087 = vmatpush1.msra.mxu0 0.0
    %6088 = vmatprep.subr.mxu0 0.0
    %6089 = vmatpush1.msra.mxu0 0.0
    %6090 = vmatprep.subr.mxu0 0.0
    %6091 = vmatpush1.msra.mxu0 0.0
    %6092 = vmatprep.subr.mxu0 0.0
    %6093 = vmatpush1.msra.mxu0 0.0
    %6094 = vmatprep.subr.mxu0 0.0
    %6095 = vmatpush1.msra.mxu0 0.0
    %6096 = vmatprep.subr.mxu0 0.0
    %6097 = vmatpush1.msra.mxu0 0.0
    %6098 = vmatprep.subr.mxu0 0.0
    %6099 = vmatpush1.msra.mxu0 0.0
    %6100 = vmatprep.subr.mxu0 0.0
    %6101 = vmatpush1.msra.mxu0 0.0
    %6102 = vmatprep.subr.mxu0 0.0
    %6103 = vmatpush1.msra.mxu0 0.0
    %6104 = vmatprep.subr.mxu0 0.0
    %6105 = vmatpush1.msra.mxu0 0.0
    %6106 = vmatprep.subr.mxu0 0.0
    %6107 = vmatpush1.msra.mxu0 0.0
    %6108 = vmatprep.subr.mxu0 0.0
    %6109 = vmatpush1.msra.mxu0 0.0
    %6110 = vmatprep.subr.mxu0 0.0
    %6111 = vmatpush1.msra.mxu0 0.0
    %6112 = vmatprep.subr.mxu0 0.0
    %6113 = vmatpush1.msra.mxu0 0.0
    %6114 = vmatprep.subr.mxu0 0.0
    %6115 = vmatpush1.msra.mxu0 0.0
    %6116 = vmatprep.subr.mxu0 0.0
    %6117 = vmatpush1.msra.mxu0 0.0
    %6118 = vmatprep.subr.mxu0 0.0
    %6119 = vmatpush1.msra.mxu0 0.0
    %6120 = vmatprep.subr.mxu0 0.0
    %6121 = vmatpush1.msra.mxu0 0.0
    %6122 = vmatprep.subr.mxu0 0.0
    %6123 = vmatpush1.msra.mxu0 0.0
    %6124 = vmatprep.subr.mxu0 0.0
    %6125 = vmatpush1.msra.mxu0 0.0
    %6126 = vmatprep.subr.mxu0 0.0
    %6127 = vmatpush1.msra.mxu0 0.0
    %6128 = vmatprep.subr.mxu0 0.0
    %6129 = vmatpush1.msra.mxu0 0.0
    %6130 = vmatprep.subr.mxu0 0.0
    %6131 = vmatpush1.msra.mxu0 0.0
    %6132 = vmatprep.subr.mxu0 0.0
    %6133 = vmatpush1.msra.mxu0 0.0
    %6134 = vmatprep.subr.mxu0 0.0
    %6135 = vmatpush1.msra.mxu0 0.0
    %6136 = vmatprep.subr.mxu0 0.0
    %6137 = vmatpush1.msra.mxu0 0.0
    %6138 = vmatprep.subr.mxu0 0.0
    %6139 = vmatpush1.msra.mxu0 0.0
    %6140 = vmatprep.subr.mxu0 0.0
    %6141 = vmatpush1.msra.mxu0 0.0
    %6142 = vmatprep.mubr.f32.mxu0 0.0
    %6143 = vmatmul.mubr.f32.gmra.mrb[0].mxu0 %v6072
    %v6144 = vpop.f32.mrb[0].mxu0
    %v6145 = vadd.f32 0.0, %v6144
    %v6146 = vpop.f32.mrb[0].mxu0
    %6147 = vmatprep.mubr.f32.mxu0 0.0
    %6148 = vmatmul.mubr.f32.gmra.mrb[0].mxu0 %v6074
    %v6149 = vpop.f32.mrb[0].mxu0
    %v6150 = vadd.f32 0.0, %v6149
    %v6151 = vpop.f32.mrb[0].mxu0
    %6152 = vdwg.mxu0
    %6155 = vrot.lane.b32.xlu0 %v6061, 124
    %v6156 = vpop.permute.xlu0 %6155
    %6157 = vrot.lane.b32.xlu0 %v6062, 124
    %v6158 = vpop.permute.xlu0 %6157
    %v6159 = vcombine.low %v5958, %v5951
    %v6161 = vsel %vm6071, %v6156, 0
    %v6163 = vsel %vm6071, %v6158, 0
    %v6165 = vsel %vm1048, %v5959, 0
    %6167 = vmatprep.subr.mxu0 0.0
    %6168 = vmatpush1.msra.mxu0 %v6159
    %6169 = vmatprep.subr.mxu0 0.0
    %6170 = vmatpush1.msra.mxu0 %v6165
    %6171 = vmatprep.subr.mxu0 0.0
    %6172 = vmatpush1.msra.mxu0 0.0
    %6173 = vmatprep.subr.mxu0 0.0
    %6174 = vmatpush1.msra.mxu0 0.0
    %6175 = vmatprep.subr.mxu0 0.0
    %6176 = vmatpush1.msra.mxu0 0.0
    %6177 = vmatprep.subr.mxu0 0.0
    %6178 = vmatpush1.msra.mxu0 0.0
    %6179 = vmatprep.subr.mxu0 0.0
    %6180 = vmatpush1.msra.mxu0 0.0
    %6181 = vmatprep.subr.mxu0 0.0
    %6182 = vmatpush1.msra.mxu0 0.0
    %6183 = vmatprep.subr.mxu0 0.0
    %6184 = vmatpush1.msra.mxu0 0.0
    %6185 = vmatprep.subr.mxu0 0.0
    %6186 = vmatpush1.msra.mxu0 0.0
    %6187 = vmatprep.subr.mxu0 0.0
    %6188 = vmatpush1.msra.mxu0 0.0
    %6189 = vmatprep.subr.mxu0 0.0
    %6190 = vmatpush1.msra.mxu0 0.0
    %6191 = vmatprep.subr.mxu0 0.0
    %6192 = vmatpush1.msra.mxu0 0.0
    %6193 = vmatprep.subr.mxu0 0.0
    %6194 = vmatpush1.msra.mxu0 0.0
    %6195 = vmatprep.subr.mxu0 0.0
    %6196 = vmatpush1.msra.mxu0 0.0
    %6197 = vmatprep.subr.mxu0 0.0
    %6198 = vmatpush1.msra.mxu0 0.0
    %6199 = vmatprep.subr.mxu0 0.0
    %6200 = vmatpush1.msra.mxu0 0.0
    %6201 = vmatprep.subr.mxu0 0.0
    %6202 = vmatpush1.msra.mxu0 0.0
    %6203 = vmatprep.subr.mxu0 0.0
    %6204 = vmatpush1.msra.mxu0 0.0
    %6205 = vmatprep.subr.mxu0 0.0
    %6206 = vmatpush1.msra.mxu0 0.0
    %6207 = vmatprep.subr.mxu0 0.0
    %6208 = vmatpush1.msra.mxu0 0.0
    %6209 = vmatprep.subr.mxu0 0.0
    %6210 = vmatpush1.msra.mxu0 0.0
    %6211 = vmatprep.subr.mxu0 0.0
    %6212 = vmatpush1.msra.mxu0 0.0
    %6213 = vmatprep.subr.mxu0 0.0
    %6214 = vmatpush1.msra.mxu0 0.0
    %6215 = vmatprep.subr.mxu0 0.0
    %6216 = vmatpush1.msra.mxu0 0.0
    %6217 = vmatprep.subr.mxu0 0.0
    %6218 = vmatpush1.msra.mxu0 0.0
    %6219 = vmatprep.subr.mxu0 0.0
    %6220 = vmatpush1.msra.mxu0 0.0
    %6221 = vmatprep.subr.mxu0 0.0
    %6222 = vmatpush1.msra.mxu0 0.0
    %6223 = vmatprep.subr.mxu0 0.0
    %6224 = vmatpush1.msra.mxu0 0.0
    %6225 = vmatprep.subr.mxu0 0.0
    %6226 = vmatpush1.msra.mxu0 0.0
    %6227 = vmatprep.subr.mxu0 0.0
    %6228 = vmatpush1.msra.mxu0 0.0
    %6229 = vmatprep.subr.mxu0 0.0
    %6230 = vmatpush1.msra.mxu0 0.0
    %6231 = vmatprep.mubr.f32.mxu0 0.0
    %6232 = vmatmul.mubr.f32.gmra.mrb[0].mxu0 %v6161
    %v6233 = vpop.f32.mrb[0].mxu0
    %v6234 = vadd.f32 0.0, %v6233
    %v6235 = vpop.f32.mrb[0].mxu0
    %6236 = vmatprep.mubr.f32.mxu0 0.0
    %6237 = vmatmul.mubr.f32.gmra.mrb[0].mxu0 %v6163
    %v6238 = vpop.f32.mrb[0].mxu0
    %v6239 = vadd.f32 0.0, %v6238
    %v6240 = vpop.f32.mrb[0].mxu0
    %6241 = vdwg.mxu0
    %v6242 = vsel %vm994, %v6059, 0
    %v6244 = vsel %vm994, %v6060, 0
    %v6246 = vsel %vm1048, %v6027, 0
    %6248 = vmatprep.subr.mxu0 0.0
    %6249 = vmatpush1.msra.mxu0 %v6246
    %6250 = vmatprep.subr.mxu0 0.0
    %6251 = vmatpush1.msra.mxu0 0.0
    %6252 = vmatprep.subr.mxu0 0.0
    %6253 = vmatpush1.msra.mxu0 0.0
    %6254 = vmatprep.subr.mxu0 0.0
    %6255 = vmatpush1.msra.mxu0 0.0
    %6256 = vmatprep.subr.mxu0 0.0
    %6257 = vmatpush1.msra.mxu0 0.0
    %6258 = vmatprep.subr.mxu0 0.0
    %6259 = vmatpush1.msra.mxu0 0.0
    %6260 = vmatprep.subr.mxu0 0.0
    %6261 = vmatpush1.msra.mxu0 0.0
    %6262 = vmatprep.subr.mxu0 0.0
    %6263 = vmatpush1.msra.mxu0 0.0
    %6264 = vmatprep.subr.mxu0 0.0
    %6265 = vmatpush1.msra.mxu0 0.0
    %6266 = vmatprep.subr.mxu0 0.0
    %6267 = vmatpush1.msra.mxu0 0.0
    %6268 = vmatprep.subr.mxu0 0.0
    %6269 = vmatpush1.msra.mxu0 0.0
    %6270 = vmatprep.subr.mxu0 0.0
    %6271 = vmatpush1.msra.mxu0 0.0
    %6272 = vmatprep.subr.mxu0 0.0
    %6273 = vmatpush1.msra.mxu0 0.0
    %6274 = vmatprep.subr.mxu0 0.0
    %6275 = vmatpush1.msra.mxu0 0.0
    %6276 = vmatprep.subr.mxu0 0.0
    %6277 = vmatpush1.msra.mxu0 0.0
    %6278 = vmatprep.subr.mxu0 0.0
    %6279 = vmatpush1.msra.mxu0 0.0
    %6280 = vmatprep.subr.mxu0 0.0
    %6281 = vmatpush1.msra.mxu0 0.0
    %6282 = vmatprep.subr.mxu0 0.0
    %6283 = vmatpush1.msra.mxu0 0.0
    %6284 = vmatprep.subr.mxu0 0.0
    %6285 = vmatpush1.msra.mxu0 0.0
    %6286 = vmatprep.subr.mxu0 0.0
    %6287 = vmatpush1.msra.mxu0 0.0
    %6288 = vmatprep.subr.mxu0 0.0
    %6289 = vmatpush1.msra.mxu0 0.0
    %6290 = vmatprep.subr.mxu0 0.0
    %6291 = vmatpush1.msra.mxu0 0.0
    %6292 = vmatprep.subr.mxu0 0.0
    %6293 = vmatpush1.msra.mxu0 0.0
    %6294 = vmatprep.subr.mxu0 0.0
    %6295 = vmatpush1.msra.mxu0 0.0
    %6296 = vmatprep.subr.mxu0 0.0
    %6297 = vmatpush1.msra.mxu0 0.0
    %6298 = vmatprep.subr.mxu0 0.0
    %6299 = vmatpush1.msra.mxu0 0.0
    %6300 = vmatprep.subr.mxu0 0.0
    %6301 = vmatpush1.msra.mxu0 0.0
    %6302 = vmatprep.subr.mxu0 0.0
    %6303 = vmatpush1.msra.mxu0 0.0
    %6304 = vmatprep.subr.mxu0 0.0
    %6305 = vmatpush1.msra.mxu0 0.0
    %6306 = vmatprep.subr.mxu0 0.0
    %6307 = vmatpush1.msra.mxu0 0.0
    %6308 = vmatprep.subr.mxu0 0.0
    %6309 = vmatpush1.msra.mxu0 0.0
    %6310 = vmatprep.subr.mxu0 0.0
    %6311 = vmatpush1.msra.mxu0 0.0
    %6312 = vmatprep.mubr.f32.mxu0 0.0
    %6313 = vmatmul.mubr.f32.gmra.mrb[0].mxu0 %v6242
    %v6314 = vpop.f32.mrb[0].mxu0
    %v6315 = vadd.f32 %v6145, %v6314
    %v6316 = vpop.f32.mrb[0].mxu0
    %6317 = vmatprep.mubr.f32.mxu0 0.0
    %6318 = vmatmul.mubr.f32.gmra.mrb[0].mxu0 %v6244
    %v6319 = vpop.f32.mrb[0].mxu0
    %v6320 = vadd.f32 %v6150, %v6319
    %v6321 = vpop.f32.mrb[0].mxu0
    %6322 = vdwg.mxu0
    %v6323 = vsel %vm994, %v6061, 0
    %v6325 = vsel %vm994, %v6062, 0
    %v6327 = vsel %vm1048, %v6031, 0
    %6329 = vmatprep.subr.mxu0 0.0
    %6330 = vmatpush1.msra.mxu0 %v6327
    %6331 = vmatprep.subr.mxu0 0.0
    %6332 = vmatpush1.msra.mxu0 0.0
    %6333 = vmatprep.subr.mxu0 0.0
    %6334 = vmatpush1.msra.mxu0 0.0
    %6335 = vmatprep.subr.mxu0 0.0
    %6336 = vmatpush1.msra.mxu0 0.0
    %6337 = vmatprep.subr.mxu0 0.0
    %6338 = vmatpush1.msra.mxu0 0.0
    %6339 = vmatprep.subr.mxu0 0.0
    %6340 = vmatpush1.msra.mxu0 0.0
    %6341 = vmatprep.subr.mxu0 0.0
    %6342 = vmatpush1.msra.mxu0 0.0
    %6343 = vmatprep.subr.mxu0 0.0
    %6344 = vmatpush1.msra.mxu0 0.0
    %6345 = vmatprep.subr.mxu0 0.0
    %6346 = vmatpush1.msra.mxu0 0.0
    %6347 = vmatprep.subr.mxu0 0.0
    %6348 = vmatpush1.msra.mxu0 0.0
    %6349 = vmatprep.subr.mxu0 0.0
    %6350 = vmatpush1.msra.mxu0 0.0
    %6351 = vmatprep.subr.mxu0 0.0
    %6352 = vmatpush1.msra.mxu0 0.0
    %6353 = vmatprep.subr.mxu0 0.0
    %6354 = vmatpush1.msra.mxu0 0.0
    %6355 = vmatprep.subr.mxu0 0.0
    %6356 = vmatpush1.msra.mxu0 0.0
    %6357 = vmatprep.subr.mxu0 0.0
    %6358 = vmatpush1.msra.mxu0 0.0
    %6359 = vmatprep.subr.mxu0 0.0
    %6360 = vmatpush1.msra.mxu0 0.0
    %6361 = vmatprep.subr.mxu0 0.0
    %6362 = vmatpush1.msra.mxu0 0.0
    %6363 = vmatprep.subr.mxu0 0.0
    %6364 = vmatpush1.msra.mxu0 0.0
    %6365 = vmatprep.subr.mxu0 0.0
    %6366 = vmatpush1.msra.mxu0 0.0
    %6367 = vmatprep.subr.mxu0 0.0
    %6368 = vmatpush1.msra.mxu0 0.0
    %6369 = vmatprep.subr.mxu0 0.0
    %6370 = vmatpush1.msra.mxu0 0.0
    %6371 = vmatprep.subr.mxu0 0.0
    %6372 = vmatpush1.msra.mxu0 0.0
    %6373 = vmatprep.subr.mxu0 0.0
    %6374 = vmatpush1.msra.mxu0 0.0
    %6375 = vmatprep.subr.mxu0 0.0
    %6376 = vmatpush1.msra.mxu0 0.0
    %6377 = vmatprep.subr.mxu0 0.0
    %6378 = vmatpush1.msra.mxu0 0.0
    %6379 = vmatprep.subr.mxu0 0.0
    %6380 = vmatpush1.msra.mxu0 0.0
    %6381 = vmatprep.subr.mxu0 0.0
    %6382 = vmatpush1.msra.mxu0 0.0
    %6383 = vmatprep.subr.mxu0 0.0
    %6384 = vmatpush1.msra.mxu0 0.0
    %6385 = vmatprep.subr.mxu0 0.0
    %6386 = vmatpush1.msra.mxu0 0.0
    %6387 = vmatprep.subr.mxu0 0.0
    %6388 = vmatpush1.msra.mxu0 0.0
    %6389 = vmatprep.subr.mxu0 0.0
    %6390 = vmatpush1.msra.mxu0 0.0
    %6391 = vmatprep.subr.mxu0 0.0
    %6392 = vmatpush1.msra.mxu0 0.0
    %6393 = vmatprep.mubr.f32.mxu0 0.0
    %6394 = vmatmul.mubr.f32.gmra.mrb[0].mxu0 %v6323
    %v6395 = vpop.f32.mrb[0].mxu0
    %v6396 = vadd.f32 %v6234, %v6395
    %v6397 = vpop.f32.mrb[0].mxu0
    %6398 = vmatprep.mubr.f32.mxu0 0.0
    %6399 = vmatmul.mubr.f32.gmra.mrb[0].mxu0 %v6325
    %v6400 = vpop.f32.mrb[0].mxu0
    %v6401 = vadd.f32 %v6239, %v6400
    %v6402 = vpop.f32.mrb[0].mxu0
    %6403 = vdwg.mxu0
    %vm6404 = vcmask 392192
    %6405 = vst.msk [vmem:[#allocation2] sm:$0xff] %vm6404, %v6315
    %6406 = vst.msk [vmem:[#allocation2 + $0x8] sm:$0xff] %vm6404, %v6320
    %6407 = vst.msk [vmem:[#allocation2 + $0x10] sm:$0xff] %vm6404, %v6396
    %6408 = vst.msk [vmem:[#allocation2 + $0x18] sm:$0xff] %vm6404, %v6401
    // Predicated region
    $region102: #{_lambda_.1} parent=1 // pred_check
      _
    $region103: #{_lambda_.1} parent=1 // pred_check_branch
      %6410 = sbr.rel (0) target = $region105
    $region104: #{_lambda_.1} parent=1 // pred_region
      %s6412 = ssub.s32 512, 512
      %6413 = vsyncadd [#allocation3], %s6412
      %s6414 = sshll.u32 [#allocation2], 4
      %s6415 = int_to_ptr.vmem [resolvable:$true] %s6414
      %6420 = dma.vmem_to_hbm [thread:$0]  %s6415, 512, %s25, [#allocation3], 128, 128, 8
    $region105: #{_lambda_.1} parent=1 // pred_fallthru
      _
    // Predicated region
    $region106: #{_lambda_.1} parent=1 // pred_check
      _
    $region107: #{_lambda_.1} parent=1 // pred_check_branch
      %6422 = sbr.rel (0) target = $region109
    $region108: #{_lambda_.1} parent=1 // pred_region
      %6423 = dma.done [#allocation3], 512
    $region109: #{_lambda_.1} parent=1 // pred_fallthru
      _
    %6424 = vsyncpa [#allocation3], 1

</llo_original>
